<compile_context>
chip_gen: v7x
topology: tpu7x:2x2x1
jax: 0.10.0
libtpu: 0.0.40
codegen_flags: <defaults>
</compile_context>

<pallas_src>
import functools

import jax
import jax.numpy as jnp
from jax.experimental import pallas as pl
from jax.experimental.pallas import tpu as pltpu

BN_EPS = 1e-5
_PREC = jax.lax.Precision.HIGHEST   # used only by the pure-JAX reference


# ---------------------------------------------------------------------------
# Kernel bodies
# ---------------------------------------------------------------------------
def _stats8(acc):
    """Pack per-channel sum / sum-of-squares of a (rows, C) f32 slab into a
    (1, 8, C) block (row 0 = sum, row 1 = sumsq, rest zero).  Every grid tile
    writes its own sublane-aligned stats block, so the tile axis stays
    'parallel' and the reduction over tiles finishes outside the kernel."""
    c = acc.shape[1]
    s = jnp.broadcast_to(jnp.sum(acc, axis=0, keepdims=True), (8, c))
    ss = jnp.broadcast_to(jnp.sum(acc * acc, axis=0, keepdims=True), (8, c))
    r = jax.lax.broadcasted_iota(jnp.int32, (8, c), 0)
    zero = jnp.zeros((8, c), jnp.float32)
    return jnp.where(r == 0, s, jnp.where(r == 1, ss, zero))[None]


def _conv1x1_stats_kernel(x_ref, w_ref, o_ref, st_ref):
    """conv1: 1x1 conv == channel matmul on a (row_tile, Cin) slab.
    bf16 MXU operands, f32 accumulation; bf16 activation store; BN1 stats."""
    acc = jnp.dot(x_ref[...].astype(jnp.bfloat16), w_ref[...],
                  preferred_element_type=jnp.float32)
    o_ref[...] = acc.astype(o_ref.dtype)
    st_ref[...] = _stats8(acc)


def _bn_relu_conv1x1_stats_kernel(x_ref, sc_ref, bi_ref, w_ref, o_ref, st_ref):
    """Fused: folded BN (x*scale+bias) + ReLU of the previous conv output,
    then the next 1x1 conv, plus BN partial stats of the new output."""
    a = jnp.maximum(x_ref[...].astype(jnp.float32) * sc_ref[...] + bi_ref[...],
                    0.0)
    acc = jnp.dot(a.astype(jnp.bfloat16), w_ref[...],
                  preferred_element_type=jnp.float32)
    o_ref[...] = acc.astype(o_ref.dtype)
    st_ref[...] = _stats8(acc)


def _bn_relu_dconv3x3_stats_kernel(h, w, p, d,
                                   x_ref, sc_ref, bi_ref, w_ref,
                                   o_ref, st_ref, pad_ref):
    """Fused: BN1 + ReLU, dilated 3x3 'SAME' conv as nine accumulating matmuls
    over shifted windows of a row-flattened, vertically zero-padded bf16
    scratch, BN2 partial stats.  One grid step == one image."""
    hw = h * w
    front = d * w + 8                     # sublane-aligned interior offset
    total = pad_ref.shape[0]

    a = jnp.maximum(x_ref[...].astype(jnp.float32) * sc_ref[...] + bi_ref[...],
                    0.0)

    # Vertical zero-padding regions; interior (the activation) in between.
    pad_ref[0:front, :] = jnp.zeros((front, p), jnp.bfloat16)
    pad_ref[front + hw:total, :] = jnp.zeros((total - front - hw, p),
                                             jnp.bfloat16)
    pad_ref[front:front + hw, :] = a.astype(jnp.bfloat16)

    # Horizontal validity masks: without them the kx=0 / kx=2 shifted windows
    # would read wrapped-around pixels from the neighbouring image row.
    r = jax.lax.broadcasted_iota(jnp.int32, (hw, p), 0)
    if (w & (w - 1)) == 0:
        jcol = jnp.bitwise_and(r, w - 1)
    else:
        jcol = jax.lax.rem(r, jnp.int32(w))
    left_ok = jcol >= d            # kx == 0 term valid
    right_ok = jcol < (w - d)      # kx == 2 term valid

    acc = None
    for ky in range(3):
        for kx in range(3):
            start = front + (ky - 1) * d * w + (kx - 1) * d     # static int
            win = pad_ref[start:start + hw, :]
            contrib = jnp.dot(win, w_ref[ky * 3 + kx],
                              preferred_element_type=jnp.float32)
            if kx == 0:
                contrib = jnp.where(left_ok, contrib, 0.0)
            elif kx == 2:
                contrib = jnp.where(right_ok, contrib, 0.0)
            acc = contrib if acc is None else acc + contrib

    o_ref[...] = acc.astype(o_ref.dtype)
    st_ref[...] = _stats8(acc)


def _bn_residual_relu_kernel(x_ref, res_ref, sc_ref, bi_ref, o_ref):
    """Fused epilogue: folded BN3 + residual add + final ReLU (f32 output)."""
    o_ref[...] = jnp.maximum(
        x_ref[...].astype(jnp.float32) * sc_ref[...] + bi_ref[...]
        + res_ref[...], 0.0)


# ---------------------------------------------------------------------------
# Host-side helpers
# ---------------------------------------------------------------------------
def _finalize_bn(stats, gamma, beta, count):
    """Reduce per-tile (sum, sumsq) partials and fold BatchNorm (training mode,
    biased variance) into a single per-channel scale/bias FMA."""
    tot = jnp.sum(stats, axis=0)                          # (8, C)
    mu = tot[0] / count
    var = jnp.maximum(tot[1] / count - mu * mu, 0.0)      # biased variance
    scale = gamma.astype(jnp.float32) * jax.lax.rsqrt(var + BN_EPS)
    bias = beta.astype(jnp.float32) - mu * scale
    return scale.reshape(1, -1), bias.reshape(1, -1)


def _pick_row_tile(rows, bytes_per_row, budget=24 << 20):
    """Largest tile (<=1024) that divides rows and whose double-buffered
    footprint fits the budget.  rows is a multiple of 8, so 8 always divides
    (never falls back to a whole-array tile)."""
    for cand in (1024, 512, 256, 128, 64, 32, 16, 8):
        if rows % cand == 0 and 2 * cand * bytes_per_row <= budget:
            return cand
    return 8


def _cparams(est_bytes):
    """Parallel grid semantics + a VMEM limit sized from the estimated tile
    footprint, clamped to 3/4 of the chip's physical VMEM (v7x: 64 MiB)."""
    try:
        cap = int(getattr(pltpu.get_tpu_info(), "vmem_capacity_bytes",
                          64 << 20))
    except Exception:
        cap = 64 << 20
    hi = max((cap * 3) // 4, 32 << 20)
    limit = int(min(max(2 * int(est_bytes), 16 << 20), hi))
    return pltpu.CompilerParams(dimension_semantics=("parallel",),
                                vmem_limit_bytes=limit)


# ---------------------------------------------------------------------------
# Forward pass
# ---------------------------------------------------------------------------
def bottleneck_forward_nhwc(x_nhwc, params, *, planes, dilation):
    """NHWC-native forward (preferred entry point: no layout transposes)."""
    w1_pt, w2_pt, w3_pt, g1, b1, g2, b2, g3, b3 = params
    n, h, w, cin = x_nhwc.shape
    cout = 4 * planes
    d = dilation
    assert cin == cout, "downsample=None requires inplanes == planes*4"
    hw = h * w
    rows = n * hw
    assert hw % 8 == 0, "H*W must be a multiple of 8 for sublane tiling"
    assert h > d and w > 2 * d, "feature map must exceed the dilated halo"

    x2d = x_nhwc.reshape(rows, cin).astype(jnp.float32)

    # PyTorch OIHW conv weights -> matmul-friendly bf16 MXU operands.
    w1 = jnp.transpose(w1_pt[:, :, 0, 0], (1, 0)).astype(jnp.bfloat16)  # (Cin,P)
    w2k = jnp.transpose(w2_pt, (2, 3, 1, 0)).reshape(9, planes, planes)
    w2k = w2k.astype(jnp.bfloat16)                                       # (9,P,P)
    w3 = jnp.transpose(w3_pt[:, :, 0, 0], (1, 0)).astype(jnp.bfloat16)   # (P,4P)

    # ---- pass 1: conv1 (1x1) + BN1 partial stats, row-tiled -----------------
    tr1 = _pick_row_tile(rows, cin * 4 + planes * 2)
    nt1 = rows // tr1
    o1, st1 = pl.pallas_call(
        _conv1x1_stats_kernel,
        grid=(nt1,),
        in_specs=[pl.BlockSpec((tr1, cin), lambda i: (i, 0)),
                  pl.BlockSpec((cin, planes), lambda i: (0, 0))],
        out_specs=(pl.BlockSpec((tr1, planes), lambda i: (i, 0)),
                   pl.BlockSpec((1, 8, planes), lambda i: (i, 0, 0))),
        out_shape=(jax.ShapeDtypeStruct((rows, planes), jnp.bfloat16),
                   jax.ShapeDtypeStruct((nt1, 8, planes), jnp.float32)),
        compiler_params=_cparams(2 * tr1 * (cin * 4 + planes * 2)),
        cost_estimate=pl.CostEstimate(flops=2 * rows * cin * planes,
                                      transcendentals=0,
                                      bytes_accessed=rows * (cin * 4 + planes * 2)),
    )(x2d, w1)
    sc1, bi1 = _finalize_bn(st1, g1, b1, rows)

    # ---- pass 2: BN1+ReLU fused with dilated 3x3 conv, per image ------------
    pad_rows = hw + 2 * d * w + 16
    est2 = (4 * hw * planes * 2 + pad_rows * planes * 2
            + 9 * planes * planes * 2 + 4 * hw * planes * 4)
    o2, st2 = pl.pallas_call(
        functools.partial(_bn_relu_dconv3x3_stats_kernel, h, w, planes, d),
        grid=(n,),
        in_specs=[pl.BlockSpec((hw, planes), lambda b: (b, 0)),
                  pl.BlockSpec((1, planes), lambda b: (0, 0)),
                  pl.BlockSpec((1, planes), lambda b: (0, 0)),
                  pl.BlockSpec((9, planes, planes), lambda b: (0, 0, 0))],
        out_specs=(pl.BlockSpec((hw, planes), lambda b: (b, 0)),
                   pl.BlockSpec((1, 8, planes), lambda b: (b, 0, 0))),
        out_shape=(jax.ShapeDtypeStruct((rows, planes), jnp.bfloat16),
                   jax.ShapeDtypeStruct((n, 8, planes), jnp.float32)),
        scratch_shapes=[pltpu.VMEM((pad_rows, planes), jnp.bfloat16)],
        compiler_params=_cparams(est2),
        cost_estimate=pl.CostEstimate(flops=2 * rows * 9 * planes * planes,
                                      transcendentals=0,
                                      bytes_accessed=rows * planes * 4),
    )(o1, sc1, bi1, w2k)
    sc2, bi2 = _finalize_bn(st2, g2, b2, rows)

    # ---- pass 3: BN2+ReLU fused with conv3 (1x1) + BN3 stats, row-tiled -----
    tr3 = _pick_row_tile(rows, planes * 2 + cout * 2)
    nt3 = rows // tr3
    o3, st3 = pl.pallas_call(
        _bn_relu_conv1x1_stats_kernel,
        grid=(nt3,),
        in_specs=[pl.BlockSpec((tr3, planes), lambda i: (i, 0)),
                  pl.BlockSpec((1, planes), lambda i: (0, 0)),
                  pl.BlockSpec((1, planes), lambda i: (0, 0)),
                  pl.BlockSpec((planes, cout), lambda i: (0, 0))],
        out_specs=(pl.BlockSpec((tr3, cout), lambda i: (i, 0)),
                   pl.BlockSpec((1, 8, cout), lambda i: (i, 0, 0))),
        out_shape=(jax.ShapeDtypeStruct((rows, cout), jnp.bfloat16),
                   jax.ShapeDtypeStruct((nt3, 8, cout), jnp.float32)),
        compiler_params=_cparams(2 * tr3 * (planes * 2 + cout * 2)),
        cost_estimate=pl.CostEstimate(flops=2 * rows * planes * cout,
                                      transcendentals=0,
                                      bytes_accessed=rows * (planes * 2 + cout * 2)),
    )(o2, sc2, bi2, w3)
    sc3, bi3 = _finalize_bn(st3, g3, b3, rows)

    # ---- pass 4: BN3 + residual add + ReLU, row-tiled, f32 output -----------
    tr4 = _pick_row_tile(rows, cout * (2 + 4 + 4))
    nt4 = rows // tr4
    out2d = pl.pallas_call(
        _bn_residual_relu_kernel,
        grid=(nt4,),
        in_specs=[pl.BlockSpec((tr4, cout), lambda i: (i, 0)),
                  pl.BlockSpec((tr4, cout), lambda i: (i, 0)),
                  pl.BlockSpec((1, cout), lambda i: (0, 0)),
                  pl.BlockSpec((1, cout), lambda i: (0, 0))],
        out_specs=pl.BlockSpec((tr4, cout), lambda i: (i, 0)),
        out_shape=jax.ShapeDtypeStruct((rows, cout), jnp.float32),
        compiler_params=_cparams(2 * tr4 * cout * (2 + 4 + 4)),
        cost_estimate=pl.CostEstimate(flops=3 * rows * cout,
                                      transcendentals=0,
                                      bytes_accessed=rows * cout * 10),
    )(o3, x2d, sc3, bi3)

    return out2d.reshape(n, h, w, cout)


def bottleneck_forward(x_nchw, params, *, planes, dilation):
    """PyTorch-compatible NCHW boundary.  In a full NHWC network use
    bottleneck_forward_nhwc directly and skip these two transposes."""
    x_nhwc = jnp.transpose(x_nchw, (0, 2, 3, 1))
    out = bottleneck_forward_nhwc(x_nhwc, params, planes=planes,
                                  dilation=dilation)
    return jnp.transpose(out, (0, 3, 1, 2))


# ---------------------------------------------------------------------------
# Pure-JAX reference (f32, HIGHEST precision) — ground truth for the check
# ---------------------------------------------------------------------------
def bottleneck_reference(x, params, *, dilation):
    w1, w2, w3, g1, b1, g2, b2, g3, b3 = params

    def conv(x, wgt, dil, pad):
        return jax.lax.conv_general_dilated(
            x, wgt, window_strides=(1, 1),
            padding=[(pad, pad), (pad, pad)], rhs_dilation=(dil, dil),
            dimension_numbers=("NCHW", "OIHW", "NCHW"), precision=_PREC)

    def bn(x, g, b):
        mu = x.mean(axis=(0, 2, 3), keepdims=True)
        var = ((x - mu) ** 2).mean(axis=(0, 2, 3), keepdims=True)
        return ((x - mu) / jnp.sqrt(var + BN_EPS)
                * g.reshape(1, -1, 1, 1) + b.reshape(1, -1, 1, 1))

    out = jax.nn.relu(bn(conv(x, w1, 1, 0), g1, b1))
    out = jax.nn.relu(bn(conv(out, w2, dilation, dilation), g2, b2))
    out = bn(conv(out, w3, 1, 0), g3, b3)
    return jax.nn.relu(out + x)


if __name__ == "__main__":
    N, INPLANES, H, W = 2, 16, 16, 16
    PLANES = 4            # planes * 4 == inplanes -> residual add is valid
    BLOCK_NO = 3          # < 5  ->  dilation = 2, padding = 2
    DILATION = 2 if BLOCK_NO < 5 else 4

    key = jax.random.PRNGKey(0)
    ks = jax.random.split(key, 10)
    x = jax.random.normal(ks[0], (N, INPLANES, H, W), jnp.float32)
    w1 = 0.2 * jax.random.normal(ks[1], (PLANES, INPLANES, 1, 1), jnp.float32)
    w2 = 0.2 * jax.random.normal(ks[2], (PLANES, PLANES, 3, 3), jnp.float32)
    w3 = 0.2 * jax.random.normal(ks[3], (4 * PLANES, PLANES, 1, 1), jnp.float32)
    g1 = 1.0 + 0.1 * jax.random.normal(ks[4], (PLANES,), jnp.float32)
    b1 = 0.1 * jax.random.normal(ks[5], (PLANES,), jnp.float32)
    g2 = 1.0 + 0.1 * jax.random.normal(ks[6], (PLANES,), jnp.float32)
    b2 = 0.1 * jax.random.normal(ks[7], (PLANES,), jnp.float32)
    g3 = 1.0 + 0.1 * jax.random.normal(ks[8], (4 * PLANES,), jnp.float32)
    b3 = 0.1 * jax.random.normal(ks[9], (4 * PLANES,), jnp.float32)
    params = (w1, w2, w3, g1, b1, g2, b2, g3, b3)

    fwd = jax.jit(functools.partial(bottleneck_forward,
                                    planes=PLANES, dilation=DILATION))
    out = jax.block_until_ready(fwd(x, params))

    ref = bottleneck_reference(x, params, dilation=DILATION)
    assert out.shape == (N, 4 * PLANES, H, W), out.shape
    max_err = float(jnp.max(jnp.abs(out - ref)))
    # bf16 MXU operands + bf16 inter-pass activations (f32 accumulation, BN
    # stats and residual) vs the f32 HIGHEST-precision reference -> relaxed
    # tolerance.
    assert jnp.allclose(out, ref, atol=7.5e-2, rtol=5e-2), f"max_err={max_err}"
    print("KERNEL_OK")
</pallas_src>

<mosaic_0001>
module attributes {stable_mosaic.version = 11 : i64} {
  func.func @_conv1x1_stats_kernel(%arg0: i32, %arg1: memref<512x16xf32, #tpu.memory_space<vmem>>, %arg2: memref<16x4xbf16, #tpu.memory_space<vmem>>, %arg3: memref<512x4xbf16, #tpu.memory_space<vmem>>, %arg4: memref<1x8x4xf32, #tpu.memory_space<vmem>>) attributes {dimension_semantics = [#tpu.dimension_semantics<parallel>], iteration_bounds = array<i64: 1>, scalar_prefetch = 0 : i64, scratch_operands = 0 : i64, tpu.core_type = #tpu.core_type<tc>, window_params = [{transform_indices = @transform_0, window_bounds = array<i64: 512, 16>}, {pipeline_mode = #tpu.pipeline_mode<synchronous>, transform_indices = @transform_1, window_bounds = array<i64: 16, 4>}, {transform_indices = @transform_2, window_bounds = array<i64: 512, 4>}, {transform_indices = @transform_3, window_bounds = array<i64: 1, 8, 4>}]} {
    %c0 = arith.constant 0 : index
    %c0_0 = arith.constant 0 : index
    %0 = vector.load %arg1[%c0, %c0_0] : memref<512x16xf32, #tpu.memory_space<vmem>>, vector<512x16xf32>
    %1 = arith.truncf %0 : vector<512x16xf32> to vector<512x16xbf16>
    %c0_1 = arith.constant 0 : index
    %c0_2 = arith.constant 0 : index
    %2 = vector.load %arg2[%c0_1, %c0_2] : memref<16x4xbf16, #tpu.memory_space<vmem>>, vector<16x4xbf16>
    %cst = arith.constant dense<0.000000e+00> : vector<512x4xf32>
    %3 = tpu.matmul %1, %2, %cst {dimension_numbers = #tpu.dot_dimension_numbers<[1], [0], [0], [1], [0, 0, 1, 1], [], []>} : vector<512x16xbf16>, vector<16x4xbf16>, vector<512x4xf32> -> vector<512x4xf32>
    %4 = arith.truncf %3 : vector<512x4xf32> to vector<512x4xbf16>
    %c0_3 = arith.constant 0 : index
    %c0_4 = arith.constant 0 : index
    %5 = vector.load %arg3[%c0_3, %c0_4] : memref<512x4xbf16, #tpu.memory_space<vmem>>, vector<512x4xbf16>
    tpu.vector_store %arg3[%c0_3, %c0_4], %4 {strides = array<i32>} : memref<512x4xbf16, #tpu.memory_space<vmem>>, vector<512x4xbf16>,
    %cst_5 = arith.constant dense<0.000000e+00> : vector<4xf32>
    %6 = vector.multi_reduction <add>, %3, %cst_5 [0] : vector<512x4xf32> to vector<4xf32>
    %7 = vector.shape_cast %6 : vector<4xf32> to vector<1x4xf32>
    %8 = vector.shape_cast %7 : vector<1x4xf32> to vector<1x4xf32>
    %9 = vector.broadcast %8 : vector<1x4xf32> to vector<8x4xf32>
    %10 = arith.mulf %3, %3 : vector<512x4xf32>
    %cst_6 = arith.constant dense<0.000000e+00> : vector<4xf32>
    %11 = vector.multi_reduction <add>, %10, %cst_6 [0] : vector<512x4xf32> to vector<4xf32>
    %12 = vector.shape_cast %11 : vector<4xf32> to vector<1x4xf32>
    %13 = vector.shape_cast %12 : vector<1x4xf32> to vector<1x4xf32>
    %14 = vector.broadcast %13 : vector<1x4xf32> to vector<8x4xf32>
    %15 = tpu.iota {dimensions = array<i32: 0>} : vector<8x4xi32>
    %cst_7 = arith.constant 0.000000e+00 : f32
    %16 = vector.broadcast %cst_7 : f32 to vector<8x4xf32>
    %c0_i32 = arith.constant 0 : i32
    %17 = vector.broadcast %c0_i32 : i32 to vector<8x4xi32>
    %18 = arith.cmpi eq, %15, %17 : vector<8x4xi32>
    %c1_i32 = arith.constant 1 : i32
    %19 = vector.broadcast %c1_i32 : i32 to vector<8x4xi32>
    %20 = arith.cmpi eq, %15, %19 : vector<8x4xi32>
    %21 = arith.select %20, %14, %16 : vector<8x4xi1>, vector<8x4xf32>
    %22 = arith.select %18, %9, %21 : vector<8x4xi1>, vector<8x4xf32>
    %23 = vector.shape_cast %22 : vector<8x4xf32> to vector<1x8x4xf32>
    %c0_8 = arith.constant 0 : index
    %c0_9 = arith.constant 0 : index
    %c0_10 = arith.constant 0 : index
    %24 = vector.load %arg4[%c0_8, %c0_9, %c0_10] : memref<1x8x4xf32, #tpu.memory_space<vmem>>, vector<1x8x4xf32>
    tpu.vector_store %arg4[%c0_8, %c0_9, %c0_10], %23 {strides = array<i32>} : memref<1x8x4xf32, #tpu.memory_space<vmem>>, vector<1x8x4xf32>,
    return
  }
  func.func @transform_0(%arg0: i32) -> (i32, i32) {
    %c0_i32 = arith.constant 0 : i32
    %c0_i32_0 = arith.constant 0 : i32
    return %arg0, %c0_i32 : i32, i32
  }
  func.func @transform_1(%arg0: i32) -> (i32, i32) {
    %c0_i32 = arith.constant 0 : i32
    %c0_i32_0 = arith.constant 0 : i32
    %c0_i32_1 = arith.constant 0 : i32
    return %c0_i32, %c0_i32_0 : i32, i32
  }
  func.func @transform_2(%arg0: i32) -> (i32, i32) {
    %c0_i32 = arith.constant 0 : i32
    %c0_i32_0 = arith.constant 0 : i32
    return %arg0, %c0_i32 : i32, i32
  }
  func.func @transform_3(%arg0: i32) -> (i32, i32, i32) {
    %c0_i32 = arith.constant 0 : i32
    %c0_i32_0 = arith.constant 0 : i32
    %c0_i32_1 = arith.constant 0 : i32
    return %arg0, %c0_i32, %c0_i32_0 : i32, i32, i32
  }
}

module attributes {stable_mosaic.version = 11 : i64} {
  func.func @_bn_relu_dconv3x3_stats_kernel(%arg0: i32, %arg1: memref<256x4xbf16, #tpu.memory_space<vmem>>, %arg2: memref<1x4xf32, #tpu.memory_space<vmem>>, %arg3: memref<1x4xf32, #tpu.memory_space<vmem>>, %arg4: memref<9x4x4xbf16, #tpu.memory_space<vmem>>, %arg5: memref<256x4xbf16, #tpu.memory_space<vmem>>, %arg6: memref<1x8x4xf32, #tpu.memory_space<vmem>>, %arg7: memref<336x4xbf16, #tpu.memory_space<vmem>>) attributes {dimension_semantics = [#tpu.dimension_semantics<parallel>], iteration_bounds = array<i64: 2>, scalar_prefetch = 0 : i64, scratch_operands = 1 : i64, tpu.core_type = #tpu.core_type<tc>, window_params = [{transform_indices = @transform_0, window_bounds = array<i64: 256, 4>}, {pipeline_mode = #tpu.pipeline_mode<synchronous>, transform_indices = @transform_1, window_bounds = array<i64: 1, 4>}, {pipeline_mode = #tpu.pipeline_mode<synchronous>, transform_indices = @transform_2, window_bounds = array<i64: 1, 4>}, {pipeline_mode = #tpu.pipeline_mode<synchronous>, transform_indices = @transform_3, window_bounds = array<i64: 9, 4, 4>}, {transform_indices = @transform_4, window_bounds = array<i64: 256, 4>}, {transform_indices = @transform_5, window_bounds = array<i64: 1, 8, 4>}]} {
    %c0 = arith.constant 0 : index
    %c0_0 = arith.constant 0 : index
    %0 = vector.load %arg1[%c0, %c0_0] : memref<256x4xbf16, #tpu.memory_space<vmem>>, vector<256x4xbf16>
    %1 = arith.extf %0 : vector<256x4xbf16> to vector<256x4xf32>
    %c0_1 = arith.constant 0 : index
    %c0_2 = arith.constant 0 : index
    %2 = vector.load %arg2[%c0_1, %c0_2] : memref<1x4xf32, #tpu.memory_space<vmem>>, vector<1x4xf32>
    %3 = vector.broadcast %2 : vector<1x4xf32> to vector<256x4xf32>
    %4 = arith.mulf %1, %3 : vector<256x4xf32>
    %c0_3 = arith.constant 0 : index
    %c0_4 = arith.constant 0 : index
    %5 = vector.load %arg3[%c0_3, %c0_4] : memref<1x4xf32, #tpu.memory_space<vmem>>, vector<1x4xf32>
    %6 = vector.broadcast %5 : vector<1x4xf32> to vector<256x4xf32>
    %7 = arith.addf %4, %6 : vector<256x4xf32>
    %cst = arith.constant 0.000000e+00 : f32
    %8 = vector.broadcast %cst : f32 to vector<256x4xf32>
    %9 = arith.maximumf %7, %8 : vector<256x4xf32>
    %cst_5 = arith.constant 0.000000e+00 : bf16
    %10 = vector.broadcast %cst_5 : bf16 to vector<40x4xbf16>
    %c0_6 = arith.constant 0 : index
    %c0_7 = arith.constant 0 : index
    %11 = vector.load %arg7[%c0_6, %c0_7] : memref<336x4xbf16, #tpu.memory_space<vmem>>, vector<40x4xbf16>
    tpu.vector_store %arg7[%c0_6, %c0_7], %10 {strides = array<i32>} : memref<336x4xbf16, #tpu.memory_space<vmem>>, vector<40x4xbf16>,
    %cst_8 = arith.constant 0.000000e+00 : bf16
    %12 = vector.broadcast %cst_8 : bf16 to vector<40x4xbf16>
    %c296 = arith.constant 296 : index
    %c0_9 = arith.constant 0 : index
    %13 = vector.load %arg7[%c296, %c0_9] : memref<336x4xbf16, #tpu.memory_space<vmem>>, vector<40x4xbf16>
    tpu.vector_store %arg7[%c296, %c0_9], %12 {strides = array<i32>} : memref<336x4xbf16, #tpu.memory_space<vmem>>, vector<40x4xbf16>,
    %14 = arith.truncf %9 : vector<256x4xf32> to vector<256x4xbf16>
    %c40 = arith.constant 40 : index
    %c0_10 = arith.constant 0 : index
    %15 = vector.load %arg7[%c40, %c0_10] : memref<336x4xbf16, #tpu.memory_space<vmem>>, vector<256x4xbf16>
    tpu.vector_store %arg7[%c40, %c0_10], %14 {strides = array<i32>} : memref<336x4xbf16, #tpu.memory_space<vmem>>, vector<256x4xbf16>,
    %16 = tpu.iota {dimensions = array<i32: 0>} : vector<256x4xi32>
    %c15_i32 = arith.constant 15 : i32
    %17 = vector.broadcast %c15_i32 : i32 to vector<256x4xi32>
    %18 = arith.andi %16, %17 : vector<256x4xi32>
    %c2_i32 = arith.constant 2 : i32
    %19 = vector.broadcast %c2_i32 : i32 to vector<256x4xi32>
    %20 = arith.cmpi sge, %18, %19 : vector<256x4xi32>
    %c14_i32 = arith.constant 14 : i32
    %21 = vector.broadcast %c14_i32 : i32 to vector<256x4xi32>
    %22 = arith.cmpi slt, %18, %21 : vector<256x4xi32>
    %c6 = arith.constant 6 : index
    %c0_11 = arith.constant 0 : index
    %23 = vector.load %arg7[%c6, %c0_11] : memref<336x4xbf16, #tpu.memory_space<vmem>>, vector<256x4xbf16>
    %c0_12 = arith.constant 0 : index
    %c0_13 = arith.constant 0 : index
    %c0_14 = arith.constant 0 : index
    %24 = vector.load %arg4[%c0_12, %c0_13, %c0_14] : memref<9x4x4xbf16, #tpu.memory_space<vmem>>, vector<1x4x4xbf16>
    %25 = vector.shape_cast %24 : vector<1x4x4xbf16> to vector<4x4xbf16>
    %cst_15 = arith.constant dense<0.000000e+00> : vector<256x4xf32>
    %26 = tpu.matmul %23, %25, %cst_15 {dimension_numbers = #tpu.dot_dimension_numbers<[1], [0], [0], [1], [0, 0, 1, 1], [], []>} : vector<256x4xbf16>, vector<4x4xbf16>, vector<256x4xf32> -> vector<256x4xf32>
    %cst_16 = arith.constant 0.000000e+00 : f32
    %27 = vector.broadcast %cst_16 : f32 to vector<256x4xf32>
    %28 = arith.select %20, %26, %27 : vector<256x4xi1>, vector<256x4xf32>
    %c8 = arith.constant 8 : index
    %c0_17 = arith.constant 0 : index
    %29 = vector.load %arg7[%c8, %c0_17] : memref<336x4xbf16, #tpu.memory_space<vmem>>, vector<256x4xbf16>
    %c1 = arith.constant 1 : index
    %c0_18 = arith.constant 0 : index
    %c0_19 = arith.constant 0 : index
    %30 = vector.load %arg4[%c1, %c0_18, %c0_19] : memref<9x4x4xbf16, #tpu.memory_space<vmem>>, vector<1x4x4xbf16>
    %31 = vector.shape_cast %30 : vector<1x4x4xbf16> to vector<4x4xbf16>
    %cst_20 = arith.constant dense<0.000000e+00> : vector<256x4xf32>
    %32 = tpu.matmul %29, %31, %cst_20 {dimension_numbers = #tpu.dot_dimension_numbers<[1], [0], [0], [1], [0, 0, 1, 1], [], []>} : vector<256x4xbf16>, vector<4x4xbf16>, vector<256x4xf32> -> vector<256x4xf32>
    %33 = arith.addf %28, %32 : vector<256x4xf32>
    %c10 = arith.constant 10 : index
    %c0_21 = arith.constant 0 : index
    %34 = vector.load %arg7[%c10, %c0_21] : memref<336x4xbf16, #tpu.memory_space<vmem>>, vector<256x4xbf16>
    %c2 = arith.constant 2 : index
    %c0_22 = arith.constant 0 : index
    %c0_23 = arith.constant 0 : index
    %35 = vector.load %arg4[%c2, %c0_22, %c0_23] : memref<9x4x4xbf16, #tpu.memory_space<vmem>>, vector<1x4x4xbf16>
    %36 = vector.shape_cast %35 : vector<1x4x4xbf16> to vector<4x4xbf16>
    %cst_24 = arith.constant dense<0.000000e+00> : vector<256x4xf32>
    %37 = tpu.matmul %34, %36, %cst_24 {dimension_numbers = #tpu.dot_dimension_numbers<[1], [0], [0], [1], [0, 0, 1, 1], [], []>} : vector<256x4xbf16>, vector<4x4xbf16>, vector<256x4xf32> -> vector<256x4xf32>
    %cst_25 = arith.constant 0.000000e+00 : f32
    %38 = vector.broadcast %cst_25 : f32 to vector<256x4xf32>
    %39 = arith.select %22, %37, %38 : vector<256x4xi1>, vector<256x4xf32>
    %40 = arith.addf %33, %39 : vector<256x4xf32>
    %c38 = arith.constant 38 : index
    %c0_26 = arith.constant 0 : index
    %41 = vector.load %arg7[%c38, %c0_26] : memref<336x4xbf16, #tpu.memory_space<vmem>>, vector<256x4xbf16>
    %c3 = arith.constant 3 : index
    %c0_27 = arith.constant 0 : index
    %c0_28 = arith.constant 0 : index
    %42 = vector.load %arg4[%c3, %c0_27, %c0_28] : memref<9x4x4xbf16, #tpu.memory_space<vmem>>, vector<1x4x4xbf16>
    %43 = vector.shape_cast %42 : vector<1x4x4xbf16> to vector<4x4xbf16>
    %cst_29 = arith.constant dense<0.000000e+00> : vector<256x4xf32>
    %44 = tpu.matmul %41, %43, %cst_29 {dimension_numbers = #tpu.dot_dimension_numbers<[1], [0], [0], [1], [0, 0, 1, 1], [], []>} : vector<256x4xbf16>, vector<4x4xbf16>, vector<256x4xf32> -> vector<256x4xf32>
    %cst_30 = arith.constant 0.000000e+00 : f32
    %45 = vector.broadcast %cst_30 : f32 to vector<256x4xf32>
    %46 = arith.select %20, %44, %45 : vector<256x4xi1>, vector<256x4xf32>
    %47 = arith.addf %40, %46 : vector<256x4xf32>
    %c40_31 = arith.constant 40 : index
    %c0_32 = arith.constant 0 : index
    %48 = vector.load %arg7[%c40_31, %c0_32] : memref<336x4xbf16, #tpu.memory_space<vmem>>, vector<256x4xbf16>
    %c4 = arith.constant 4 : index
    %c0_33 = arith.constant 0 : index
    %c0_34 = arith.constant 0 : index
    %49 = vector.load %arg4[%c4, %c0_33, %c0_34] : memref<9x4x4xbf16, #tpu.memory_space<vmem>>, vector<1x4x4xbf16>
    %50 = vector.shape_cast %49 : vector<1x4x4xbf16> to vector<4x4xbf16>
    %cst_35 = arith.constant dense<0.000000e+00> : vector<256x4xf32>
    %51 = tpu.matmul %48, %50, %cst_35 {dimension_numbers = #tpu.dot_dimension_numbers<[1], [0], [0], [1], [0, 0, 1, 1], [], []>} : vector<256x4xbf16>, vector<4x4xbf16>, vector<256x4xf32> -> vector<256x4xf32>
    %52 = arith.addf %47, %51 : vector<256x4xf32>
    %c42 = arith.constant 42 : index
    %c0_36 = arith.constant 0 : index
    %53 = vector.load %arg7[%c42, %c0_36] : memref<336x4xbf16, #tpu.memory_space<vmem>>, vector<256x4xbf16>
    %c5 = arith.constant 5 : index
    %c0_37 = arith.constant 0 : index
    %c0_38 = arith.constant 0 : index
    %54 = vector.load %arg4[%c5, %c0_37, %c0_38] : memref<9x4x4xbf16, #tpu.memory_space<vmem>>, vector<1x4x4xbf16>
    %55 = vector.shape_cast %54 : vector<1x4x4xbf16> to vector<4x4xbf16>
    %cst_39 = arith.constant dense<0.000000e+00> : vector<256x4xf32>
    %56 = tpu.matmul %53, %55, %cst_39 {dimension_numbers = #tpu.dot_dimension_numbers<[1], [0], [0], [1], [0, 0, 1, 1], [], []>} : vector<256x4xbf16>, vector<4x4xbf16>, vector<256x4xf32> -> vector<256x4xf32>
    %cst_40 = arith.constant 0.000000e+00 : f32
    %57 = vector.broadcast %cst_40 : f32 to vector<256x4xf32>
    %58 = arith.select %22, %56, %57 : vector<256x4xi1>, vector<256x4xf32>
    %59 = arith.addf %52, %58 : vector<256x4xf32>
    %c70 = arith.constant 70 : index
    %c0_41 = arith.constant 0 : index
    %60 = vector.load %arg7[%c70, %c0_41] : memref<336x4xbf16, #tpu.memory_space<vmem>>, vector<256x4xbf16>
    %c6_42 = arith.constant 6 : index
    %c0_43 = arith.constant 0 : index
    %c0_44 = arith.constant 0 : index
    %61 = vector.load %arg4[%c6_42, %c0_43, %c0_44] : memref<9x4x4xbf16, #tpu.memory_space<vmem>>, vector<1x4x4xbf16>
    %62 = vector.shape_cast %61 : vector<1x4x4xbf16> to vector<4x4xbf16>
    %cst_45 = arith.constant dense<0.000000e+00> : vector<256x4xf32>
    %63 = tpu.matmul %60, %62, %cst_45 {dimension_numbers = #tpu.dot_dimension_numbers<[1], [0], [0], [1], [0, 0, 1, 1], [], []>} : vector<256x4xbf16>, vector<4x4xbf16>, vector<256x4xf32> -> vector<256x4xf32>
    %cst_46 = arith.constant 0.000000e+00 : f32
    %64 = vector.broadcast %cst_46 : f32 to vector<256x4xf32>
    %65 = arith.select %20, %63, %64 : vector<256x4xi1>, vector<256x4xf32>
    %66 = arith.addf %59, %65 : vector<256x4xf32>
    %c72 = arith.constant 72 : index
    %c0_47 = arith.constant 0 : index
    %67 = vector.load %arg7[%c72, %c0_47] : memref<336x4xbf16, #tpu.memory_space<vmem>>, vector<256x4xbf16>
    %c7 = arith.constant 7 : index
    %c0_48 = arith.constant 0 : index
    %c0_49 = arith.constant 0 : index
    %68 = vector.load %arg4[%c7, %c0_48, %c0_49] : memref<9x4x4xbf16, #tpu.memory_space<vmem>>, vector<1x4x4xbf16>
    %69 = vector.shape_cast %68 : vector<1x4x4xbf16> to vector<4x4xbf16>
    %cst_50 = arith.constant dense<0.000000e+00> : vector<256x4xf32>
    %70 = tpu.matmul %67, %69, %cst_50 {dimension_numbers = #tpu.dot_dimension_numbers<[1], [0], [0], [1], [0, 0, 1, 1], [], []>} : vector<256x4xbf16>, vector<4x4xbf16>, vector<256x4xf32> -> vector<256x4xf32>
    %71 = arith.addf %66, %70 : vector<256x4xf32>
    %c74 = arith.constant 74 : index
    %c0_51 = arith.constant 0 : index
    %72 = vector.load %arg7[%c74, %c0_51] : memref<336x4xbf16, #tpu.memory_space<vmem>>, vector<256x4xbf16>
    %c8_52 = arith.constant 8 : index
    %c0_53 = arith.constant 0 : index
    %c0_54 = arith.constant 0 : index
    %73 = vector.load %arg4[%c8_52, %c0_53, %c0_54] : memref<9x4x4xbf16, #tpu.memory_space<vmem>>, vector<1x4x4xbf16>
    %74 = vector.shape_cast %73 : vector<1x4x4xbf16> to vector<4x4xbf16>
    %cst_55 = arith.constant dense<0.000000e+00> : vector<256x4xf32>
    %75 = tpu.matmul %72, %74, %cst_55 {dimension_numbers = #tpu.dot_dimension_numbers<[1], [0], [0], [1], [0, 0, 1, 1], [], []>} : vector<256x4xbf16>, vector<4x4xbf16>, vector<256x4xf32> -> vector<256x4xf32>
    %cst_56 = arith.constant 0.000000e+00 : f32
    %76 = vector.broadcast %cst_56 : f32 to vector<256x4xf32>
    %77 = arith.select %22, %75, %76 : vector<256x4xi1>, vector<256x4xf32>
    %78 = arith.addf %71, %77 : vector<256x4xf32>
    %79 = arith.truncf %78 : vector<256x4xf32> to vector<256x4xbf16>
    %c0_57 = arith.constant 0 : index
    %c0_58 = arith.constant 0 : index
    %80 = vector.load %arg5[%c0_57, %c0_58] : memref<256x4xbf16, #tpu.memory_space<vmem>>, vector<256x4xbf16>
    tpu.vector_store %arg5[%c0_57, %c0_58], %79 {strides = array<i32>} : memref<256x4xbf16, #tpu.memory_space<vmem>>, vector<256x4xbf16>,
    %cst_59 = arith.constant dense<0.000000e+00> : vector<4xf32>
    %81 = vector.multi_reduction <add>, %78, %cst_59 [0] : vector<256x4xf32> to vector<4xf32>
    %82 = vector.shape_cast %81 : vector<4xf32> to vector<1x4xf32>
    %83 = vector.shape_cast %82 : vector<1x4xf32> to vector<1x4xf32>
    %84 = vector.broadcast %83 : vector<1x4xf32> to vector<8x4xf32>
    %85 = arith.mulf %78, %78 : vector<256x4xf32>
    %cst_60 = arith.constant dense<0.000000e+00> : vector<4xf32>
    %86 = vector.multi_reduction <add>, %85, %cst_60 [0] : vector<256x4xf32> to vector<4xf32>
    %87 = vector.shape_cast %86 : vector<4xf32> to vector<1x4xf32>
    %88 = vector.shape_cast %87 : vector<1x4xf32> to vector<1x4xf32>
    %89 = vector.broadcast %88 : vector<1x4xf32> to vector<8x4xf32>
    %90 = tpu.iota {dimensions = array<i32: 0>} : vector<8x4xi32>
    %cst_61 = arith.constant 0.000000e+00 : f32
    %91 = vector.broadcast %cst_61 : f32 to vector<8x4xf32>
    %c0_i32 = arith.constant 0 : i32
    %92 = vector.broadcast %c0_i32 : i32 to vector<8x4xi32>
    %93 = arith.cmpi eq, %90, %92 : vector<8x4xi32>
    %c1_i32 = arith.constant 1 : i32
    %94 = vector.broadcast %c1_i32 : i32 to vector<8x4xi32>
    %95 = arith.cmpi eq, %90, %94 : vector<8x4xi32>
    %96 = arith.select %95, %89, %91 : vector<8x4xi1>, vector<8x4xf32>
    %97 = arith.select %93, %84, %96 : vector<8x4xi1>, vector<8x4xf32>
    %98 = vector.shape_cast %97 : vector<8x4xf32> to vector<1x8x4xf32>
    %c0_62 = arith.constant 0 : index
    %c0_63 = arith.constant 0 : index
    %c0_64 = arith.constant 0 : index
    %99 = vector.load %arg6[%c0_62, %c0_63, %c0_64] : memref<1x8x4xf32, #tpu.memory_space<vmem>>, vector<1x8x4xf32>
    tpu.vector_store %arg6[%c0_62, %c0_63, %c0_64], %98 {strides = array<i32>} : memref<1x8x4xf32, #tpu.memory_space<vmem>>, vector<1x8x4xf32>,
    return
  }
  func.func @transform_0(%arg0: i32) -> (i32, i32) {
    %c0_i32 = arith.constant 0 : i32
    %c0_i32_0 = arith.constant 0 : i32
    return %arg0, %c0_i32 : i32, i32
  }
  func.func @transform_1(%arg0: i32) -> (i32, i32) {
    %c0_i32 = arith.constant 0 : i32
    %c0_i32_0 = arith.constant 0 : i32
    %c0_i32_1 = arith.constant 0 : i32
    return %c0_i32, %c0_i32_0 : i32, i32
  }
  func.func @transform_2(%arg0: i32) -> (i32, i32) {
    %c0_i32 = arith.constant 0 : i32
    %c0_i32_0 = arith.constant 0 : i32
    %c0_i32_1 = arith.constant 0 : i32
    return %c0_i32, %c0_i32_0 : i32, i32
  }
  func.func @transform_3(%arg0: i32) -> (i32, i32, i32) {
    %c0_i32 = arith.constant 0 : i32
    %c0_i32_0 = arith.constant 0 : i32
    %c0_i32_1 = arith.constant 0 : i32
    %c0_i32_2 = arith.constant 0 : i32
    return %c0_i32, %c0_i32_0, %c0_i32_1 : i32, i32, i32
  }
  func.func @transform_4(%arg0: i32) -> (i32, i32) {
    %c0_i32 = arith.constant 0 : i32
    %c0_i32_0 = arith.constant 0 : i32
    return %arg0, %c0_i32 : i32, i32
  }
  func.func @transform_5(%arg0: i32) -> (i32, i32, i32) {
    %c0_i32 = arith.constant 0 : i32
    %c0_i32_0 = arith.constant 0 : i32
    %c0_i32_1 = arith.constant 0 : i32
    return %arg0, %c0_i32, %c0_i32_0 : i32, i32, i32
  }
}

module attributes {stable_mosaic.version = 11 : i64} {
  func.func @_bn_relu_conv1x1_stats_kernel(%arg0: i32, %arg1: memref<512x4xbf16, #tpu.memory_space<vmem>>, %arg2: memref<1x4xf32, #tpu.memory_space<vmem>>, %arg3: memref<1x4xf32, #tpu.memory_space<vmem>>, %arg4: memref<4x16xbf16, #tpu.memory_space<vmem>>, %arg5: memref<512x16xbf16, #tpu.memory_space<vmem>>, %arg6: memref<1x8x16xf32, #tpu.memory_space<vmem>>) attributes {dimension_semantics = [#tpu.dimension_semantics<parallel>], iteration_bounds = array<i64: 1>, scalar_prefetch = 0 : i64, scratch_operands = 0 : i64, tpu.core_type = #tpu.core_type<tc>, window_params = [{transform_indices = @transform_0, window_bounds = array<i64: 512, 4>}, {pipeline_mode = #tpu.pipeline_mode<synchronous>, transform_indices = @transform_1, window_bounds = array<i64: 1, 4>}, {pipeline_mode = #tpu.pipeline_mode<synchronous>, transform_indices = @transform_2, window_bounds = array<i64: 1, 4>}, {pipeline_mode = #tpu.pipeline_mode<synchronous>, transform_indices = @transform_3, window_bounds = array<i64: 4, 16>}, {transform_indices = @transform_4, window_bounds = array<i64: 512, 16>}, {transform_indices = @transform_5, window_bounds = array<i64: 1, 8, 16>}]} {
    %c0 = arith.constant 0 : index
    %c0_0 = arith.constant 0 : index
    %0 = vector.load %arg1[%c0, %c0_0] : memref<512x4xbf16, #tpu.memory_space<vmem>>, vector<512x4xbf16>
    %1 = arith.extf %0 : vector<512x4xbf16> to vector<512x4xf32>
    %c0_1 = arith.constant 0 : index
    %c0_2 = arith.constant 0 : index
    %2 = vector.load %arg2[%c0_1, %c0_2] : memref<1x4xf32, #tpu.memory_space<vmem>>, vector<1x4xf32>
    %3 = vector.broadcast %2 : vector<1x4xf32> to vector<512x4xf32>
    %4 = arith.mulf %1, %3 : vector<512x4xf32>
    %c0_3 = arith.constant 0 : index
    %c0_4 = arith.constant 0 : index
    %5 = vector.load %arg3[%c0_3, %c0_4] : memref<1x4xf32, #tpu.memory_space<vmem>>, vector<1x4xf32>
    %6 = vector.broadcast %5 : vector<1x4xf32> to vector<512x4xf32>
    %7 = arith.addf %4, %6 : vector<512x4xf32>
    %cst = arith.constant 0.000000e+00 : f32
    %8 = vector.broadcast %cst : f32 to vector<512x4xf32>
    %9 = arith.maximumf %7, %8 : vector<512x4xf32>
    %10 = arith.truncf %9 : vector<512x4xf32> to vector<512x4xbf16>
    %c0_5 = arith.constant 0 : index
    %c0_6 = arith.constant 0 : index
    %11 = vector.load %arg4[%c0_5, %c0_6] : memref<4x16xbf16, #tpu.memory_space<vmem>>, vector<4x16xbf16>
    %cst_7 = arith.constant dense<0.000000e+00> : vector<512x16xf32>
    %12 = tpu.matmul %10, %11, %cst_7 {dimension_numbers = #tpu.dot_dimension_numbers<[1], [0], [0], [1], [0, 0, 1, 1], [], []>} : vector<512x4xbf16>, vector<4x16xbf16>, vector<512x16xf32> -> vector<512x16xf32>
    %13 = arith.truncf %12 : vector<512x16xf32> to vector<512x16xbf16>
    %c0_8 = arith.constant 0 : index
    %c0_9 = arith.constant 0 : index
    %14 = vector.load %arg5[%c0_8, %c0_9] : memref<512x16xbf16, #tpu.memory_space<vmem>>, vector<512x16xbf16>
    tpu.vector_store %arg5[%c0_8, %c0_9], %13 {strides = array<i32>} : memref<512x16xbf16, #tpu.memory_space<vmem>>, vector<512x16xbf16>,
    %cst_10 = arith.constant dense<0.000000e+00> : vector<16xf32>
    %15 = vector.multi_reduction <add>, %12, %cst_10 [0] : vector<512x16xf32> to vector<16xf32>
    %16 = vector.shape_cast %15 : vector<16xf32> to vector<1x16xf32>
    %17 = vector.shape_cast %16 : vector<1x16xf32> to vector<1x16xf32>
    %18 = vector.broadcast %17 : vector<1x16xf32> to vector<8x16xf32>
    %19 = arith.mulf %12, %12 : vector<512x16xf32>
    %cst_11 = arith.constant dense<0.000000e+00> : vector<16xf32>
    %20 = vector.multi_reduction <add>, %19, %cst_11 [0] : vector<512x16xf32> to vector<16xf32>
    %21 = vector.shape_cast %20 : vector<16xf32> to vector<1x16xf32>
    %22 = vector.shape_cast %21 : vector<1x16xf32> to vector<1x16xf32>
    %23 = vector.broadcast %22 : vector<1x16xf32> to vector<8x16xf32>
    %24 = tpu.iota {dimensions = array<i32: 0>} : vector<8x16xi32>
    %cst_12 = arith.constant 0.000000e+00 : f32
    %25 = vector.broadcast %cst_12 : f32 to vector<8x16xf32>
    %c0_i32 = arith.constant 0 : i32
    %26 = vector.broadcast %c0_i32 : i32 to vector<8x16xi32>
    %27 = arith.cmpi eq, %24, %26 : vector<8x16xi32>
    %c1_i32 = arith.constant 1 : i32
    %28 = vector.broadcast %c1_i32 : i32 to vector<8x16xi32>
    %29 = arith.cmpi eq, %24, %28 : vector<8x16xi32>
    %30 = arith.select %29, %23, %25 : vector<8x16xi1>, vector<8x16xf32>
    %31 = arith.select %27, %18, %30 : vector<8x16xi1>, vector<8x16xf32>
    %32 = vector.shape_cast %31 : vector<8x16xf32> to vector<1x8x16xf32>
    %c0_13 = arith.constant 0 : index
    %c0_14 = arith.constant 0 : index
    %c0_15 = arith.constant 0 : index
    %33 = vector.load %arg6[%c0_13, %c0_14, %c0_15] : memref<1x8x16xf32, #tpu.memory_space<vmem>>, vector<1x8x16xf32>
    tpu.vector_store %arg6[%c0_13, %c0_14, %c0_15], %32 {strides = array<i32>} : memref<1x8x16xf32, #tpu.memory_space<vmem>>, vector<1x8x16xf32>,
    return
  }
  func.func @transform_0(%arg0: i32) -> (i32, i32) {
    %c0_i32 = arith.constant 0 : i32
    %c0_i32_0 = arith.constant 0 : i32
    return %arg0, %c0_i32 : i32, i32
  }
  func.func @transform_1(%arg0: i32) -> (i32, i32) {
    %c0_i32 = arith.constant 0 : i32
    %c0_i32_0 = arith.constant 0 : i32
    %c0_i32_1 = arith.constant 0 : i32
    return %c0_i32, %c0_i32_0 : i32, i32
  }
  func.func @transform_2(%arg0: i32) -> (i32, i32) {
    %c0_i32 = arith.constant 0 : i32
    %c0_i32_0 = arith.constant 0 : i32
    %c0_i32_1 = arith.constant 0 : i32
    return %c0_i32, %c0_i32_0 : i32, i32
  }
  func.func @transform_3(%arg0: i32) -> (i32, i32) {
    %c0_i32 = arith.constant 0 : i32
    %c0_i32_0 = arith.constant 0 : i32
    %c0_i32_1 = arith.constant 0 : i32
    return %c0_i32, %c0_i32_0 : i32, i32
  }
  func.func @transform_4(%arg0: i32) -> (i32, i32) {
    %c0_i32 = arith.constant 0 : i32
    %c0_i32_0 = arith.constant 0 : i32
    return %arg0, %c0_i32 : i32, i32
  }
  func.func @transform_5(%arg0: i32) -> (i32, i32, i32) {
    %c0_i32 = arith.constant 0 : i32
    %c0_i32_0 = arith.constant 0 : i32
    %c0_i32_1 = arith.constant 0 : i32
    return %arg0, %c0_i32, %c0_i32_0 : i32, i32, i32
  }
}

module attributes {stable_mosaic.version = 11 : i64} {
  func.func @_bn_residual_relu_kernel(%arg0: i32, %arg1: memref<512x16xbf16, #tpu.memory_space<vmem>>, %arg2: memref<512x16xf32, #tpu.memory_space<vmem>>, %arg3: memref<1x16xf32, #tpu.memory_space<vmem>>, %arg4: memref<1x16xf32, #tpu.memory_space<vmem>>, %arg5: memref<512x16xf32, #tpu.memory_space<vmem>>) attributes {dimension_semantics = [#tpu.dimension_semantics<parallel>], iteration_bounds = array<i64: 1>, scalar_prefetch = 0 : i64, scratch_operands = 0 : i64, tpu.core_type = #tpu.core_type<tc>, window_params = [{transform_indices = @transform_0, window_bounds = array<i64: 512, 16>}, {transform_indices = @transform_1, window_bounds = array<i64: 512, 16>}, {pipeline_mode = #tpu.pipeline_mode<synchronous>, transform_indices = @transform_2, window_bounds = array<i64: 1, 16>}, {pipeline_mode = #tpu.pipeline_mode<synchronous>, transform_indices = @transform_3, window_bounds = array<i64: 1, 16>}, {transform_indices = @transform_4, window_bounds = array<i64: 512, 16>}]} {
    %c0 = arith.constant 0 : index
    %c0_0 = arith.constant 0 : index
    %0 = vector.load %arg1[%c0, %c0_0] : memref<512x16xbf16, #tpu.memory_space<vmem>>, vector<512x16xbf16>
    %1 = arith.extf %0 : vector<512x16xbf16> to vector<512x16xf32>
    %c0_1 = arith.constant 0 : index
    %c0_2 = arith.constant 0 : index
    %2 = vector.load %arg3[%c0_1, %c0_2] : memref<1x16xf32, #tpu.memory_space<vmem>>, vector<1x16xf32>
    %3 = vector.broadcast %2 : vector<1x16xf32> to vector<512x16xf32>
    %4 = arith.mulf %1, %3 : vector<512x16xf32>
    %c0_3 = arith.constant 0 : index
    %c0_4 = arith.constant 0 : index
    %5 = vector.load %arg4[%c0_3, %c0_4] : memref<1x16xf32, #tpu.memory_space<vmem>>, vector<1x16xf32>
    %6 = vector.broadcast %5 : vector<1x16xf32> to vector<512x16xf32>
    %7 = arith.addf %4, %6 : vector<512x16xf32>
    %c0_5 = arith.constant 0 : index
    %c0_6 = arith.constant 0 : index
    %8 = vector.load %arg2[%c0_5, %c0_6] : memref<512x16xf32, #tpu.memory_space<vmem>>, vector<512x16xf32>
    %9 = arith.addf %7, %8 : vector<512x16xf32>
    %cst = arith.constant 0.000000e+00 : f32
    %10 = vector.broadcast %cst : f32 to vector<512x16xf32>
    %11 = arith.maximumf %9, %10 : vector<512x16xf32>
    %c0_7 = arith.constant 0 : index
    %c0_8 = arith.constant 0 : index
    %12 = vector.load %arg5[%c0_7, %c0_8] : memref<512x16xf32, #tpu.memory_space<vmem>>, vector<512x16xf32>
    tpu.vector_store %arg5[%c0_7, %c0_8], %11 {strides = array<i32>} : memref<512x16xf32, #tpu.memory_space<vmem>>, vector<512x16xf32>,
    return
  }
  func.func @transform_0(%arg0: i32) -> (i32, i32) {
    %c0_i32 = arith.constant 0 : i32
    %c0_i32_0 = arith.constant 0 : i32
    return %arg0, %c0_i32 : i32, i32
  }
  func.func @transform_1(%arg0: i32) -> (i32, i32) {
    %c0_i32 = arith.constant 0 : i32
    %c0_i32_0 = arith.constant 0 : i32
    return %arg0, %c0_i32 : i32, i32
  }
  func.func @transform_2(%arg0: i32) -> (i32, i32) {
    %c0_i32 = arith.constant 0 : i32
    %c0_i32_0 = arith.constant 0 : i32
    %c0_i32_1 = arith.constant 0 : i32
    return %c0_i32, %c0_i32_0 : i32, i32
  }
  func.func @transform_3(%arg0: i32) -> (i32, i32) {
    %c0_i32 = arith.constant 0 : i32
    %c0_i32_0 = arith.constant 0 : i32
    %c0_i32_1 = arith.constant 0 : i32
    return %c0_i32, %c0_i32_0 : i32, i32
  }
  func.func @transform_4(%arg0: i32) -> (i32, i32) {
    %c0_i32 = arith.constant 0 : i32
    %c0_i32_0 = arith.constant 0 : i32
    return %arg0, %c0_i32 : i32, i32
  }
}

</mosaic_0001>

<llo_original>
// kernel: bottleneck_forward.7
$region0: #{bottleneck_forward.7}
  #allocation0 [shape = 'u32[]', space=smem, size = 0x4, offset = 0x4, fixed_abs, tag = 'smem constant byte address 0x4 - core index']
  #allocation1 [shape = 'u32[144,128]{1,0:T(1,128)}', space=vmem, size = 0x12000, scoped, tag = 'internal scratch']
  %s0 = inlined_call_operand.vmem [shape: bf16[512,16], index: 0, kind: input, shape index: {}]
  %s1 = inlined_call_operand.vmem [shape: f32[512,16], index: 1, kind: input, shape index: {}]
  %s2 = inlined_call_operand.vmem [shape: f32[1,16], index: 2, kind: input, shape index: {}]
  %s3 = inlined_call_operand.vmem [shape: f32[1,16], index: 3, kind: input, shape index: {}]
  %s4 = inlined_call_operand.vmem [shape: f32[512,16], index: 4, kind: output, shape index: {}]
  %s5 = sld [smem:[#allocation0]]
  $region26: #{bottleneck_forward.7} parent=0
    _
  %s7 = ssub.s32 1, %s5
  %s8 = scalar_select 0, %s7, %s5
  // Predicated region
  $region2: #{bottleneck_forward.7} parent=0 // pred_check
    _
  $region3: #{bottleneck_forward.7} parent=0 // pred_check_branch
    %10 = sbr.rel (0) target = $region5
  $region4: #{bottleneck_forward.7} parent=0 // pred_region
    _
  $region5: #{bottleneck_forward.7} parent=0 // pred_fallthru
    _
  // Predicated region
  $region6: #{bottleneck_forward.7} parent=0 // pred_check
    _
  $region7: #{bottleneck_forward.7} parent=0 // pred_check_branch
    %12 = sbr.rel (0) target = $region9
  $region8: #{bottleneck_forward.7} parent=0 // pred_region
    _
  $region9: #{bottleneck_forward.7} parent=0 // pred_fallthru
    _
  // Predicated region
  $region10: #{bottleneck_forward.7} parent=0 // pred_check
    _
  $region11: #{bottleneck_forward.7} parent=0 // pred_check_branch
    %14 = sbr.rel (0) target = $region13
  $region12: #{bottleneck_forward.7} parent=0 // pred_region
    _
  $region13: #{bottleneck_forward.7} parent=0 // pred_fallthru
    _
  // Predicated region
  $region14: #{bottleneck_forward.7} parent=0 // pred_check
    _
  $region15: #{bottleneck_forward.7} parent=0 // pred_check_branch
    %16 = sbr.rel (0) target = $region17
  $region16: #{bottleneck_forward.7} parent=0 // pred_region
    _
  $region17: #{bottleneck_forward.7} parent=0 // pred_fallthru
    _
  %v17 = vld [vmem:[%s0] sm:$0xf]
  %v18 = vld [vmem:[%s0 + $0x4] sm:$0xf]
  %v19 = vld [vmem:[%s0 + $0x8] sm:$0xf]
  %v20 = vld [vmem:[%s0 + $0xc] sm:$0xf]
  %v21 = vld [vmem:[%s0 + $0x10] sm:$0xf]
  %v22 = vld [vmem:[%s0 + $0x14] sm:$0xf]
  %v23 = vld [vmem:[%s0 + $0x18] sm:$0xf]
  %v24 = vld [vmem:[%s0 + $0x1c] sm:$0xf]
  %v25 = vld [vmem:[%s0 + $0x20] sm:$0xf]
  %v26 = vld [vmem:[%s0 + $0x24] sm:$0xf]
  %v27 = vld [vmem:[%s0 + $0x28] sm:$0xf]
  %v28 = vld [vmem:[%s0 + $0x2c] sm:$0xf]
  %v29 = vld [vmem:[%s0 + $0x30] sm:$0xf]
  %v30 = vld [vmem:[%s0 + $0x34] sm:$0xf]
  %v31 = vld [vmem:[%s0 + $0x38] sm:$0xf]
  %v32 = vld [vmem:[%s0 + $0x3c] sm:$0xf]
  %v33 = vld [vmem:[%s0 + $0x40] sm:$0xf]
  %v34 = vld [vmem:[%s0 + $0x44] sm:$0xf]
  %v35 = vld [vmem:[%s0 + $0x48] sm:$0xf]
  %v36 = vld [vmem:[%s0 + $0x4c] sm:$0xf]
  %v37 = vld [vmem:[%s0 + $0x50] sm:$0xf]
  %v38 = vld [vmem:[%s0 + $0x54] sm:$0xf]
  %v39 = vld [vmem:[%s0 + $0x58] sm:$0xf]
  %v40 = vld [vmem:[%s0 + $0x5c] sm:$0xf]
  %v41 = vld [vmem:[%s0 + $0x60] sm:$0xf]
  %v42 = vld [vmem:[%s0 + $0x64] sm:$0xf]
  %v43 = vld [vmem:[%s0 + $0x68] sm:$0xf]
  %v44 = vld [vmem:[%s0 + $0x6c] sm:$0xf]
  %v45 = vld [vmem:[%s0 + $0x70] sm:$0xf]
  %v46 = vld [vmem:[%s0 + $0x74] sm:$0xf]
  %v47 = vld [vmem:[%s0 + $0x78] sm:$0xf]
  %v48 = vld [vmem:[%s0 + $0x7c] sm:$0xf]
  %v49 = vld [vmem:[%s0 + $0x80] sm:$0xf]
  %v50 = vld [vmem:[%s0 + $0x84] sm:$0xf]
  %v51 = vld [vmem:[%s0 + $0x88] sm:$0xf]
  %v52 = vld [vmem:[%s0 + $0x8c] sm:$0xf]
  %v53 = vld [vmem:[%s0 + $0x90] sm:$0xf]
  %v54 = vld [vmem:[%s0 + $0x94] sm:$0xf]
  %v55 = vld [vmem:[%s0 + $0x98] sm:$0xf]
  %v56 = vld [vmem:[%s0 + $0x9c] sm:$0xf]
  %v57 = vld [vmem:[%s0 + $0xa0] sm:$0xf]
  %v58 = vld [vmem:[%s0 + $0xa4] sm:$0xf]
  %v59 = vld [vmem:[%s0 + $0xa8] sm:$0xf]
  %v60 = vld [vmem:[%s0 + $0xac] sm:$0xf]
  %v61 = vld [vmem:[%s0 + $0xb0] sm:$0xf]
  %v62 = vld [vmem:[%s0 + $0xb4] sm:$0xf]
  %v63 = vld [vmem:[%s0 + $0xb8] sm:$0xf]
  %v64 = vld [vmem:[%s0 + $0xbc] sm:$0xf]
  %v65 = vld [vmem:[%s0 + $0xc0] sm:$0xf]
  %v66 = vld [vmem:[%s0 + $0xc4] sm:$0xf]
  %v67 = vld [vmem:[%s0 + $0xc8] sm:$0xf]
  %v68 = vld [vmem:[%s0 + $0xcc] sm:$0xf]
  %v69 = vld [vmem:[%s0 + $0xd0] sm:$0xf]
  %v70 = vld [vmem:[%s0 + $0xd4] sm:$0xf]
  %v71 = vld [vmem:[%s0 + $0xd8] sm:$0xf]
  %v72 = vld [vmem:[%s0 + $0xdc] sm:$0xf]
  %v73 = vld [vmem:[%s0 + $0xe0] sm:$0xf]
  %v74 = vld [vmem:[%s0 + $0xe4] sm:$0xf]
  %v75 = vld [vmem:[%s0 + $0xe8] sm:$0xf]
  %v76 = vld [vmem:[%s0 + $0xec] sm:$0xf]
  %v77 = vld [vmem:[%s0 + $0xf0] sm:$0xf]
  %v78 = vld [vmem:[%s0 + $0xf4] sm:$0xf]
  %v79 = vld [vmem:[%s0 + $0xf8] sm:$0xf]
  %v80 = vld [vmem:[%s0 + $0xfc] sm:$0xf]
  %v81 = vunpack.c.l.bf16 %v17
  %v82 = vunpack.c.l.bf16 %v18
  %v83 = vunpack.c.l.bf16 %v19
  %v84 = vunpack.c.l.bf16 %v20
  %v85 = vunpack.c.l.bf16 %v21
  %v86 = vunpack.c.l.bf16 %v22
  %v87 = vunpack.c.l.bf16 %v23
  %v88 = vunpack.c.l.bf16 %v24
  %v89 = vunpack.c.l.bf16 %v25
  %v90 = vunpack.c.l.bf16 %v26
  %v91 = vunpack.c.l.bf16 %v27
  %v92 = vunpack.c.l.bf16 %v28
  %v93 = vunpack.c.l.bf16 %v29
  %v94 = vunpack.c.l.bf16 %v30
  %v95 = vunpack.c.l.bf16 %v31
  %v96 = vunpack.c.l.bf16 %v32
  %v97 = vunpack.c.l.bf16 %v33
  %v98 = vunpack.c.l.bf16 %v34
  %v99 = vunpack.c.l.bf16 %v35
  %v100 = vunpack.c.l.bf16 %v36
  %v101 = vunpack.c.l.bf16 %v37
  %v102 = vunpack.c.l.bf16 %v38
  %v103 = vunpack.c.l.bf16 %v39
  %v104 = vunpack.c.l.bf16 %v40
  %v105 = vunpack.c.l.bf16 %v41
  %v106 = vunpack.c.l.bf16 %v42
  %v107 = vunpack.c.l.bf16 %v43
  %v108 = vunpack.c.l.bf16 %v44
  %v109 = vunpack.c.l.bf16 %v45
  %v110 = vunpack.c.l.bf16 %v46
  %v111 = vunpack.c.l.bf16 %v47
  %v112 = vunpack.c.l.bf16 %v48
  %v113 = vunpack.c.l.bf16 %v49
  %v114 = vunpack.c.l.bf16 %v50
  %v115 = vunpack.c.l.bf16 %v51
  %v116 = vunpack.c.l.bf16 %v52
  %v117 = vunpack.c.l.bf16 %v53
  %v118 = vunpack.c.l.bf16 %v54
  %v119 = vunpack.c.l.bf16 %v55
  %v120 = vunpack.c.l.bf16 %v56
  %v121 = vunpack.c.l.bf16 %v57
  %v122 = vunpack.c.l.bf16 %v58
  %v123 = vunpack.c.l.bf16 %v59
  %v124 = vunpack.c.l.bf16 %v60
  %v125 = vunpack.c.l.bf16 %v61
  %v126 = vunpack.c.l.bf16 %v62
  %v127 = vunpack.c.l.bf16 %v63
  %v128 = vunpack.c.l.bf16 %v64
  %v129 = vunpack.c.l.bf16 %v65
  %v130 = vunpack.c.l.bf16 %v66
  %v131 = vunpack.c.l.bf16 %v67
  %v132 = vunpack.c.l.bf16 %v68
  %v133 = vunpack.c.l.bf16 %v69
  %v134 = vunpack.c.l.bf16 %v70
  %v135 = vunpack.c.l.bf16 %v71
  %v136 = vunpack.c.l.bf16 %v72
  %v137 = vunpack.c.l.bf16 %v73
  %v138 = vunpack.c.l.bf16 %v74
  %v139 = vunpack.c.l.bf16 %v75
  %v140 = vunpack.c.l.bf16 %v76
  %v141 = vunpack.c.l.bf16 %v77
  %v142 = vunpack.c.l.bf16 %v78
  %v143 = vunpack.c.l.bf16 %v79
  %v144 = vunpack.c.l.bf16 %v80
  %v145 = vld [vmem:[%s2] sm:$0x1]
  %v147 = vlaneseq
  %v148 = vshrl.u32 %v147, 7
  %v149 = vsub.s32 0, %v148
  %v150 = vrot.slane %v145, %v149
  %v152 = vmul.f32 %v81, %v150
  %v153 = vmul.f32 %v82, %v150
  %v154 = vmul.f32 %v83, %v150
  %v155 = vmul.f32 %v84, %v150
  %v156 = vmul.f32 %v85, %v150
  %v157 = vmul.f32 %v86, %v150
  %v158 = vmul.f32 %v87, %v150
  %v159 = vmul.f32 %v88, %v150
  %v160 = vmul.f32 %v89, %v150
  %v161 = vmul.f32 %v90, %v150
  %v162 = vmul.f32 %v91, %v150
  %v163 = vmul.f32 %v92, %v150
  %v164 = vmul.f32 %v93, %v150
  %v165 = vmul.f32 %v94, %v150
  %v166 = vmul.f32 %v95, %v150
  %v167 = vmul.f32 %v96, %v150
  %v168 = vmul.f32 %v97, %v150
  %v169 = vmul.f32 %v98, %v150
  %v170 = vmul.f32 %v99, %v150
  %v171 = vmul.f32 %v100, %v150
  %v172 = vmul.f32 %v101, %v150
  %v173 = vmul.f32 %v102, %v150
  %v174 = vmul.f32 %v103, %v150
  %v175 = vmul.f32 %v104, %v150
  %v176 = vmul.f32 %v105, %v150
  %v177 = vmul.f32 %v106, %v150
  %v178 = vmul.f32 %v107, %v150
  %v179 = vmul.f32 %v108, %v150
  %v180 = vmul.f32 %v109, %v150
  %v181 = vmul.f32 %v110, %v150
  %v182 = vmul.f32 %v111, %v150
  %v183 = vmul.f32 %v112, %v150
  %v184 = vmul.f32 %v113, %v150
  %v185 = vmul.f32 %v114, %v150
  %v186 = vmul.f32 %v115, %v150
  %v187 = vmul.f32 %v116, %v150
  %v188 = vmul.f32 %v117, %v150
  %v189 = vmul.f32 %v118, %v150
  %v190 = vmul.f32 %v119, %v150
  %v191 = vmul.f32 %v120, %v150
  %v192 = vmul.f32 %v121, %v150
  %v193 = vmul.f32 %v122, %v150
  %v194 = vmul.f32 %v123, %v150
  %v195 = vmul.f32 %v124, %v150
  %v196 = vmul.f32 %v125, %v150
  %v197 = vmul.f32 %v126, %v150
  %v198 = vmul.f32 %v127, %v150
  %v199 = vmul.f32 %v128, %v150
  %v200 = vmul.f32 %v129, %v150
  %v201 = vmul.f32 %v130, %v150
  %v202 = vmul.f32 %v131, %v150
  %v203 = vmul.f32 %v132, %v150
  %v204 = vmul.f32 %v133, %v150
  %v205 = vmul.f32 %v134, %v150
  %v206 = vmul.f32 %v135, %v150
  %v207 = vmul.f32 %v136, %v150
  %v208 = vmul.f32 %v137, %v150
  %v209 = vmul.f32 %v138, %v150
  %v210 = vmul.f32 %v139, %v150
  %v211 = vmul.f32 %v140, %v150
  %v212 = vmul.f32 %v141, %v150
  %v213 = vmul.f32 %v142, %v150
  %v214 = vmul.f32 %v143, %v150
  %v215 = vmul.f32 %v144, %v150
  %v216 = vld [vmem:[%s3] sm:$0x1]
  %v218 = vlaneseq
  %v219 = vshrl.u32 %v218, 7
  %v220 = vsub.s32 0, %v219
  %v221 = vrot.slane %v216, %v220
  %v223 = vadd.f32 %v152, %v221
  %v224 = vadd.f32 %v153, %v221
  %v225 = vadd.f32 %v154, %v221
  %v226 = vadd.f32 %v155, %v221
  %v227 = vadd.f32 %v156, %v221
  %v228 = vadd.f32 %v157, %v221
  %v229 = vadd.f32 %v158, %v221
  %v230 = vadd.f32 %v159, %v221
  %v231 = vadd.f32 %v160, %v221
  %v232 = vadd.f32 %v161, %v221
  %v233 = vadd.f32 %v162, %v221
  %v234 = vadd.f32 %v163, %v221
  %v235 = vadd.f32 %v164, %v221
  %v236 = vadd.f32 %v165, %v221
  %v237 = vadd.f32 %v166, %v221
  %v238 = vadd.f32 %v167, %v221
  %v239 = vadd.f32 %v168, %v221
  %v240 = vadd.f32 %v169, %v221
  %v241 = vadd.f32 %v170, %v221
  %v242 = vadd.f32 %v171, %v221
  %v243 = vadd.f32 %v172, %v221
  %v244 = vadd.f32 %v173, %v221
  %v245 = vadd.f32 %v174, %v221
  %v246 = vadd.f32 %v175, %v221
  %v247 = vadd.f32 %v176, %v221
  %v248 = vadd.f32 %v177, %v221
  %v249 = vadd.f32 %v178, %v221
  %v250 = vadd.f32 %v179, %v221
  %v251 = vadd.f32 %v180, %v221
  %v252 = vadd.f32 %v181, %v221
  %v253 = vadd.f32 %v182, %v221
  %v254 = vadd.f32 %v183, %v221
  %v255 = vadd.f32 %v184, %v221
  %v256 = vadd.f32 %v185, %v221
  %v257 = vadd.f32 %v186, %v221
  %v258 = vadd.f32 %v187, %v221
  %v259 = vadd.f32 %v188, %v221
  %v260 = vadd.f32 %v189, %v221
  %v261 = vadd.f32 %v190, %v221
  %v262 = vadd.f32 %v191, %v221
  %v263 = vadd.f32 %v192, %v221
  %v264 = vadd.f32 %v193, %v221
  %v265 = vadd.f32 %v194, %v221
  %v266 = vadd.f32 %v195, %v221
  %v267 = vadd.f32 %v196, %v221
  %v268 = vadd.f32 %v197, %v221
  %v269 = vadd.f32 %v198, %v221
  %v270 = vadd.f32 %v199, %v221
  %v271 = vadd.f32 %v200, %v221
  %v272 = vadd.f32 %v201, %v221
  %v273 = vadd.f32 %v202, %v221
  %v274 = vadd.f32 %v203, %v221
  %v275 = vadd.f32 %v204, %v221
  %v276 = vadd.f32 %v205, %v221
  %v277 = vadd.f32 %v206, %v221
  %v278 = vadd.f32 %v207, %v221
  %v279 = vadd.f32 %v208, %v221
  %v280 = vadd.f32 %v209, %v221
  %v281 = vadd.f32 %v210, %v221
  %v282 = vadd.f32 %v211, %v221
  %v283 = vadd.f32 %v212, %v221
  %v284 = vadd.f32 %v213, %v221
  %v285 = vadd.f32 %v214, %v221
  %v286 = vadd.f32 %v215, %v221
  %v287 = vld [vmem:[%s1] sm:$0xff]
  %v288 = vld [vmem:[%s1 + $0x8] sm:$0xff]
  %v289 = vld [vmem:[%s1 + $0x10] sm:$0xff]
  %v290 = vld [vmem:[%s1 + $0x18] sm:$0xff]
  %v291 = vld [vmem:[%s1 + $0x20] sm:$0xff]
  %v292 = vld [vmem:[%s1 + $0x28] sm:$0xff]
  %v293 = vld [vmem:[%s1 + $0x30] sm:$0xff]
  %v294 = vld [vmem:[%s1 + $0x38] sm:$0xff]
  %v295 = vld [vmem:[%s1 + $0x40] sm:$0xff]
  %v296 = vld [vmem:[%s1 + $0x48] sm:$0xff]
  %v297 = vld [vmem:[%s1 + $0x50] sm:$0xff]
  %v298 = vld [vmem:[%s1 + $0x58] sm:$0xff]
  %v299 = vld [vmem:[%s1 + $0x60] sm:$0xff]
  %v300 = vld [vmem:[%s1 + $0x68] sm:$0xff]
  %v301 = vld [vmem:[%s1 + $0x70] sm:$0xff]
  %v302 = vld [vmem:[%s1 + $0x78] sm:$0xff]
  %v303 = vld [vmem:[%s1 + $0x80] sm:$0xff]
  %v304 = vld [vmem:[%s1 + $0x88] sm:$0xff]
  %v305 = vld [vmem:[%s1 + $0x90] sm:$0xff]
  %v306 = vld [vmem:[%s1 + $0x98] sm:$0xff]
  %v307 = vld [vmem:[%s1 + $0xa0] sm:$0xff]
  %v308 = vld [vmem:[%s1 + $0xa8] sm:$0xff]
  %v309 = vld [vmem:[%s1 + $0xb0] sm:$0xff]
  %v310 = vld [vmem:[%s1 + $0xb8] sm:$0xff]
  %v311 = vld [vmem:[%s1 + $0xc0] sm:$0xff]
  %v312 = vld [vmem:[%s1 + $0xc8] sm:$0xff]
  %v313 = vld [vmem:[%s1 + $0xd0] sm:$0xff]
  %v314 = vld [vmem:[%s1 + $0xd8] sm:$0xff]
  %v315 = vld [vmem:[%s1 + $0xe0] sm:$0xff]
  %v316 = vld [vmem:[%s1 + $0xe8] sm:$0xff]
  %v317 = vld [vmem:[%s1 + $0xf0] sm:$0xff]
  %v318 = vld [vmem:[%s1 + $0xf8] sm:$0xff]
  %v319 = vld [vmem:[%s1 + $0x100] sm:$0xff]
  %v320 = vld [vmem:[%s1 + $0x108] sm:$0xff]
  %v321 = vld [vmem:[%s1 + $0x110] sm:$0xff]
  %v322 = vld [vmem:[%s1 + $0x118] sm:$0xff]
  %v323 = vld [vmem:[%s1 + $0x120] sm:$0xff]
  %v324 = vld [vmem:[%s1 + $0x128] sm:$0xff]
  %v325 = vld [vmem:[%s1 + $0x130] sm:$0xff]
  %v326 = vld [vmem:[%s1 + $0x138] sm:$0xff]
  %v327 = vld [vmem:[%s1 + $0x140] sm:$0xff]
  %v328 = vld [vmem:[%s1 + $0x148] sm:$0xff]
  %v329 = vld [vmem:[%s1 + $0x150] sm:$0xff]
  %v330 = vld [vmem:[%s1 + $0x158] sm:$0xff]
  %v331 = vld [vmem:[%s1 + $0x160] sm:$0xff]
  %v332 = vld [vmem:[%s1 + $0x168] sm:$0xff]
  %v333 = vld [vmem:[%s1 + $0x170] sm:$0xff]
  %v334 = vld [vmem:[%s1 + $0x178] sm:$0xff]
  %v335 = vld [vmem:[%s1 + $0x180] sm:$0xff]
  %v336 = vld [vmem:[%s1 + $0x188] sm:$0xff]
  %v337 = vld [vmem:[%s1 + $0x190] sm:$0xff]
  %v338 = vld [vmem:[%s1 + $0x198] sm:$0xff]
  %v339 = vld [vmem:[%s1 + $0x1a0] sm:$0xff]
  %v340 = vld [vmem:[%s1 + $0x1a8] sm:$0xff]
  %v341 = vld [vmem:[%s1 + $0x1b0] sm:$0xff]
  %v342 = vld [vmem:[%s1 + $0x1b8] sm:$0xff]
  %v343 = vld [vmem:[%s1 + $0x1c0] sm:$0xff]
  %v344 = vld [vmem:[%s1 + $0x1c8] sm:$0xff]
  %v345 = vld [vmem:[%s1 + $0x1d0] sm:$0xff]
  %v346 = vld [vmem:[%s1 + $0x1d8] sm:$0xff]
  %v347 = vld [vmem:[%s1 + $0x1e0] sm:$0xff]
  %v348 = vld [vmem:[%s1 + $0x1e8] sm:$0xff]
  %v349 = vld [vmem:[%s1 + $0x1f0] sm:$0xff]
  %v350 = vld [vmem:[%s1 + $0x1f8] sm:$0xff]
  %v351 = vadd.f32 %v223, %v287
  %v352 = vadd.f32 %v224, %v288
  %v353 = vadd.f32 %v225, %v289
  %v354 = vadd.f32 %v226, %v290
  %v355 = vadd.f32 %v227, %v291
  %v356 = vadd.f32 %v228, %v292
  %v357 = vadd.f32 %v229, %v293
  %v358 = vadd.f32 %v230, %v294
  %v359 = vadd.f32 %v231, %v295
  %v360 = vadd.f32 %v232, %v296
  %v361 = vadd.f32 %v233, %v297
  %v362 = vadd.f32 %v234, %v298
  %v363 = vadd.f32 %v235, %v299
  %v364 = vadd.f32 %v236, %v300
  %v365 = vadd.f32 %v237, %v301
  %v366 = vadd.f32 %v238, %v302
  %v367 = vadd.f32 %v239, %v303
  %v368 = vadd.f32 %v240, %v304
  %v369 = vadd.f32 %v241, %v305
  %v370 = vadd.f32 %v242, %v306
  %v371 = vadd.f32 %v243, %v307
  %v372 = vadd.f32 %v244, %v308
  %v373 = vadd.f32 %v245, %v309
  %v374 = vadd.f32 %v246, %v310
  %v375 = vadd.f32 %v247, %v311
  %v376 = vadd.f32 %v248, %v312
  %v377 = vadd.f32 %v249, %v313
  %v378 = vadd.f32 %v250, %v314
  %v379 = vadd.f32 %v251, %v315
  %v380 = vadd.f32 %v252, %v316
  %v381 = vadd.f32 %v253, %v317
  %v382 = vadd.f32 %v254, %v318
  %v383 = vadd.f32 %v255, %v319
  %v384 = vadd.f32 %v256, %v320
  %v385 = vadd.f32 %v257, %v321
  %v386 = vadd.f32 %v258, %v322
  %v387 = vadd.f32 %v259, %v323
  %v388 = vadd.f32 %v260, %v324
  %v389 = vadd.f32 %v261, %v325
  %v390 = vadd.f32 %v262, %v326
  %v391 = vadd.f32 %v263, %v327
  %v392 = vadd.f32 %v264, %v328
  %v393 = vadd.f32 %v265, %v329
  %v394 = vadd.f32 %v266, %v330
  %v395 = vadd.f32 %v267, %v331
  %v396 = vadd.f32 %v268, %v332
  %v397 = vadd.f32 %v269, %v333
  %v398 = vadd.f32 %v270, %v334
  %v399 = vadd.f32 %v271, %v335
  %v400 = vadd.f32 %v272, %v336
  %v401 = vadd.f32 %v273, %v337
  %v402 = vadd.f32 %v274, %v338
  %v403 = vadd.f32 %v275, %v339
  %v404 = vadd.f32 %v276, %v340
  %v405 = vadd.f32 %v277, %v341
  %v406 = vadd.f32 %v278, %v342
  %v407 = vadd.f32 %v279, %v343
  %v408 = vadd.f32 %v280, %v344
  %v409 = vadd.f32 %v281, %v345
  %v410 = vadd.f32 %v282, %v346
  %v411 = vadd.f32 %v283, %v347
  %v412 = vadd.f32 %v284, %v348
  %v413 = vadd.f32 %v285, %v349
  %v414 = vadd.f32 %v286, %v350
  %v415 = vmax.f32 %v351, 0.0
  %v416 = vmax.f32 %v352, 0.0
  %v417 = vmax.f32 %v353, 0.0
  %v418 = vmax.f32 %v354, 0.0
  %v419 = vmax.f32 %v355, 0.0
  %v420 = vmax.f32 %v356, 0.0
  %v421 = vmax.f32 %v357, 0.0
  %v422 = vmax.f32 %v358, 0.0
  %v423 = vmax.f32 %v359, 0.0
  %v424 = vmax.f32 %v360, 0.0
  %v425 = vmax.f32 %v361, 0.0
  %v426 = vmax.f32 %v362, 0.0
  %v427 = vmax.f32 %v363, 0.0
  %v428 = vmax.f32 %v364, 0.0
  %v429 = vmax.f32 %v365, 0.0
  %v430 = vmax.f32 %v366, 0.0
  %v431 = vmax.f32 %v367, 0.0
  %v432 = vmax.f32 %v368, 0.0
  %v433 = vmax.f32 %v369, 0.0
  %v434 = vmax.f32 %v370, 0.0
  %v435 = vmax.f32 %v371, 0.0
  %v436 = vmax.f32 %v372, 0.0
  %v437 = vmax.f32 %v373, 0.0
  %v438 = vmax.f32 %v374, 0.0
  %v439 = vmax.f32 %v375, 0.0
  %v440 = vmax.f32 %v376, 0.0
  %v441 = vmax.f32 %v377, 0.0
  %v442 = vmax.f32 %v378, 0.0
  %v443 = vmax.f32 %v379, 0.0
  %v444 = vmax.f32 %v380, 0.0
  %v445 = vmax.f32 %v381, 0.0
  %v446 = vmax.f32 %v382, 0.0
  %v447 = vmax.f32 %v383, 0.0
  %v448 = vmax.f32 %v384, 0.0
  %v449 = vmax.f32 %v385, 0.0
  %v450 = vmax.f32 %v386, 0.0
  %v451 = vmax.f32 %v387, 0.0
  %v452 = vmax.f32 %v388, 0.0
  %v453 = vmax.f32 %v389, 0.0
  %v454 = vmax.f32 %v390, 0.0
  %v455 = vmax.f32 %v391, 0.0
  %v456 = vmax.f32 %v392, 0.0
  %v457 = vmax.f32 %v393, 0.0
  %v458 = vmax.f32 %v394, 0.0
  %v459 = vmax.f32 %v395, 0.0
  %v460 = vmax.f32 %v396, 0.0
  %v461 = vmax.f32 %v397, 0.0
  %v462 = vmax.f32 %v398, 0.0
  %v463 = vmax.f32 %v399, 0.0
  %v464 = vmax.f32 %v400, 0.0
  %v465 = vmax.f32 %v401, 0.0
  %v466 = vmax.f32 %v402, 0.0
  %v467 = vmax.f32 %v403, 0.0
  %v468 = vmax.f32 %v404, 0.0
  %v469 = vmax.f32 %v405, 0.0
  %v470 = vmax.f32 %v406, 0.0
  %v471 = vmax.f32 %v407, 0.0
  %v472 = vmax.f32 %v408, 0.0
  %v473 = vmax.f32 %v409, 0.0
  %v474 = vmax.f32 %v410, 0.0
  %v475 = vmax.f32 %v411, 0.0
  %v476 = vmax.f32 %v412, 0.0
  %v477 = vmax.f32 %v413, 0.0
  %v478 = vmax.f32 %v414, 0.0
  %vm479 = vcmask 130048
  %480 = vst.msk [vmem:[%s4] sm:$0xff] %vm479, %v415
  %481 = vst.msk [vmem:[%s4 + $0x8] sm:$0xff] %vm479, %v416
  %482 = vst.msk [vmem:[%s4 + $0x10] sm:$0xff] %vm479, %v417
  %483 = vst.msk [vmem:[%s4 + $0x18] sm:$0xff] %vm479, %v418
  %484 = vst.msk [vmem:[%s4 + $0x20] sm:$0xff] %vm479, %v419
  %485 = vst.msk [vmem:[%s4 + $0x28] sm:$0xff] %vm479, %v420
  %486 = vst.msk [vmem:[%s4 + $0x30] sm:$0xff] %vm479, %v421
  %487 = vst.msk [vmem:[%s4 + $0x38] sm:$0xff] %vm479, %v422
  %488 = vst.msk [vmem:[%s4 + $0x40] sm:$0xff] %vm479, %v423
  %489 = vst.msk [vmem:[%s4 + $0x48] sm:$0xff] %vm479, %v424
  %490 = vst.msk [vmem:[%s4 + $0x50] sm:$0xff] %vm479, %v425
  %491 = vst.msk [vmem:[%s4 + $0x58] sm:$0xff] %vm479, %v426
  %492 = vst.msk [vmem:[%s4 + $0x60] sm:$0xff] %vm479, %v427
  %493 = vst.msk [vmem:[%s4 + $0x68] sm:$0xff] %vm479, %v428
  %494 = vst.msk [vmem:[%s4 + $0x70] sm:$0xff] %vm479, %v429
  %495 = vst.msk [vmem:[%s4 + $0x78] sm:$0xff] %vm479, %v430
  %496 = vst.msk [vmem:[%s4 + $0x80] sm:$0xff] %vm479, %v431
  %497 = vst.msk [vmem:[%s4 + $0x88] sm:$0xff] %vm479, %v432
  %498 = vst.msk [vmem:[%s4 + $0x90] sm:$0xff] %vm479, %v433
  %499 = vst.msk [vmem:[%s4 + $0x98] sm:$0xff] %vm479, %v434
  %500 = vst.msk [vmem:[%s4 + $0xa0] sm:$0xff] %vm479, %v435
  %501 = vst.msk [vmem:[%s4 + $0xa8] sm:$0xff] %vm479, %v436
  %502 = vst.msk [vmem:[%s4 + $0xb0] sm:$0xff] %vm479, %v437
  %503 = vst.msk [vmem:[%s4 + $0xb8] sm:$0xff] %vm479, %v438
  %504 = vst.msk [vmem:[%s4 + $0xc0] sm:$0xff] %vm479, %v439
  %505 = vst.msk [vmem:[%s4 + $0xc8] sm:$0xff] %vm479, %v440
  %506 = vst.msk [vmem:[%s4 + $0xd0] sm:$0xff] %vm479, %v441
  %507 = vst.msk [vmem:[%s4 + $0xd8] sm:$0xff] %vm479, %v442
  %508 = vst.msk [vmem:[%s4 + $0xe0] sm:$0xff] %vm479, %v443
  %509 = vst.msk [vmem:[%s4 + $0xe8] sm:$0xff] %vm479, %v444
  %510 = vst.msk [vmem:[%s4 + $0xf0] sm:$0xff] %vm479, %v445
  %511 = vst.msk [vmem:[%s4 + $0xf8] sm:$0xff] %vm479, %v446
  %512 = vst.msk [vmem:[%s4 + $0x100] sm:$0xff] %vm479, %v447
  %513 = vst.msk [vmem:[%s4 + $0x108] sm:$0xff] %vm479, %v448
  %514 = vst.msk [vmem:[%s4 + $0x110] sm:$0xff] %vm479, %v449
  %515 = vst.msk [vmem:[%s4 + $0x118] sm:$0xff] %vm479, %v450
  %516 = vst.msk [vmem:[%s4 + $0x120] sm:$0xff] %vm479, %v451
  %517 = vst.msk [vmem:[%s4 + $0x128] sm:$0xff] %vm479, %v452
  %518 = vst.msk [vmem:[%s4 + $0x130] sm:$0xff] %vm479, %v453
  %519 = vst.msk [vmem:[%s4 + $0x138] sm:$0xff] %vm479, %v454
  %520 = vst.msk [vmem:[%s4 + $0x140] sm:$0xff] %vm479, %v455
  %521 = vst.msk [vmem:[%s4 + $0x148] sm:$0xff] %vm479, %v456
  %522 = vst.msk [vmem:[%s4 + $0x150] sm:$0xff] %vm479, %v457
  %523 = vst.msk [vmem:[%s4 + $0x158] sm:$0xff] %vm479, %v458
  %524 = vst.msk [vmem:[%s4 + $0x160] sm:$0xff] %vm479, %v459
  %525 = vst.msk [vmem:[%s4 + $0x168] sm:$0xff] %vm479, %v460
  %526 = vst.msk [vmem:[%s4 + $0x170] sm:$0xff] %vm479, %v461
  %527 = vst.msk [vmem:[%s4 + $0x178] sm:$0xff] %vm479, %v462
  %528 = vst.msk [vmem:[%s4 + $0x180] sm:$0xff] %vm479, %v463
  %529 = vst.msk [vmem:[%s4 + $0x188] sm:$0xff] %vm479, %v464
  %530 = vst.msk [vmem:[%s4 + $0x190] sm:$0xff] %vm479, %v465
  %531 = vst.msk [vmem:[%s4 + $0x198] sm:$0xff] %vm479, %v466
  %532 = vst.msk [vmem:[%s4 + $0x1a0] sm:$0xff] %vm479, %v467
  %533 = vst.msk [vmem:[%s4 + $0x1a8] sm:$0xff] %vm479, %v468
  %534 = vst.msk [vmem:[%s4 + $0x1b0] sm:$0xff] %vm479, %v469
  %535 = vst.msk [vmem:[%s4 + $0x1b8] sm:$0xff] %vm479, %v470
  %536 = vst.msk [vmem:[%s4 + $0x1c0] sm:$0xff] %vm479, %v471
  %537 = vst.msk [vmem:[%s4 + $0x1c8] sm:$0xff] %vm479, %v472
  %538 = vst.msk [vmem:[%s4 + $0x1d0] sm:$0xff] %vm479, %v473
  %539 = vst.msk [vmem:[%s4 + $0x1d8] sm:$0xff] %vm479, %v474
  %540 = vst.msk [vmem:[%s4 + $0x1e0] sm:$0xff] %vm479, %v475
  %541 = vst.msk [vmem:[%s4 + $0x1e8] sm:$0xff] %vm479, %v476
  %542 = vst.msk [vmem:[%s4 + $0x1f0] sm:$0xff] %vm479, %v477
  %543 = vst.msk [vmem:[%s4 + $0x1f8] sm:$0xff] %vm479, %v478
  // Predicated region
  $region18: #{bottleneck_forward.7} parent=0 // pred_check
    _
  $region19: #{bottleneck_forward.7} parent=0 // pred_check_branch
    %545 = sbr.rel (0) target = $region21
  $region20: #{bottleneck_forward.7} parent=0 // pred_region
    _
  $region21: #{bottleneck_forward.7} parent=0 // pred_fallthru
    _
  // Predicated region
  $region22: #{bottleneck_forward.7} parent=0 // pred_check
    _
  $region23: #{bottleneck_forward.7} parent=0 // pred_check_branch
    %547 = sbr.rel (0) target = $region25
  $region24: #{bottleneck_forward.7} parent=0 // pred_region
    _
  $region25: #{bottleneck_forward.7} parent=0 // pred_fallthru
    _

// kernel: bottleneck_forward.4
$region0: #{bottleneck_forward.4}
  #allocation0 [shape = 'u32[]', space=smem, size = 0x4, offset = 0x4, fixed_abs, tag = 'smem constant byte address 0x4 - core index']
  #allocation1 [shape = 'u32[144,128]{1,0:T(1,128)}', space=vmem, size = 0x12000, scoped, tag = 'internal scratch']
  %s0 = inlined_call_operand.vmem [shape: f32[512,16], index: 0, kind: input, shape index: {}]
  %s1 = inlined_call_operand.vmem [shape: bf16[16,4], index: 1, kind: input, shape index: {}]
  %s2 = inlined_call_operand.vmem [shape: bf16[512,4], index: 2, kind: output, shape index: {0}]
  %s3 = inlined_call_operand.vmem [shape: f32[1,8,4], index: 3, kind: output, shape index: {1}]
  %4 = xla_tuple %s2, %s3
  %s5 = sld [smem:[#allocation0]]
  $region26: #{bottleneck_forward.4} parent=0
    _
  %s7 = ssub.s32 1, %s5
  %s8 = scalar_select 0, %s7, %s5
  // Predicated region
  $region2: #{bottleneck_forward.4} parent=0 // pred_check
    _
  $region3: #{bottleneck_forward.4} parent=0 // pred_check_branch
    %10 = sbr.rel (0) target = $region5
  $region4: #{bottleneck_forward.4} parent=0 // pred_region
    _
  $region5: #{bottleneck_forward.4} parent=0 // pred_fallthru
    _
  // Predicated region
  $region6: #{bottleneck_forward.4} parent=0 // pred_check
    _
  $region7: #{bottleneck_forward.4} parent=0 // pred_check_branch
    %12 = sbr.rel (0) target = $region9
  $region8: #{bottleneck_forward.4} parent=0 // pred_region
    _
  $region9: #{bottleneck_forward.4} parent=0 // pred_fallthru
    _
  %v14 = vld [vmem:[%s0] sm:$0xff]
  %v15 = vld [vmem:[%s0 + $0x8] sm:$0xff]
  %v16 = vld [vmem:[%s0 + $0x10] sm:$0xff]
  %v17 = vld [vmem:[%s0 + $0x18] sm:$0xff]
  %v18 = vld [vmem:[%s0 + $0x20] sm:$0xff]
  %v19 = vld [vmem:[%s0 + $0x28] sm:$0xff]
  %v20 = vld [vmem:[%s0 + $0x30] sm:$0xff]
  %v21 = vld [vmem:[%s0 + $0x38] sm:$0xff]
  %v22 = vld [vmem:[%s0 + $0x40] sm:$0xff]
  %v23 = vld [vmem:[%s0 + $0x48] sm:$0xff]
  %v24 = vld [vmem:[%s0 + $0x50] sm:$0xff]
  %v25 = vld [vmem:[%s0 + $0x58] sm:$0xff]
  %v26 = vld [vmem:[%s0 + $0x60] sm:$0xff]
  %v27 = vld [vmem:[%s0 + $0x68] sm:$0xff]
  %v28 = vld [vmem:[%s0 + $0x70] sm:$0xff]
  %v29 = vld [vmem:[%s0 + $0x78] sm:$0xff]
  %v30 = vld [vmem:[%s0 + $0x80] sm:$0xff]
  %v31 = vld [vmem:[%s0 + $0x88] sm:$0xff]
  %v32 = vld [vmem:[%s0 + $0x90] sm:$0xff]
  %v33 = vld [vmem:[%s0 + $0x98] sm:$0xff]
  %v34 = vld [vmem:[%s0 + $0xa0] sm:$0xff]
  %v35 = vld [vmem:[%s0 + $0xa8] sm:$0xff]
  %v36 = vld [vmem:[%s0 + $0xb0] sm:$0xff]
  %v37 = vld [vmem:[%s0 + $0xb8] sm:$0xff]
  %v38 = vld [vmem:[%s0 + $0xc0] sm:$0xff]
  %v39 = vld [vmem:[%s0 + $0xc8] sm:$0xff]
  %v40 = vld [vmem:[%s0 + $0xd0] sm:$0xff]
  %v41 = vld [vmem:[%s0 + $0xd8] sm:$0xff]
  %v42 = vld [vmem:[%s0 + $0xe0] sm:$0xff]
  %v43 = vld [vmem:[%s0 + $0xe8] sm:$0xff]
  %v44 = vld [vmem:[%s0 + $0xf0] sm:$0xff]
  %v45 = vld [vmem:[%s0 + $0xf8] sm:$0xff]
  %v46 = vld [vmem:[%s0 + $0x100] sm:$0xff]
  %v47 = vld [vmem:[%s0 + $0x108] sm:$0xff]
  %v48 = vld [vmem:[%s0 + $0x110] sm:$0xff]
  %v49 = vld [vmem:[%s0 + $0x118] sm:$0xff]
  %v50 = vld [vmem:[%s0 + $0x120] sm:$0xff]
  %v51 = vld [vmem:[%s0 + $0x128] sm:$0xff]
  %v52 = vld [vmem:[%s0 + $0x130] sm:$0xff]
  %v53 = vld [vmem:[%s0 + $0x138] sm:$0xff]
  %v54 = vld [vmem:[%s0 + $0x140] sm:$0xff]
  %v55 = vld [vmem:[%s0 + $0x148] sm:$0xff]
  %v56 = vld [vmem:[%s0 + $0x150] sm:$0xff]
  %v57 = vld [vmem:[%s0 + $0x158] sm:$0xff]
  %v58 = vld [vmem:[%s0 + $0x160] sm:$0xff]
  %v59 = vld [vmem:[%s0 + $0x168] sm:$0xff]
  %v60 = vld [vmem:[%s0 + $0x170] sm:$0xff]
  %v61 = vld [vmem:[%s0 + $0x178] sm:$0xff]
  %v62 = vld [vmem:[%s0 + $0x180] sm:$0xff]
  %v63 = vld [vmem:[%s0 + $0x188] sm:$0xff]
  %v64 = vld [vmem:[%s0 + $0x190] sm:$0xff]
  %v65 = vld [vmem:[%s0 + $0x198] sm:$0xff]
  %v66 = vld [vmem:[%s0 + $0x1a0] sm:$0xff]
  %v67 = vld [vmem:[%s0 + $0x1a8] sm:$0xff]
  %v68 = vld [vmem:[%s0 + $0x1b0] sm:$0xff]
  %v69 = vld [vmem:[%s0 + $0x1b8] sm:$0xff]
  %v70 = vld [vmem:[%s0 + $0x1c0] sm:$0xff]
  %v71 = vld [vmem:[%s0 + $0x1c8] sm:$0xff]
  %v72 = vld [vmem:[%s0 + $0x1d0] sm:$0xff]
  %v73 = vld [vmem:[%s0 + $0x1d8] sm:$0xff]
  %v74 = vld [vmem:[%s0 + $0x1e0] sm:$0xff]
  %v75 = vld [vmem:[%s0 + $0x1e8] sm:$0xff]
  %v76 = vld [vmem:[%s0 + $0x1f0] sm:$0xff]
  %v77 = vld [vmem:[%s0 + $0x1f8] sm:$0xff]
  %v78 = vpack.c.bf16 %v15, %v14
  %v79 = vpack.c.bf16 %v17, %v16
  %v80 = vpack.c.bf16 %v19, %v18
  %v81 = vpack.c.bf16 %v21, %v20
  %v82 = vpack.c.bf16 %v23, %v22
  %v83 = vpack.c.bf16 %v25, %v24
  %v84 = vpack.c.bf16 %v27, %v26
  %v85 = vpack.c.bf16 %v29, %v28
  %v86 = vpack.c.bf16 %v31, %v30
  %v87 = vpack.c.bf16 %v33, %v32
  %v88 = vpack.c.bf16 %v35, %v34
  %v89 = vpack.c.bf16 %v37, %v36
  %v90 = vpack.c.bf16 %v39, %v38
  %v91 = vpack.c.bf16 %v41, %v40
  %v92 = vpack.c.bf16 %v43, %v42
  %v93 = vpack.c.bf16 %v45, %v44
  %v94 = vpack.c.bf16 %v47, %v46
  %v95 = vpack.c.bf16 %v49, %v48
  %v96 = vpack.c.bf16 %v51, %v50
  %v97 = vpack.c.bf16 %v53, %v52
  %v98 = vpack.c.bf16 %v55, %v54
  %v99 = vpack.c.bf16 %v57, %v56
  %v100 = vpack.c.bf16 %v59, %v58
  %v101 = vpack.c.bf16 %v61, %v60
  %v102 = vpack.c.bf16 %v63, %v62
  %v103 = vpack.c.bf16 %v65, %v64
  %v104 = vpack.c.bf16 %v67, %v66
  %v105 = vpack.c.bf16 %v69, %v68
  %v106 = vpack.c.bf16 %v71, %v70
  %v107 = vpack.c.bf16 %v73, %v72
  %v108 = vpack.c.bf16 %v75, %v74
  %v109 = vpack.c.bf16 %v77, %v76
  %v110 = vld [vmem:[%s1] sm:$0xf]
  %v111 = vld [vmem:[%s1 + $0x4] sm:$0xf]
  %v114 = vunpack.c.l.b16 %v110
  %v115 = vunpack.c.l.b16 %v111
  %v116 = vpack.c.b16 %v115, %v114
  %vm118 = vcmask 130048
  %v120 = vsel %vm118, %v78, 0
  %v123 = vsel %vm118, %v79, 0
  %v126 = vsel %vm118, %v80, 0
  %v129 = vsel %vm118, %v81, 0
  %v132 = vsel %vm118, %v82, 0
  %v135 = vsel %vm118, %v83, 0
  %v138 = vsel %vm118, %v84, 0
  %v141 = vsel %vm118, %v85, 0
  %v144 = vsel %vm118, %v86, 0
  %v147 = vsel %vm118, %v87, 0
  %v150 = vsel %vm118, %v88, 0
  %v153 = vsel %vm118, %v89, 0
  %v156 = vsel %vm118, %v90, 0
  %v159 = vsel %vm118, %v91, 0
  %v162 = vsel %vm118, %v92, 0
  %v165 = vsel %vm118, %v93, 0
  %v168 = vsel %vm118, %v94, 0
  %v171 = vsel %vm118, %v95, 0
  %v174 = vsel %vm118, %v96, 0
  %v177 = vsel %vm118, %v97, 0
  %v180 = vsel %vm118, %v98, 0
  %v183 = vsel %vm118, %v99, 0
  %v186 = vsel %vm118, %v100, 0
  %v189 = vsel %vm118, %v101, 0
  %v192 = vsel %vm118, %v102, 0
  %v195 = vsel %vm118, %v103, 0
  %v198 = vsel %vm118, %v104, 0
  %v201 = vsel %vm118, %v105, 0
  %v204 = vsel %vm118, %v106, 0
  %v207 = vsel %vm118, %v107, 0
  %v210 = vsel %vm118, %v108, 0
  %v213 = vsel %vm118, %v109, 0
  %215 = vmatprep.subr.bf16.mxu0 0
  %216 = vmatpush1.bf16.msra.mxu0 %v116
  %217 = vmatprep.subr.bf16.mxu0 0
  %218 = vmatpush1.bf16.msra.mxu0 0
  %219 = vmatprep.subr.bf16.mxu0 0
  %220 = vmatpush1.bf16.msra.mxu0 0
  %221 = vmatprep.subr.bf16.mxu0 0
  %222 = vmatpush1.bf16.msra.mxu0 0
  %223 = vmatprep.subr.bf16.mxu0 0
  %224 = vmatpush1.bf16.msra.mxu0 0
  %225 = vmatprep.subr.bf16.mxu0 0
  %226 = vmatpush1.bf16.msra.mxu0 0
  %227 = vmatprep.subr.bf16.mxu0 0
  %228 = vmatpush1.bf16.msra.mxu0 0
  %229 = vmatprep.subr.bf16.mxu0 0
  %230 = vmatpush1.bf16.msra.mxu0 0
  %231 = vmatprep.subr.bf16.mxu0 0
  %232 = vmatpush1.bf16.msra.mxu0 0
  %233 = vmatprep.subr.bf16.mxu0 0
  %234 = vmatpush1.bf16.msra.mxu0 0
  %235 = vmatprep.subr.bf16.mxu0 0
  %236 = vmatpush1.bf16.msra.mxu0 0
  %237 = vmatprep.subr.bf16.mxu0 0
  %238 = vmatpush1.bf16.msra.mxu0 0
  %239 = vmatprep.subr.bf16.mxu0 0
  %240 = vmatpush1.bf16.msra.mxu0 0
  %241 = vmatprep.subr.bf16.mxu0 0
  %242 = vmatpush1.bf16.msra.mxu0 0
  %243 = vmatprep.subr.bf16.mxu0 0
  %244 = vmatpush1.bf16.msra.mxu0 0
  %245 = vmatprep.subr.bf16.mxu0 0
  %246 = vmatpush1.bf16.msra.mxu0 0
  %247 = vmatprep.mubr.bf16.mxu0 0
  %248 = vmatmul.mubr.bf16.gmra.mrb[0].mxu0 %v120
  %v249 = vpop.f32.mrb[0].mxu0
  %v250 = vadd.f32 0.0, %v249
  %v251 = vpop.f32.mrb[0].mxu0
  %v252 = vpop.f32.mrb[0].mxu0
  %v253 = vadd.f32 0.0, %v252
  %v254 = vpop.f32.mrb[0].mxu0
  %255 = vmatprep.mubr.bf16.mxu0 0
  %256 = vmatmul.mubr.bf16.gmra.mrb[0].mxu0 %v123
  %v257 = vpop.f32.mrb[0].mxu0
  %v258 = vadd.f32 0.0, %v257
  %v259 = vpop.f32.mrb[0].mxu0
  %v260 = vpop.f32.mrb[0].mxu0
  %v261 = vadd.f32 0.0, %v260
  %v262 = vpop.f32.mrb[0].mxu0
  %263 = vmatprep.mubr.bf16.mxu0 0
  %264 = vmatmul.mubr.bf16.gmra.mrb[0].mxu0 %v126
  %v265 = vpop.f32.mrb[0].mxu0
  %v266 = vadd.f32 0.0, %v265
  %v267 = vpop.f32.mrb[0].mxu0
  %v268 = vpop.f32.mrb[0].mxu0
  %v269 = vadd.f32 0.0, %v268
  %v270 = vpop.f32.mrb[0].mxu0
  %271 = vmatprep.mubr.bf16.mxu0 0
  %272 = vmatmul.mubr.bf16.gmra.mrb[0].mxu0 %v129
  %v273 = vpop.f32.mrb[0].mxu0
  %v274 = vadd.f32 0.0, %v273
  %v275 = vpop.f32.mrb[0].mxu0
  %v276 = vpop.f32.mrb[0].mxu0
  %v277 = vadd.f32 0.0, %v276
  %v278 = vpop.f32.mrb[0].mxu0
  %279 = vmatprep.mubr.bf16.mxu0 0
  %280 = vmatmul.mubr.bf16.gmra.mrb[0].mxu0 %v132
  %v281 = vpop.f32.mrb[0].mxu0
  %v282 = vadd.f32 0.0, %v281
  %v283 = vpop.f32.mrb[0].mxu0
  %v284 = vpop.f32.mrb[0].mxu0
  %v285 = vadd.f32 0.0, %v284
  %v286 = vpop.f32.mrb[0].mxu0
  %287 = vmatprep.mubr.bf16.mxu0 0
  %288 = vmatmul.mubr.bf16.gmra.mrb[0].mxu0 %v135
  %v289 = vpop.f32.mrb[0].mxu0
  %v290 = vadd.f32 0.0, %v289
  %v291 = vpop.f32.mrb[0].mxu0
  %v292 = vpop.f32.mrb[0].mxu0
  %v293 = vadd.f32 0.0, %v292
  %v294 = vpop.f32.mrb[0].mxu0
  %295 = vmatprep.mubr.bf16.mxu0 0
  %296 = vmatmul.mubr.bf16.gmra.mrb[0].mxu0 %v138
  %v297 = vpop.f32.mrb[0].mxu0
  %v298 = vadd.f32 0.0, %v297
  %v299 = vpop.f32.mrb[0].mxu0
  %v300 = vpop.f32.mrb[0].mxu0
  %v301 = vadd.f32 0.0, %v300
  %v302 = vpop.f32.mrb[0].mxu0
  %303 = vmatprep.mubr.bf16.mxu0 0
  %304 = vmatmul.mubr.bf16.gmra.mrb[0].mxu0 %v141
  %v305 = vpop.f32.mrb[0].mxu0
  %v306 = vadd.f32 0.0, %v305
  %v307 = vpop.f32.mrb[0].mxu0
  %v308 = vpop.f32.mrb[0].mxu0
  %v309 = vadd.f32 0.0, %v308
  %v310 = vpop.f32.mrb[0].mxu0
  %311 = vmatprep.mubr.bf16.mxu0 0
  %312 = vmatmul.mubr.bf16.gmra.mrb[0].mxu0 %v144
  %v313 = vpop.f32.mrb[0].mxu0
  %v314 = vadd.f32 0.0, %v313
  %v315 = vpop.f32.mrb[0].mxu0
  %v316 = vpop.f32.mrb[0].mxu0
  %v317 = vadd.f32 0.0, %v316
  %v318 = vpop.f32.mrb[0].mxu0
  %319 = vmatprep.mubr.bf16.mxu0 0
  %320 = vmatmul.mubr.bf16.gmra.mrb[0].mxu0 %v147
  %v321 = vpop.f32.mrb[0].mxu0
  %v322 = vadd.f32 0.0, %v321
  %v323 = vpop.f32.mrb[0].mxu0
  %v324 = vpop.f32.mrb[0].mxu0
  %v325 = vadd.f32 0.0, %v324
  %v326 = vpop.f32.mrb[0].mxu0
  %327 = vmatprep.mubr.bf16.mxu0 0
  %328 = vmatmul.mubr.bf16.gmra.mrb[0].mxu0 %v150
  %v329 = vpop.f32.mrb[0].mxu0
  %v330 = vadd.f32 0.0, %v329
  %v331 = vpop.f32.mrb[0].mxu0
  %v332 = vpop.f32.mrb[0].mxu0
  %v333 = vadd.f32 0.0, %v332
  %v334 = vpop.f32.mrb[0].mxu0
  %335 = vmatprep.mubr.bf16.mxu0 0
  %336 = vmatmul.mubr.bf16.gmra.mrb[0].mxu0 %v153
  %v337 = vpop.f32.mrb[0].mxu0
  %v338 = vadd.f32 0.0, %v337
  %v339 = vpop.f32.mrb[0].mxu0
  %v340 = vpop.f32.mrb[0].mxu0
  %v341 = vadd.f32 0.0, %v340
  %v342 = vpop.f32.mrb[0].mxu0
  %343 = vmatprep.mubr.bf16.mxu0 0
  %344 = vmatmul.mubr.bf16.gmra.mrb[0].mxu0 %v156
  %v345 = vpop.f32.mrb[0].mxu0
  %v346 = vadd.f32 0.0, %v345
  %v347 = vpop.f32.mrb[0].mxu0
  %v348 = vpop.f32.mrb[0].mxu0
  %v349 = vadd.f32 0.0, %v348
  %v350 = vpop.f32.mrb[0].mxu0
  %351 = vmatprep.mubr.bf16.mxu0 0
  %352 = vmatmul.mubr.bf16.gmra.mrb[0].mxu0 %v159
  %v353 = vpop.f32.mrb[0].mxu0
  %v354 = vadd.f32 0.0, %v353
  %v355 = vpop.f32.mrb[0].mxu0
  %v356 = vpop.f32.mrb[0].mxu0
  %v357 = vadd.f32 0.0, %v356
  %v358 = vpop.f32.mrb[0].mxu0
  %359 = vmatprep.mubr.bf16.mxu0 0
  %360 = vmatmul.mubr.bf16.gmra.mrb[0].mxu0 %v162
  %v361 = vpop.f32.mrb[0].mxu0
  %v362 = vadd.f32 0.0, %v361
  %v363 = vpop.f32.mrb[0].mxu0
  %v364 = vpop.f32.mrb[0].mxu0
  %v365 = vadd.f32 0.0, %v364
  %v366 = vpop.f32.mrb[0].mxu0
  %367 = vmatprep.mubr.bf16.mxu0 0
  %368 = vmatmul.mubr.bf16.gmra.mrb[0].mxu0 %v165
  %v369 = vpop.f32.mrb[0].mxu0
  %v370 = vadd.f32 0.0, %v369
  %v371 = vpop.f32.mrb[0].mxu0
  %v372 = vpop.f32.mrb[0].mxu0
  %v373 = vadd.f32 0.0, %v372
  %v374 = vpop.f32.mrb[0].mxu0
  %375 = vmatprep.mubr.bf16.mxu0 0
  %376 = vmatmul.mubr.bf16.gmra.mrb[0].mxu0 %v168
  %v377 = vpop.f32.mrb[0].mxu0
  %v378 = vadd.f32 0.0, %v377
  %v379 = vpop.f32.mrb[0].mxu0
  %v380 = vpop.f32.mrb[0].mxu0
  %v381 = vadd.f32 0.0, %v380
  %v382 = vpop.f32.mrb[0].mxu0
  %383 = vmatprep.mubr.bf16.mxu0 0
  %384 = vmatmul.mubr.bf16.gmra.mrb[0].mxu0 %v171
  %v385 = vpop.f32.mrb[0].mxu0
  %v386 = vadd.f32 0.0, %v385
  %v387 = vpop.f32.mrb[0].mxu0
  %v388 = vpop.f32.mrb[0].mxu0
  %v389 = vadd.f32 0.0, %v388
  %v390 = vpop.f32.mrb[0].mxu0
  %391 = vmatprep.mubr.bf16.mxu0 0
  %392 = vmatmul.mubr.bf16.gmra.mrb[0].mxu0 %v174
  %v393 = vpop.f32.mrb[0].mxu0
  %v394 = vadd.f32 0.0, %v393
  %v395 = vpop.f32.mrb[0].mxu0
  %v396 = vpop.f32.mrb[0].mxu0
  %v397 = vadd.f32 0.0, %v396
  %v398 = vpop.f32.mrb[0].mxu0
  %399 = vmatprep.mubr.bf16.mxu0 0
  %400 = vmatmul.mubr.bf16.gmra.mrb[0].mxu0 %v177
  %v401 = vpop.f32.mrb[0].mxu0
  %v402 = vadd.f32 0.0, %v401
  %v403 = vpop.f32.mrb[0].mxu0
  %v404 = vpop.f32.mrb[0].mxu0
  %v405 = vadd.f32 0.0, %v404
  %v406 = vpop.f32.mrb[0].mxu0
  %407 = vmatprep.mubr.bf16.mxu0 0
  %408 = vmatmul.mubr.bf16.gmra.mrb[0].mxu0 %v180
  %v409 = vpop.f32.mrb[0].mxu0
  %v410 = vadd.f32 0.0, %v409
  %v411 = vpop.f32.mrb[0].mxu0
  %v412 = vpop.f32.mrb[0].mxu0
  %v413 = vadd.f32 0.0, %v412
  %v414 = vpop.f32.mrb[0].mxu0
  %415 = vmatprep.mubr.bf16.mxu0 0
  %416 = vmatmul.mubr.bf16.gmra.mrb[0].mxu0 %v183
  %v417 = vpop.f32.mrb[0].mxu0
  %v418 = vadd.f32 0.0, %v417
  %v419 = vpop.f32.mrb[0].mxu0
  %v420 = vpop.f32.mrb[0].mxu0
  %v421 = vadd.f32 0.0, %v420
  %v422 = vpop.f32.mrb[0].mxu0
  %423 = vmatprep.mubr.bf16.mxu0 0
  %424 = vmatmul.mubr.bf16.gmra.mrb[0].mxu0 %v186
  %v425 = vpop.f32.mrb[0].mxu0
  %v426 = vadd.f32 0.0, %v425
  %v427 = vpop.f32.mrb[0].mxu0
  %v428 = vpop.f32.mrb[0].mxu0
  %v429 = vadd.f32 0.0, %v428
  %v430 = vpop.f32.mrb[0].mxu0
  %431 = vmatprep.mubr.bf16.mxu0 0
  %432 = vmatmul.mubr.bf16.gmra.mrb[0].mxu0 %v189
  %v433 = vpop.f32.mrb[0].mxu0
  %v434 = vadd.f32 0.0, %v433
  %v435 = vpop.f32.mrb[0].mxu0
  %v436 = vpop.f32.mrb[0].mxu0
  %v437 = vadd.f32 0.0, %v436
  %v438 = vpop.f32.mrb[0].mxu0
  %439 = vmatprep.mubr.bf16.mxu0 0
  %440 = vmatmul.mubr.bf16.gmra.mrb[0].mxu0 %v192
  %v441 = vpop.f32.mrb[0].mxu0
  %v442 = vadd.f32 0.0, %v441
  %v443 = vpop.f32.mrb[0].mxu0
  %v444 = vpop.f32.mrb[0].mxu0
  %v445 = vadd.f32 0.0, %v444
  %v446 = vpop.f32.mrb[0].mxu0
  %447 = vmatprep.mubr.bf16.mxu0 0
  %448 = vmatmul.mubr.bf16.gmra.mrb[0].mxu0 %v195
  %v449 = vpop.f32.mrb[0].mxu0
  %v450 = vadd.f32 0.0, %v449
  %v451 = vpop.f32.mrb[0].mxu0
  %v452 = vpop.f32.mrb[0].mxu0
  %v453 = vadd.f32 0.0, %v452
  %v454 = vpop.f32.mrb[0].mxu0
  %455 = vmatprep.mubr.bf16.mxu0 0
  %456 = vmatmul.mubr.bf16.gmra.mrb[0].mxu0 %v198
  %v457 = vpop.f32.mrb[0].mxu0
  %v458 = vadd.f32 0.0, %v457
  %v459 = vpop.f32.mrb[0].mxu0
  %v460 = vpop.f32.mrb[0].mxu0
  %v461 = vadd.f32 0.0, %v460
  %v462 = vpop.f32.mrb[0].mxu0
  %463 = vmatprep.mubr.bf16.mxu0 0
  %464 = vmatmul.mubr.bf16.gmra.mrb[0].mxu0 %v201
  %v465 = vpop.f32.mrb[0].mxu0
  %v466 = vadd.f32 0.0, %v465
  %v467 = vpop.f32.mrb[0].mxu0
  %v468 = vpop.f32.mrb[0].mxu0
  %v469 = vadd.f32 0.0, %v468
  %v470 = vpop.f32.mrb[0].mxu0
  %471 = vmatprep.mubr.bf16.mxu0 0
  %472 = vmatmul.mubr.bf16.gmra.mrb[0].mxu0 %v204
  %v473 = vpop.f32.mrb[0].mxu0
  %v474 = vadd.f32 0.0, %v473
  %v475 = vpop.f32.mrb[0].mxu0
  %v476 = vpop.f32.mrb[0].mxu0
  %v477 = vadd.f32 0.0, %v476
  %v478 = vpop.f32.mrb[0].mxu0
  %479 = vmatprep.mubr.bf16.mxu0 0
  %480 = vmatmul.mubr.bf16.gmra.mrb[0].mxu0 %v207
  %v481 = vpop.f32.mrb[0].mxu0
  %v482 = vadd.f32 0.0, %v481
  %v483 = vpop.f32.mrb[0].mxu0
  %v484 = vpop.f32.mrb[0].mxu0
  %v485 = vadd.f32 0.0, %v484
  %v486 = vpop.f32.mrb[0].mxu0
  %487 = vmatprep.mubr.bf16.mxu0 0
  %488 = vmatmul.mubr.bf16.gmra.mrb[0].mxu0 %v210
  %v489 = vpop.f32.mrb[0].mxu0
  %v490 = vadd.f32 0.0, %v489
  %v491 = vpop.f32.mrb[0].mxu0
  %v492 = vpop.f32.mrb[0].mxu0
  %v493 = vadd.f32 0.0, %v492
  %v494 = vpop.f32.mrb[0].mxu0
  %495 = vmatprep.mubr.bf16.mxu0 0
  %496 = vmatmul.mubr.bf16.gmra.mrb[0].mxu0 %v213
  %v497 = vpop.f32.mrb[0].mxu0
  %v498 = vadd.f32 0.0, %v497
  %v499 = vpop.f32.mrb[0].mxu0
  %v500 = vpop.f32.mrb[0].mxu0
  %v501 = vadd.f32 0.0, %v500
  %v502 = vpop.f32.mrb[0].mxu0
  %503 = vdwg.mxu0
  %v504 = vpack.c.bf16 %v253, %v250
  %v505 = vpack.c.bf16 %v261, %v258
  %v506 = vpack.c.bf16 %v269, %v266
  %v507 = vpack.c.bf16 %v277, %v274
  %v508 = vpack.c.bf16 %v285, %v282
  %v509 = vpack.c.bf16 %v293, %v290
  %v510 = vpack.c.bf16 %v301, %v298
  %v511 = vpack.c.bf16 %v309, %v306
  %v512 = vpack.c.bf16 %v317, %v314
  %v513 = vpack.c.bf16 %v325, %v322
  %v514 = vpack.c.bf16 %v333, %v330
  %v515 = vpack.c.bf16 %v341, %v338
  %v516 = vpack.c.bf16 %v349, %v346
  %v517 = vpack.c.bf16 %v357, %v354
  %v518 = vpack.c.bf16 %v365, %v362
  %v519 = vpack.c.bf16 %v373, %v370
  %v520 = vpack.c.bf16 %v381, %v378
  %v521 = vpack.c.bf16 %v389, %v386
  %v522 = vpack.c.bf16 %v397, %v394
  %v523 = vpack.c.bf16 %v405, %v402
  %v524 = vpack.c.bf16 %v413, %v410
  %v525 = vpack.c.bf16 %v421, %v418
  %v526 = vpack.c.bf16 %v429, %v426
  %v527 = vpack.c.bf16 %v437, %v434
  %v528 = vpack.c.bf16 %v445, %v442
  %v529 = vpack.c.bf16 %v453, %v450
  %v530 = vpack.c.bf16 %v461, %v458
  %v531 = vpack.c.bf16 %v469, %v466
  %v532 = vpack.c.bf16 %v477, %v474
  %v533 = vpack.c.bf16 %v485, %v482
  %v534 = vpack.c.bf16 %v493, %v490
  %v535 = vpack.c.bf16 %v501, %v498
  %v568 = vunpack.c.l.b16 %v504
  %v569 = vunpack.c.h.b16 %v504
  %v570 = vunpack.c.l.b16 %v505
  %v571 = vunpack.c.h.b16 %v505
  %v572 = vunpack.c.l.b16 %v506
  %v573 = vunpack.c.h.b16 %v506
  %v574 = vunpack.c.l.b16 %v507
  %v575 = vunpack.c.h.b16 %v507
  %v576 = vunpack.c.l.b16 %v508
  %v577 = vunpack.c.h.b16 %v508
  %v578 = vunpack.c.l.b16 %v509
  %v579 = vunpack.c.h.b16 %v509
  %v580 = vunpack.c.l.b16 %v510
  %v581 = vunpack.c.h.b16 %v510
  %v582 = vunpack.c.l.b16 %v511
  %v583 = vunpack.c.h.b16 %v511
  %v584 = vunpack.c.l.b16 %v512
  %v585 = vunpack.c.h.b16 %v512
  %v586 = vunpack.c.l.b16 %v513
  %v587 = vunpack.c.h.b16 %v513
  %v588 = vunpack.c.l.b16 %v514
  %v589 = vunpack.c.h.b16 %v514
  %v590 = vunpack.c.l.b16 %v515
  %v591 = vunpack.c.h.b16 %v515
  %v592 = vunpack.c.l.b16 %v516
  %v593 = vunpack.c.h.b16 %v516
  %v594 = vunpack.c.l.b16 %v517
  %v595 = vunpack.c.h.b16 %v517
  %v596 = vunpack.c.l.b16 %v518
  %v597 = vunpack.c.h.b16 %v518
  %v598 = vunpack.c.l.b16 %v519
  %v599 = vunpack.c.h.b16 %v519
  %v600 = vunpack.c.l.b16 %v520
  %v601 = vunpack.c.h.b16 %v520
  %v602 = vunpack.c.l.b16 %v521
  %v603 = vunpack.c.h.b16 %v521
  %v604 = vunpack.c.l.b16 %v522
  %v605 = vunpack.c.h.b16 %v522
  %v606 = vunpack.c.l.b16 %v523
  %v607 = vunpack.c.h.b16 %v523
  %v608 = vunpack.c.l.b16 %v524
  %v609 = vunpack.c.h.b16 %v524
  %v610 = vunpack.c.l.b16 %v525
  %v611 = vunpack.c.h.b16 %v525
  %v612 = vunpack.c.l.b16 %v526
  %v613 = vunpack.c.h.b16 %v526
  %v614 = vunpack.c.l.b16 %v527
  %v615 = vunpack.c.h.b16 %v527
  %v616 = vunpack.c.l.b16 %v528
  %v617 = vunpack.c.h.b16 %v528
  %v618 = vunpack.c.l.b16 %v529
  %v619 = vunpack.c.h.b16 %v529
  %v620 = vunpack.c.l.b16 %v530
  %v621 = vunpack.c.h.b16 %v530
  %v622 = vunpack.c.l.b16 %v531
  %v623 = vunpack.c.h.b16 %v531
  %v624 = vunpack.c.l.b16 %v532
  %v625 = vunpack.c.h.b16 %v532
  %v626 = vunpack.c.l.b16 %v533
  %v627 = vunpack.c.h.b16 %v533
  %v628 = vunpack.c.l.b16 %v534
  %v629 = vunpack.c.h.b16 %v534
  %v630 = vunpack.c.l.b16 %v535
  %v631 = vunpack.c.h.b16 %v535
  %v632 = vpack.c.b16 %v568, %v568
  %v633 = vpack.c.b16 %v569, %v569
  %v634 = vpack.c.b16 %v570, %v570
  %v635 = vpack.c.b16 %v571, %v571
  %v636 = vpack.c.b16 %v572, %v572
  %v637 = vpack.c.b16 %v573, %v573
  %v638 = vpack.c.b16 %v574, %v574
  %v639 = vpack.c.b16 %v575, %v575
  %v640 = vpack.c.b16 %v576, %v576
  %v641 = vpack.c.b16 %v577, %v577
  %v642 = vpack.c.b16 %v578, %v578
  %v643 = vpack.c.b16 %v579, %v579
  %v644 = vpack.c.b16 %v580, %v580
  %v645 = vpack.c.b16 %v581, %v581
  %v646 = vpack.c.b16 %v582, %v582
  %v647 = vpack.c.b16 %v583, %v583
  %v648 = vpack.c.b16 %v584, %v584
  %v649 = vpack.c.b16 %v585, %v585
  %v650 = vpack.c.b16 %v586, %v586
  %v651 = vpack.c.b16 %v587, %v587
  %v652 = vpack.c.b16 %v588, %v588
  %v653 = vpack.c.b16 %v589, %v589
  %v654 = vpack.c.b16 %v590, %v590
  %v655 = vpack.c.b16 %v591, %v591
  %v656 = vpack.c.b16 %v592, %v592
  %v657 = vpack.c.b16 %v593, %v593
  %v658 = vpack.c.b16 %v594, %v594
  %v659 = vpack.c.b16 %v595, %v595
  %v660 = vpack.c.b16 %v596, %v596
  %v661 = vpack.c.b16 %v597, %v597
  %v662 = vpack.c.b16 %v598, %v598
  %v663 = vpack.c.b16 %v599, %v599
  %v664 = vpack.c.b16 %v600, %v600
  %v665 = vpack.c.b16 %v601, %v601
  %v666 = vpack.c.b16 %v602, %v602
  %v667 = vpack.c.b16 %v603, %v603
  %v668 = vpack.c.b16 %v604, %v604
  %v669 = vpack.c.b16 %v605, %v605
  %v670 = vpack.c.b16 %v606, %v606
  %v671 = vpack.c.b16 %v607, %v607
  %v672 = vpack.c.b16 %v608, %v608
  %v673 = vpack.c.b16 %v609, %v609
  %v674 = vpack.c.b16 %v610, %v610
  %v675 = vpack.c.b16 %v611, %v611
  %v676 = vpack.c.b16 %v612, %v612
  %v677 = vpack.c.b16 %v613, %v613
  %v678 = vpack.c.b16 %v614, %v614
  %v679 = vpack.c.b16 %v615, %v615
  %v680 = vpack.c.b16 %v616, %v616
  %v681 = vpack.c.b16 %v617, %v617
  %v682 = vpack.c.b16 %v618, %v618
  %v683 = vpack.c.b16 %v619, %v619
  %v684 = vpack.c.b16 %v620, %v620
  %v685 = vpack.c.b16 %v621, %v621
  %v686 = vpack.c.b16 %v622, %v622
  %v687 = vpack.c.b16 %v623, %v623
  %v688 = vpack.c.b16 %v624, %v624
  %v689 = vpack.c.b16 %v625, %v625
  %v690 = vpack.c.b16 %v626, %v626
  %v691 = vpack.c.b16 %v627, %v627
  %v692 = vpack.c.b16 %v628, %v628
  %v693 = vpack.c.b16 %v629, %v629
  %v694 = vpack.c.b16 %v630, %v630
  %v695 = vpack.c.b16 %v631, %v631
  %vm760 = vcmask 27648
  %761 = vst.msk [vmem:[%s2] sm:$0xf] %vm760, %v632
  %762 = vst.msk [vmem:[%s2 + $0x4] sm:$0xf] %vm760, %v633
  %763 = vst.msk [vmem:[%s2 + $0x8] sm:$0xf] %vm760, %v634
  %764 = vst.msk [vmem:[%s2 + $0xc] sm:$0xf] %vm760, %v635
  %765 = vst.msk [vmem:[%s2 + $0x10] sm:$0xf] %vm760, %v636
  %766 = vst.msk [vmem:[%s2 + $0x14] sm:$0xf] %vm760, %v637
  %767 = vst.msk [vmem:[%s2 + $0x18] sm:$0xf] %vm760, %v638
  %768 = vst.msk [vmem:[%s2 + $0x1c] sm:$0xf] %vm760, %v639
  %769 = vst.msk [vmem:[%s2 + $0x20] sm:$0xf] %vm760, %v640
  %770 = vst.msk [vmem:[%s2 + $0x24] sm:$0xf] %vm760, %v641
  %771 = vst.msk [vmem:[%s2 + $0x28] sm:$0xf] %vm760, %v642
  %772 = vst.msk [vmem:[%s2 + $0x2c] sm:$0xf] %vm760, %v643
  %773 = vst.msk [vmem:[%s2 + $0x30] sm:$0xf] %vm760, %v644
  %774 = vst.msk [vmem:[%s2 + $0x34] sm:$0xf] %vm760, %v645
  %775 = vst.msk [vmem:[%s2 + $0x38] sm:$0xf] %vm760, %v646
  %776 = vst.msk [vmem:[%s2 + $0x3c] sm:$0xf] %vm760, %v647
  %777 = vst.msk [vmem:[%s2 + $0x40] sm:$0xf] %vm760, %v648
  %778 = vst.msk [vmem:[%s2 + $0x44] sm:$0xf] %vm760, %v649
  %779 = vst.msk [vmem:[%s2 + $0x48] sm:$0xf] %vm760, %v650
  %780 = vst.msk [vmem:[%s2 + $0x4c] sm:$0xf] %vm760, %v651
  %781 = vst.msk [vmem:[%s2 + $0x50] sm:$0xf] %vm760, %v652
  %782 = vst.msk [vmem:[%s2 + $0x54] sm:$0xf] %vm760, %v653
  %783 = vst.msk [vmem:[%s2 + $0x58] sm:$0xf] %vm760, %v654
  %784 = vst.msk [vmem:[%s2 + $0x5c] sm:$0xf] %vm760, %v655
  %785 = vst.msk [vmem:[%s2 + $0x60] sm:$0xf] %vm760, %v656
  %786 = vst.msk [vmem:[%s2 + $0x64] sm:$0xf] %vm760, %v657
  %787 = vst.msk [vmem:[%s2 + $0x68] sm:$0xf] %vm760, %v658
  %788 = vst.msk [vmem:[%s2 + $0x6c] sm:$0xf] %vm760, %v659
  %789 = vst.msk [vmem:[%s2 + $0x70] sm:$0xf] %vm760, %v660
  %790 = vst.msk [vmem:[%s2 + $0x74] sm:$0xf] %vm760, %v661
  %791 = vst.msk [vmem:[%s2 + $0x78] sm:$0xf] %vm760, %v662
  %792 = vst.msk [vmem:[%s2 + $0x7c] sm:$0xf] %vm760, %v663
  %793 = vst.msk [vmem:[%s2 + $0x80] sm:$0xf] %vm760, %v664
  %794 = vst.msk [vmem:[%s2 + $0x84] sm:$0xf] %vm760, %v665
  %795 = vst.msk [vmem:[%s2 + $0x88] sm:$0xf] %vm760, %v666
  %796 = vst.msk [vmem:[%s2 + $0x8c] sm:$0xf] %vm760, %v667
  %797 = vst.msk [vmem:[%s2 + $0x90] sm:$0xf] %vm760, %v668
  %798 = vst.msk [vmem:[%s2 + $0x94] sm:$0xf] %vm760, %v669
  %799 = vst.msk [vmem:[%s2 + $0x98] sm:$0xf] %vm760, %v670
  %800 = vst.msk [vmem:[%s2 + $0x9c] sm:$0xf] %vm760, %v671
  %801 = vst.msk [vmem:[%s2 + $0xa0] sm:$0xf] %vm760, %v672
  %802 = vst.msk [vmem:[%s2 + $0xa4] sm:$0xf] %vm760, %v673
  %803 = vst.msk [vmem:[%s2 + $0xa8] sm:$0xf] %vm760, %v674
  %804 = vst.msk [vmem:[%s2 + $0xac] sm:$0xf] %vm760, %v675
  %805 = vst.msk [vmem:[%s2 + $0xb0] sm:$0xf] %vm760, %v676
  %806 = vst.msk [vmem:[%s2 + $0xb4] sm:$0xf] %vm760, %v677
  %807 = vst.msk [vmem:[%s2 + $0xb8] sm:$0xf] %vm760, %v678
  %808 = vst.msk [vmem:[%s2 + $0xbc] sm:$0xf] %vm760, %v679
  %809 = vst.msk [vmem:[%s2 + $0xc0] sm:$0xf] %vm760, %v680
  %810 = vst.msk [vmem:[%s2 + $0xc4] sm:$0xf] %vm760, %v681
  %811 = vst.msk [vmem:[%s2 + $0xc8] sm:$0xf] %vm760, %v682
  %812 = vst.msk [vmem:[%s2 + $0xcc] sm:$0xf] %vm760, %v683
  %813 = vst.msk [vmem:[%s2 + $0xd0] sm:$0xf] %vm760, %v684
  %814 = vst.msk [vmem:[%s2 + $0xd4] sm:$0xf] %vm760, %v685
  %815 = vst.msk [vmem:[%s2 + $0xd8] sm:$0xf] %vm760, %v686
  %816 = vst.msk [vmem:[%s2 + $0xdc] sm:$0xf] %vm760, %v687
  %817 = vst.msk [vmem:[%s2 + $0xe0] sm:$0xf] %vm760, %v688
  %818 = vst.msk [vmem:[%s2 + $0xe4] sm:$0xf] %vm760, %v689
  %819 = vst.msk [vmem:[%s2 + $0xe8] sm:$0xf] %vm760, %v690
  %820 = vst.msk [vmem:[%s2 + $0xec] sm:$0xf] %vm760, %v691
  %821 = vst.msk [vmem:[%s2 + $0xf0] sm:$0xf] %vm760, %v692
  %822 = vst.msk [vmem:[%s2 + $0xf4] sm:$0xf] %vm760, %v693
  %823 = vst.msk [vmem:[%s2 + $0xf8] sm:$0xf] %vm760, %v694
  %824 = vst.msk [vmem:[%s2 + $0xfc] sm:$0xf] %vm760, %v695
  %vm825 = vcmask 31744
  %v826 = vsel %vm825, %v250, 0.0
  %v827 = vsel %vm825, %v253, 0.0
  %v828 = vadd.f32 %v826, %v827
  %v829 = vsel %vm825, %v258, 0.0
  %v830 = vadd.f32 %v828, %v829
  %v831 = vsel %vm825, %v261, 0.0
  %v832 = vadd.f32 %v830, %v831
  %v833 = vsel %vm825, %v266, 0.0
  %v834 = vadd.f32 %v832, %v833
  %v835 = vsel %vm825, %v269, 0.0
  %v836 = vadd.f32 %v834, %v835
  %v837 = vsel %vm825, %v274, 0.0
  %v838 = vadd.f32 %v836, %v837
  %v839 = vsel %vm825, %v277, 0.0
  %v840 = vadd.f32 %v838, %v839
  %v841 = vsel %vm825, %v282, 0.0
  %v842 = vadd.f32 %v840, %v841
  %v843 = vsel %vm825, %v285, 0.0
  %v844 = vadd.f32 %v842, %v843
  %v845 = vsel %vm825, %v290, 0.0
  %v846 = vadd.f32 %v844, %v845
  %v847 = vsel %vm825, %v293, 0.0
  %v848 = vadd.f32 %v846, %v847
  %v849 = vsel %vm825, %v298, 0.0
  %v850 = vadd.f32 %v848, %v849
  %v851 = vsel %vm825, %v301, 0.0
  %v852 = vadd.f32 %v850, %v851
  %v853 = vsel %vm825, %v306, 0.0
  %v854 = vadd.f32 %v852, %v853
  %v855 = vsel %vm825, %v309, 0.0
  %v856 = vadd.f32 %v854, %v855
  %v857 = vsel %vm825, %v314, 0.0
  %v858 = vadd.f32 %v856, %v857
  %v859 = vsel %vm825, %v317, 0.0
  %v860 = vadd.f32 %v858, %v859
  %v861 = vsel %vm825, %v322, 0.0
  %v862 = vadd.f32 %v860, %v861
  %v863 = vsel %vm825, %v325, 0.0
  %v864 = vadd.f32 %v862, %v863
  %v865 = vsel %vm825, %v330, 0.0
  %v866 = vadd.f32 %v864, %v865
  %v867 = vsel %vm825, %v333, 0.0
  %v868 = vadd.f32 %v866, %v867
  %v869 = vsel %vm825, %v338, 0.0
  %v870 = vadd.f32 %v868, %v869
  %v871 = vsel %vm825, %v341, 0.0
  %v872 = vadd.f32 %v870, %v871
  %v873 = vsel %vm825, %v346, 0.0
  %v874 = vadd.f32 %v872, %v873
  %v875 = vsel %vm825, %v349, 0.0
  %v876 = vadd.f32 %v874, %v875
  %v877 = vsel %vm825, %v354, 0.0
  %v878 = vadd.f32 %v876, %v877
  %v879 = vsel %vm825, %v357, 0.0
  %v880 = vadd.f32 %v878, %v879
  %v881 = vsel %vm825, %v362, 0.0
  %v882 = vadd.f32 %v880, %v881
  %v883 = vsel %vm825, %v365, 0.0
  %v884 = vadd.f32 %v882, %v883
  %v885 = vsel %vm825, %v370, 0.0
  %v886 = vadd.f32 %v884, %v885
  %v887 = vsel %vm825, %v373, 0.0
  %v888 = vadd.f32 %v886, %v887
  %v889 = vsel %vm825, %v378, 0.0
  %v890 = vadd.f32 %v888, %v889
  %v891 = vsel %vm825, %v381, 0.0
  %v892 = vadd.f32 %v890, %v891
  %v893 = vsel %vm825, %v386, 0.0
  %v894 = vadd.f32 %v892, %v893
  %v895 = vsel %vm825, %v389, 0.0
  %v896 = vadd.f32 %v894, %v895
  %v897 = vsel %vm825, %v394, 0.0
  %v898 = vadd.f32 %v896, %v897
  %v899 = vsel %vm825, %v397, 0.0
  %v900 = vadd.f32 %v898, %v899
  %v901 = vsel %vm825, %v402, 0.0
  %v902 = vadd.f32 %v900, %v901
  %v903 = vsel %vm825, %v405, 0.0
  %v904 = vadd.f32 %v902, %v903
  %v905 = vsel %vm825, %v410, 0.0
  %v906 = vadd.f32 %v904, %v905
  %v907 = vsel %vm825, %v413, 0.0
  %v908 = vadd.f32 %v906, %v907
  %v909 = vsel %vm825, %v418, 0.0
  %v910 = vadd.f32 %v908, %v909
  %v911 = vsel %vm825, %v421, 0.0
  %v912 = vadd.f32 %v910, %v911
  %v913 = vsel %vm825, %v426, 0.0
  %v914 = vadd.f32 %v912, %v913
  %v915 = vsel %vm825, %v429, 0.0
  %v916 = vadd.f32 %v914, %v915
  %v917 = vsel %vm825, %v434, 0.0
  %v918 = vadd.f32 %v916, %v917
  %v919 = vsel %vm825, %v437, 0.0
  %v920 = vadd.f32 %v918, %v919
  %v921 = vsel %vm825, %v442, 0.0
  %v922 = vadd.f32 %v920, %v921
  %v923 = vsel %vm825, %v445, 0.0
  %v924 = vadd.f32 %v922, %v923
  %v925 = vsel %vm825, %v450, 0.0
  %v926 = vadd.f32 %v924, %v925
  %v927 = vsel %vm825, %v453, 0.0
  %v928 = vadd.f32 %v926, %v927
  %v929 = vsel %vm825, %v458, 0.0
  %v930 = vadd.f32 %v928, %v929
  %v931 = vsel %vm825, %v461, 0.0
  %v932 = vadd.f32 %v930, %v931
  %v933 = vsel %vm825, %v466, 0.0
  %v934 = vadd.f32 %v932, %v933
  %v935 = vsel %vm825, %v469, 0.0
  %v936 = vadd.f32 %v934, %v935
  %v937 = vsel %vm825, %v474, 0.0
  %v938 = vadd.f32 %v936, %v937
  %v939 = vsel %vm825, %v477, 0.0
  %v940 = vadd.f32 %v938, %v939
  %v941 = vsel %vm825, %v482, 0.0
  %v942 = vadd.f32 %v940, %v941
  %v943 = vsel %vm825, %v485, 0.0
  %v944 = vadd.f32 %v942, %v943
  %v945 = vsel %vm825, %v490, 0.0
  %v946 = vadd.f32 %v944, %v945
  %v947 = vsel %vm825, %v493, 0.0
  %v948 = vadd.f32 %v946, %v947
  %v949 = vsel %vm825, %v498, 0.0
  %v950 = vadd.f32 %v948, %v949
  %v951 = vsel %vm825, %v501, 0.0
  %v952 = vadd.f32 %v950, %v951
  %v953 = vrot.slane %v952, 4
  %v954 = vadd.f32 %v952, %v953
  %v955 = vrot.slane %v954, 2
  %v956 = vadd.f32 %v954, %v955
  %v957 = vrot.slane %v956, 1
  %v958 = vadd.f32 %v956, %v957
  %v959 = vmul.f32 %v250, %v250
  %v960 = vmul.f32 %v253, %v253
  %v961 = vmul.f32 %v258, %v258
  %v962 = vmul.f32 %v261, %v261
  %v963 = vmul.f32 %v266, %v266
  %v964 = vmul.f32 %v269, %v269
  %v965 = vmul.f32 %v274, %v274
  %v966 = vmul.f32 %v277, %v277
  %v967 = vmul.f32 %v282, %v282
  %v968 = vmul.f32 %v285, %v285
  %v969 = vmul.f32 %v290, %v290
  %v970 = vmul.f32 %v293, %v293
  %v971 = vmul.f32 %v298, %v298
  %v972 = vmul.f32 %v301, %v301
  %v973 = vmul.f32 %v306, %v306
  %v974 = vmul.f32 %v309, %v309
  %v975 = vmul.f32 %v314, %v314
  %v976 = vmul.f32 %v317, %v317
  %v977 = vmul.f32 %v322, %v322
  %v978 = vmul.f32 %v325, %v325
  %v979 = vmul.f32 %v330, %v330
  %v980 = vmul.f32 %v333, %v333
  %v981 = vmul.f32 %v338, %v338
  %v982 = vmul.f32 %v341, %v341
  %v983 = vmul.f32 %v346, %v346
  %v984 = vmul.f32 %v349, %v349
  %v985 = vmul.f32 %v354, %v354
  %v986 = vmul.f32 %v357, %v357
  %v987 = vmul.f32 %v362, %v362
  %v988 = vmul.f32 %v365, %v365
  %v989 = vmul.f32 %v370, %v370
  %v990 = vmul.f32 %v373, %v373
  %v991 = vmul.f32 %v378, %v378
  %v992 = vmul.f32 %v381, %v381
  %v993 = vmul.f32 %v386, %v386
  %v994 = vmul.f32 %v389, %v389
  %v995 = vmul.f32 %v394, %v394
  %v996 = vmul.f32 %v397, %v397
  %v997 = vmul.f32 %v402, %v402
  %v998 = vmul.f32 %v405, %v405
  %v999 = vmul.f32 %v410, %v410
  %v1000 = vmul.f32 %v413, %v413
  %v1001 = vmul.f32 %v418, %v418
  %v1002 = vmul.f32 %v421, %v421
  %v1003 = vmul.f32 %v426, %v426
  %v1004 = vmul.f32 %v429, %v429
  %v1005 = vmul.f32 %v434, %v434
  %v1006 = vmul.f32 %v437, %v437
  %v1007 = vmul.f32 %v442, %v442
  %v1008 = vmul.f32 %v445, %v445
  %v1009 = vmul.f32 %v450, %v450
  %v1010 = vmul.f32 %v453, %v453
  %v1011 = vmul.f32 %v458, %v458
  %v1012 = vmul.f32 %v461, %v461
  %v1013 = vmul.f32 %v466, %v466
  %v1014 = vmul.f32 %v469, %v469
  %v1015 = vmul.f32 %v474, %v474
  %v1016 = vmul.f32 %v477, %v477
  %v1017 = vmul.f32 %v482, %v482
  %v1018 = vmul.f32 %v485, %v485
  %v1019 = vmul.f32 %v490, %v490
  %v1020 = vmul.f32 %v493, %v493
  %v1021 = vmul.f32 %v498, %v498
  %v1022 = vmul.f32 %v501, %v501
  %v1023 = vsel %vm825, %v959, 0.0
  %v1024 = vsel %vm825, %v960, 0.0
  %v1025 = vadd.f32 %v1023, %v1024
  %v1026 = vsel %vm825, %v961, 0.0
  %v1027 = vadd.f32 %v1025, %v1026
  %v1028 = vsel %vm825, %v962, 0.0
  %v1029 = vadd.f32 %v1027, %v1028
  %v1030 = vsel %vm825, %v963, 0.0
  %v1031 = vadd.f32 %v1029, %v1030
  %v1032 = vsel %vm825, %v964, 0.0
  %v1033 = vadd.f32 %v1031, %v1032
  %v1034 = vsel %vm825, %v965, 0.0
  %v1035 = vadd.f32 %v1033, %v1034
  %v1036 = vsel %vm825, %v966, 0.0
  %v1037 = vadd.f32 %v1035, %v1036
  %v1038 = vsel %vm825, %v967, 0.0
  %v1039 = vadd.f32 %v1037, %v1038
  %v1040 = vsel %vm825, %v968, 0.0
  %v1041 = vadd.f32 %v1039, %v1040
  %v1042 = vsel %vm825, %v969, 0.0
  %v1043 = vadd.f32 %v1041, %v1042
  %v1044 = vsel %vm825, %v970, 0.0
  %v1045 = vadd.f32 %v1043, %v1044
  %v1046 = vsel %vm825, %v971, 0.0
  %v1047 = vadd.f32 %v1045, %v1046
  %v1048 = vsel %vm825, %v972, 0.0
  %v1049 = vadd.f32 %v1047, %v1048
  %v1050 = vsel %vm825, %v973, 0.0
  %v1051 = vadd.f32 %v1049, %v1050
  %v1052 = vsel %vm825, %v974, 0.0
  %v1053 = vadd.f32 %v1051, %v1052
  %v1054 = vsel %vm825, %v975, 0.0
  %v1055 = vadd.f32 %v1053, %v1054
  %v1056 = vsel %vm825, %v976, 0.0
  %v1057 = vadd.f32 %v1055, %v1056
  %v1058 = vsel %vm825, %v977, 0.0
  %v1059 = vadd.f32 %v1057, %v1058
  %v1060 = vsel %vm825, %v978, 0.0
  %v1061 = vadd.f32 %v1059, %v1060
  %v1062 = vsel %vm825, %v979, 0.0
  %v1063 = vadd.f32 %v1061, %v1062
  %v1064 = vsel %vm825, %v980, 0.0
  %v1065 = vadd.f32 %v1063, %v1064
  %v1066 = vsel %vm825, %v981, 0.0
  %v1067 = vadd.f32 %v1065, %v1066
  %v1068 = vsel %vm825, %v982, 0.0
  %v1069 = vadd.f32 %v1067, %v1068
  %v1070 = vsel %vm825, %v983, 0.0
  %v1071 = vadd.f32 %v1069, %v1070
  %v1072 = vsel %vm825, %v984, 0.0
  %v1073 = vadd.f32 %v1071, %v1072
  %v1074 = vsel %vm825, %v985, 0.0
  %v1075 = vadd.f32 %v1073, %v1074
  %v1076 = vsel %vm825, %v986, 0.0
  %v1077 = vadd.f32 %v1075, %v1076
  %v1078 = vsel %vm825, %v987, 0.0
  %v1079 = vadd.f32 %v1077, %v1078
  %v1080 = vsel %vm825, %v988, 0.0
  %v1081 = vadd.f32 %v1079, %v1080
  %v1082 = vsel %vm825, %v989, 0.0
  %v1083 = vadd.f32 %v1081, %v1082
  %v1084 = vsel %vm825, %v990, 0.0
  %v1085 = vadd.f32 %v1083, %v1084
  %v1086 = vsel %vm825, %v991, 0.0
  %v1087 = vadd.f32 %v1085, %v1086
  %v1088 = vsel %vm825, %v992, 0.0
  %v1089 = vadd.f32 %v1087, %v1088
  %v1090 = vsel %vm825, %v993, 0.0
  %v1091 = vadd.f32 %v1089, %v1090
  %v1092 = vsel %vm825, %v994, 0.0
  %v1093 = vadd.f32 %v1091, %v1092
  %v1094 = vsel %vm825, %v995, 0.0
  %v1095 = vadd.f32 %v1093, %v1094
  %v1096 = vsel %vm825, %v996, 0.0
  %v1097 = vadd.f32 %v1095, %v1096
  %v1098 = vsel %vm825, %v997, 0.0
  %v1099 = vadd.f32 %v1097, %v1098
  %v1100 = vsel %vm825, %v998, 0.0
  %v1101 = vadd.f32 %v1099, %v1100
  %v1102 = vsel %vm825, %v999, 0.0
  %v1103 = vadd.f32 %v1101, %v1102
  %v1104 = vsel %vm825, %v1000, 0.0
  %v1105 = vadd.f32 %v1103, %v1104
  %v1106 = vsel %vm825, %v1001, 0.0
  %v1107 = vadd.f32 %v1105, %v1106
  %v1108 = vsel %vm825, %v1002, 0.0
  %v1109 = vadd.f32 %v1107, %v1108
  %v1110 = vsel %vm825, %v1003, 0.0
  %v1111 = vadd.f32 %v1109, %v1110
  %v1112 = vsel %vm825, %v1004, 0.0
  %v1113 = vadd.f32 %v1111, %v1112
  %v1114 = vsel %vm825, %v1005, 0.0
  %v1115 = vadd.f32 %v1113, %v1114
  %v1116 = vsel %vm825, %v1006, 0.0
  %v1117 = vadd.f32 %v1115, %v1116
  %v1118 = vsel %vm825, %v1007, 0.0
  %v1119 = vadd.f32 %v1117, %v1118
  %v1120 = vsel %vm825, %v1008, 0.0
  %v1121 = vadd.f32 %v1119, %v1120
  %v1122 = vsel %vm825, %v1009, 0.0
  %v1123 = vadd.f32 %v1121, %v1122
  %v1124 = vsel %vm825, %v1010, 0.0
  %v1125 = vadd.f32 %v1123, %v1124
  %v1126 = vsel %vm825, %v1011, 0.0
  %v1127 = vadd.f32 %v1125, %v1126
  %v1128 = vsel %vm825, %v1012, 0.0
  %v1129 = vadd.f32 %v1127, %v1128
  %v1130 = vsel %vm825, %v1013, 0.0
  %v1131 = vadd.f32 %v1129, %v1130
  %v1132 = vsel %vm825, %v1014, 0.0
  %v1133 = vadd.f32 %v1131, %v1132
  %v1134 = vsel %vm825, %v1015, 0.0
  %v1135 = vadd.f32 %v1133, %v1134
  %v1136 = vsel %vm825, %v1016, 0.0
  %v1137 = vadd.f32 %v1135, %v1136
  %v1138 = vsel %vm825, %v1017, 0.0
  %v1139 = vadd.f32 %v1137, %v1138
  %v1140 = vsel %vm825, %v1018, 0.0
  %v1141 = vadd.f32 %v1139, %v1140
  %v1142 = vsel %vm825, %v1019, 0.0
  %v1143 = vadd.f32 %v1141, %v1142
  %v1144 = vsel %vm825, %v1020, 0.0
  %v1145 = vadd.f32 %v1143, %v1144
  %v1146 = vsel %vm825, %v1021, 0.0
  %v1147 = vadd.f32 %v1145, %v1146
  %v1148 = vsel %vm825, %v1022, 0.0
  %v1149 = vadd.f32 %v1147, %v1148
  %v1150 = vrot.slane %v1149, 4
  %v1151 = vadd.f32 %v1149, %v1150
  %v1152 = vrot.slane %v1151, 2
  %v1153 = vadd.f32 %v1151, %v1152
  %v1154 = vrot.slane %v1153, 1
  %v1155 = vadd.f32 %v1153, %v1154
  %v1156 = vlaneseq
  %v1157 = vshrl.u32 %v1156, 7
  %vm1158 = vcmp.eq.s32.totalorder %v1157, 0
  %vm1159 = vcmp.eq.s32.totalorder %v1157, 1
  %v1160 = vsel %vm1159, %v1155, 0.0
  %v1161 = vsel %vm1158, %v958, %v1160
  %1162 = vst.msk [vmem:[%s3] sm:$0xff] %vm825, %v1161
  // Predicated region
  $region10: #{bottleneck_forward.4} parent=0 // pred_check
    _
  $region11: #{bottleneck_forward.4} parent=0 // pred_check_branch
    %1164 = sbr.rel (0) target = $region13
  $region12: #{bottleneck_forward.4} parent=0 // pred_region
    _
  $region13: #{bottleneck_forward.4} parent=0 // pred_fallthru
    _
  // Predicated region
  $region14: #{bottleneck_forward.4} parent=0 // pred_check
    _
  $region15: #{bottleneck_forward.4} parent=0 // pred_check_branch
    %1166 = sbr.rel (0) target = $region17
  $region16: #{bottleneck_forward.4} parent=0 // pred_region
    _
  $region17: #{bottleneck_forward.4} parent=0 // pred_fallthru
    _
  // Predicated region
  $region18: #{bottleneck_forward.4} parent=0 // pred_check
    _
  $region19: #{bottleneck_forward.4} parent=0 // pred_check_branch
    %1168 = sbr.rel (0) target = $region21
  $region20: #{bottleneck_forward.4} parent=0 // pred_region
    _
  $region21: #{bottleneck_forward.4} parent=0 // pred_fallthru
    _
  // Predicated region
  $region22: #{bottleneck_forward.4} parent=0 // pred_check
    _
  $region23: #{bottleneck_forward.4} parent=0 // pred_check_branch
    %1170 = sbr.rel (0) target = $region25
  $region24: #{bottleneck_forward.4} parent=0 // pred_region
    _
  $region25: #{bottleneck_forward.4} parent=0 // pred_fallthru
    _

// kernel: bottleneck_forward.6
$region0: #{bottleneck_forward.6}
  #allocation0 [shape = 'u32[]', space=smem, size = 0x4, offset = 0x4, fixed_abs, tag = 'smem constant byte address 0x4 - core index']
  #allocation1 [shape = 'u32[144,128]{1,0:T(1,128)}', space=vmem, size = 0x12000, scoped, tag = 'internal scratch']
  %s0 = inlined_call_operand.vmem [shape: bf16[512,4], index: 0, kind: input, shape index: {}]
  %s1 = inlined_call_operand.vmem [shape: f32[1,4], index: 1, kind: input, shape index: {}]
  %s2 = inlined_call_operand.vmem [shape: f32[1,4], index: 2, kind: input, shape index: {}]
  %s3 = inlined_call_operand.vmem [shape: bf16[4,16], index: 3, kind: input, shape index: {}]
  %s4 = inlined_call_operand.vmem [shape: bf16[512,16], index: 4, kind: output, shape index: {0}]
  %s5 = inlined_call_operand.vmem [shape: f32[1,8,16], index: 5, kind: output, shape index: {1}]
  %6 = xla_tuple %s4, %s5
  %s7 = sld [smem:[#allocation0]]
  $region34: #{bottleneck_forward.6} parent=0
    _
  %s9 = ssub.s32 1, %s7
  %s10 = scalar_select 0, %s9, %s7
  // Predicated region
  $region2: #{bottleneck_forward.6} parent=0 // pred_check
    _
  $region3: #{bottleneck_forward.6} parent=0 // pred_check_branch
    %12 = sbr.rel (0) target = $region5
  $region4: #{bottleneck_forward.6} parent=0 // pred_region
    _
  $region5: #{bottleneck_forward.6} parent=0 // pred_fallthru
    _
  // Predicated region
  $region6: #{bottleneck_forward.6} parent=0 // pred_check
    _
  $region7: #{bottleneck_forward.6} parent=0 // pred_check_branch
    %14 = sbr.rel (0) target = $region9
  $region8: #{bottleneck_forward.6} parent=0 // pred_region
    _
  $region9: #{bottleneck_forward.6} parent=0 // pred_fallthru
    _
  // Predicated region
  $region10: #{bottleneck_forward.6} parent=0 // pred_check
    _
  $region11: #{bottleneck_forward.6} parent=0 // pred_check_branch
    %16 = sbr.rel (0) target = $region13
  $region12: #{bottleneck_forward.6} parent=0 // pred_region
    _
  $region13: #{bottleneck_forward.6} parent=0 // pred_fallthru
    _
  // Predicated region
  $region14: #{bottleneck_forward.6} parent=0 // pred_check
    _
  $region15: #{bottleneck_forward.6} parent=0 // pred_check_branch
    %18 = sbr.rel (0) target = $region17
  $region16: #{bottleneck_forward.6} parent=0 // pred_region
    _
  $region17: #{bottleneck_forward.6} parent=0 // pred_fallthru
    _
  %v20 = vld [vmem:[%s0] sm:$0xf]
  %v21 = vld [vmem:[%s0 + $0x4] sm:$0xf]
  %v22 = vld [vmem:[%s0 + $0x8] sm:$0xf]
  %v23 = vld [vmem:[%s0 + $0xc] sm:$0xf]
  %v24 = vld [vmem:[%s0 + $0x10] sm:$0xf]
  %v25 = vld [vmem:[%s0 + $0x14] sm:$0xf]
  %v26 = vld [vmem:[%s0 + $0x18] sm:$0xf]
  %v27 = vld [vmem:[%s0 + $0x1c] sm:$0xf]
  %v28 = vld [vmem:[%s0 + $0x20] sm:$0xf]
  %v29 = vld [vmem:[%s0 + $0x24] sm:$0xf]
  %v30 = vld [vmem:[%s0 + $0x28] sm:$0xf]
  %v31 = vld [vmem:[%s0 + $0x2c] sm:$0xf]
  %v32 = vld [vmem:[%s0 + $0x30] sm:$0xf]
  %v33 = vld [vmem:[%s0 + $0x34] sm:$0xf]
  %v34 = vld [vmem:[%s0 + $0x38] sm:$0xf]
  %v35 = vld [vmem:[%s0 + $0x3c] sm:$0xf]
  %v36 = vld [vmem:[%s0 + $0x40] sm:$0xf]
  %v37 = vld [vmem:[%s0 + $0x44] sm:$0xf]
  %v38 = vld [vmem:[%s0 + $0x48] sm:$0xf]
  %v39 = vld [vmem:[%s0 + $0x4c] sm:$0xf]
  %v40 = vld [vmem:[%s0 + $0x50] sm:$0xf]
  %v41 = vld [vmem:[%s0 + $0x54] sm:$0xf]
  %v42 = vld [vmem:[%s0 + $0x58] sm:$0xf]
  %v43 = vld [vmem:[%s0 + $0x5c] sm:$0xf]
  %v44 = vld [vmem:[%s0 + $0x60] sm:$0xf]
  %v45 = vld [vmem:[%s0 + $0x64] sm:$0xf]
  %v46 = vld [vmem:[%s0 + $0x68] sm:$0xf]
  %v47 = vld [vmem:[%s0 + $0x6c] sm:$0xf]
  %v48 = vld [vmem:[%s0 + $0x70] sm:$0xf]
  %v49 = vld [vmem:[%s0 + $0x74] sm:$0xf]
  %v50 = vld [vmem:[%s0 + $0x78] sm:$0xf]
  %v51 = vld [vmem:[%s0 + $0x7c] sm:$0xf]
  %v52 = vld [vmem:[%s0 + $0x80] sm:$0xf]
  %v53 = vld [vmem:[%s0 + $0x84] sm:$0xf]
  %v54 = vld [vmem:[%s0 + $0x88] sm:$0xf]
  %v55 = vld [vmem:[%s0 + $0x8c] sm:$0xf]
  %v56 = vld [vmem:[%s0 + $0x90] sm:$0xf]
  %v57 = vld [vmem:[%s0 + $0x94] sm:$0xf]
  %v58 = vld [vmem:[%s0 + $0x98] sm:$0xf]
  %v59 = vld [vmem:[%s0 + $0x9c] sm:$0xf]
  %v60 = vld [vmem:[%s0 + $0xa0] sm:$0xf]
  %v61 = vld [vmem:[%s0 + $0xa4] sm:$0xf]
  %v62 = vld [vmem:[%s0 + $0xa8] sm:$0xf]
  %v63 = vld [vmem:[%s0 + $0xac] sm:$0xf]
  %v64 = vld [vmem:[%s0 + $0xb0] sm:$0xf]
  %v65 = vld [vmem:[%s0 + $0xb4] sm:$0xf]
  %v66 = vld [vmem:[%s0 + $0xb8] sm:$0xf]
  %v67 = vld [vmem:[%s0 + $0xbc] sm:$0xf]
  %v68 = vld [vmem:[%s0 + $0xc0] sm:$0xf]
  %v69 = vld [vmem:[%s0 + $0xc4] sm:$0xf]
  %v70 = vld [vmem:[%s0 + $0xc8] sm:$0xf]
  %v71 = vld [vmem:[%s0 + $0xcc] sm:$0xf]
  %v72 = vld [vmem:[%s0 + $0xd0] sm:$0xf]
  %v73 = vld [vmem:[%s0 + $0xd4] sm:$0xf]
  %v74 = vld [vmem:[%s0 + $0xd8] sm:$0xf]
  %v75 = vld [vmem:[%s0 + $0xdc] sm:$0xf]
  %v76 = vld [vmem:[%s0 + $0xe0] sm:$0xf]
  %v77 = vld [vmem:[%s0 + $0xe4] sm:$0xf]
  %v78 = vld [vmem:[%s0 + $0xe8] sm:$0xf]
  %v79 = vld [vmem:[%s0 + $0xec] sm:$0xf]
  %v80 = vld [vmem:[%s0 + $0xf0] sm:$0xf]
  %v81 = vld [vmem:[%s0 + $0xf4] sm:$0xf]
  %v82 = vld [vmem:[%s0 + $0xf8] sm:$0xf]
  %v83 = vld [vmem:[%s0 + $0xfc] sm:$0xf]
  %v84 = vunpack.c.l.bf16 %v20
  %v85 = vunpack.c.l.bf16 %v21
  %v86 = vunpack.c.l.bf16 %v22
  %v87 = vunpack.c.l.bf16 %v23
  %v88 = vunpack.c.l.bf16 %v24
  %v89 = vunpack.c.l.bf16 %v25
  %v90 = vunpack.c.l.bf16 %v26
  %v91 = vunpack.c.l.bf16 %v27
  %v92 = vunpack.c.l.bf16 %v28
  %v93 = vunpack.c.l.bf16 %v29
  %v94 = vunpack.c.l.bf16 %v30
  %v95 = vunpack.c.l.bf16 %v31
  %v96 = vunpack.c.l.bf16 %v32
  %v97 = vunpack.c.l.bf16 %v33
  %v98 = vunpack.c.l.bf16 %v34
  %v99 = vunpack.c.l.bf16 %v35
  %v100 = vunpack.c.l.bf16 %v36
  %v101 = vunpack.c.l.bf16 %v37
  %v102 = vunpack.c.l.bf16 %v38
  %v103 = vunpack.c.l.bf16 %v39
  %v104 = vunpack.c.l.bf16 %v40
  %v105 = vunpack.c.l.bf16 %v41
  %v106 = vunpack.c.l.bf16 %v42
  %v107 = vunpack.c.l.bf16 %v43
  %v108 = vunpack.c.l.bf16 %v44
  %v109 = vunpack.c.l.bf16 %v45
  %v110 = vunpack.c.l.bf16 %v46
  %v111 = vunpack.c.l.bf16 %v47
  %v112 = vunpack.c.l.bf16 %v48
  %v113 = vunpack.c.l.bf16 %v49
  %v114 = vunpack.c.l.bf16 %v50
  %v115 = vunpack.c.l.bf16 %v51
  %v116 = vunpack.c.l.bf16 %v52
  %v117 = vunpack.c.l.bf16 %v53
  %v118 = vunpack.c.l.bf16 %v54
  %v119 = vunpack.c.l.bf16 %v55
  %v120 = vunpack.c.l.bf16 %v56
  %v121 = vunpack.c.l.bf16 %v57
  %v122 = vunpack.c.l.bf16 %v58
  %v123 = vunpack.c.l.bf16 %v59
  %v124 = vunpack.c.l.bf16 %v60
  %v125 = vunpack.c.l.bf16 %v61
  %v126 = vunpack.c.l.bf16 %v62
  %v127 = vunpack.c.l.bf16 %v63
  %v128 = vunpack.c.l.bf16 %v64
  %v129 = vunpack.c.l.bf16 %v65
  %v130 = vunpack.c.l.bf16 %v66
  %v131 = vunpack.c.l.bf16 %v67
  %v132 = vunpack.c.l.bf16 %v68
  %v133 = vunpack.c.l.bf16 %v69
  %v134 = vunpack.c.l.bf16 %v70
  %v135 = vunpack.c.l.bf16 %v71
  %v136 = vunpack.c.l.bf16 %v72
  %v137 = vunpack.c.l.bf16 %v73
  %v138 = vunpack.c.l.bf16 %v74
  %v139 = vunpack.c.l.bf16 %v75
  %v140 = vunpack.c.l.bf16 %v76
  %v141 = vunpack.c.l.bf16 %v77
  %v142 = vunpack.c.l.bf16 %v78
  %v143 = vunpack.c.l.bf16 %v79
  %v144 = vunpack.c.l.bf16 %v80
  %v145 = vunpack.c.l.bf16 %v81
  %v146 = vunpack.c.l.bf16 %v82
  %v147 = vunpack.c.l.bf16 %v83
  %v148 = vld [vmem:[%s1] sm:$0x1]
  %v150 = vlaneseq
  %v151 = vshrl.u32 %v150, 7
  %v152 = vsub.s32 0, %v151
  %v153 = vrot.slane %v148, %v152
  %v155 = vmul.f32 %v84, %v153
  %v156 = vmul.f32 %v85, %v153
  %v157 = vmul.f32 %v86, %v153
  %v158 = vmul.f32 %v87, %v153
  %v159 = vmul.f32 %v88, %v153
  %v160 = vmul.f32 %v89, %v153
  %v161 = vmul.f32 %v90, %v153
  %v162 = vmul.f32 %v91, %v153
  %v163 = vmul.f32 %v92, %v153
  %v164 = vmul.f32 %v93, %v153
  %v165 = vmul.f32 %v94, %v153
  %v166 = vmul.f32 %v95, %v153
  %v167 = vmul.f32 %v96, %v153
  %v168 = vmul.f32 %v97, %v153
  %v169 = vmul.f32 %v98, %v153
  %v170 = vmul.f32 %v99, %v153
  %v171 = vmul.f32 %v100, %v153
  %v172 = vmul.f32 %v101, %v153
  %v173 = vmul.f32 %v102, %v153
  %v174 = vmul.f32 %v103, %v153
  %v175 = vmul.f32 %v104, %v153
  %v176 = vmul.f32 %v105, %v153
  %v177 = vmul.f32 %v106, %v153
  %v178 = vmul.f32 %v107, %v153
  %v179 = vmul.f32 %v108, %v153
  %v180 = vmul.f32 %v109, %v153
  %v181 = vmul.f32 %v110, %v153
  %v182 = vmul.f32 %v111, %v153
  %v183 = vmul.f32 %v112, %v153
  %v184 = vmul.f32 %v113, %v153
  %v185 = vmul.f32 %v114, %v153
  %v186 = vmul.f32 %v115, %v153
  %v187 = vmul.f32 %v116, %v153
  %v188 = vmul.f32 %v117, %v153
  %v189 = vmul.f32 %v118, %v153
  %v190 = vmul.f32 %v119, %v153
  %v191 = vmul.f32 %v120, %v153
  %v192 = vmul.f32 %v121, %v153
  %v193 = vmul.f32 %v122, %v153
  %v194 = vmul.f32 %v123, %v153
  %v195 = vmul.f32 %v124, %v153
  %v196 = vmul.f32 %v125, %v153
  %v197 = vmul.f32 %v126, %v153
  %v198 = vmul.f32 %v127, %v153
  %v199 = vmul.f32 %v128, %v153
  %v200 = vmul.f32 %v129, %v153
  %v201 = vmul.f32 %v130, %v153
  %v202 = vmul.f32 %v131, %v153
  %v203 = vmul.f32 %v132, %v153
  %v204 = vmul.f32 %v133, %v153
  %v205 = vmul.f32 %v134, %v153
  %v206 = vmul.f32 %v135, %v153
  %v207 = vmul.f32 %v136, %v153
  %v208 = vmul.f32 %v137, %v153
  %v209 = vmul.f32 %v138, %v153
  %v210 = vmul.f32 %v139, %v153
  %v211 = vmul.f32 %v140, %v153
  %v212 = vmul.f32 %v141, %v153
  %v213 = vmul.f32 %v142, %v153
  %v214 = vmul.f32 %v143, %v153
  %v215 = vmul.f32 %v144, %v153
  %v216 = vmul.f32 %v145, %v153
  %v217 = vmul.f32 %v146, %v153
  %v218 = vmul.f32 %v147, %v153
  %v219 = vld [vmem:[%s2] sm:$0x1]
  %v221 = vlaneseq
  %v222 = vshrl.u32 %v221, 7
  %v223 = vsub.s32 0, %v222
  %v224 = vrot.slane %v219, %v223
  %v226 = vadd.f32 %v155, %v224
  %v227 = vadd.f32 %v156, %v224
  %v228 = vadd.f32 %v157, %v224
  %v229 = vadd.f32 %v158, %v224
  %v230 = vadd.f32 %v159, %v224
  %v231 = vadd.f32 %v160, %v224
  %v232 = vadd.f32 %v161, %v224
  %v233 = vadd.f32 %v162, %v224
  %v234 = vadd.f32 %v163, %v224
  %v235 = vadd.f32 %v164, %v224
  %v236 = vadd.f32 %v165, %v224
  %v237 = vadd.f32 %v166, %v224
  %v238 = vadd.f32 %v167, %v224
  %v239 = vadd.f32 %v168, %v224
  %v240 = vadd.f32 %v169, %v224
  %v241 = vadd.f32 %v170, %v224
  %v242 = vadd.f32 %v171, %v224
  %v243 = vadd.f32 %v172, %v224
  %v244 = vadd.f32 %v173, %v224
  %v245 = vadd.f32 %v174, %v224
  %v246 = vadd.f32 %v175, %v224
  %v247 = vadd.f32 %v176, %v224
  %v248 = vadd.f32 %v177, %v224
  %v249 = vadd.f32 %v178, %v224
  %v250 = vadd.f32 %v179, %v224
  %v251 = vadd.f32 %v180, %v224
  %v252 = vadd.f32 %v181, %v224
  %v253 = vadd.f32 %v182, %v224
  %v254 = vadd.f32 %v183, %v224
  %v255 = vadd.f32 %v184, %v224
  %v256 = vadd.f32 %v185, %v224
  %v257 = vadd.f32 %v186, %v224
  %v258 = vadd.f32 %v187, %v224
  %v259 = vadd.f32 %v188, %v224
  %v260 = vadd.f32 %v189, %v224
  %v261 = vadd.f32 %v190, %v224
  %v262 = vadd.f32 %v191, %v224
  %v263 = vadd.f32 %v192, %v224
  %v264 = vadd.f32 %v193, %v224
  %v265 = vadd.f32 %v194, %v224
  %v266 = vadd.f32 %v195, %v224
  %v267 = vadd.f32 %v196, %v224
  %v268 = vadd.f32 %v197, %v224
  %v269 = vadd.f32 %v198, %v224
  %v270 = vadd.f32 %v199, %v224
  %v271 = vadd.f32 %v200, %v224
  %v272 = vadd.f32 %v201, %v224
  %v273 = vadd.f32 %v202, %v224
  %v274 = vadd.f32 %v203, %v224
  %v275 = vadd.f32 %v204, %v224
  %v276 = vadd.f32 %v205, %v224
  %v277 = vadd.f32 %v206, %v224
  %v278 = vadd.f32 %v207, %v224
  %v279 = vadd.f32 %v208, %v224
  %v280 = vadd.f32 %v209, %v224
  %v281 = vadd.f32 %v210, %v224
  %v282 = vadd.f32 %v211, %v224
  %v283 = vadd.f32 %v212, %v224
  %v284 = vadd.f32 %v213, %v224
  %v285 = vadd.f32 %v214, %v224
  %v286 = vadd.f32 %v215, %v224
  %v287 = vadd.f32 %v216, %v224
  %v288 = vadd.f32 %v217, %v224
  %v289 = vadd.f32 %v218, %v224
  %v290 = vmax.f32 %v226, 0.0
  %v291 = vmax.f32 %v227, 0.0
  %v292 = vmax.f32 %v228, 0.0
  %v293 = vmax.f32 %v229, 0.0
  %v294 = vmax.f32 %v230, 0.0
  %v295 = vmax.f32 %v231, 0.0
  %v296 = vmax.f32 %v232, 0.0
  %v297 = vmax.f32 %v233, 0.0
  %v298 = vmax.f32 %v234, 0.0
  %v299 = vmax.f32 %v235, 0.0
  %v300 = vmax.f32 %v236, 0.0
  %v301 = vmax.f32 %v237, 0.0
  %v302 = vmax.f32 %v238, 0.0
  %v303 = vmax.f32 %v239, 0.0
  %v304 = vmax.f32 %v240, 0.0
  %v305 = vmax.f32 %v241, 0.0
  %v306 = vmax.f32 %v242, 0.0
  %v307 = vmax.f32 %v243, 0.0
  %v308 = vmax.f32 %v244, 0.0
  %v309 = vmax.f32 %v245, 0.0
  %v310 = vmax.f32 %v246, 0.0
  %v311 = vmax.f32 %v247, 0.0
  %v312 = vmax.f32 %v248, 0.0
  %v313 = vmax.f32 %v249, 0.0
  %v314 = vmax.f32 %v250, 0.0
  %v315 = vmax.f32 %v251, 0.0
  %v316 = vmax.f32 %v252, 0.0
  %v317 = vmax.f32 %v253, 0.0
  %v318 = vmax.f32 %v254, 0.0
  %v319 = vmax.f32 %v255, 0.0
  %v320 = vmax.f32 %v256, 0.0
  %v321 = vmax.f32 %v257, 0.0
  %v322 = vmax.f32 %v258, 0.0
  %v323 = vmax.f32 %v259, 0.0
  %v324 = vmax.f32 %v260, 0.0
  %v325 = vmax.f32 %v261, 0.0
  %v326 = vmax.f32 %v262, 0.0
  %v327 = vmax.f32 %v263, 0.0
  %v328 = vmax.f32 %v264, 0.0
  %v329 = vmax.f32 %v265, 0.0
  %v330 = vmax.f32 %v266, 0.0
  %v331 = vmax.f32 %v267, 0.0
  %v332 = vmax.f32 %v268, 0.0
  %v333 = vmax.f32 %v269, 0.0
  %v334 = vmax.f32 %v270, 0.0
  %v335 = vmax.f32 %v271, 0.0
  %v336 = vmax.f32 %v272, 0.0
  %v337 = vmax.f32 %v273, 0.0
  %v338 = vmax.f32 %v274, 0.0
  %v339 = vmax.f32 %v275, 0.0
  %v340 = vmax.f32 %v276, 0.0
  %v341 = vmax.f32 %v277, 0.0
  %v342 = vmax.f32 %v278, 0.0
  %v343 = vmax.f32 %v279, 0.0
  %v344 = vmax.f32 %v280, 0.0
  %v345 = vmax.f32 %v281, 0.0
  %v346 = vmax.f32 %v282, 0.0
  %v347 = vmax.f32 %v283, 0.0
  %v348 = vmax.f32 %v284, 0.0
  %v349 = vmax.f32 %v285, 0.0
  %v350 = vmax.f32 %v286, 0.0
  %v351 = vmax.f32 %v287, 0.0
  %v352 = vmax.f32 %v288, 0.0
  %v353 = vmax.f32 %v289, 0.0
  %v354 = vpack.c.bf16 %v291, %v290
  %v355 = vpack.c.bf16 %v293, %v292
  %v356 = vpack.c.bf16 %v295, %v294
  %v357 = vpack.c.bf16 %v297, %v296
  %v358 = vpack.c.bf16 %v299, %v298
  %v359 = vpack.c.bf16 %v301, %v300
  %v360 = vpack.c.bf16 %v303, %v302
  %v361 = vpack.c.bf16 %v305, %v304
  %v362 = vpack.c.bf16 %v307, %v306
  %v363 = vpack.c.bf16 %v309, %v308
  %v364 = vpack.c.bf16 %v311, %v310
  %v365 = vpack.c.bf16 %v313, %v312
  %v366 = vpack.c.bf16 %v315, %v314
  %v367 = vpack.c.bf16 %v317, %v316
  %v368 = vpack.c.bf16 %v319, %v318
  %v369 = vpack.c.bf16 %v321, %v320
  %v370 = vpack.c.bf16 %v323, %v322
  %v371 = vpack.c.bf16 %v325, %v324
  %v372 = vpack.c.bf16 %v327, %v326
  %v373 = vpack.c.bf16 %v329, %v328
  %v374 = vpack.c.bf16 %v331, %v330
  %v375 = vpack.c.bf16 %v333, %v332
  %v376 = vpack.c.bf16 %v335, %v334
  %v377 = vpack.c.bf16 %v337, %v336
  %v378 = vpack.c.bf16 %v339, %v338
  %v379 = vpack.c.bf16 %v341, %v340
  %v380 = vpack.c.bf16 %v343, %v342
  %v381 = vpack.c.bf16 %v345, %v344
  %v382 = vpack.c.bf16 %v347, %v346
  %v383 = vpack.c.bf16 %v349, %v348
  %v384 = vpack.c.bf16 %v351, %v350
  %v385 = vpack.c.bf16 %v353, %v352
  %v386 = vld [vmem:[%s3] sm:$0x3]
  %vm387 = vcmask 31744
  %v389 = vsel %vm387, %v354, 0
  %v392 = vsel %vm387, %v355, 0
  %v395 = vsel %vm387, %v356, 0
  %v398 = vsel %vm387, %v357, 0
  %v401 = vsel %vm387, %v358, 0
  %v404 = vsel %vm387, %v359, 0
  %v407 = vsel %vm387, %v360, 0
  %v410 = vsel %vm387, %v361, 0
  %v413 = vsel %vm387, %v362, 0
  %v416 = vsel %vm387, %v363, 0
  %v419 = vsel %vm387, %v364, 0
  %v422 = vsel %vm387, %v365, 0
  %v425 = vsel %vm387, %v366, 0
  %v428 = vsel %vm387, %v367, 0
  %v431 = vsel %vm387, %v368, 0
  %v434 = vsel %vm387, %v369, 0
  %v437 = vsel %vm387, %v370, 0
  %v440 = vsel %vm387, %v371, 0
  %v443 = vsel %vm387, %v372, 0
  %v446 = vsel %vm387, %v373, 0
  %v449 = vsel %vm387, %v374, 0
  %v452 = vsel %vm387, %v375, 0
  %v455 = vsel %vm387, %v376, 0
  %v458 = vsel %vm387, %v377, 0
  %v461 = vsel %vm387, %v378, 0
  %v464 = vsel %vm387, %v379, 0
  %v467 = vsel %vm387, %v380, 0
  %v470 = vsel %vm387, %v381, 0
  %v473 = vsel %vm387, %v382, 0
  %v476 = vsel %vm387, %v383, 0
  %v479 = vsel %vm387, %v384, 0
  %v482 = vsel %vm387, %v385, 0
  %vm484 = vcmask 1041408
  %v486 = vsel %vm484, %v386, 0
  %488 = vmatprep.subr.bf16.mxu0 0
  %489 = vmatpush1.bf16.msra.mxu0 %v486
  %490 = vmatprep.subr.bf16.mxu0 0
  %491 = vmatpush1.bf16.msra.mxu0 0
  %492 = vmatprep.subr.bf16.mxu0 0
  %493 = vmatpush1.bf16.msra.mxu0 0
  %494 = vmatprep.subr.bf16.mxu0 0
  %495 = vmatpush1.bf16.msra.mxu0 0
  %496 = vmatprep.subr.bf16.mxu0 0
  %497 = vmatpush1.bf16.msra.mxu0 0
  %498 = vmatprep.subr.bf16.mxu0 0
  %499 = vmatpush1.bf16.msra.mxu0 0
  %500 = vmatprep.subr.bf16.mxu0 0
  %501 = vmatpush1.bf16.msra.mxu0 0
  %502 = vmatprep.subr.bf16.mxu0 0
  %503 = vmatpush1.bf16.msra.mxu0 0
  %504 = vmatprep.subr.bf16.mxu0 0
  %505 = vmatpush1.bf16.msra.mxu0 0
  %506 = vmatprep.subr.bf16.mxu0 0
  %507 = vmatpush1.bf16.msra.mxu0 0
  %508 = vmatprep.subr.bf16.mxu0 0
  %509 = vmatpush1.bf16.msra.mxu0 0
  %510 = vmatprep.subr.bf16.mxu0 0
  %511 = vmatpush1.bf16.msra.mxu0 0
  %512 = vmatprep.subr.bf16.mxu0 0
  %513 = vmatpush1.bf16.msra.mxu0 0
  %514 = vmatprep.subr.bf16.mxu0 0
  %515 = vmatpush1.bf16.msra.mxu0 0
  %516 = vmatprep.subr.bf16.mxu0 0
  %517 = vmatpush1.bf16.msra.mxu0 0
  %518 = vmatprep.subr.bf16.mxu0 0
  %519 = vmatpush1.bf16.msra.mxu0 0
  %520 = vmatprep.mubr.bf16.mxu0 0
  %521 = vmatmul.mubr.bf16.gmra.mrb[0].mxu0 %v389
  %v522 = vpop.f32.mrb[0].mxu0
  %v523 = vadd.f32 0.0, %v522
  %v524 = vpop.f32.mrb[0].mxu0
  %v525 = vpop.f32.mrb[0].mxu0
  %v526 = vadd.f32 0.0, %v525
  %v527 = vpop.f32.mrb[0].mxu0
  %528 = vmatprep.mubr.bf16.mxu0 0
  %529 = vmatmul.mubr.bf16.gmra.mrb[0].mxu0 %v392
  %v530 = vpop.f32.mrb[0].mxu0
  %v531 = vadd.f32 0.0, %v530
  %v532 = vpop.f32.mrb[0].mxu0
  %v533 = vpop.f32.mrb[0].mxu0
  %v534 = vadd.f32 0.0, %v533
  %v535 = vpop.f32.mrb[0].mxu0
  %536 = vmatprep.mubr.bf16.mxu0 0
  %537 = vmatmul.mubr.bf16.gmra.mrb[0].mxu0 %v395
  %v538 = vpop.f32.mrb[0].mxu0
  %v539 = vadd.f32 0.0, %v538
  %v540 = vpop.f32.mrb[0].mxu0
  %v541 = vpop.f32.mrb[0].mxu0
  %v542 = vadd.f32 0.0, %v541
  %v543 = vpop.f32.mrb[0].mxu0
  %544 = vmatprep.mubr.bf16.mxu0 0
  %545 = vmatmul.mubr.bf16.gmra.mrb[0].mxu0 %v398
  %v546 = vpop.f32.mrb[0].mxu0
  %v547 = vadd.f32 0.0, %v546
  %v548 = vpop.f32.mrb[0].mxu0
  %v549 = vpop.f32.mrb[0].mxu0
  %v550 = vadd.f32 0.0, %v549
  %v551 = vpop.f32.mrb[0].mxu0
  %552 = vmatprep.mubr.bf16.mxu0 0
  %553 = vmatmul.mubr.bf16.gmra.mrb[0].mxu0 %v401
  %v554 = vpop.f32.mrb[0].mxu0
  %v555 = vadd.f32 0.0, %v554
  %v556 = vpop.f32.mrb[0].mxu0
  %v557 = vpop.f32.mrb[0].mxu0
  %v558 = vadd.f32 0.0, %v557
  %v559 = vpop.f32.mrb[0].mxu0
  %560 = vmatprep.mubr.bf16.mxu0 0
  %561 = vmatmul.mubr.bf16.gmra.mrb[0].mxu0 %v404
  %v562 = vpop.f32.mrb[0].mxu0
  %v563 = vadd.f32 0.0, %v562
  %v564 = vpop.f32.mrb[0].mxu0
  %v565 = vpop.f32.mrb[0].mxu0
  %v566 = vadd.f32 0.0, %v565
  %v567 = vpop.f32.mrb[0].mxu0
  %568 = vmatprep.mubr.bf16.mxu0 0
  %569 = vmatmul.mubr.bf16.gmra.mrb[0].mxu0 %v407
  %v570 = vpop.f32.mrb[0].mxu0
  %v571 = vadd.f32 0.0, %v570
  %v572 = vpop.f32.mrb[0].mxu0
  %v573 = vpop.f32.mrb[0].mxu0
  %v574 = vadd.f32 0.0, %v573
  %v575 = vpop.f32.mrb[0].mxu0
  %576 = vmatprep.mubr.bf16.mxu0 0
  %577 = vmatmul.mubr.bf16.gmra.mrb[0].mxu0 %v410
  %v578 = vpop.f32.mrb[0].mxu0
  %v579 = vadd.f32 0.0, %v578
  %v580 = vpop.f32.mrb[0].mxu0
  %v581 = vpop.f32.mrb[0].mxu0
  %v582 = vadd.f32 0.0, %v581
  %v583 = vpop.f32.mrb[0].mxu0
  %584 = vmatprep.mubr.bf16.mxu0 0
  %585 = vmatmul.mubr.bf16.gmra.mrb[0].mxu0 %v413
  %v586 = vpop.f32.mrb[0].mxu0
  %v587 = vadd.f32 0.0, %v586
  %v588 = vpop.f32.mrb[0].mxu0
  %v589 = vpop.f32.mrb[0].mxu0
  %v590 = vadd.f32 0.0, %v589
  %v591 = vpop.f32.mrb[0].mxu0
  %592 = vmatprep.mubr.bf16.mxu0 0
  %593 = vmatmul.mubr.bf16.gmra.mrb[0].mxu0 %v416
  %v594 = vpop.f32.mrb[0].mxu0
  %v595 = vadd.f32 0.0, %v594
  %v596 = vpop.f32.mrb[0].mxu0
  %v597 = vpop.f32.mrb[0].mxu0
  %v598 = vadd.f32 0.0, %v597
  %v599 = vpop.f32.mrb[0].mxu0
  %600 = vmatprep.mubr.bf16.mxu0 0
  %601 = vmatmul.mubr.bf16.gmra.mrb[0].mxu0 %v419
  %v602 = vpop.f32.mrb[0].mxu0
  %v603 = vadd.f32 0.0, %v602
  %v604 = vpop.f32.mrb[0].mxu0
  %v605 = vpop.f32.mrb[0].mxu0
  %v606 = vadd.f32 0.0, %v605
  %v607 = vpop.f32.mrb[0].mxu0
  %608 = vmatprep.mubr.bf16.mxu0 0
  %609 = vmatmul.mubr.bf16.gmra.mrb[0].mxu0 %v422
  %v610 = vpop.f32.mrb[0].mxu0
  %v611 = vadd.f32 0.0, %v610
  %v612 = vpop.f32.mrb[0].mxu0
  %v613 = vpop.f32.mrb[0].mxu0
  %v614 = vadd.f32 0.0, %v613
  %v615 = vpop.f32.mrb[0].mxu0
  %616 = vmatprep.mubr.bf16.mxu0 0
  %617 = vmatmul.mubr.bf16.gmra.mrb[0].mxu0 %v425
  %v618 = vpop.f32.mrb[0].mxu0
  %v619 = vadd.f32 0.0, %v618
  %v620 = vpop.f32.mrb[0].mxu0
  %v621 = vpop.f32.mrb[0].mxu0
  %v622 = vadd.f32 0.0, %v621
  %v623 = vpop.f32.mrb[0].mxu0
  %624 = vmatprep.mubr.bf16.mxu0 0
  %625 = vmatmul.mubr.bf16.gmra.mrb[0].mxu0 %v428
  %v626 = vpop.f32.mrb[0].mxu0
  %v627 = vadd.f32 0.0, %v626
  %v628 = vpop.f32.mrb[0].mxu0
  %v629 = vpop.f32.mrb[0].mxu0
  %v630 = vadd.f32 0.0, %v629
  %v631 = vpop.f32.mrb[0].mxu0
  %632 = vmatprep.mubr.bf16.mxu0 0
  %633 = vmatmul.mubr.bf16.gmra.mrb[0].mxu0 %v431
  %v634 = vpop.f32.mrb[0].mxu0
  %v635 = vadd.f32 0.0, %v634
  %v636 = vpop.f32.mrb[0].mxu0
  %v637 = vpop.f32.mrb[0].mxu0
  %v638 = vadd.f32 0.0, %v637
  %v639 = vpop.f32.mrb[0].mxu0
  %640 = vmatprep.mubr.bf16.mxu0 0
  %641 = vmatmul.mubr.bf16.gmra.mrb[0].mxu0 %v434
  %v642 = vpop.f32.mrb[0].mxu0
  %v643 = vadd.f32 0.0, %v642
  %v644 = vpop.f32.mrb[0].mxu0
  %v645 = vpop.f32.mrb[0].mxu0
  %v646 = vadd.f32 0.0, %v645
  %v647 = vpop.f32.mrb[0].mxu0
  %648 = vmatprep.mubr.bf16.mxu0 0
  %649 = vmatmul.mubr.bf16.gmra.mrb[0].mxu0 %v437
  %v650 = vpop.f32.mrb[0].mxu0
  %v651 = vadd.f32 0.0, %v650
  %v652 = vpop.f32.mrb[0].mxu0
  %v653 = vpop.f32.mrb[0].mxu0
  %v654 = vadd.f32 0.0, %v653
  %v655 = vpop.f32.mrb[0].mxu0
  %656 = vmatprep.mubr.bf16.mxu0 0
  %657 = vmatmul.mubr.bf16.gmra.mrb[0].mxu0 %v440
  %v658 = vpop.f32.mrb[0].mxu0
  %v659 = vadd.f32 0.0, %v658
  %v660 = vpop.f32.mrb[0].mxu0
  %v661 = vpop.f32.mrb[0].mxu0
  %v662 = vadd.f32 0.0, %v661
  %v663 = vpop.f32.mrb[0].mxu0
  %664 = vmatprep.mubr.bf16.mxu0 0
  %665 = vmatmul.mubr.bf16.gmra.mrb[0].mxu0 %v443
  %v666 = vpop.f32.mrb[0].mxu0
  %v667 = vadd.f32 0.0, %v666
  %v668 = vpop.f32.mrb[0].mxu0
  %v669 = vpop.f32.mrb[0].mxu0
  %v670 = vadd.f32 0.0, %v669
  %v671 = vpop.f32.mrb[0].mxu0
  %672 = vmatprep.mubr.bf16.mxu0 0
  %673 = vmatmul.mubr.bf16.gmra.mrb[0].mxu0 %v446
  %v674 = vpop.f32.mrb[0].mxu0
  %v675 = vadd.f32 0.0, %v674
  %v676 = vpop.f32.mrb[0].mxu0
  %v677 = vpop.f32.mrb[0].mxu0
  %v678 = vadd.f32 0.0, %v677
  %v679 = vpop.f32.mrb[0].mxu0
  %680 = vmatprep.mubr.bf16.mxu0 0
  %681 = vmatmul.mubr.bf16.gmra.mrb[0].mxu0 %v449
  %v682 = vpop.f32.mrb[0].mxu0
  %v683 = vadd.f32 0.0, %v682
  %v684 = vpop.f32.mrb[0].mxu0
  %v685 = vpop.f32.mrb[0].mxu0
  %v686 = vadd.f32 0.0, %v685
  %v687 = vpop.f32.mrb[0].mxu0
  %688 = vmatprep.mubr.bf16.mxu0 0
  %689 = vmatmul.mubr.bf16.gmra.mrb[0].mxu0 %v452
  %v690 = vpop.f32.mrb[0].mxu0
  %v691 = vadd.f32 0.0, %v690
  %v692 = vpop.f32.mrb[0].mxu0
  %v693 = vpop.f32.mrb[0].mxu0
  %v694 = vadd.f32 0.0, %v693
  %v695 = vpop.f32.mrb[0].mxu0
  %696 = vmatprep.mubr.bf16.mxu0 0
  %697 = vmatmul.mubr.bf16.gmra.mrb[0].mxu0 %v455
  %v698 = vpop.f32.mrb[0].mxu0
  %v699 = vadd.f32 0.0, %v698
  %v700 = vpop.f32.mrb[0].mxu0
  %v701 = vpop.f32.mrb[0].mxu0
  %v702 = vadd.f32 0.0, %v701
  %v703 = vpop.f32.mrb[0].mxu0
  %704 = vmatprep.mubr.bf16.mxu0 0
  %705 = vmatmul.mubr.bf16.gmra.mrb[0].mxu0 %v458
  %v706 = vpop.f32.mrb[0].mxu0
  %v707 = vadd.f32 0.0, %v706
  %v708 = vpop.f32.mrb[0].mxu0
  %v709 = vpop.f32.mrb[0].mxu0
  %v710 = vadd.f32 0.0, %v709
  %v711 = vpop.f32.mrb[0].mxu0
  %712 = vmatprep.mubr.bf16.mxu0 0
  %713 = vmatmul.mubr.bf16.gmra.mrb[0].mxu0 %v461
  %v714 = vpop.f32.mrb[0].mxu0
  %v715 = vadd.f32 0.0, %v714
  %v716 = vpop.f32.mrb[0].mxu0
  %v717 = vpop.f32.mrb[0].mxu0
  %v718 = vadd.f32 0.0, %v717
  %v719 = vpop.f32.mrb[0].mxu0
  %720 = vmatprep.mubr.bf16.mxu0 0
  %721 = vmatmul.mubr.bf16.gmra.mrb[0].mxu0 %v464
  %v722 = vpop.f32.mrb[0].mxu0
  %v723 = vadd.f32 0.0, %v722
  %v724 = vpop.f32.mrb[0].mxu0
  %v725 = vpop.f32.mrb[0].mxu0
  %v726 = vadd.f32 0.0, %v725
  %v727 = vpop.f32.mrb[0].mxu0
  %728 = vmatprep.mubr.bf16.mxu0 0
  %729 = vmatmul.mubr.bf16.gmra.mrb[0].mxu0 %v467
  %v730 = vpop.f32.mrb[0].mxu0
  %v731 = vadd.f32 0.0, %v730
  %v732 = vpop.f32.mrb[0].mxu0
  %v733 = vpop.f32.mrb[0].mxu0
  %v734 = vadd.f32 0.0, %v733
  %v735 = vpop.f32.mrb[0].mxu0
  %736 = vmatprep.mubr.bf16.mxu0 0
  %737 = vmatmul.mubr.bf16.gmra.mrb[0].mxu0 %v470
  %v738 = vpop.f32.mrb[0].mxu0
  %v739 = vadd.f32 0.0, %v738
  %v740 = vpop.f32.mrb[0].mxu0
  %v741 = vpop.f32.mrb[0].mxu0
  %v742 = vadd.f32 0.0, %v741
  %v743 = vpop.f32.mrb[0].mxu0
  %744 = vmatprep.mubr.bf16.mxu0 0
  %745 = vmatmul.mubr.bf16.gmra.mrb[0].mxu0 %v473
  %v746 = vpop.f32.mrb[0].mxu0
  %v747 = vadd.f32 0.0, %v746
  %v748 = vpop.f32.mrb[0].mxu0
  %v749 = vpop.f32.mrb[0].mxu0
  %v750 = vadd.f32 0.0, %v749
  %v751 = vpop.f32.mrb[0].mxu0
  %752 = vmatprep.mubr.bf16.mxu0 0
  %753 = vmatmul.mubr.bf16.gmra.mrb[0].mxu0 %v476
  %v754 = vpop.f32.mrb[0].mxu0
  %v755 = vadd.f32 0.0, %v754
  %v756 = vpop.f32.mrb[0].mxu0
  %v757 = vpop.f32.mrb[0].mxu0
  %v758 = vadd.f32 0.0, %v757
  %v759 = vpop.f32.mrb[0].mxu0
  %760 = vmatprep.mubr.bf16.mxu0 0
  %761 = vmatmul.mubr.bf16.gmra.mrb[0].mxu0 %v479
  %v762 = vpop.f32.mrb[0].mxu0
  %v763 = vadd.f32 0.0, %v762
  %v764 = vpop.f32.mrb[0].mxu0
  %v765 = vpop.f32.mrb[0].mxu0
  %v766 = vadd.f32 0.0, %v765
  %v767 = vpop.f32.mrb[0].mxu0
  %768 = vmatprep.mubr.bf16.mxu0 0
  %769 = vmatmul.mubr.bf16.gmra.mrb[0].mxu0 %v482
  %v770 = vpop.f32.mrb[0].mxu0
  %v771 = vadd.f32 0.0, %v770
  %v772 = vpop.f32.mrb[0].mxu0
  %v773 = vpop.f32.mrb[0].mxu0
  %v774 = vadd.f32 0.0, %v773
  %v775 = vpop.f32.mrb[0].mxu0
  %776 = vdwg.mxu0
  %v777 = vpack.c.bf16 %v526, %v523
  %v778 = vpack.c.bf16 %v534, %v531
  %v779 = vpack.c.bf16 %v542, %v539
  %v780 = vpack.c.bf16 %v550, %v547
  %v781 = vpack.c.bf16 %v558, %v555
  %v782 = vpack.c.bf16 %v566, %v563
  %v783 = vpack.c.bf16 %v574, %v571
  %v784 = vpack.c.bf16 %v582, %v579
  %v785 = vpack.c.bf16 %v590, %v587
  %v786 = vpack.c.bf16 %v598, %v595
  %v787 = vpack.c.bf16 %v606, %v603
  %v788 = vpack.c.bf16 %v614, %v611
  %v789 = vpack.c.bf16 %v622, %v619
  %v790 = vpack.c.bf16 %v630, %v627
  %v791 = vpack.c.bf16 %v638, %v635
  %v792 = vpack.c.bf16 %v646, %v643
  %v793 = vpack.c.bf16 %v654, %v651
  %v794 = vpack.c.bf16 %v662, %v659
  %v795 = vpack.c.bf16 %v670, %v667
  %v796 = vpack.c.bf16 %v678, %v675
  %v797 = vpack.c.bf16 %v686, %v683
  %v798 = vpack.c.bf16 %v694, %v691
  %v799 = vpack.c.bf16 %v702, %v699
  %v800 = vpack.c.bf16 %v710, %v707
  %v801 = vpack.c.bf16 %v718, %v715
  %v802 = vpack.c.bf16 %v726, %v723
  %v803 = vpack.c.bf16 %v734, %v731
  %v804 = vpack.c.bf16 %v742, %v739
  %v805 = vpack.c.bf16 %v750, %v747
  %v806 = vpack.c.bf16 %v758, %v755
  %v807 = vpack.c.bf16 %v766, %v763
  %v808 = vpack.c.bf16 %v774, %v771
  %v841 = vunpack.c.l.b16 %v777
  %v842 = vunpack.c.h.b16 %v777
  %v843 = vunpack.c.l.b16 %v778
  %v844 = vunpack.c.h.b16 %v778
  %v845 = vunpack.c.l.b16 %v779
  %v846 = vunpack.c.h.b16 %v779
  %v847 = vunpack.c.l.b16 %v780
  %v848 = vunpack.c.h.b16 %v780
  %v849 = vunpack.c.l.b16 %v781
  %v850 = vunpack.c.h.b16 %v781
  %v851 = vunpack.c.l.b16 %v782
  %v852 = vunpack.c.h.b16 %v782
  %v853 = vunpack.c.l.b16 %v783
  %v854 = vunpack.c.h.b16 %v783
  %v855 = vunpack.c.l.b16 %v784
  %v856 = vunpack.c.h.b16 %v784
  %v857 = vunpack.c.l.b16 %v785
  %v858 = vunpack.c.h.b16 %v785
  %v859 = vunpack.c.l.b16 %v786
  %v860 = vunpack.c.h.b16 %v786
  %v861 = vunpack.c.l.b16 %v787
  %v862 = vunpack.c.h.b16 %v787
  %v863 = vunpack.c.l.b16 %v788
  %v864 = vunpack.c.h.b16 %v788
  %v865 = vunpack.c.l.b16 %v789
  %v866 = vunpack.c.h.b16 %v789
  %v867 = vunpack.c.l.b16 %v790
  %v868 = vunpack.c.h.b16 %v790
  %v869 = vunpack.c.l.b16 %v791
  %v870 = vunpack.c.h.b16 %v791
  %v871 = vunpack.c.l.b16 %v792
  %v872 = vunpack.c.h.b16 %v792
  %v873 = vunpack.c.l.b16 %v793
  %v874 = vunpack.c.h.b16 %v793
  %v875 = vunpack.c.l.b16 %v794
  %v876 = vunpack.c.h.b16 %v794
  %v877 = vunpack.c.l.b16 %v795
  %v878 = vunpack.c.h.b16 %v795
  %v879 = vunpack.c.l.b16 %v796
  %v880 = vunpack.c.h.b16 %v796
  %v881 = vunpack.c.l.b16 %v797
  %v882 = vunpack.c.h.b16 %v797
  %v883 = vunpack.c.l.b16 %v798
  %v884 = vunpack.c.h.b16 %v798
  %v885 = vunpack.c.l.b16 %v799
  %v886 = vunpack.c.h.b16 %v799
  %v887 = vunpack.c.l.b16 %v800
  %v888 = vunpack.c.h.b16 %v800
  %v889 = vunpack.c.l.b16 %v801
  %v890 = vunpack.c.h.b16 %v801
  %v891 = vunpack.c.l.b16 %v802
  %v892 = vunpack.c.h.b16 %v802
  %v893 = vunpack.c.l.b16 %v803
  %v894 = vunpack.c.h.b16 %v803
  %v895 = vunpack.c.l.b16 %v804
  %v896 = vunpack.c.h.b16 %v804
  %v897 = vunpack.c.l.b16 %v805
  %v898 = vunpack.c.h.b16 %v805
  %v899 = vunpack.c.l.b16 %v806
  %v900 = vunpack.c.h.b16 %v806
  %v901 = vunpack.c.l.b16 %v807
  %v902 = vunpack.c.h.b16 %v807
  %v903 = vunpack.c.l.b16 %v808
  %v904 = vunpack.c.h.b16 %v808
  %v905 = vpack.c.b16 %v841, %v841
  %v906 = vpack.c.b16 %v842, %v842
  %v907 = vpack.c.b16 %v843, %v843
  %v908 = vpack.c.b16 %v844, %v844
  %v909 = vpack.c.b16 %v845, %v845
  %v910 = vpack.c.b16 %v846, %v846
  %v911 = vpack.c.b16 %v847, %v847
  %v912 = vpack.c.b16 %v848, %v848
  %v913 = vpack.c.b16 %v849, %v849
  %v914 = vpack.c.b16 %v850, %v850
  %v915 = vpack.c.b16 %v851, %v851
  %v916 = vpack.c.b16 %v852, %v852
  %v917 = vpack.c.b16 %v853, %v853
  %v918 = vpack.c.b16 %v854, %v854
  %v919 = vpack.c.b16 %v855, %v855
  %v920 = vpack.c.b16 %v856, %v856
  %v921 = vpack.c.b16 %v857, %v857
  %v922 = vpack.c.b16 %v858, %v858
  %v923 = vpack.c.b16 %v859, %v859
  %v924 = vpack.c.b16 %v860, %v860
  %v925 = vpack.c.b16 %v861, %v861
  %v926 = vpack.c.b16 %v862, %v862
  %v927 = vpack.c.b16 %v863, %v863
  %v928 = vpack.c.b16 %v864, %v864
  %v929 = vpack.c.b16 %v865, %v865
  %v930 = vpack.c.b16 %v866, %v866
  %v931 = vpack.c.b16 %v867, %v867
  %v932 = vpack.c.b16 %v868, %v868
  %v933 = vpack.c.b16 %v869, %v869
  %v934 = vpack.c.b16 %v870, %v870
  %v935 = vpack.c.b16 %v871, %v871
  %v936 = vpack.c.b16 %v872, %v872
  %v937 = vpack.c.b16 %v873, %v873
  %v938 = vpack.c.b16 %v874, %v874
  %v939 = vpack.c.b16 %v875, %v875
  %v940 = vpack.c.b16 %v876, %v876
  %v941 = vpack.c.b16 %v877, %v877
  %v942 = vpack.c.b16 %v878, %v878
  %v943 = vpack.c.b16 %v879, %v879
  %v944 = vpack.c.b16 %v880, %v880
  %v945 = vpack.c.b16 %v881, %v881
  %v946 = vpack.c.b16 %v882, %v882
  %v947 = vpack.c.b16 %v883, %v883
  %v948 = vpack.c.b16 %v884, %v884
  %v949 = vpack.c.b16 %v885, %v885
  %v950 = vpack.c.b16 %v886, %v886
  %v951 = vpack.c.b16 %v887, %v887
  %v952 = vpack.c.b16 %v888, %v888
  %v953 = vpack.c.b16 %v889, %v889
  %v954 = vpack.c.b16 %v890, %v890
  %v955 = vpack.c.b16 %v891, %v891
  %v956 = vpack.c.b16 %v892, %v892
  %v957 = vpack.c.b16 %v893, %v893
  %v958 = vpack.c.b16 %v894, %v894
  %v959 = vpack.c.b16 %v895, %v895
  %v960 = vpack.c.b16 %v896, %v896
  %v961 = vpack.c.b16 %v897, %v897
  %v962 = vpack.c.b16 %v898, %v898
  %v963 = vpack.c.b16 %v899, %v899
  %v964 = vpack.c.b16 %v900, %v900
  %v965 = vpack.c.b16 %v901, %v901
  %v966 = vpack.c.b16 %v902, %v902
  %v967 = vpack.c.b16 %v903, %v903
  %v968 = vpack.c.b16 %v904, %v904
  %vm1033 = vcmask 125952
  %1034 = vst.msk [vmem:[%s4] sm:$0xf] %vm1033, %v905
  %1035 = vst.msk [vmem:[%s4 + $0x4] sm:$0xf] %vm1033, %v906
  %1036 = vst.msk [vmem:[%s4 + $0x8] sm:$0xf] %vm1033, %v907
  %1037 = vst.msk [vmem:[%s4 + $0xc] sm:$0xf] %vm1033, %v908
  %1038 = vst.msk [vmem:[%s4 + $0x10] sm:$0xf] %vm1033, %v909
  %1039 = vst.msk [vmem:[%s4 + $0x14] sm:$0xf] %vm1033, %v910
  %1040 = vst.msk [vmem:[%s4 + $0x18] sm:$0xf] %vm1033, %v911
  %1041 = vst.msk [vmem:[%s4 + $0x1c] sm:$0xf] %vm1033, %v912
  %1042 = vst.msk [vmem:[%s4 + $0x20] sm:$0xf] %vm1033, %v913
  %1043 = vst.msk [vmem:[%s4 + $0x24] sm:$0xf] %vm1033, %v914
  %1044 = vst.msk [vmem:[%s4 + $0x28] sm:$0xf] %vm1033, %v915
  %1045 = vst.msk [vmem:[%s4 + $0x2c] sm:$0xf] %vm1033, %v916
  %1046 = vst.msk [vmem:[%s4 + $0x30] sm:$0xf] %vm1033, %v917
  %1047 = vst.msk [vmem:[%s4 + $0x34] sm:$0xf] %vm1033, %v918
  %1048 = vst.msk [vmem:[%s4 + $0x38] sm:$0xf] %vm1033, %v919
  %1049 = vst.msk [vmem:[%s4 + $0x3c] sm:$0xf] %vm1033, %v920
  %1050 = vst.msk [vmem:[%s4 + $0x40] sm:$0xf] %vm1033, %v921
  %1051 = vst.msk [vmem:[%s4 + $0x44] sm:$0xf] %vm1033, %v922
  %1052 = vst.msk [vmem:[%s4 + $0x48] sm:$0xf] %vm1033, %v923
  %1053 = vst.msk [vmem:[%s4 + $0x4c] sm:$0xf] %vm1033, %v924
  %1054 = vst.msk [vmem:[%s4 + $0x50] sm:$0xf] %vm1033, %v925
  %1055 = vst.msk [vmem:[%s4 + $0x54] sm:$0xf] %vm1033, %v926
  %1056 = vst.msk [vmem:[%s4 + $0x58] sm:$0xf] %vm1033, %v927
  %1057 = vst.msk [vmem:[%s4 + $0x5c] sm:$0xf] %vm1033, %v928
  %1058 = vst.msk [vmem:[%s4 + $0x60] sm:$0xf] %vm1033, %v929
  %1059 = vst.msk [vmem:[%s4 + $0x64] sm:$0xf] %vm1033, %v930
  %1060 = vst.msk [vmem:[%s4 + $0x68] sm:$0xf] %vm1033, %v931
  %1061 = vst.msk [vmem:[%s4 + $0x6c] sm:$0xf] %vm1033, %v932
  %1062 = vst.msk [vmem:[%s4 + $0x70] sm:$0xf] %vm1033, %v933
  %1063 = vst.msk [vmem:[%s4 + $0x74] sm:$0xf] %vm1033, %v934
  %1064 = vst.msk [vmem:[%s4 + $0x78] sm:$0xf] %vm1033, %v935
  %1065 = vst.msk [vmem:[%s4 + $0x7c] sm:$0xf] %vm1033, %v936
  %1066 = vst.msk [vmem:[%s4 + $0x80] sm:$0xf] %vm1033, %v937
  %1067 = vst.msk [vmem:[%s4 + $0x84] sm:$0xf] %vm1033, %v938
  %1068 = vst.msk [vmem:[%s4 + $0x88] sm:$0xf] %vm1033, %v939
  %1069 = vst.msk [vmem:[%s4 + $0x8c] sm:$0xf] %vm1033, %v940
  %1070 = vst.msk [vmem:[%s4 + $0x90] sm:$0xf] %vm1033, %v941
  %1071 = vst.msk [vmem:[%s4 + $0x94] sm:$0xf] %vm1033, %v942
  %1072 = vst.msk [vmem:[%s4 + $0x98] sm:$0xf] %vm1033, %v943
  %1073 = vst.msk [vmem:[%s4 + $0x9c] sm:$0xf] %vm1033, %v944
  %1074 = vst.msk [vmem:[%s4 + $0xa0] sm:$0xf] %vm1033, %v945
  %1075 = vst.msk [vmem:[%s4 + $0xa4] sm:$0xf] %vm1033, %v946
  %1076 = vst.msk [vmem:[%s4 + $0xa8] sm:$0xf] %vm1033, %v947
  %1077 = vst.msk [vmem:[%s4 + $0xac] sm:$0xf] %vm1033, %v948
  %1078 = vst.msk [vmem:[%s4 + $0xb0] sm:$0xf] %vm1033, %v949
  %1079 = vst.msk [vmem:[%s4 + $0xb4] sm:$0xf] %vm1033, %v950
  %1080 = vst.msk [vmem:[%s4 + $0xb8] sm:$0xf] %vm1033, %v951
  %1081 = vst.msk [vmem:[%s4 + $0xbc] sm:$0xf] %vm1033, %v952
  %1082 = vst.msk [vmem:[%s4 + $0xc0] sm:$0xf] %vm1033, %v953
  %1083 = vst.msk [vmem:[%s4 + $0xc4] sm:$0xf] %vm1033, %v954
  %1084 = vst.msk [vmem:[%s4 + $0xc8] sm:$0xf] %vm1033, %v955
  %1085 = vst.msk [vmem:[%s4 + $0xcc] sm:$0xf] %vm1033, %v956
  %1086 = vst.msk [vmem:[%s4 + $0xd0] sm:$0xf] %vm1033, %v957
  %1087 = vst.msk [vmem:[%s4 + $0xd4] sm:$0xf] %vm1033, %v958
  %1088 = vst.msk [vmem:[%s4 + $0xd8] sm:$0xf] %vm1033, %v959
  %1089 = vst.msk [vmem:[%s4 + $0xdc] sm:$0xf] %vm1033, %v960
  %1090 = vst.msk [vmem:[%s4 + $0xe0] sm:$0xf] %vm1033, %v961
  %1091 = vst.msk [vmem:[%s4 + $0xe4] sm:$0xf] %vm1033, %v962
  %1092 = vst.msk [vmem:[%s4 + $0xe8] sm:$0xf] %vm1033, %v963
  %1093 = vst.msk [vmem:[%s4 + $0xec] sm:$0xf] %vm1033, %v964
  %1094 = vst.msk [vmem:[%s4 + $0xf0] sm:$0xf] %vm1033, %v965
  %1095 = vst.msk [vmem:[%s4 + $0xf4] sm:$0xf] %vm1033, %v966
  %1096 = vst.msk [vmem:[%s4 + $0xf8] sm:$0xf] %vm1033, %v967
  %1097 = vst.msk [vmem:[%s4 + $0xfc] sm:$0xf] %vm1033, %v968
  %vm1098 = vcmask 130048
  %v1099 = vsel %vm1098, %v523, 0.0
  %v1100 = vsel %vm1098, %v526, 0.0
  %v1101 = vadd.f32 %v1099, %v1100
  %v1102 = vsel %vm1098, %v531, 0.0
  %v1103 = vadd.f32 %v1101, %v1102
  %v1104 = vsel %vm1098, %v534, 0.0
  %v1105 = vadd.f32 %v1103, %v1104
  %v1106 = vsel %vm1098, %v539, 0.0
  %v1107 = vadd.f32 %v1105, %v1106
  %v1108 = vsel %vm1098, %v542, 0.0
  %v1109 = vadd.f32 %v1107, %v1108
  %v1110 = vsel %vm1098, %v547, 0.0
  %v1111 = vadd.f32 %v1109, %v1110
  %v1112 = vsel %vm1098, %v550, 0.0
  %v1113 = vadd.f32 %v1111, %v1112
  %v1114 = vsel %vm1098, %v555, 0.0
  %v1115 = vadd.f32 %v1113, %v1114
  %v1116 = vsel %vm1098, %v558, 0.0
  %v1117 = vadd.f32 %v1115, %v1116
  %v1118 = vsel %vm1098, %v563, 0.0
  %v1119 = vadd.f32 %v1117, %v1118
  %v1120 = vsel %vm1098, %v566, 0.0
  %v1121 = vadd.f32 %v1119, %v1120
  %v1122 = vsel %vm1098, %v571, 0.0
  %v1123 = vadd.f32 %v1121, %v1122
  %v1124 = vsel %vm1098, %v574, 0.0
  %v1125 = vadd.f32 %v1123, %v1124
  %v1126 = vsel %vm1098, %v579, 0.0
  %v1127 = vadd.f32 %v1125, %v1126
  %v1128 = vsel %vm1098, %v582, 0.0
  %v1129 = vadd.f32 %v1127, %v1128
  %v1130 = vsel %vm1098, %v587, 0.0
  %v1131 = vadd.f32 %v1129, %v1130
  %v1132 = vsel %vm1098, %v590, 0.0
  %v1133 = vadd.f32 %v1131, %v1132
  %v1134 = vsel %vm1098, %v595, 0.0
  %v1135 = vadd.f32 %v1133, %v1134
  %v1136 = vsel %vm1098, %v598, 0.0
  %v1137 = vadd.f32 %v1135, %v1136
  %v1138 = vsel %vm1098, %v603, 0.0
  %v1139 = vadd.f32 %v1137, %v1138
  %v1140 = vsel %vm1098, %v606, 0.0
  %v1141 = vadd.f32 %v1139, %v1140
  %v1142 = vsel %vm1098, %v611, 0.0
  %v1143 = vadd.f32 %v1141, %v1142
  %v1144 = vsel %vm1098, %v614, 0.0
  %v1145 = vadd.f32 %v1143, %v1144
  %v1146 = vsel %vm1098, %v619, 0.0
  %v1147 = vadd.f32 %v1145, %v1146
  %v1148 = vsel %vm1098, %v622, 0.0
  %v1149 = vadd.f32 %v1147, %v1148
  %v1150 = vsel %vm1098, %v627, 0.0
  %v1151 = vadd.f32 %v1149, %v1150
  %v1152 = vsel %vm1098, %v630, 0.0
  %v1153 = vadd.f32 %v1151, %v1152
  %v1154 = vsel %vm1098, %v635, 0.0
  %v1155 = vadd.f32 %v1153, %v1154
  %v1156 = vsel %vm1098, %v638, 0.0
  %v1157 = vadd.f32 %v1155, %v1156
  %v1158 = vsel %vm1098, %v643, 0.0
  %v1159 = vadd.f32 %v1157, %v1158
  %v1160 = vsel %vm1098, %v646, 0.0
  %v1161 = vadd.f32 %v1159, %v1160
  %v1162 = vsel %vm1098, %v651, 0.0
  %v1163 = vadd.f32 %v1161, %v1162
  %v1164 = vsel %vm1098, %v654, 0.0
  %v1165 = vadd.f32 %v1163, %v1164
  %v1166 = vsel %vm1098, %v659, 0.0
  %v1167 = vadd.f32 %v1165, %v1166
  %v1168 = vsel %vm1098, %v662, 0.0
  %v1169 = vadd.f32 %v1167, %v1168
  %v1170 = vsel %vm1098, %v667, 0.0
  %v1171 = vadd.f32 %v1169, %v1170
  %v1172 = vsel %vm1098, %v670, 0.0
  %v1173 = vadd.f32 %v1171, %v1172
  %v1174 = vsel %vm1098, %v675, 0.0
  %v1175 = vadd.f32 %v1173, %v1174
  %v1176 = vsel %vm1098, %v678, 0.0
  %v1177 = vadd.f32 %v1175, %v1176
  %v1178 = vsel %vm1098, %v683, 0.0
  %v1179 = vadd.f32 %v1177, %v1178
  %v1180 = vsel %vm1098, %v686, 0.0
  %v1181 = vadd.f32 %v1179, %v1180
  %v1182 = vsel %vm1098, %v691, 0.0
  %v1183 = vadd.f32 %v1181, %v1182
  %v1184 = vsel %vm1098, %v694, 0.0
  %v1185 = vadd.f32 %v1183, %v1184
  %v1186 = vsel %vm1098, %v699, 0.0
  %v1187 = vadd.f32 %v1185, %v1186
  %v1188 = vsel %vm1098, %v702, 0.0
  %v1189 = vadd.f32 %v1187, %v1188
  %v1190 = vsel %vm1098, %v707, 0.0
  %v1191 = vadd.f32 %v1189, %v1190
  %v1192 = vsel %vm1098, %v710, 0.0
  %v1193 = vadd.f32 %v1191, %v1192
  %v1194 = vsel %vm1098, %v715, 0.0
  %v1195 = vadd.f32 %v1193, %v1194
  %v1196 = vsel %vm1098, %v718, 0.0
  %v1197 = vadd.f32 %v1195, %v1196
  %v1198 = vsel %vm1098, %v723, 0.0
  %v1199 = vadd.f32 %v1197, %v1198
  %v1200 = vsel %vm1098, %v726, 0.0
  %v1201 = vadd.f32 %v1199, %v1200
  %v1202 = vsel %vm1098, %v731, 0.0
  %v1203 = vadd.f32 %v1201, %v1202
  %v1204 = vsel %vm1098, %v734, 0.0
  %v1205 = vadd.f32 %v1203, %v1204
  %v1206 = vsel %vm1098, %v739, 0.0
  %v1207 = vadd.f32 %v1205, %v1206
  %v1208 = vsel %vm1098, %v742, 0.0
  %v1209 = vadd.f32 %v1207, %v1208
  %v1210 = vsel %vm1098, %v747, 0.0
  %v1211 = vadd.f32 %v1209, %v1210
  %v1212 = vsel %vm1098, %v750, 0.0
  %v1213 = vadd.f32 %v1211, %v1212
  %v1214 = vsel %vm1098, %v755, 0.0
  %v1215 = vadd.f32 %v1213, %v1214
  %v1216 = vsel %vm1098, %v758, 0.0
  %v1217 = vadd.f32 %v1215, %v1216
  %v1218 = vsel %vm1098, %v763, 0.0
  %v1219 = vadd.f32 %v1217, %v1218
  %v1220 = vsel %vm1098, %v766, 0.0
  %v1221 = vadd.f32 %v1219, %v1220
  %v1222 = vsel %vm1098, %v771, 0.0
  %v1223 = vadd.f32 %v1221, %v1222
  %v1224 = vsel %vm1098, %v774, 0.0
  %v1225 = vadd.f32 %v1223, %v1224
  %v1226 = vrot.slane %v1225, 4
  %v1227 = vadd.f32 %v1225, %v1226
  %v1228 = vrot.slane %v1227, 2
  %v1229 = vadd.f32 %v1227, %v1228
  %v1230 = vrot.slane %v1229, 1
  %v1231 = vadd.f32 %v1229, %v1230
  %v1232 = vmul.f32 %v523, %v523
  %v1233 = vmul.f32 %v526, %v526
  %v1234 = vmul.f32 %v531, %v531
  %v1235 = vmul.f32 %v534, %v534
  %v1236 = vmul.f32 %v539, %v539
  %v1237 = vmul.f32 %v542, %v542
  %v1238 = vmul.f32 %v547, %v547
  %v1239 = vmul.f32 %v550, %v550
  %v1240 = vmul.f32 %v555, %v555
  %v1241 = vmul.f32 %v558, %v558
  %v1242 = vmul.f32 %v563, %v563
  %v1243 = vmul.f32 %v566, %v566
  %v1244 = vmul.f32 %v571, %v571
  %v1245 = vmul.f32 %v574, %v574
  %v1246 = vmul.f32 %v579, %v579
  %v1247 = vmul.f32 %v582, %v582
  %v1248 = vmul.f32 %v587, %v587
  %v1249 = vmul.f32 %v590, %v590
  %v1250 = vmul.f32 %v595, %v595
  %v1251 = vmul.f32 %v598, %v598
  %v1252 = vmul.f32 %v603, %v603
  %v1253 = vmul.f32 %v606, %v606
  %v1254 = vmul.f32 %v611, %v611
  %v1255 = vmul.f32 %v614, %v614
  %v1256 = vmul.f32 %v619, %v619
  %v1257 = vmul.f32 %v622, %v622
  %v1258 = vmul.f32 %v627, %v627
  %v1259 = vmul.f32 %v630, %v630
  %v1260 = vmul.f32 %v635, %v635
  %v1261 = vmul.f32 %v638, %v638
  %v1262 = vmul.f32 %v643, %v643
  %v1263 = vmul.f32 %v646, %v646
  %v1264 = vmul.f32 %v651, %v651
  %v1265 = vmul.f32 %v654, %v654
  %v1266 = vmul.f32 %v659, %v659
  %v1267 = vmul.f32 %v662, %v662
  %v1268 = vmul.f32 %v667, %v667
  %v1269 = vmul.f32 %v670, %v670
  %v1270 = vmul.f32 %v675, %v675
  %v1271 = vmul.f32 %v678, %v678
  %v1272 = vmul.f32 %v683, %v683
  %v1273 = vmul.f32 %v686, %v686
  %v1274 = vmul.f32 %v691, %v691
  %v1275 = vmul.f32 %v694, %v694
  %v1276 = vmul.f32 %v699, %v699
  %v1277 = vmul.f32 %v702, %v702
  %v1278 = vmul.f32 %v707, %v707
  %v1279 = vmul.f32 %v710, %v710
  %v1280 = vmul.f32 %v715, %v715
  %v1281 = vmul.f32 %v718, %v718
  %v1282 = vmul.f32 %v723, %v723
  %v1283 = vmul.f32 %v726, %v726
  %v1284 = vmul.f32 %v731, %v731
  %v1285 = vmul.f32 %v734, %v734
  %v1286 = vmul.f32 %v739, %v739
  %v1287 = vmul.f32 %v742, %v742
  %v1288 = vmul.f32 %v747, %v747
  %v1289 = vmul.f32 %v750, %v750
  %v1290 = vmul.f32 %v755, %v755
  %v1291 = vmul.f32 %v758, %v758
  %v1292 = vmul.f32 %v763, %v763
  %v1293 = vmul.f32 %v766, %v766
  %v1294 = vmul.f32 %v771, %v771
  %v1295 = vmul.f32 %v774, %v774
  %v1296 = vsel %vm1098, %v1232, 0.0
  %v1297 = vsel %vm1098, %v1233, 0.0
  %v1298 = vadd.f32 %v1296, %v1297
  %v1299 = vsel %vm1098, %v1234, 0.0
  %v1300 = vadd.f32 %v1298, %v1299
  %v1301 = vsel %vm1098, %v1235, 0.0
  %v1302 = vadd.f32 %v1300, %v1301
  %v1303 = vsel %vm1098, %v1236, 0.0
  %v1304 = vadd.f32 %v1302, %v1303
  %v1305 = vsel %vm1098, %v1237, 0.0
  %v1306 = vadd.f32 %v1304, %v1305
  %v1307 = vsel %vm1098, %v1238, 0.0
  %v1308 = vadd.f32 %v1306, %v1307
  %v1309 = vsel %vm1098, %v1239, 0.0
  %v1310 = vadd.f32 %v1308, %v1309
  %v1311 = vsel %vm1098, %v1240, 0.0
  %v1312 = vadd.f32 %v1310, %v1311
  %v1313 = vsel %vm1098, %v1241, 0.0
  %v1314 = vadd.f32 %v1312, %v1313
  %v1315 = vsel %vm1098, %v1242, 0.0
  %v1316 = vadd.f32 %v1314, %v1315
  %v1317 = vsel %vm1098, %v1243, 0.0
  %v1318 = vadd.f32 %v1316, %v1317
  %v1319 = vsel %vm1098, %v1244, 0.0
  %v1320 = vadd.f32 %v1318, %v1319
  %v1321 = vsel %vm1098, %v1245, 0.0
  %v1322 = vadd.f32 %v1320, %v1321
  %v1323 = vsel %vm1098, %v1246, 0.0
  %v1324 = vadd.f32 %v1322, %v1323
  %v1325 = vsel %vm1098, %v1247, 0.0
  %v1326 = vadd.f32 %v1324, %v1325
  %v1327 = vsel %vm1098, %v1248, 0.0
  %v1328 = vadd.f32 %v1326, %v1327
  %v1329 = vsel %vm1098, %v1249, 0.0
  %v1330 = vadd.f32 %v1328, %v1329
  %v1331 = vsel %vm1098, %v1250, 0.0
  %v1332 = vadd.f32 %v1330, %v1331
  %v1333 = vsel %vm1098, %v1251, 0.0
  %v1334 = vadd.f32 %v1332, %v1333
  %v1335 = vsel %vm1098, %v1252, 0.0
  %v1336 = vadd.f32 %v1334, %v1335
  %v1337 = vsel %vm1098, %v1253, 0.0
  %v1338 = vadd.f32 %v1336, %v1337
  %v1339 = vsel %vm1098, %v1254, 0.0
  %v1340 = vadd.f32 %v1338, %v1339
  %v1341 = vsel %vm1098, %v1255, 0.0
  %v1342 = vadd.f32 %v1340, %v1341
  %v1343 = vsel %vm1098, %v1256, 0.0
  %v1344 = vadd.f32 %v1342, %v1343
  %v1345 = vsel %vm1098, %v1257, 0.0
  %v1346 = vadd.f32 %v1344, %v1345
  %v1347 = vsel %vm1098, %v1258, 0.0
  %v1348 = vadd.f32 %v1346, %v1347
  %v1349 = vsel %vm1098, %v1259, 0.0
  %v1350 = vadd.f32 %v1348, %v1349
  %v1351 = vsel %vm1098, %v1260, 0.0
  %v1352 = vadd.f32 %v1350, %v1351
  %v1353 = vsel %vm1098, %v1261, 0.0
  %v1354 = vadd.f32 %v1352, %v1353
  %v1355 = vsel %vm1098, %v1262, 0.0
  %v1356 = vadd.f32 %v1354, %v1355
  %v1357 = vsel %vm1098, %v1263, 0.0
  %v1358 = vadd.f32 %v1356, %v1357
  %v1359 = vsel %vm1098, %v1264, 0.0
  %v1360 = vadd.f32 %v1358, %v1359
  %v1361 = vsel %vm1098, %v1265, 0.0
  %v1362 = vadd.f32 %v1360, %v1361
  %v1363 = vsel %vm1098, %v1266, 0.0
  %v1364 = vadd.f32 %v1362, %v1363
  %v1365 = vsel %vm1098, %v1267, 0.0
  %v1366 = vadd.f32 %v1364, %v1365
  %v1367 = vsel %vm1098, %v1268, 0.0
  %v1368 = vadd.f32 %v1366, %v1367
  %v1369 = vsel %vm1098, %v1269, 0.0
  %v1370 = vadd.f32 %v1368, %v1369
  %v1371 = vsel %vm1098, %v1270, 0.0
  %v1372 = vadd.f32 %v1370, %v1371
  %v1373 = vsel %vm1098, %v1271, 0.0
  %v1374 = vadd.f32 %v1372, %v1373
  %v1375 = vsel %vm1098, %v1272, 0.0
  %v1376 = vadd.f32 %v1374, %v1375
  %v1377 = vsel %vm1098, %v1273, 0.0
  %v1378 = vadd.f32 %v1376, %v1377
  %v1379 = vsel %vm1098, %v1274, 0.0
  %v1380 = vadd.f32 %v1378, %v1379
  %v1381 = vsel %vm1098, %v1275, 0.0
  %v1382 = vadd.f32 %v1380, %v1381
  %v1383 = vsel %vm1098, %v1276, 0.0
  %v1384 = vadd.f32 %v1382, %v1383
  %v1385 = vsel %vm1098, %v1277, 0.0
  %v1386 = vadd.f32 %v1384, %v1385
  %v1387 = vsel %vm1098, %v1278, 0.0
  %v1388 = vadd.f32 %v1386, %v1387
  %v1389 = vsel %vm1098, %v1279, 0.0
  %v1390 = vadd.f32 %v1388, %v1389
  %v1391 = vsel %vm1098, %v1280, 0.0
  %v1392 = vadd.f32 %v1390, %v1391
  %v1393 = vsel %vm1098, %v1281, 0.0
  %v1394 = vadd.f32 %v1392, %v1393
  %v1395 = vsel %vm1098, %v1282, 0.0
  %v1396 = vadd.f32 %v1394, %v1395
  %v1397 = vsel %vm1098, %v1283, 0.0
  %v1398 = vadd.f32 %v1396, %v1397
  %v1399 = vsel %vm1098, %v1284, 0.0
  %v1400 = vadd.f32 %v1398, %v1399
  %v1401 = vsel %vm1098, %v1285, 0.0
  %v1402 = vadd.f32 %v1400, %v1401
  %v1403 = vsel %vm1098, %v1286, 0.0
  %v1404 = vadd.f32 %v1402, %v1403
  %v1405 = vsel %vm1098, %v1287, 0.0
  %v1406 = vadd.f32 %v1404, %v1405
  %v1407 = vsel %vm1098, %v1288, 0.0
  %v1408 = vadd.f32 %v1406, %v1407
  %v1409 = vsel %vm1098, %v1289, 0.0
  %v1410 = vadd.f32 %v1408, %v1409
  %v1411 = vsel %vm1098, %v1290, 0.0
  %v1412 = vadd.f32 %v1410, %v1411
  %v1413 = vsel %vm1098, %v1291, 0.0
  %v1414 = vadd.f32 %v1412, %v1413
  %v1415 = vsel %vm1098, %v1292, 0.0
  %v1416 = vadd.f32 %v1414, %v1415
  %v1417 = vsel %vm1098, %v1293, 0.0
  %v1418 = vadd.f32 %v1416, %v1417
  %v1419 = vsel %vm1098, %v1294, 0.0
  %v1420 = vadd.f32 %v1418, %v1419
  %v1421 = vsel %vm1098, %v1295, 0.0
  %v1422 = vadd.f32 %v1420, %v1421
  %v1423 = vrot.slane %v1422, 4
  %v1424 = vadd.f32 %v1422, %v1423
  %v1425 = vrot.slane %v1424, 2
  %v1426 = vadd.f32 %v1424, %v1425
  %v1427 = vrot.slane %v1426, 1
  %v1428 = vadd.f32 %v1426, %v1427
  %v1429 = vlaneseq
  %v1430 = vshrl.u32 %v1429, 7
  %vm1431 = vcmp.eq.s32.totalorder %v1430, 0
  %vm1432 = vcmp.eq.s32.totalorder %v1430, 1
  %v1433 = vsel %vm1432, %v1428, 0.0
  %v1434 = vsel %vm1431, %v1231, %v1433
  %1435 = vst.msk [vmem:[%s5] sm:$0xff] %vm1098, %v1434
  // Predicated region
  $region18: #{bottleneck_forward.6} parent=0 // pred_check
    _
  $region19: #{bottleneck_forward.6} parent=0 // pred_check_branch
    %1437 = sbr.rel (0) target = $region21
  $region20: #{bottleneck_forward.6} parent=0 // pred_region
    _
  $region21: #{bottleneck_forward.6} parent=0 // pred_fallthru
    _
  // Predicated region
  $region22: #{bottleneck_forward.6} parent=0 // pred_check
    _
  $region23: #{bottleneck_forward.6} parent=0 // pred_check_branch
    %1439 = sbr.rel (0) target = $region25
  $region24: #{bottleneck_forward.6} parent=0 // pred_region
    _
  $region25: #{bottleneck_forward.6} parent=0 // pred_fallthru
    _
  // Predicated region
  $region26: #{bottleneck_forward.6} parent=0 // pred_check
    _
  $region27: #{bottleneck_forward.6} parent=0 // pred_check_branch
    %1441 = sbr.rel (0) target = $region29
  $region28: #{bottleneck_forward.6} parent=0 // pred_region
    _
  $region29: #{bottleneck_forward.6} parent=0 // pred_fallthru
    _
  // Predicated region
  $region30: #{bottleneck_forward.6} parent=0 // pred_check
    _
  $region31: #{bottleneck_forward.6} parent=0 // pred_check_branch
    %1443 = sbr.rel (0) target = $region33
  $region32: #{bottleneck_forward.6} parent=0 // pred_region
    _
  $region33: #{bottleneck_forward.6} parent=0 // pred_fallthru
    _

// kernel: bottleneck_forward.5
$region0: #{bottleneck_forward.5}
  #allocation0 [shape = 'u32[]', space=smem, size = 0x4, offset = 0x4, fixed_abs, tag = 'smem constant byte address 0x4 - core index']
  #allocation1 [shape = 'u32[144,128]{1,0:T(1,128)}', space=vmem, size = 0x12000, scoped, tag = 'internal scratch']
  #allocation2 [shape = 'bf16[336,4]{1,0:T(16,128)(2,1)}', space=vmem, size = 0x15000, scoped, tag = 'scratch operand']
  %s0 = inlined_call_operand.vmem [shape: bf16[512,4], index: 0, kind: input, shape index: {}]
  %s1 = inlined_call_operand.vmem [shape: f32[1,4], index: 1, kind: input, shape index: {}]
  %s2 = inlined_call_operand.vmem [shape: f32[1,4], index: 2, kind: input, shape index: {}]
  %s3 = inlined_call_operand.vmem [shape: bf16[9,4,4], index: 3, kind: input, shape index: {}]
  %s4 = inlined_call_operand.vmem [shape: bf16[512,4], index: 4, kind: output, shape index: {0}]
  %s5 = inlined_call_operand.vmem [shape: f32[2,8,4], index: 5, kind: output, shape index: {1}]
  %6 = xla_tuple %s4, %s5
  %s7 = sld [smem:[#allocation0]]
  $region57: #{bottleneck_forward.5} parent=0
    _
  %s9 = ssub.s32 1, %s7
  %s10 = scalar_select 0, %s9, %s7
  loop: start=0, step=1, limit=4
  $region2: #{bottleneck_forward.5} parent=0 // loop_pre_header
    _
  $region3: #{bottleneck_forward.5} parent=0 // loop_header
    %s12 = sphi 0, %s16
    %p13 = scmp.ge.s32.totalorder %s12, 4
    %s22 = sphi 0, %s24
    %s25 = sphi 0, %s22
    %s26 = sphi 0, %s25
    %s42 = sphi 0, %s26
    %s46 = sphi 0, %s46
    %s48 = sphi 0, %s46
    %s49 = sphi 0, %s48
    %s63 = sphi 0, %s49
    %s67 = sphi 0, %s67
    %s69 = sphi 0, %s67
    %s70 = sphi 0, %s69
    %s84 = sphi 0, %s70
    %s88 = sphi 0, %s88
    %s90 = sphi 0, %s88
    %s91 = sphi 0, %s90
    %s105 = sphi 0, %s91
    %s111 = sphi 0, %s113
    %s114 = sphi 0, %s111
    %s115 = sphi 0, %s114
    %s131 = sphi 0, %s115
    %s137 = sphi 0, %s139
    %s140 = sphi 0, %s137
    %s141 = sphi 0, %s140
    %s157 = sphi 0, %s141
  $region4: #{bottleneck_forward.5} parent=0 // loop_header_branch
    %15 = sbr.rel (%p13) target = $region8
  $region5: #{bottleneck_forward.5} parent=0 // loop_body
    %s17 = ssub.s32 %s12, 1
    %s18 = ssub.s32 %s12, 2
    %s19 = sadd.s32 %s12, 1
    %s20 = ssub.s32 %s12, %s19
    %p21 = scmp.eq.s32.totalorder %s20, 0
    %s23 = sadd.s32 %s22, 1
    %s24 = scalar_select %p21, %s22, %s23
    %p27 = pneg %p21
    %p28 = scmp.eq.s32.totalorder %s12, 1
    %p29 = por %p27, %p28
    %p30 = scmp.ne.s32.totalorder %s22, %s25
    %p31 = scmp.eq.s32.totalorder %s12, 0
    %p32 = por %p30, %p31
    %p33 = scmp.ne.s32.totalorder %s22, %s25
    %p34 = scmp.eq.s32.totalorder %s17, 1
    %p35 = por %p33, %p34
    %p36 = scmp.ne.s32.totalorder %s25, %s26
    %p37 = scmp.eq.s32.totalorder %s17, 0
    %p38 = por %p36, %p37
    %p39 = scmp.ne.s32.totalorder %s25, %s26
    %p40 = scmp.eq.s32.totalorder %s18, 1
    %p41 = por %p39, %p40
    %p43 = scmp.ne.s32.totalorder %s26, %s42
    %p44 = scmp.eq.s32.totalorder %s18, 0
    %p45 = por %p43, %p44
    %s47 = sadd.s32 %s46, 1
    %p50 = scmp.eq.s32.totalorder %s12, 1
    %p51 = scmp.ne.s32.totalorder %s46, %s48
    %p52 = scmp.eq.s32.totalorder %s12, 0
    %p53 = por %p51, %p52
    %p54 = scmp.ne.s32.totalorder %s46, %s48
    %p55 = scmp.eq.s32.totalorder %s17, 1
    %p56 = por %p54, %p55
    %p57 = scmp.ne.s32.totalorder %s48, %s49
    %p58 = scmp.eq.s32.totalorder %s17, 0
    %p59 = por %p57, %p58
    %p60 = scmp.ne.s32.totalorder %s48, %s49
    %p61 = scmp.eq.s32.totalorder %s18, 1
    %p62 = por %p60, %p61
    %p64 = scmp.ne.s32.totalorder %s49, %s63
    %p65 = scmp.eq.s32.totalorder %s18, 0
    %p66 = por %p64, %p65
    %s68 = sadd.s32 %s67, 1
    %p71 = scmp.eq.s32.totalorder %s12, 1
    %p72 = scmp.ne.s32.totalorder %s67, %s69
    %p73 = scmp.eq.s32.totalorder %s12, 0
    %p74 = por %p72, %p73
    %p75 = scmp.ne.s32.totalorder %s67, %s69
    %p76 = scmp.eq.s32.totalorder %s17, 1
    %p77 = por %p75, %p76
    %p78 = scmp.ne.s32.totalorder %s69, %s70
    %p79 = scmp.eq.s32.totalorder %s17, 0
    %p80 = por %p78, %p79
    %p81 = scmp.ne.s32.totalorder %s69, %s70
    %p82 = scmp.eq.s32.totalorder %s18, 1
    %p83 = por %p81, %p82
    %p85 = scmp.ne.s32.totalorder %s70, %s84
    %p86 = scmp.eq.s32.totalorder %s18, 0
    %p87 = por %p85, %p86
    %s89 = sadd.s32 %s88, 1
    %p92 = scmp.eq.s32.totalorder %s12, 1
    %p93 = scmp.ne.s32.totalorder %s88, %s90
    %p94 = scmp.eq.s32.totalorder %s12, 0
    %p95 = por %p93, %p94
    %p96 = scmp.ne.s32.totalorder %s88, %s90
    %p97 = scmp.eq.s32.totalorder %s17, 1
    %p98 = por %p96, %p97
    %p99 = scmp.ne.s32.totalorder %s90, %s91
    %p100 = scmp.eq.s32.totalorder %s17, 0
    %p101 = por %p99, %p100
    %p102 = scmp.ne.s32.totalorder %s90, %s91
    %p103 = scmp.eq.s32.totalorder %s18, 1
    %p104 = por %p102, %p103
    %p106 = scmp.ne.s32.totalorder %s91, %s105
    %p107 = scmp.eq.s32.totalorder %s18, 0
    %p108 = por %p106, %p107
    %s109 = ssub.s32 %s12, %s19
    %p110 = scmp.eq.s32.totalorder %s109, 0
    %s112 = sadd.s32 %s111, 1
    %s113 = scalar_select %p110, %s111, %s112
    %p116 = pneg %p110
    %p117 = scmp.eq.s32.totalorder %s12, 1
    %p118 = por %p116, %p117
    %p119 = scmp.ne.s32.totalorder %s111, %s114
    %p120 = scmp.eq.s32.totalorder %s12, 0
    %p121 = por %p119, %p120
    %p122 = scmp.ne.s32.totalorder %s111, %s114
    %p123 = scmp.eq.s32.totalorder %s17, 1
    %p124 = por %p122, %p123
    %p125 = scmp.ne.s32.totalorder %s114, %s115
    %p126 = scmp.eq.s32.totalorder %s17, 0
    %p127 = por %p125, %p126
    %p128 = scmp.ne.s32.totalorder %s114, %s115
    %p129 = scmp.eq.s32.totalorder %s18, 1
    %p130 = por %p128, %p129
    %p132 = scmp.ne.s32.totalorder %s115, %s131
    %p133 = scmp.eq.s32.totalorder %s18, 0
    %p134 = por %p132, %p133
    %s135 = ssub.s32 %s12, %s19
    %p136 = scmp.eq.s32.totalorder %s135, 0
    %s138 = sadd.s32 %s137, 1
    %s139 = scalar_select %p136, %s137, %s138
    %p142 = pneg %p136
    %p143 = scmp.eq.s32.totalorder %s12, 1
    %p144 = por %p142, %p143
    %p145 = scmp.ne.s32.totalorder %s137, %s140
    %p146 = scmp.eq.s32.totalorder %s12, 0
    %p147 = por %p145, %p146
    %p148 = scmp.ne.s32.totalorder %s137, %s140
    %p149 = scmp.eq.s32.totalorder %s17, 1
    %p150 = por %p148, %p149
    %p151 = scmp.ne.s32.totalorder %s140, %s141
    %p152 = scmp.eq.s32.totalorder %s17, 0
    %p153 = por %p151, %p152
    %p154 = scmp.ne.s32.totalorder %s140, %s141
    %p155 = scmp.eq.s32.totalorder %s18, 1
    %p156 = por %p154, %p155
    %p158 = scmp.ne.s32.totalorder %s141, %s157
    %p159 = scmp.eq.s32.totalorder %s18, 0
    %p160 = por %p158, %p159
    %p161 = scmp.le.s32.totalorder 1, %s12
    %p162 = scmp.lt.s32.totalorder %s12, 3
    %p163 = pnand %p161, %p162
    %p164 = pneg %p163
    // Predicated region
    $region9: #{bottleneck_forward.5} parent=5 // pred_check
      _
    $region10: #{bottleneck_forward.5} parent=5 // pred_check_branch
      %166 = sbr.rel (%p163) target = $region12
    $region11: #{bottleneck_forward.5} parent=5 // pred_region
      %s167 = ssub.s32 %s12, 1
      // Predicated region
      $region13: #{bottleneck_forward.5} parent=11 // pred_check
        %p168 = pneg %p59
      $region14: #{bottleneck_forward.5} parent=11 // pred_check_branch
        %170 = sbr.rel (%p168) target = $region16
      $region15: #{bottleneck_forward.5} parent=11 // pred_region
        _
      $region16: #{bottleneck_forward.5} parent=11 // pred_fallthru
        _
      // Predicated region
      $region17: #{bottleneck_forward.5} parent=11 // pred_check
        %p171 = pneg %p80
      $region18: #{bottleneck_forward.5} parent=11 // pred_check_branch
        %173 = sbr.rel (%p171) target = $region20
      $region19: #{bottleneck_forward.5} parent=11 // pred_region
        _
      $region20: #{bottleneck_forward.5} parent=11 // pred_fallthru
        _
      // Predicated region
      $region21: #{bottleneck_forward.5} parent=11 // pred_check
        %p174 = pneg %p101
      $region22: #{bottleneck_forward.5} parent=11 // pred_check_branch
        %176 = sbr.rel (%p174) target = $region24
      $region23: #{bottleneck_forward.5} parent=11 // pred_region
        _
      $region24: #{bottleneck_forward.5} parent=11 // pred_fallthru
        _
    $region12: #{bottleneck_forward.5} parent=5 // pred_fallthru
      _
    %p177 = scmp.lt.s32.totalorder %s12, 2
    // Predicated region
    $region25: #{bottleneck_forward.5} parent=5 // pred_check
      %p178 = pneg %p177
    $region26: #{bottleneck_forward.5} parent=5 // pred_check_branch
      %180 = sbr.rel (%p178) target = $region28
    $region27: #{bottleneck_forward.5} parent=5 // pred_region
      // Predicated region
      $region29: #{bottleneck_forward.5} parent=27 // pred_check
        %p181 = pneg %p32
      $region30: #{bottleneck_forward.5} parent=27 // pred_check_branch
        %183 = sbr.rel (%p181) target = $region32
      $region31: #{bottleneck_forward.5} parent=27 // pred_region
        %s184 = smul.u32 32, %s12
        %p185 = scmp.lt.s32.totalorder %s184, 63
        %s186 = scalar_select %p185, %s184, 63
        %s187 = smul.addr %s186, 4
        %s188 = scalar_lea.vmem %s0, %s187
        %s189 = smul.u32 32, %s12
      $region32: #{bottleneck_forward.5} parent=27 // pred_fallthru
        _
    $region28: #{bottleneck_forward.5} parent=5 // pred_fallthru
      _
    %p190 = scmp.le.s32.totalorder 1, %s12
    %p191 = scmp.lt.s32.totalorder %s12, 3
    %p192 = pnand %p190, %p191
    %p193 = pneg %p192
    // Predicated region
    $region33: #{bottleneck_forward.5} parent=5 // pred_check
      _
    $region34: #{bottleneck_forward.5} parent=5 // pred_check_branch
      %195 = sbr.rel (%p192) target = $region36
    $region35: #{bottleneck_forward.5} parent=5 // pred_region
      %s196 = ssub.s32 %s12, 1
      %s197 = smul.u32 32, %s17
      %p198 = scmp.lt.s32.totalorder %s197, 63
      %s199 = scalar_select %p198, %s197, 63
      %s200 = smul.addr %s199, 4
      %s201 = scalar_lea.vmem %s0, %s200
      %p202 = pneg %p38
      %p203 = pneg %p35
      %p204 = pneg %p59
      %p205 = pneg %p56
      %p206 = pneg %p80
      %p207 = pneg %p77
      %p208 = pneg %p101
      %p209 = pneg %p98
      %p210 = pneg %p127
      %p211 = pneg %p124
      %s212 = smul.u32 32, %s17
      %p213 = scmp.lt.s32.totalorder %s212, 63
      %s214 = scalar_select %p213, %s212, 63
      %s215 = smul.addr %s214, 4
      %s216 = scalar_lea.vmem %s4, %s215
      %p217 = pneg %p153
      %p218 = pneg %p150
      %p219 = scmp.lt.s32.totalorder %s17, 1
      %s220 = scalar_select %p219, %s17, 1
      %s221 = smul.addr %s220, 8
      %s222 = scalar_lea.vmem %s5, %s221
      %s223 = smul.u32 32, %s17
      %p224 = scmp.lt.s32.totalorder %s223, 63
      %s225 = scalar_select %p224, %s223, 63
      %s226 = smul.addr %s225, 4
      %s227 = scalar_lea.vmem %s0, %s226
      %s228 = smul.u32 32, %s17
      %s229 = smul.u32 32, %s17
      %p230 = scmp.lt.s32.totalorder %s229, 63
      %s231 = scalar_select %p230, %s229, 63
      %s232 = smul.addr %s231, 4
      %s233 = scalar_lea.vmem %s4, %s232
      %s234 = smul.u32 32, %s17
      %p235 = scmp.lt.s32.totalorder %s17, 1
      %s236 = scalar_select %p235, %s17, 1
      %s237 = smul.addr %s236, 8
      %s238 = scalar_lea.vmem %s5, %s237
      %v240 = vld [vmem:[%s227] sm:$0xf]
      %v241 = vld [vmem:[%s227 + $0x4] sm:$0xf]
      %v242 = vld [vmem:[%s227 + $0x8] sm:$0xf]
      %v243 = vld [vmem:[%s227 + $0xc] sm:$0xf]
      %v244 = vld [vmem:[%s227 + $0x10] sm:$0xf]
      %v245 = vld [vmem:[%s227 + $0x14] sm:$0xf]
      %v246 = vld [vmem:[%s227 + $0x18] sm:$0xf]
      %v247 = vld [vmem:[%s227 + $0x1c] sm:$0xf]
      %v248 = vld [vmem:[%s227 + $0x20] sm:$0xf]
      %v249 = vld [vmem:[%s227 + $0x24] sm:$0xf]
      %v250 = vld [vmem:[%s227 + $0x28] sm:$0xf]
      %v251 = vld [vmem:[%s227 + $0x2c] sm:$0xf]
      %v252 = vld [vmem:[%s227 + $0x30] sm:$0xf]
      %v253 = vld [vmem:[%s227 + $0x34] sm:$0xf]
      %v254 = vld [vmem:[%s227 + $0x38] sm:$0xf]
      %v255 = vld [vmem:[%s227 + $0x3c] sm:$0xf]
      %v256 = vld [vmem:[%s227 + $0x40] sm:$0xf]
      %v257 = vld [vmem:[%s227 + $0x44] sm:$0xf]
      %v258 = vld [vmem:[%s227 + $0x48] sm:$0xf]
      %v259 = vld [vmem:[%s227 + $0x4c] sm:$0xf]
      %v260 = vld [vmem:[%s227 + $0x50] sm:$0xf]
      %v261 = vld [vmem:[%s227 + $0x54] sm:$0xf]
      %v262 = vld [vmem:[%s227 + $0x58] sm:$0xf]
      %v263 = vld [vmem:[%s227 + $0x5c] sm:$0xf]
      %v264 = vld [vmem:[%s227 + $0x60] sm:$0xf]
      %v265 = vld [vmem:[%s227 + $0x64] sm:$0xf]
      %v266 = vld [vmem:[%s227 + $0x68] sm:$0xf]
      %v267 = vld [vmem:[%s227 + $0x6c] sm:$0xf]
      %v268 = vld [vmem:[%s227 + $0x70] sm:$0xf]
      %v269 = vld [vmem:[%s227 + $0x74] sm:$0xf]
      %v270 = vld [vmem:[%s227 + $0x78] sm:$0xf]
      %v271 = vld [vmem:[%s227 + $0x7c] sm:$0xf]
      %v272 = vunpack.c.l.bf16 %v240
      %v273 = vunpack.c.l.bf16 %v241
      %v274 = vunpack.c.l.bf16 %v242
      %v275 = vunpack.c.l.bf16 %v243
      %v276 = vunpack.c.l.bf16 %v244
      %v277 = vunpack.c.l.bf16 %v245
      %v278 = vunpack.c.l.bf16 %v246
      %v279 = vunpack.c.l.bf16 %v247
      %v280 = vunpack.c.l.bf16 %v248
      %v281 = vunpack.c.l.bf16 %v249
      %v282 = vunpack.c.l.bf16 %v250
      %v283 = vunpack.c.l.bf16 %v251
      %v284 = vunpack.c.l.bf16 %v252
      %v285 = vunpack.c.l.bf16 %v253
      %v286 = vunpack.c.l.bf16 %v254
      %v287 = vunpack.c.l.bf16 %v255
      %v288 = vunpack.c.l.bf16 %v256
      %v289 = vunpack.c.l.bf16 %v257
      %v290 = vunpack.c.l.bf16 %v258
      %v291 = vunpack.c.l.bf16 %v259
      %v292 = vunpack.c.l.bf16 %v260
      %v293 = vunpack.c.l.bf16 %v261
      %v294 = vunpack.c.l.bf16 %v262
      %v295 = vunpack.c.l.bf16 %v263
      %v296 = vunpack.c.l.bf16 %v264
      %v297 = vunpack.c.l.bf16 %v265
      %v298 = vunpack.c.l.bf16 %v266
      %v299 = vunpack.c.l.bf16 %v267
      %v300 = vunpack.c.l.bf16 %v268
      %v301 = vunpack.c.l.bf16 %v269
      %v302 = vunpack.c.l.bf16 %v270
      %v303 = vunpack.c.l.bf16 %v271
      %v304 = vld [vmem:[%s1] sm:$0x1]
      %v306 = vlaneseq
      %v307 = vshrl.u32 %v306, 7
      %v308 = vsub.s32 0, %v307
      %v309 = vrot.slane %v304, %v308
      %v311 = vmul.f32 %v272, %v309
      %v312 = vmul.f32 %v273, %v309
      %v313 = vmul.f32 %v274, %v309
      %v314 = vmul.f32 %v275, %v309
      %v315 = vmul.f32 %v276, %v309
      %v316 = vmul.f32 %v277, %v309
      %v317 = vmul.f32 %v278, %v309
      %v318 = vmul.f32 %v279, %v309
      %v319 = vmul.f32 %v280, %v309
      %v320 = vmul.f32 %v281, %v309
      %v321 = vmul.f32 %v282, %v309
      %v322 = vmul.f32 %v283, %v309
      %v323 = vmul.f32 %v284, %v309
      %v324 = vmul.f32 %v285, %v309
      %v325 = vmul.f32 %v286, %v309
      %v326 = vmul.f32 %v287, %v309
      %v327 = vmul.f32 %v288, %v309
      %v328 = vmul.f32 %v289, %v309
      %v329 = vmul.f32 %v290, %v309
      %v330 = vmul.f32 %v291, %v309
      %v331 = vmul.f32 %v292, %v309
      %v332 = vmul.f32 %v293, %v309
      %v333 = vmul.f32 %v294, %v309
      %v334 = vmul.f32 %v295, %v309
      %v335 = vmul.f32 %v296, %v309
      %v336 = vmul.f32 %v297, %v309
      %v337 = vmul.f32 %v298, %v309
      %v338 = vmul.f32 %v299, %v309
      %v339 = vmul.f32 %v300, %v309
      %v340 = vmul.f32 %v301, %v309
      %v341 = vmul.f32 %v302, %v309
      %v342 = vmul.f32 %v303, %v309
      %v343 = vld [vmem:[%s2] sm:$0x1]
      %v345 = vlaneseq
      %v346 = vshrl.u32 %v345, 7
      %v347 = vsub.s32 0, %v346
      %v348 = vrot.slane %v343, %v347
      %v350 = vadd.f32 %v311, %v348
      %v351 = vadd.f32 %v312, %v348
      %v352 = vadd.f32 %v313, %v348
      %v353 = vadd.f32 %v314, %v348
      %v354 = vadd.f32 %v315, %v348
      %v355 = vadd.f32 %v316, %v348
      %v356 = vadd.f32 %v317, %v348
      %v357 = vadd.f32 %v318, %v348
      %v358 = vadd.f32 %v319, %v348
      %v359 = vadd.f32 %v320, %v348
      %v360 = vadd.f32 %v321, %v348
      %v361 = vadd.f32 %v322, %v348
      %v362 = vadd.f32 %v323, %v348
      %v363 = vadd.f32 %v324, %v348
      %v364 = vadd.f32 %v325, %v348
      %v365 = vadd.f32 %v326, %v348
      %v366 = vadd.f32 %v327, %v348
      %v367 = vadd.f32 %v328, %v348
      %v368 = vadd.f32 %v329, %v348
      %v369 = vadd.f32 %v330, %v348
      %v370 = vadd.f32 %v331, %v348
      %v371 = vadd.f32 %v332, %v348
      %v372 = vadd.f32 %v333, %v348
      %v373 = vadd.f32 %v334, %v348
      %v374 = vadd.f32 %v335, %v348
      %v375 = vadd.f32 %v336, %v348
      %v376 = vadd.f32 %v337, %v348
      %v377 = vadd.f32 %v338, %v348
      %v378 = vadd.f32 %v339, %v348
      %v379 = vadd.f32 %v340, %v348
      %v380 = vadd.f32 %v341, %v348
      %v381 = vadd.f32 %v342, %v348
      %v382 = vmax.f32 %v350, 0.0
      %v383 = vmax.f32 %v351, 0.0
      %v384 = vmax.f32 %v352, 0.0
      %v385 = vmax.f32 %v353, 0.0
      %v386 = vmax.f32 %v354, 0.0
      %v387 = vmax.f32 %v355, 0.0
      %v388 = vmax.f32 %v356, 0.0
      %v389 = vmax.f32 %v357, 0.0
      %v390 = vmax.f32 %v358, 0.0
      %v391 = vmax.f32 %v359, 0.0
      %v392 = vmax.f32 %v360, 0.0
      %v393 = vmax.f32 %v361, 0.0
      %v394 = vmax.f32 %v362, 0.0
      %v395 = vmax.f32 %v363, 0.0
      %v396 = vmax.f32 %v364, 0.0
      %v397 = vmax.f32 %v365, 0.0
      %v398 = vmax.f32 %v366, 0.0
      %v399 = vmax.f32 %v367, 0.0
      %v400 = vmax.f32 %v368, 0.0
      %v401 = vmax.f32 %v369, 0.0
      %v402 = vmax.f32 %v370, 0.0
      %v403 = vmax.f32 %v371, 0.0
      %v404 = vmax.f32 %v372, 0.0
      %v405 = vmax.f32 %v373, 0.0
      %v406 = vmax.f32 %v374, 0.0
      %v407 = vmax.f32 %v375, 0.0
      %v408 = vmax.f32 %v376, 0.0
      %v409 = vmax.f32 %v377, 0.0
      %v410 = vmax.f32 %v378, 0.0
      %v411 = vmax.f32 %v379, 0.0
      %v412 = vmax.f32 %v380, 0.0
      %v413 = vmax.f32 %v381, 0.0
      %vm414 = vcmask 31744
      %415 = vst.msk [vmem:[#allocation2] sm:$0xff] %vm414, 0
      %416 = vst.msk [vmem:[#allocation2 + $0x8] sm:$0xff] %vm414, 0
      %vm417 = vcmask 27648
      %418 = vst.msk [vmem:[#allocation2 + $0x10] sm:$0xf] %vm417, 0
      %vm419 = vcmask 31748
      %420 = vst.msk [vmem:[#allocation2 + $0x90] sm:$0xf0] %vm419, 0
      %421 = vst.msk [vmem:[#allocation2 + $0x98] sm:$0xff] %vm414, 0
      %422 = vst.msk [vmem:[#allocation2 + $0xa0] sm:$0xff] %vm414, 0
      %v423 = vpack.c.bf16 %v383, %v382
      %v424 = vpack.c.bf16 %v385, %v384
      %v425 = vpack.c.bf16 %v387, %v386
      %v426 = vpack.c.bf16 %v389, %v388
      %v427 = vpack.c.bf16 %v391, %v390
      %v428 = vpack.c.bf16 %v393, %v392
      %v429 = vpack.c.bf16 %v395, %v394
      %v430 = vpack.c.bf16 %v397, %v396
      %v431 = vpack.c.bf16 %v399, %v398
      %v432 = vpack.c.bf16 %v401, %v400
      %v433 = vpack.c.bf16 %v403, %v402
      %v434 = vpack.c.bf16 %v405, %v404
      %v435 = vpack.c.bf16 %v407, %v406
      %v436 = vpack.c.bf16 %v409, %v408
      %v437 = vpack.c.bf16 %v411, %v410
      %v438 = vpack.c.bf16 %v413, %v412
      %vm455 = vcmask 1043456
      %v456 = vrot.slane %v423, 4
      %v457 = vrot.slane %v424, 4
      %v458 = vsel %vm455, %v456, %v457
      %v459 = vrot.slane %v425, 4
      %v460 = vsel %vm455, %v457, %v459
      %v461 = vrot.slane %v426, 4
      %v462 = vsel %vm455, %v459, %v461
      %v463 = vrot.slane %v427, 4
      %v464 = vsel %vm455, %v461, %v463
      %v465 = vrot.slane %v428, 4
      %v466 = vsel %vm455, %v463, %v465
      %v467 = vrot.slane %v429, 4
      %v468 = vsel %vm455, %v465, %v467
      %v469 = vrot.slane %v430, 4
      %v470 = vsel %vm455, %v467, %v469
      %v471 = vrot.slane %v431, 4
      %v472 = vsel %vm455, %v469, %v471
      %v473 = vrot.slane %v432, 4
      %v474 = vsel %vm455, %v471, %v473
      %v475 = vrot.slane %v433, 4
      %v476 = vsel %vm455, %v473, %v475
      %v477 = vrot.slane %v434, 4
      %v478 = vsel %vm455, %v475, %v477
      %v479 = vrot.slane %v435, 4
      %v480 = vsel %vm455, %v477, %v479
      %v481 = vrot.slane %v436, 4
      %v482 = vsel %vm455, %v479, %v481
      %v483 = vrot.slane %v437, 4
      %v484 = vsel %vm455, %v481, %v483
      %v485 = vrot.slane %v438, 4
      %v486 = vsel %vm455, %v483, %v485
      %504 = vst.msk [vmem:[#allocation2 + $0x10] sm:$0xf0] %vm419, %v456
      %505 = vst.msk [vmem:[#allocation2 + $0x18] sm:$0xff] %vm414, %v458
      %506 = vst.msk [vmem:[#allocation2 + $0x20] sm:$0xff] %vm414, %v460
      %507 = vst.msk [vmem:[#allocation2 + $0x28] sm:$0xff] %vm414, %v462
      %508 = vst.msk [vmem:[#allocation2 + $0x30] sm:$0xff] %vm414, %v464
      %509 = vst.msk [vmem:[#allocation2 + $0x38] sm:$0xff] %vm414, %v466
      %510 = vst.msk [vmem:[#allocation2 + $0x40] sm:$0xff] %vm414, %v468
      %511 = vst.msk [vmem:[#allocation2 + $0x48] sm:$0xff] %vm414, %v470
      %512 = vst.msk [vmem:[#allocation2 + $0x50] sm:$0xff] %vm414, %v472
      %513 = vst.msk [vmem:[#allocation2 + $0x58] sm:$0xff] %vm414, %v474
      %514 = vst.msk [vmem:[#allocation2 + $0x60] sm:$0xff] %vm414, %v476
      %515 = vst.msk [vmem:[#allocation2 + $0x68] sm:$0xff] %vm414, %v478
      %516 = vst.msk [vmem:[#allocation2 + $0x70] sm:$0xff] %vm414, %v480
      %517 = vst.msk [vmem:[#allocation2 + $0x78] sm:$0xff] %vm414, %v482
      %518 = vst.msk [vmem:[#allocation2 + $0x80] sm:$0xff] %vm414, %v484
      %519 = vst.msk [vmem:[#allocation2 + $0x88] sm:$0xff] %vm414, %v486
      %520 = vst.msk [vmem:[#allocation2 + $0x90] sm:$0xf] %vm417, %v485
      %v521 = vlaneseq
      %v522 = vshrl.u32 %v521, 7
      %v523 = vadd.s32 %v522, 8
      %v524 = vadd.s32 %v522, 16
      %v525 = vadd.s32 %v522, 24
      %v526 = vadd.s32 %v522, 32
      %v527 = vadd.s32 %v522, 40
      %v528 = vadd.s32 %v522, 48
      %v529 = vadd.s32 %v522, 56
      %v530 = vadd.s32 %v522, 64
      %v531 = vadd.s32 %v522, 72
      %v532 = vadd.s32 %v522, 80
      %v533 = vadd.s32 %v522, 88
      %v534 = vadd.s32 %v522, 96
      %v535 = vadd.s32 %v522, 104
      %v536 = vadd.s32 %v522, 112
      %v537 = vadd.s32 %v522, 120
      %v538 = vadd.s32 %v522, 128
      %v539 = vadd.s32 %v522, 136
      %v540 = vadd.s32 %v522, 144
      %v541 = vadd.s32 %v522, 152
      %v542 = vadd.s32 %v522, 160
      %v543 = vadd.s32 %v522, 168
      %v544 = vadd.s32 %v522, 176
      %v545 = vadd.s32 %v522, 184
      %v546 = vadd.s32 %v522, 192
      %v547 = vadd.s32 %v522, 200
      %v548 = vadd.s32 %v522, 208
      %v549 = vadd.s32 %v522, 216
      %v550 = vadd.s32 %v522, 224
      %v551 = vadd.s32 %v522, 232
      %v552 = vadd.s32 %v522, 240
      %v553 = vadd.s32 %v522, 248
      %v554 = vand.u32 %v522, 15
      %v555 = vand.u32 %v523, 15
      %v556 = vand.u32 %v524, 15
      %v557 = vand.u32 %v525, 15
      %v558 = vand.u32 %v526, 15
      %v559 = vand.u32 %v527, 15
      %v560 = vand.u32 %v528, 15
      %v561 = vand.u32 %v529, 15
      %v562 = vand.u32 %v530, 15
      %v563 = vand.u32 %v531, 15
      %v564 = vand.u32 %v532, 15
      %v565 = vand.u32 %v533, 15
      %v566 = vand.u32 %v534, 15
      %v567 = vand.u32 %v535, 15
      %v568 = vand.u32 %v536, 15
      %v569 = vand.u32 %v537, 15
      %v570 = vand.u32 %v538, 15
      %v571 = vand.u32 %v539, 15
      %v572 = vand.u32 %v540, 15
      %v573 = vand.u32 %v541, 15
      %v574 = vand.u32 %v542, 15
      %v575 = vand.u32 %v543, 15
      %v576 = vand.u32 %v544, 15
      %v577 = vand.u32 %v545, 15
      %v578 = vand.u32 %v546, 15
      %v579 = vand.u32 %v547, 15
      %v580 = vand.u32 %v548, 15
      %v581 = vand.u32 %v549, 15
      %v582 = vand.u32 %v550, 15
      %v583 = vand.u32 %v551, 15
      %v584 = vand.u32 %v552, 15
      %v585 = vand.u32 %v553, 15
      %vm586 = vcmp.ge.s32.totalorder %v554, 2
      %vm587 = vcmp.ge.s32.totalorder %v555, 2
      %vm588 = vcmp.ge.s32.totalorder %v556, 2
      %vm589 = vcmp.ge.s32.totalorder %v557, 2
      %vm590 = vcmp.ge.s32.totalorder %v558, 2
      %vm591 = vcmp.ge.s32.totalorder %v559, 2
      %vm592 = vcmp.ge.s32.totalorder %v560, 2
      %vm593 = vcmp.ge.s32.totalorder %v561, 2
      %vm594 = vcmp.ge.s32.totalorder %v562, 2
      %vm595 = vcmp.ge.s32.totalorder %v563, 2
      %vm596 = vcmp.ge.s32.totalorder %v564, 2
      %vm597 = vcmp.ge.s32.totalorder %v565, 2
      %vm598 = vcmp.ge.s32.totalorder %v566, 2
      %vm599 = vcmp.ge.s32.totalorder %v567, 2
      %vm600 = vcmp.ge.s32.totalorder %v568, 2
      %vm601 = vcmp.ge.s32.totalorder %v569, 2
      %vm602 = vcmp.ge.s32.totalorder %v570, 2
      %vm603 = vcmp.ge.s32.totalorder %v571, 2
      %vm604 = vcmp.ge.s32.totalorder %v572, 2
      %vm605 = vcmp.ge.s32.totalorder %v573, 2
      %vm606 = vcmp.ge.s32.totalorder %v574, 2
      %vm607 = vcmp.ge.s32.totalorder %v575, 2
      %vm608 = vcmp.ge.s32.totalorder %v576, 2
      %vm609 = vcmp.ge.s32.totalorder %v577, 2
      %vm610 = vcmp.ge.s32.totalorder %v578, 2
      %vm611 = vcmp.ge.s32.totalorder %v579, 2
      %vm612 = vcmp.ge.s32.totalorder %v580, 2
      %vm613 = vcmp.ge.s32.totalorder %v581, 2
      %vm614 = vcmp.ge.s32.totalorder %v582, 2
      %vm615 = vcmp.ge.s32.totalorder %v583, 2
      %vm616 = vcmp.ge.s32.totalorder %v584, 2
      %vm617 = vcmp.ge.s32.totalorder %v585, 2
      %vm618 = vcmp.lt.s32.totalorder %v554, 14
      %vm619 = vcmp.lt.s32.totalorder %v555, 14
      %vm620 = vcmp.lt.s32.totalorder %v556, 14
      %vm621 = vcmp.lt.s32.totalorder %v557, 14
      %vm622 = vcmp.lt.s32.totalorder %v558, 14
      %vm623 = vcmp.lt.s32.totalorder %v559, 14
      %vm624 = vcmp.lt.s32.totalorder %v560, 14
      %vm625 = vcmp.lt.s32.totalorder %v561, 14
      %vm626 = vcmp.lt.s32.totalorder %v562, 14
      %vm627 = vcmp.lt.s32.totalorder %v563, 14
      %vm628 = vcmp.lt.s32.totalorder %v564, 14
      %vm629 = vcmp.lt.s32.totalorder %v565, 14
      %vm630 = vcmp.lt.s32.totalorder %v566, 14
      %vm631 = vcmp.lt.s32.totalorder %v567, 14
      %vm632 = vcmp.lt.s32.totalorder %v568, 14
      %vm633 = vcmp.lt.s32.totalorder %v569, 14
      %vm634 = vcmp.lt.s32.totalorder %v570, 14
      %vm635 = vcmp.lt.s32.totalorder %v571, 14
      %vm636 = vcmp.lt.s32.totalorder %v572, 14
      %vm637 = vcmp.lt.s32.totalorder %v573, 14
      %vm638 = vcmp.lt.s32.totalorder %v574, 14
      %vm639 = vcmp.lt.s32.totalorder %v575, 14
      %vm640 = vcmp.lt.s32.totalorder %v576, 14
      %vm641 = vcmp.lt.s32.totalorder %v577, 14
      %vm642 = vcmp.lt.s32.totalorder %v578, 14
      %vm643 = vcmp.lt.s32.totalorder %v579, 14
      %vm644 = vcmp.lt.s32.totalorder %v580, 14
      %vm645 = vcmp.lt.s32.totalorder %v581, 14
      %vm646 = vcmp.lt.s32.totalorder %v582, 14
      %vm647 = vcmp.lt.s32.totalorder %v583, 14
      %vm648 = vcmp.lt.s32.totalorder %v584, 14
      %vm649 = vcmp.lt.s32.totalorder %v585, 14
      %v650 = vld [vmem:[#allocation2] sm:$0xf8]
      %v651 = vld [vmem:[#allocation2 + $0x8] sm:$0xff]
      %v652 = vld [vmem:[#allocation2 + $0x10] sm:$0xff]
      %v653 = vld [vmem:[#allocation2 + $0x18] sm:$0xff]
      %v654 = vld [vmem:[#allocation2 + $0x20] sm:$0xff]
      %v655 = vld [vmem:[#allocation2 + $0x28] sm:$0xff]
      %v656 = vld [vmem:[#allocation2 + $0x30] sm:$0xff]
      %v657 = vld [vmem:[#allocation2 + $0x38] sm:$0xff]
      %v658 = vld [vmem:[#allocation2 + $0x40] sm:$0xff]
      %v659 = vld [vmem:[#allocation2 + $0x48] sm:$0xff]
      %v660 = vld [vmem:[#allocation2 + $0x50] sm:$0xff]
      %v661 = vld [vmem:[#allocation2 + $0x58] sm:$0xff]
      %v662 = vld [vmem:[#allocation2 + $0x60] sm:$0xff]
      %v663 = vld [vmem:[#allocation2 + $0x68] sm:$0xff]
      %v664 = vld [vmem:[#allocation2 + $0x70] sm:$0xff]
      %v665 = vld [vmem:[#allocation2 + $0x78] sm:$0xff]
      %v666 = vld [vmem:[#allocation2 + $0x80] sm:$0x7]
      %v667 = vld [vmem:[%s3] sm:$0x3]
      %vm685 = vcmask 1044480
      %v686 = vrot.slane %v650, 3
      %v687 = vrot.slane %v651, 3
      %v688 = vsel %vm685, %v686, %v687
      %v689 = vrot.slane %v652, 3
      %v690 = vsel %vm685, %v687, %v689
      %v691 = vrot.slane %v653, 3
      %v692 = vsel %vm685, %v689, %v691
      %v693 = vrot.slane %v654, 3
      %v694 = vsel %vm685, %v691, %v693
      %v695 = vrot.slane %v655, 3
      %v696 = vsel %vm685, %v693, %v695
      %v697 = vrot.slane %v656, 3
      %v698 = vsel %vm685, %v695, %v697
      %v699 = vrot.slane %v657, 3
      %v700 = vsel %vm685, %v697, %v699
      %v701 = vrot.slane %v658, 3
      %v702 = vsel %vm685, %v699, %v701
      %v703 = vrot.slane %v659, 3
      %v704 = vsel %vm685, %v701, %v703
      %v705 = vrot.slane %v660, 3
      %v706 = vsel %vm685, %v703, %v705
      %v707 = vrot.slane %v661, 3
      %v708 = vsel %vm685, %v705, %v707
      %v709 = vrot.slane %v662, 3
      %v710 = vsel %vm685, %v707, %v709
      %v711 = vrot.slane %v663, 3
      %v712 = vsel %vm685, %v709, %v711
      %v713 = vrot.slane %v664, 3
      %v714 = vsel %vm685, %v711, %v713
      %v715 = vrot.slane %v665, 3
      %v716 = vsel %vm685, %v713, %v715
      %v717 = vrot.slane %v666, 3
      %v718 = vsel %vm685, %v715, %v717
      %v720 = vsel %vm414, %v688, 0
      %v723 = vsel %vm414, %v690, 0
      %v726 = vsel %vm414, %v692, 0
      %v729 = vsel %vm414, %v694, 0
      %v732 = vsel %vm414, %v696, 0
      %v735 = vsel %vm414, %v698, 0
      %v738 = vsel %vm414, %v700, 0
      %v741 = vsel %vm414, %v702, 0
      %v744 = vsel %vm414, %v704, 0
      %v747 = vsel %vm414, %v706, 0
      %v750 = vsel %vm414, %v708, 0
      %v753 = vsel %vm414, %v710, 0
      %v756 = vsel %vm414, %v712, 0
      %v759 = vsel %vm414, %v714, 0
      %v762 = vsel %vm414, %v716, 0
      %v765 = vsel %vm414, %v718, 0
      %vm767 = vcmask 1041408
      %v769 = vsel %vm767, %v667, 0
      %771 = vmatprep.subr.bf16.mxu0 0
      %772 = vmatpush1.bf16.msra.mxu0 %v769
      %773 = vmatprep.subr.bf16.mxu0 0
      %774 = vmatpush1.bf16.msra.mxu0 0
      %775 = vmatprep.subr.bf16.mxu0 0
      %776 = vmatpush1.bf16.msra.mxu0 0
      %777 = vmatprep.subr.bf16.mxu0 0
      %778 = vmatpush1.bf16.msra.mxu0 0
      %779 = vmatprep.subr.bf16.mxu0 0
      %780 = vmatpush1.bf16.msra.mxu0 0
      %781 = vmatprep.subr.bf16.mxu0 0
      %782 = vmatpush1.bf16.msra.mxu0 0
      %783 = vmatprep.subr.bf16.mxu0 0
      %784 = vmatpush1.bf16.msra.mxu0 0
      %785 = vmatprep.subr.bf16.mxu0 0
      %786 = vmatpush1.bf16.msra.mxu0 0
      %787 = vmatprep.subr.bf16.mxu0 0
      %788 = vmatpush1.bf16.msra.mxu0 0
      %789 = vmatprep.subr.bf16.mxu0 0
      %790 = vmatpush1.bf16.msra.mxu0 0
      %791 = vmatprep.subr.bf16.mxu0 0
      %792 = vmatpush1.bf16.msra.mxu0 0
      %793 = vmatprep.subr.bf16.mxu0 0
      %794 = vmatpush1.bf16.msra.mxu0 0
      %795 = vmatprep.subr.bf16.mxu0 0
      %796 = vmatpush1.bf16.msra.mxu0 0
      %797 = vmatprep.subr.bf16.mxu0 0
      %798 = vmatpush1.bf16.msra.mxu0 0
      %799 = vmatprep.subr.bf16.mxu0 0
      %800 = vmatpush1.bf16.msra.mxu0 0
      %801 = vmatprep.subr.bf16.mxu0 0
      %802 = vmatpush1.bf16.msra.mxu0 0
      %803 = vmatprep.mubr.bf16.mxu0 0
      %804 = vmatmul.mubr.bf16.gmra.mrb[0].mxu0 %v720
      %v805 = vpop.f32.mrb[0].mxu0
      %v806 = vadd.f32 0.0, %v805
      %v807 = vpop.f32.mrb[0].mxu0
      %v808 = vpop.f32.mrb[0].mxu0
      %v809 = vadd.f32 0.0, %v808
      %v810 = vpop.f32.mrb[0].mxu0
      %811 = vmatprep.mubr.bf16.mxu0 0
      %812 = vmatmul.mubr.bf16.gmra.mrb[0].mxu0 %v723
      %v813 = vpop.f32.mrb[0].mxu0
      %v814 = vadd.f32 0.0, %v813
      %v815 = vpop.f32.mrb[0].mxu0
      %v816 = vpop.f32.mrb[0].mxu0
      %v817 = vadd.f32 0.0, %v816
      %v818 = vpop.f32.mrb[0].mxu0
      %819 = vmatprep.mubr.bf16.mxu0 0
      %820 = vmatmul.mubr.bf16.gmra.mrb[0].mxu0 %v726
      %v821 = vpop.f32.mrb[0].mxu0
      %v822 = vadd.f32 0.0, %v821
      %v823 = vpop.f32.mrb[0].mxu0
      %v824 = vpop.f32.mrb[0].mxu0
      %v825 = vadd.f32 0.0, %v824
      %v826 = vpop.f32.mrb[0].mxu0
      %827 = vmatprep.mubr.bf16.mxu0 0
      %828 = vmatmul.mubr.bf16.gmra.mrb[0].mxu0 %v729
      %v829 = vpop.f32.mrb[0].mxu0
      %v830 = vadd.f32 0.0, %v829
      %v831 = vpop.f32.mrb[0].mxu0
      %v832 = vpop.f32.mrb[0].mxu0
      %v833 = vadd.f32 0.0, %v832
      %v834 = vpop.f32.mrb[0].mxu0
      %835 = vmatprep.mubr.bf16.mxu0 0
      %836 = vmatmul.mubr.bf16.gmra.mrb[0].mxu0 %v732
      %v837 = vpop.f32.mrb[0].mxu0
      %v838 = vadd.f32 0.0, %v837
      %v839 = vpop.f32.mrb[0].mxu0
      %v840 = vpop.f32.mrb[0].mxu0
      %v841 = vadd.f32 0.0, %v840
      %v842 = vpop.f32.mrb[0].mxu0
      %843 = vmatprep.mubr.bf16.mxu0 0
      %844 = vmatmul.mubr.bf16.gmra.mrb[0].mxu0 %v735
      %v845 = vpop.f32.mrb[0].mxu0
      %v846 = vadd.f32 0.0, %v845
      %v847 = vpop.f32.mrb[0].mxu0
      %v848 = vpop.f32.mrb[0].mxu0
      %v849 = vadd.f32 0.0, %v848
      %v850 = vpop.f32.mrb[0].mxu0
      %851 = vmatprep.mubr.bf16.mxu0 0
      %852 = vmatmul.mubr.bf16.gmra.mrb[0].mxu0 %v738
      %v853 = vpop.f32.mrb[0].mxu0
      %v854 = vadd.f32 0.0, %v853
      %v855 = vpop.f32.mrb[0].mxu0
      %v856 = vpop.f32.mrb[0].mxu0
      %v857 = vadd.f32 0.0, %v856
      %v858 = vpop.f32.mrb[0].mxu0
      %859 = vmatprep.mubr.bf16.mxu0 0
      %860 = vmatmul.mubr.bf16.gmra.mrb[0].mxu0 %v741
      %v861 = vpop.f32.mrb[0].mxu0
      %v862 = vadd.f32 0.0, %v861
      %v863 = vpop.f32.mrb[0].mxu0
      %v864 = vpop.f32.mrb[0].mxu0
      %v865 = vadd.f32 0.0, %v864
      %v866 = vpop.f32.mrb[0].mxu0
      %867 = vmatprep.mubr.bf16.mxu0 0
      %868 = vmatmul.mubr.bf16.gmra.mrb[0].mxu0 %v744
      %v869 = vpop.f32.mrb[0].mxu0
      %v870 = vadd.f32 0.0, %v869
      %v871 = vpop.f32.mrb[0].mxu0
      %v872 = vpop.f32.mrb[0].mxu0
      %v873 = vadd.f32 0.0, %v872
      %v874 = vpop.f32.mrb[0].mxu0
      %875 = vmatprep.mubr.bf16.mxu0 0
      %876 = vmatmul.mubr.bf16.gmra.mrb[0].mxu0 %v747
      %v877 = vpop.f32.mrb[0].mxu0
      %v878 = vadd.f32 0.0, %v877
      %v879 = vpop.f32.mrb[0].mxu0
      %v880 = vpop.f32.mrb[0].mxu0
      %v881 = vadd.f32 0.0, %v880
      %v882 = vpop.f32.mrb[0].mxu0
      %883 = vmatprep.mubr.bf16.mxu0 0
      %884 = vmatmul.mubr.bf16.gmra.mrb[0].mxu0 %v750
      %v885 = vpop.f32.mrb[0].mxu0
      %v886 = vadd.f32 0.0, %v885
      %v887 = vpop.f32.mrb[0].mxu0
      %v888 = vpop.f32.mrb[0].mxu0
      %v889 = vadd.f32 0.0, %v888
      %v890 = vpop.f32.mrb[0].mxu0
      %891 = vmatprep.mubr.bf16.mxu0 0
      %892 = vmatmul.mubr.bf16.gmra.mrb[0].mxu0 %v753
      %v893 = vpop.f32.mrb[0].mxu0
      %v894 = vadd.f32 0.0, %v893
      %v895 = vpop.f32.mrb[0].mxu0
      %v896 = vpop.f32.mrb[0].mxu0
      %v897 = vadd.f32 0.0, %v896
      %v898 = vpop.f32.mrb[0].mxu0
      %899 = vmatprep.mubr.bf16.mxu0 0
      %900 = vmatmul.mubr.bf16.gmra.mrb[0].mxu0 %v756
      %v901 = vpop.f32.mrb[0].mxu0
      %v902 = vadd.f32 0.0, %v901
      %v903 = vpop.f32.mrb[0].mxu0
      %v904 = vpop.f32.mrb[0].mxu0
      %v905 = vadd.f32 0.0, %v904
      %v906 = vpop.f32.mrb[0].mxu0
      %907 = vmatprep.mubr.bf16.mxu0 0
      %908 = vmatmul.mubr.bf16.gmra.mrb[0].mxu0 %v759
      %v909 = vpop.f32.mrb[0].mxu0
      %v910 = vadd.f32 0.0, %v909
      %v911 = vpop.f32.mrb[0].mxu0
      %v912 = vpop.f32.mrb[0].mxu0
      %v913 = vadd.f32 0.0, %v912
      %v914 = vpop.f32.mrb[0].mxu0
      %915 = vmatprep.mubr.bf16.mxu0 0
      %916 = vmatmul.mubr.bf16.gmra.mrb[0].mxu0 %v762
      %v917 = vpop.f32.mrb[0].mxu0
      %v918 = vadd.f32 0.0, %v917
      %v919 = vpop.f32.mrb[0].mxu0
      %v920 = vpop.f32.mrb[0].mxu0
      %v921 = vadd.f32 0.0, %v920
      %v922 = vpop.f32.mrb[0].mxu0
      %923 = vmatprep.mubr.bf16.mxu0 0
      %924 = vmatmul.mubr.bf16.gmra.mrb[0].mxu0 %v765
      %v925 = vpop.f32.mrb[0].mxu0
      %v926 = vadd.f32 0.0, %v925
      %v927 = vpop.f32.mrb[0].mxu0
      %v928 = vpop.f32.mrb[0].mxu0
      %v929 = vadd.f32 0.0, %v928
      %v930 = vpop.f32.mrb[0].mxu0
      %931 = vdwg.mxu0
      %v932 = vsel %vm586, %v806, 0.0
      %v933 = vsel %vm587, %v809, 0.0
      %v934 = vsel %vm588, %v814, 0.0
      %v935 = vsel %vm589, %v817, 0.0
      %v936 = vsel %vm590, %v822, 0.0
      %v937 = vsel %vm591, %v825, 0.0
      %v938 = vsel %vm592, %v830, 0.0
      %v939 = vsel %vm593, %v833, 0.0
      %v940 = vsel %vm594, %v838, 0.0
      %v941 = vsel %vm595, %v841, 0.0
      %v942 = vsel %vm596, %v846, 0.0
      %v943 = vsel %vm597, %v849, 0.0
      %v944 = vsel %vm598, %v854, 0.0
      %v945 = vsel %vm599, %v857, 0.0
      %v946 = vsel %vm600, %v862, 0.0
      %v947 = vsel %vm601, %v865, 0.0
      %v948 = vsel %vm602, %v870, 0.0
      %v949 = vsel %vm603, %v873, 0.0
      %v950 = vsel %vm604, %v878, 0.0
      %v951 = vsel %vm605, %v881, 0.0
      %v952 = vsel %vm606, %v886, 0.0
      %v953 = vsel %vm607, %v889, 0.0
      %v954 = vsel %vm608, %v894, 0.0
      %v955 = vsel %vm609, %v897, 0.0
      %v956 = vsel %vm610, %v902, 0.0
      %v957 = vsel %vm611, %v905, 0.0
      %v958 = vsel %vm612, %v910, 0.0
      %v959 = vsel %vm613, %v913, 0.0
      %v960 = vsel %vm614, %v918, 0.0
      %v961 = vsel %vm615, %v921, 0.0
      %v962 = vsel %vm616, %v926, 0.0
      %v963 = vsel %vm617, %v929, 0.0
      %v964 = vld [vmem:[#allocation2] sm:$0xf0]
      %v965 = vld [vmem:[#allocation2 + $0x80] sm:$0xf]
      %s966 = scalar_lea.vmem %s3, 2
      %v967 = vld [vmem:[%s966] sm:$0x3]
      %v970 = vrot.slane %v964, 4
      %v971 = vrot.slane %v651, 4
      %v972 = vsel %vm455, %v970, %v971
      %v973 = vrot.slane %v652, 4
      %v974 = vsel %vm455, %v971, %v973
      %v975 = vrot.slane %v653, 4
      %v976 = vsel %vm455, %v973, %v975
      %v977 = vrot.slane %v654, 4
      %v978 = vsel %vm455, %v975, %v977
      %v979 = vrot.slane %v655, 4
      %v980 = vsel %vm455, %v977, %v979
      %v981 = vrot.slane %v656, 4
      %v982 = vsel %vm455, %v979, %v981
      %v983 = vrot.slane %v657, 4
      %v984 = vsel %vm455, %v981, %v983
      %v985 = vrot.slane %v658, 4
      %v986 = vsel %vm455, %v983, %v985
      %v987 = vrot.slane %v659, 4
      %v988 = vsel %vm455, %v985, %v987
      %v989 = vrot.slane %v660, 4
      %v990 = vsel %vm455, %v987, %v989
      %v991 = vrot.slane %v661, 4
      %v992 = vsel %vm455, %v989, %v991
      %v993 = vrot.slane %v662, 4
      %v994 = vsel %vm455, %v991, %v993
      %v995 = vrot.slane %v663, 4
      %v996 = vsel %vm455, %v993, %v995
      %v997 = vrot.slane %v664, 4
      %v998 = vsel %vm455, %v995, %v997
      %v999 = vrot.slane %v665, 4
      %v1000 = vsel %vm455, %v997, %v999
      %v1001 = vrot.slane %v965, 4
      %v1002 = vsel %vm455, %v999, %v1001
      %v1004 = vsel %vm414, %v972, 0
      %v1007 = vsel %vm414, %v974, 0
      %v1010 = vsel %vm414, %v976, 0
      %v1013 = vsel %vm414, %v978, 0
      %v1016 = vsel %vm414, %v980, 0
      %v1019 = vsel %vm414, %v982, 0
      %v1022 = vsel %vm414, %v984, 0
      %v1025 = vsel %vm414, %v986, 0
      %v1028 = vsel %vm414, %v988, 0
      %v1031 = vsel %vm414, %v990, 0
      %v1034 = vsel %vm414, %v992, 0
      %v1037 = vsel %vm414, %v994, 0
      %v1040 = vsel %vm414, %v996, 0
      %v1043 = vsel %vm414, %v998, 0
      %v1046 = vsel %vm414, %v1000, 0
      %v1049 = vsel %vm414, %v1002, 0
      %v1052 = vsel %vm767, %v967, 0
      %1054 = vmatprep.subr.bf16.mxu0 0
      %1055 = vmatpush1.bf16.msra.mxu0 %v1052
      %1056 = vmatprep.subr.bf16.mxu0 0
      %1057 = vmatpush1.bf16.msra.mxu0 0
      %1058 = vmatprep.subr.bf16.mxu0 0
      %1059 = vmatpush1.bf16.msra.mxu0 0
      %1060 = vmatprep.subr.bf16.mxu0 0
      %1061 = vmatpush1.bf16.msra.mxu0 0
      %1062 = vmatprep.subr.bf16.mxu0 0
      %1063 = vmatpush1.bf16.msra.mxu0 0
      %1064 = vmatprep.subr.bf16.mxu0 0
      %1065 = vmatpush1.bf16.msra.mxu0 0
      %1066 = vmatprep.subr.bf16.mxu0 0
      %1067 = vmatpush1.bf16.msra.mxu0 0
      %1068 = vmatprep.subr.bf16.mxu0 0
      %1069 = vmatpush1.bf16.msra.mxu0 0
      %1070 = vmatprep.subr.bf16.mxu0 0
      %1071 = vmatpush1.bf16.msra.mxu0 0
      %1072 = vmatprep.subr.bf16.mxu0 0
      %1073 = vmatpush1.bf16.msra.mxu0 0
      %1074 = vmatprep.subr.bf16.mxu0 0
      %1075 = vmatpush1.bf16.msra.mxu0 0
      %1076 = vmatprep.subr.bf16.mxu0 0
      %1077 = vmatpush1.bf16.msra.mxu0 0
      %1078 = vmatprep.subr.bf16.mxu0 0
      %1079 = vmatpush1.bf16.msra.mxu0 0
      %1080 = vmatprep.subr.bf16.mxu0 0
      %1081 = vmatpush1.bf16.msra.mxu0 0
      %1082 = vmatprep.subr.bf16.mxu0 0
      %1083 = vmatpush1.bf16.msra.mxu0 0
      %1084 = vmatprep.subr.bf16.mxu0 0
      %1085 = vmatpush1.bf16.msra.mxu0 0
      %1086 = vmatprep.mubr.bf16.mxu0 0
      %1087 = vmatmul.mubr.bf16.gmra.mrb[0].mxu0 %v1004
      %v1088 = vpop.f32.mrb[0].mxu0
      %v1089 = vadd.f32 0.0, %v1088
      %v1090 = vpop.f32.mrb[0].mxu0
      %v1091 = vpop.f32.mrb[0].mxu0
      %v1092 = vadd.f32 0.0, %v1091
      %v1093 = vpop.f32.mrb[0].mxu0
      %1094 = vmatprep.mubr.bf16.mxu0 0
      %1095 = vmatmul.mubr.bf16.gmra.mrb[0].mxu0 %v1007
      %v1096 = vpop.f32.mrb[0].mxu0
      %v1097 = vadd.f32 0.0, %v1096
      %v1098 = vpop.f32.mrb[0].mxu0
      %v1099 = vpop.f32.mrb[0].mxu0
      %v1100 = vadd.f32 0.0, %v1099
      %v1101 = vpop.f32.mrb[0].mxu0
      %1102 = vmatprep.mubr.bf16.mxu0 0
      %1103 = vmatmul.mubr.bf16.gmra.mrb[0].mxu0 %v1010
      %v1104 = vpop.f32.mrb[0].mxu0
      %v1105 = vadd.f32 0.0, %v1104
      %v1106 = vpop.f32.mrb[0].mxu0
      %v1107 = vpop.f32.mrb[0].mxu0
      %v1108 = vadd.f32 0.0, %v1107
      %v1109 = vpop.f32.mrb[0].mxu0
      %1110 = vmatprep.mubr.bf16.mxu0 0
      %1111 = vmatmul.mubr.bf16.gmra.mrb[0].mxu0 %v1013
      %v1112 = vpop.f32.mrb[0].mxu0
      %v1113 = vadd.f32 0.0, %v1112
      %v1114 = vpop.f32.mrb[0].mxu0
      %v1115 = vpop.f32.mrb[0].mxu0
      %v1116 = vadd.f32 0.0, %v1115
      %v1117 = vpop.f32.mrb[0].mxu0
      %1118 = vmatprep.mubr.bf16.mxu0 0
      %1119 = vmatmul.mubr.bf16.gmra.mrb[0].mxu0 %v1016
      %v1120 = vpop.f32.mrb[0].mxu0
      %v1121 = vadd.f32 0.0, %v1120
      %v1122 = vpop.f32.mrb[0].mxu0
      %v1123 = vpop.f32.mrb[0].mxu0
      %v1124 = vadd.f32 0.0, %v1123
      %v1125 = vpop.f32.mrb[0].mxu0
      %1126 = vmatprep.mubr.bf16.mxu0 0
      %1127 = vmatmul.mubr.bf16.gmra.mrb[0].mxu0 %v1019
      %v1128 = vpop.f32.mrb[0].mxu0
      %v1129 = vadd.f32 0.0, %v1128
      %v1130 = vpop.f32.mrb[0].mxu0
      %v1131 = vpop.f32.mrb[0].mxu0
      %v1132 = vadd.f32 0.0, %v1131
      %v1133 = vpop.f32.mrb[0].mxu0
      %1134 = vmatprep.mubr.bf16.mxu0 0
      %1135 = vmatmul.mubr.bf16.gmra.mrb[0].mxu0 %v1022
      %v1136 = vpop.f32.mrb[0].mxu0
      %v1137 = vadd.f32 0.0, %v1136
      %v1138 = vpop.f32.mrb[0].mxu0
      %v1139 = vpop.f32.mrb[0].mxu0
      %v1140 = vadd.f32 0.0, %v1139
      %v1141 = vpop.f32.mrb[0].mxu0
      %1142 = vmatprep.mubr.bf16.mxu0 0
      %1143 = vmatmul.mubr.bf16.gmra.mrb[0].mxu0 %v1025
      %v1144 = vpop.f32.mrb[0].mxu0
      %v1145 = vadd.f32 0.0, %v1144
      %v1146 = vpop.f32.mrb[0].mxu0
      %v1147 = vpop.f32.mrb[0].mxu0
      %v1148 = vadd.f32 0.0, %v1147
      %v1149 = vpop.f32.mrb[0].mxu0
      %1150 = vmatprep.mubr.bf16.mxu0 0
      %1151 = vmatmul.mubr.bf16.gmra.mrb[0].mxu0 %v1028
      %v1152 = vpop.f32.mrb[0].mxu0
      %v1153 = vadd.f32 0.0, %v1152
      %v1154 = vpop.f32.mrb[0].mxu0
      %v1155 = vpop.f32.mrb[0].mxu0
      %v1156 = vadd.f32 0.0, %v1155
      %v1157 = vpop.f32.mrb[0].mxu0
      %1158 = vmatprep.mubr.bf16.mxu0 0
      %1159 = vmatmul.mubr.bf16.gmra.mrb[0].mxu0 %v1031
      %v1160 = vpop.f32.mrb[0].mxu0
      %v1161 = vadd.f32 0.0, %v1160
      %v1162 = vpop.f32.mrb[0].mxu0
      %v1163 = vpop.f32.mrb[0].mxu0
      %v1164 = vadd.f32 0.0, %v1163
      %v1165 = vpop.f32.mrb[0].mxu0
      %1166 = vmatprep.mubr.bf16.mxu0 0
      %1167 = vmatmul.mubr.bf16.gmra.mrb[0].mxu0 %v1034
      %v1168 = vpop.f32.mrb[0].mxu0
      %v1169 = vadd.f32 0.0, %v1168
      %v1170 = vpop.f32.mrb[0].mxu0
      %v1171 = vpop.f32.mrb[0].mxu0
      %v1172 = vadd.f32 0.0, %v1171
      %v1173 = vpop.f32.mrb[0].mxu0
      %1174 = vmatprep.mubr.bf16.mxu0 0
      %1175 = vmatmul.mubr.bf16.gmra.mrb[0].mxu0 %v1037
      %v1176 = vpop.f32.mrb[0].mxu0
      %v1177 = vadd.f32 0.0, %v1176
      %v1178 = vpop.f32.mrb[0].mxu0
      %v1179 = vpop.f32.mrb[0].mxu0
      %v1180 = vadd.f32 0.0, %v1179
      %v1181 = vpop.f32.mrb[0].mxu0
      %1182 = vmatprep.mubr.bf16.mxu0 0
      %1183 = vmatmul.mubr.bf16.gmra.mrb[0].mxu0 %v1040
      %v1184 = vpop.f32.mrb[0].mxu0
      %v1185 = vadd.f32 0.0, %v1184
      %v1186 = vpop.f32.mrb[0].mxu0
      %v1187 = vpop.f32.mrb[0].mxu0
      %v1188 = vadd.f32 0.0, %v1187
      %v1189 = vpop.f32.mrb[0].mxu0
      %1190 = vmatprep.mubr.bf16.mxu0 0
      %1191 = vmatmul.mubr.bf16.gmra.mrb[0].mxu0 %v1043
      %v1192 = vpop.f32.mrb[0].mxu0
      %v1193 = vadd.f32 0.0, %v1192
      %v1194 = vpop.f32.mrb[0].mxu0
      %v1195 = vpop.f32.mrb[0].mxu0
      %v1196 = vadd.f32 0.0, %v1195
      %v1197 = vpop.f32.mrb[0].mxu0
      %1198 = vmatprep.mubr.bf16.mxu0 0
      %1199 = vmatmul.mubr.bf16.gmra.mrb[0].mxu0 %v1046
      %v1200 = vpop.f32.mrb[0].mxu0
      %v1201 = vadd.f32 0.0, %v1200
      %v1202 = vpop.f32.mrb[0].mxu0
      %v1203 = vpop.f32.mrb[0].mxu0
      %v1204 = vadd.f32 0.0, %v1203
      %v1205 = vpop.f32.mrb[0].mxu0
      %1206 = vmatprep.mubr.bf16.mxu0 0
      %1207 = vmatmul.mubr.bf16.gmra.mrb[0].mxu0 %v1049
      %v1208 = vpop.f32.mrb[0].mxu0
      %v1209 = vadd.f32 0.0, %v1208
      %v1210 = vpop.f32.mrb[0].mxu0
      %v1211 = vpop.f32.mrb[0].mxu0
      %v1212 = vadd.f32 0.0, %v1211
      %v1213 = vpop.f32.mrb[0].mxu0
      %1214 = vdwg.mxu0
      %v1215 = vadd.f32 %v932, %v1089
      %v1216 = vadd.f32 %v933, %v1092
      %v1217 = vadd.f32 %v934, %v1097
      %v1218 = vadd.f32 %v935, %v1100
      %v1219 = vadd.f32 %v936, %v1105
      %v1220 = vadd.f32 %v937, %v1108
      %v1221 = vadd.f32 %v938, %v1113
      %v1222 = vadd.f32 %v939, %v1116
      %v1223 = vadd.f32 %v940, %v1121
      %v1224 = vadd.f32 %v941, %v1124
      %v1225 = vadd.f32 %v942, %v1129
      %v1226 = vadd.f32 %v943, %v1132
      %v1227 = vadd.f32 %v944, %v1137
      %v1228 = vadd.f32 %v945, %v1140
      %v1229 = vadd.f32 %v946, %v1145
      %v1230 = vadd.f32 %v947, %v1148
      %v1231 = vadd.f32 %v948, %v1153
      %v1232 = vadd.f32 %v949, %v1156
      %v1233 = vadd.f32 %v950, %v1161
      %v1234 = vadd.f32 %v951, %v1164
      %v1235 = vadd.f32 %v952, %v1169
      %v1236 = vadd.f32 %v953, %v1172
      %v1237 = vadd.f32 %v954, %v1177
      %v1238 = vadd.f32 %v955, %v1180
      %v1239 = vadd.f32 %v956, %v1185
      %v1240 = vadd.f32 %v957, %v1188
      %v1241 = vadd.f32 %v958, %v1193
      %v1242 = vadd.f32 %v959, %v1196
      %v1243 = vadd.f32 %v960, %v1201
      %v1244 = vadd.f32 %v961, %v1204
      %v1245 = vadd.f32 %v962, %v1209
      %v1246 = vadd.f32 %v963, %v1212
      %v1247 = vld [vmem:[#allocation2] sm:$0xe0]
      %v1248 = vld [vmem:[#allocation2 + $0x80] sm:$0x1f]
      %s1249 = scalar_lea.vmem %s3, 4
      %v1250 = vld [vmem:[%s1249] sm:$0x3]
      %vm1253 = vcmask 1042432
      %v1254 = vrot.slane %v1247, 5
      %v1255 = vrot.slane %v651, 5
      %v1256 = vsel %vm1253, %v1254, %v1255
      %v1257 = vrot.slane %v652, 5
      %v1258 = vsel %vm1253, %v1255, %v1257
      %v1259 = vrot.slane %v653, 5
      %v1260 = vsel %vm1253, %v1257, %v1259
      %v1261 = vrot.slane %v654, 5
      %v1262 = vsel %vm1253, %v1259, %v1261
      %v1263 = vrot.slane %v655, 5
      %v1264 = vsel %vm1253, %v1261, %v1263
      %v1265 = vrot.slane %v656, 5
      %v1266 = vsel %vm1253, %v1263, %v1265
      %v1267 = vrot.slane %v657, 5
      %v1268 = vsel %vm1253, %v1265, %v1267
      %v1269 = vrot.slane %v658, 5
      %v1270 = vsel %vm1253, %v1267, %v1269
      %v1271 = vrot.slane %v659, 5
      %v1272 = vsel %vm1253, %v1269, %v1271
      %v1273 = vrot.slane %v660, 5
      %v1274 = vsel %vm1253, %v1271, %v1273
      %v1275 = vrot.slane %v661, 5
      %v1276 = vsel %vm1253, %v1273, %v1275
      %v1277 = vrot.slane %v662, 5
      %v1278 = vsel %vm1253, %v1275, %v1277
      %v1279 = vrot.slane %v663, 5
      %v1280 = vsel %vm1253, %v1277, %v1279
      %v1281 = vrot.slane %v664, 5
      %v1282 = vsel %vm1253, %v1279, %v1281
      %v1283 = vrot.slane %v665, 5
      %v1284 = vsel %vm1253, %v1281, %v1283
      %v1285 = vrot.slane %v1248, 5
      %v1286 = vsel %vm1253, %v1283, %v1285
      %v1288 = vsel %vm414, %v1256, 0
      %v1291 = vsel %vm414, %v1258, 0
      %v1294 = vsel %vm414, %v1260, 0
      %v1297 = vsel %vm414, %v1262, 0
      %v1300 = vsel %vm414, %v1264, 0
      %v1303 = vsel %vm414, %v1266, 0
      %v1306 = vsel %vm414, %v1268, 0
      %v1309 = vsel %vm414, %v1270, 0
      %v1312 = vsel %vm414, %v1272, 0
      %v1315 = vsel %vm414, %v1274, 0
      %v1318 = vsel %vm414, %v1276, 0
      %v1321 = vsel %vm414, %v1278, 0
      %v1324 = vsel %vm414, %v1280, 0
      %v1327 = vsel %vm414, %v1282, 0
      %v1330 = vsel %vm414, %v1284, 0
      %v1333 = vsel %vm414, %v1286, 0
      %v1336 = vsel %vm767, %v1250, 0
      %1338 = vmatprep.subr.bf16.mxu0 0
      %1339 = vmatpush1.bf16.msra.mxu0 %v1336
      %1340 = vmatprep.subr.bf16.mxu0 0
      %1341 = vmatpush1.bf16.msra.mxu0 0
      %1342 = vmatprep.subr.bf16.mxu0 0
      %1343 = vmatpush1.bf16.msra.mxu0 0
      %1344 = vmatprep.subr.bf16.mxu0 0
      %1345 = vmatpush1.bf16.msra.mxu0 0
      %1346 = vmatprep.subr.bf16.mxu0 0
      %1347 = vmatpush1.bf16.msra.mxu0 0
      %1348 = vmatprep.subr.bf16.mxu0 0
      %1349 = vmatpush1.bf16.msra.mxu0 0
      %1350 = vmatprep.subr.bf16.mxu0 0
      %1351 = vmatpush1.bf16.msra.mxu0 0
      %1352 = vmatprep.subr.bf16.mxu0 0
      %1353 = vmatpush1.bf16.msra.mxu0 0
      %1354 = vmatprep.subr.bf16.mxu0 0
      %1355 = vmatpush1.bf16.msra.mxu0 0
      %1356 = vmatprep.subr.bf16.mxu0 0
      %1357 = vmatpush1.bf16.msra.mxu0 0
      %1358 = vmatprep.subr.bf16.mxu0 0
      %1359 = vmatpush1.bf16.msra.mxu0 0
      %1360 = vmatprep.subr.bf16.mxu0 0
      %1361 = vmatpush1.bf16.msra.mxu0 0
      %1362 = vmatprep.subr.bf16.mxu0 0
      %1363 = vmatpush1.bf16.msra.mxu0 0
      %1364 = vmatprep.subr.bf16.mxu0 0
      %1365 = vmatpush1.bf16.msra.mxu0 0
      %1366 = vmatprep.subr.bf16.mxu0 0
      %1367 = vmatpush1.bf16.msra.mxu0 0
      %1368 = vmatprep.subr.bf16.mxu0 0
      %1369 = vmatpush1.bf16.msra.mxu0 0
      %1370 = vmatprep.mubr.bf16.mxu0 0
      %1371 = vmatmul.mubr.bf16.gmra.mrb[0].mxu0 %v1288
      %v1372 = vpop.f32.mrb[0].mxu0
      %v1373 = vadd.f32 0.0, %v1372
      %v1374 = vpop.f32.mrb[0].mxu0
      %v1375 = vpop.f32.mrb[0].mxu0
      %v1376 = vadd.f32 0.0, %v1375
      %v1377 = vpop.f32.mrb[0].mxu0
      %1378 = vmatprep.mubr.bf16.mxu0 0
      %1379 = vmatmul.mubr.bf16.gmra.mrb[0].mxu0 %v1291
      %v1380 = vpop.f32.mrb[0].mxu0
      %v1381 = vadd.f32 0.0, %v1380
      %v1382 = vpop.f32.mrb[0].mxu0
      %v1383 = vpop.f32.mrb[0].mxu0
      %v1384 = vadd.f32 0.0, %v1383
      %v1385 = vpop.f32.mrb[0].mxu0
      %1386 = vmatprep.mubr.bf16.mxu0 0
      %1387 = vmatmul.mubr.bf16.gmra.mrb[0].mxu0 %v1294
      %v1388 = vpop.f32.mrb[0].mxu0
      %v1389 = vadd.f32 0.0, %v1388
      %v1390 = vpop.f32.mrb[0].mxu0
      %v1391 = vpop.f32.mrb[0].mxu0
      %v1392 = vadd.f32 0.0, %v1391
      %v1393 = vpop.f32.mrb[0].mxu0
      %1394 = vmatprep.mubr.bf16.mxu0 0
      %1395 = vmatmul.mubr.bf16.gmra.mrb[0].mxu0 %v1297
      %v1396 = vpop.f32.mrb[0].mxu0
      %v1397 = vadd.f32 0.0, %v1396
      %v1398 = vpop.f32.mrb[0].mxu0
      %v1399 = vpop.f32.mrb[0].mxu0
      %v1400 = vadd.f32 0.0, %v1399
      %v1401 = vpop.f32.mrb[0].mxu0
      %1402 = vmatprep.mubr.bf16.mxu0 0
      %1403 = vmatmul.mubr.bf16.gmra.mrb[0].mxu0 %v1300
      %v1404 = vpop.f32.mrb[0].mxu0
      %v1405 = vadd.f32 0.0, %v1404
      %v1406 = vpop.f32.mrb[0].mxu0
      %v1407 = vpop.f32.mrb[0].mxu0
      %v1408 = vadd.f32 0.0, %v1407
      %v1409 = vpop.f32.mrb[0].mxu0
      %1410 = vmatprep.mubr.bf16.mxu0 0
      %1411 = vmatmul.mubr.bf16.gmra.mrb[0].mxu0 %v1303
      %v1412 = vpop.f32.mrb[0].mxu0
      %v1413 = vadd.f32 0.0, %v1412
      %v1414 = vpop.f32.mrb[0].mxu0
      %v1415 = vpop.f32.mrb[0].mxu0
      %v1416 = vadd.f32 0.0, %v1415
      %v1417 = vpop.f32.mrb[0].mxu0
      %1418 = vmatprep.mubr.bf16.mxu0 0
      %1419 = vmatmul.mubr.bf16.gmra.mrb[0].mxu0 %v1306
      %v1420 = vpop.f32.mrb[0].mxu0
      %v1421 = vadd.f32 0.0, %v1420
      %v1422 = vpop.f32.mrb[0].mxu0
      %v1423 = vpop.f32.mrb[0].mxu0
      %v1424 = vadd.f32 0.0, %v1423
      %v1425 = vpop.f32.mrb[0].mxu0
      %1426 = vmatprep.mubr.bf16.mxu0 0
      %1427 = vmatmul.mubr.bf16.gmra.mrb[0].mxu0 %v1309
      %v1428 = vpop.f32.mrb[0].mxu0
      %v1429 = vadd.f32 0.0, %v1428
      %v1430 = vpop.f32.mrb[0].mxu0
      %v1431 = vpop.f32.mrb[0].mxu0
      %v1432 = vadd.f32 0.0, %v1431
      %v1433 = vpop.f32.mrb[0].mxu0
      %1434 = vmatprep.mubr.bf16.mxu0 0
      %1435 = vmatmul.mubr.bf16.gmra.mrb[0].mxu0 %v1312
      %v1436 = vpop.f32.mrb[0].mxu0
      %v1437 = vadd.f32 0.0, %v1436
      %v1438 = vpop.f32.mrb[0].mxu0
      %v1439 = vpop.f32.mrb[0].mxu0
      %v1440 = vadd.f32 0.0, %v1439
      %v1441 = vpop.f32.mrb[0].mxu0
      %1442 = vmatprep.mubr.bf16.mxu0 0
      %1443 = vmatmul.mubr.bf16.gmra.mrb[0].mxu0 %v1315
      %v1444 = vpop.f32.mrb[0].mxu0
      %v1445 = vadd.f32 0.0, %v1444
      %v1446 = vpop.f32.mrb[0].mxu0
      %v1447 = vpop.f32.mrb[0].mxu0
      %v1448 = vadd.f32 0.0, %v1447
      %v1449 = vpop.f32.mrb[0].mxu0
      %1450 = vmatprep.mubr.bf16.mxu0 0
      %1451 = vmatmul.mubr.bf16.gmra.mrb[0].mxu0 %v1318
      %v1452 = vpop.f32.mrb[0].mxu0
      %v1453 = vadd.f32 0.0, %v1452
      %v1454 = vpop.f32.mrb[0].mxu0
      %v1455 = vpop.f32.mrb[0].mxu0
      %v1456 = vadd.f32 0.0, %v1455
      %v1457 = vpop.f32.mrb[0].mxu0
      %1458 = vmatprep.mubr.bf16.mxu0 0
      %1459 = vmatmul.mubr.bf16.gmra.mrb[0].mxu0 %v1321
      %v1460 = vpop.f32.mrb[0].mxu0
      %v1461 = vadd.f32 0.0, %v1460
      %v1462 = vpop.f32.mrb[0].mxu0
      %v1463 = vpop.f32.mrb[0].mxu0
      %v1464 = vadd.f32 0.0, %v1463
      %v1465 = vpop.f32.mrb[0].mxu0
      %1466 = vmatprep.mubr.bf16.mxu0 0
      %1467 = vmatmul.mubr.bf16.gmra.mrb[0].mxu0 %v1324
      %v1468 = vpop.f32.mrb[0].mxu0
      %v1469 = vadd.f32 0.0, %v1468
      %v1470 = vpop.f32.mrb[0].mxu0
      %v1471 = vpop.f32.mrb[0].mxu0
      %v1472 = vadd.f32 0.0, %v1471
      %v1473 = vpop.f32.mrb[0].mxu0
      %1474 = vmatprep.mubr.bf16.mxu0 0
      %1475 = vmatmul.mubr.bf16.gmra.mrb[0].mxu0 %v1327
      %v1476 = vpop.f32.mrb[0].mxu0
      %v1477 = vadd.f32 0.0, %v1476
      %v1478 = vpop.f32.mrb[0].mxu0
      %v1479 = vpop.f32.mrb[0].mxu0
      %v1480 = vadd.f32 0.0, %v1479
      %v1481 = vpop.f32.mrb[0].mxu0
      %1482 = vmatprep.mubr.bf16.mxu0 0
      %1483 = vmatmul.mubr.bf16.gmra.mrb[0].mxu0 %v1330
      %v1484 = vpop.f32.mrb[0].mxu0
      %v1485 = vadd.f32 0.0, %v1484
      %v1486 = vpop.f32.mrb[0].mxu0
      %v1487 = vpop.f32.mrb[0].mxu0
      %v1488 = vadd.f32 0.0, %v1487
      %v1489 = vpop.f32.mrb[0].mxu0
      %1490 = vmatprep.mubr.bf16.mxu0 0
      %1491 = vmatmul.mubr.bf16.gmra.mrb[0].mxu0 %v1333
      %v1492 = vpop.f32.mrb[0].mxu0
      %v1493 = vadd.f32 0.0, %v1492
      %v1494 = vpop.f32.mrb[0].mxu0
      %v1495 = vpop.f32.mrb[0].mxu0
      %v1496 = vadd.f32 0.0, %v1495
      %v1497 = vpop.f32.mrb[0].mxu0
      %1498 = vdwg.mxu0
      %v1499 = vsel %vm618, %v1373, 0.0
      %v1500 = vsel %vm619, %v1376, 0.0
      %v1501 = vsel %vm620, %v1381, 0.0
      %v1502 = vsel %vm621, %v1384, 0.0
      %v1503 = vsel %vm622, %v1389, 0.0
      %v1504 = vsel %vm623, %v1392, 0.0
      %v1505 = vsel %vm624, %v1397, 0.0
      %v1506 = vsel %vm625, %v1400, 0.0
      %v1507 = vsel %vm626, %v1405, 0.0
      %v1508 = vsel %vm627, %v1408, 0.0
      %v1509 = vsel %vm628, %v1413, 0.0
      %v1510 = vsel %vm629, %v1416, 0.0
      %v1511 = vsel %vm630, %v1421, 0.0
      %v1512 = vsel %vm631, %v1424, 0.0
      %v1513 = vsel %vm632, %v1429, 0.0
      %v1514 = vsel %vm633, %v1432, 0.0
      %v1515 = vsel %vm634, %v1437, 0.0
      %v1516 = vsel %vm635, %v1440, 0.0
      %v1517 = vsel %vm636, %v1445, 0.0
      %v1518 = vsel %vm637, %v1448, 0.0
      %v1519 = vsel %vm638, %v1453, 0.0
      %v1520 = vsel %vm639, %v1456, 0.0
      %v1521 = vsel %vm640, %v1461, 0.0
      %v1522 = vsel %vm641, %v1464, 0.0
      %v1523 = vsel %vm642, %v1469, 0.0
      %v1524 = vsel %vm643, %v1472, 0.0
      %v1525 = vsel %vm644, %v1477, 0.0
      %v1526 = vsel %vm645, %v1480, 0.0
      %v1527 = vsel %vm646, %v1485, 0.0
      %v1528 = vsel %vm647, %v1488, 0.0
      %v1529 = vsel %vm648, %v1493, 0.0
      %v1530 = vsel %vm649, %v1496, 0.0
      %v1531 = vadd.f32 %v1215, %v1499
      %v1532 = vadd.f32 %v1216, %v1500
      %v1533 = vadd.f32 %v1217, %v1501
      %v1534 = vadd.f32 %v1218, %v1502
      %v1535 = vadd.f32 %v1219, %v1503
      %v1536 = vadd.f32 %v1220, %v1504
      %v1537 = vadd.f32 %v1221, %v1505
      %v1538 = vadd.f32 %v1222, %v1506
      %v1539 = vadd.f32 %v1223, %v1507
      %v1540 = vadd.f32 %v1224, %v1508
      %v1541 = vadd.f32 %v1225, %v1509
      %v1542 = vadd.f32 %v1226, %v1510
      %v1543 = vadd.f32 %v1227, %v1511
      %v1544 = vadd.f32 %v1228, %v1512
      %v1545 = vadd.f32 %v1229, %v1513
      %v1546 = vadd.f32 %v1230, %v1514
      %v1547 = vadd.f32 %v1231, %v1515
      %v1548 = vadd.f32 %v1232, %v1516
      %v1549 = vadd.f32 %v1233, %v1517
      %v1550 = vadd.f32 %v1234, %v1518
      %v1551 = vadd.f32 %v1235, %v1519
      %v1552 = vadd.f32 %v1236, %v1520
      %v1553 = vadd.f32 %v1237, %v1521
      %v1554 = vadd.f32 %v1238, %v1522
      %v1555 = vadd.f32 %v1239, %v1523
      %v1556 = vadd.f32 %v1240, %v1524
      %v1557 = vadd.f32 %v1241, %v1525
      %v1558 = vadd.f32 %v1242, %v1526
      %v1559 = vadd.f32 %v1243, %v1527
      %v1560 = vadd.f32 %v1244, %v1528
      %v1561 = vadd.f32 %v1245, %v1529
      %v1562 = vadd.f32 %v1246, %v1530
      %v1563 = vld [vmem:[#allocation2 + $0x10] sm:$0xf8]
      %v1564 = vld [vmem:[#allocation2 + $0x18] sm:$0xff]
      %v1565 = vld [vmem:[#allocation2 + $0x20] sm:$0xff]
      %v1566 = vld [vmem:[#allocation2 + $0x28] sm:$0xff]
      %v1567 = vld [vmem:[#allocation2 + $0x30] sm:$0xff]
      %v1568 = vld [vmem:[#allocation2 + $0x38] sm:$0xff]
      %v1569 = vld [vmem:[#allocation2 + $0x40] sm:$0xff]
      %v1570 = vld [vmem:[#allocation2 + $0x48] sm:$0xff]
      %v1571 = vld [vmem:[#allocation2 + $0x50] sm:$0xff]
      %v1572 = vld [vmem:[#allocation2 + $0x58] sm:$0xff]
      %v1573 = vld [vmem:[#allocation2 + $0x60] sm:$0xff]
      %v1574 = vld [vmem:[#allocation2 + $0x68] sm:$0xff]
      %v1575 = vld [vmem:[#allocation2 + $0x70] sm:$0xff]
      %v1576 = vld [vmem:[#allocation2 + $0x78] sm:$0xff]
      %v1577 = vld [vmem:[#allocation2 + $0x80] sm:$0xff]
      %v1578 = vld [vmem:[#allocation2 + $0x88] sm:$0xff]
      %v1579 = vld [vmem:[#allocation2 + $0x90] sm:$0x7]
      %s1580 = scalar_lea.vmem %s3, 6
      %v1581 = vld [vmem:[%s1580] sm:$0x3]
      %v1599 = vrot.slane %v1563, 3
      %v1600 = vrot.slane %v1564, 3
      %v1601 = vsel %vm685, %v1599, %v1600
      %v1602 = vrot.slane %v1565, 3
      %v1603 = vsel %vm685, %v1600, %v1602
      %v1604 = vrot.slane %v1566, 3
      %v1605 = vsel %vm685, %v1602, %v1604
      %v1606 = vrot.slane %v1567, 3
      %v1607 = vsel %vm685, %v1604, %v1606
      %v1608 = vrot.slane %v1568, 3
      %v1609 = vsel %vm685, %v1606, %v1608
      %v1610 = vrot.slane %v1569, 3
      %v1611 = vsel %vm685, %v1608, %v1610
      %v1612 = vrot.slane %v1570, 3
      %v1613 = vsel %vm685, %v1610, %v1612
      %v1614 = vrot.slane %v1571, 3
      %v1615 = vsel %vm685, %v1612, %v1614
      %v1616 = vrot.slane %v1572, 3
      %v1617 = vsel %vm685, %v1614, %v1616
      %v1618 = vrot.slane %v1573, 3
      %v1619 = vsel %vm685, %v1616, %v1618
      %v1620 = vrot.slane %v1574, 3
      %v1621 = vsel %vm685, %v1618, %v1620
      %v1622 = vrot.slane %v1575, 3
      %v1623 = vsel %vm685, %v1620, %v1622
      %v1624 = vrot.slane %v1576, 3
      %v1625 = vsel %vm685, %v1622, %v1624
      %v1626 = vrot.slane %v1577, 3
      %v1627 = vsel %vm685, %v1624, %v1626
      %v1628 = vrot.slane %v1578, 3
      %v1629 = vsel %vm685, %v1626, %v1628
      %v1630 = vrot.slane %v1579, 3
      %v1631 = vsel %vm685, %v1628, %v1630
      %v1633 = vsel %vm414, %v1601, 0
      %v1636 = vsel %vm414, %v1603, 0
      %v1639 = vsel %vm414, %v1605, 0
      %v1642 = vsel %vm414, %v1607, 0
      %v1645 = vsel %vm414, %v1609, 0
      %v1648 = vsel %vm414, %v1611, 0
      %v1651 = vsel %vm414, %v1613, 0
      %v1654 = vsel %vm414, %v1615, 0
      %v1657 = vsel %vm414, %v1617, 0
      %v1660 = vsel %vm414, %v1619, 0
      %v1663 = vsel %vm414, %v1621, 0
      %v1666 = vsel %vm414, %v1623, 0
      %v1669 = vsel %vm414, %v1625, 0
      %v1672 = vsel %vm414, %v1627, 0
      %v1675 = vsel %vm414, %v1629, 0
      %v1678 = vsel %vm414, %v1631, 0
      %v1681 = vsel %vm767, %v1581, 0
      %1683 = vmatprep.subr.bf16.mxu0 0
      %1684 = vmatpush1.bf16.msra.mxu0 %v1681
      %1685 = vmatprep.subr.bf16.mxu0 0
      %1686 = vmatpush1.bf16.msra.mxu0 0
      %1687 = vmatprep.subr.bf16.mxu0 0
      %1688 = vmatpush1.bf16.msra.mxu0 0
      %1689 = vmatprep.subr.bf16.mxu0 0
      %1690 = vmatpush1.bf16.msra.mxu0 0
      %1691 = vmatprep.subr.bf16.mxu0 0
      %1692 = vmatpush1.bf16.msra.mxu0 0
      %1693 = vmatprep.subr.bf16.mxu0 0
      %1694 = vmatpush1.bf16.msra.mxu0 0
      %1695 = vmatprep.subr.bf16.mxu0 0
      %1696 = vmatpush1.bf16.msra.mxu0 0
      %1697 = vmatprep.subr.bf16.mxu0 0
      %1698 = vmatpush1.bf16.msra.mxu0 0
      %1699 = vmatprep.subr.bf16.mxu0 0
      %1700 = vmatpush1.bf16.msra.mxu0 0
      %1701 = vmatprep.subr.bf16.mxu0 0
      %1702 = vmatpush1.bf16.msra.mxu0 0
      %1703 = vmatprep.subr.bf16.mxu0 0
      %1704 = vmatpush1.bf16.msra.mxu0 0
      %1705 = vmatprep.subr.bf16.mxu0 0
      %1706 = vmatpush1.bf16.msra.mxu0 0
      %1707 = vmatprep.subr.bf16.mxu0 0
      %1708 = vmatpush1.bf16.msra.mxu0 0
      %1709 = vmatprep.subr.bf16.mxu0 0
      %1710 = vmatpush1.bf16.msra.mxu0 0
      %1711 = vmatprep.subr.bf16.mxu0 0
      %1712 = vmatpush1.bf16.msra.mxu0 0
      %1713 = vmatprep.subr.bf16.mxu0 0
      %1714 = vmatpush1.bf16.msra.mxu0 0
      %1715 = vmatprep.mubr.bf16.mxu0 0
      %1716 = vmatmul.mubr.bf16.gmra.mrb[0].mxu0 %v1633
      %v1717 = vpop.f32.mrb[0].mxu0
      %v1718 = vadd.f32 0.0, %v1717
      %v1719 = vpop.f32.mrb[0].mxu0
      %v1720 = vpop.f32.mrb[0].mxu0
      %v1721 = vadd.f32 0.0, %v1720
      %v1722 = vpop.f32.mrb[0].mxu0
      %1723 = vmatprep.mubr.bf16.mxu0 0
      %1724 = vmatmul.mubr.bf16.gmra.mrb[0].mxu0 %v1636
      %v1725 = vpop.f32.mrb[0].mxu0
      %v1726 = vadd.f32 0.0, %v1725
      %v1727 = vpop.f32.mrb[0].mxu0
      %v1728 = vpop.f32.mrb[0].mxu0
      %v1729 = vadd.f32 0.0, %v1728
      %v1730 = vpop.f32.mrb[0].mxu0
      %1731 = vmatprep.mubr.bf16.mxu0 0
      %1732 = vmatmul.mubr.bf16.gmra.mrb[0].mxu0 %v1639
      %v1733 = vpop.f32.mrb[0].mxu0
      %v1734 = vadd.f32 0.0, %v1733
      %v1735 = vpop.f32.mrb[0].mxu0
      %v1736 = vpop.f32.mrb[0].mxu0
      %v1737 = vadd.f32 0.0, %v1736
      %v1738 = vpop.f32.mrb[0].mxu0
      %1739 = vmatprep.mubr.bf16.mxu0 0
      %1740 = vmatmul.mubr.bf16.gmra.mrb[0].mxu0 %v1642
      %v1741 = vpop.f32.mrb[0].mxu0
      %v1742 = vadd.f32 0.0, %v1741
      %v1743 = vpop.f32.mrb[0].mxu0
      %v1744 = vpop.f32.mrb[0].mxu0
      %v1745 = vadd.f32 0.0, %v1744
      %v1746 = vpop.f32.mrb[0].mxu0
      %1747 = vmatprep.mubr.bf16.mxu0 0
      %1748 = vmatmul.mubr.bf16.gmra.mrb[0].mxu0 %v1645
      %v1749 = vpop.f32.mrb[0].mxu0
      %v1750 = vadd.f32 0.0, %v1749
      %v1751 = vpop.f32.mrb[0].mxu0
      %v1752 = vpop.f32.mrb[0].mxu0
      %v1753 = vadd.f32 0.0, %v1752
      %v1754 = vpop.f32.mrb[0].mxu0
      %1755 = vmatprep.mubr.bf16.mxu0 0
      %1756 = vmatmul.mubr.bf16.gmra.mrb[0].mxu0 %v1648
      %v1757 = vpop.f32.mrb[0].mxu0
      %v1758 = vadd.f32 0.0, %v1757
      %v1759 = vpop.f32.mrb[0].mxu0
      %v1760 = vpop.f32.mrb[0].mxu0
      %v1761 = vadd.f32 0.0, %v1760
      %v1762 = vpop.f32.mrb[0].mxu0
      %1763 = vmatprep.mubr.bf16.mxu0 0
      %1764 = vmatmul.mubr.bf16.gmra.mrb[0].mxu0 %v1651
      %v1765 = vpop.f32.mrb[0].mxu0
      %v1766 = vadd.f32 0.0, %v1765
      %v1767 = vpop.f32.mrb[0].mxu0
      %v1768 = vpop.f32.mrb[0].mxu0
      %v1769 = vadd.f32 0.0, %v1768
      %v1770 = vpop.f32.mrb[0].mxu0
      %1771 = vmatprep.mubr.bf16.mxu0 0
      %1772 = vmatmul.mubr.bf16.gmra.mrb[0].mxu0 %v1654
      %v1773 = vpop.f32.mrb[0].mxu0
      %v1774 = vadd.f32 0.0, %v1773
      %v1775 = vpop.f32.mrb[0].mxu0
      %v1776 = vpop.f32.mrb[0].mxu0
      %v1777 = vadd.f32 0.0, %v1776
      %v1778 = vpop.f32.mrb[0].mxu0
      %1779 = vmatprep.mubr.bf16.mxu0 0
      %1780 = vmatmul.mubr.bf16.gmra.mrb[0].mxu0 %v1657
      %v1781 = vpop.f32.mrb[0].mxu0
      %v1782 = vadd.f32 0.0, %v1781
      %v1783 = vpop.f32.mrb[0].mxu0
      %v1784 = vpop.f32.mrb[0].mxu0
      %v1785 = vadd.f32 0.0, %v1784
      %v1786 = vpop.f32.mrb[0].mxu0
      %1787 = vmatprep.mubr.bf16.mxu0 0
      %1788 = vmatmul.mubr.bf16.gmra.mrb[0].mxu0 %v1660
      %v1789 = vpop.f32.mrb[0].mxu0
      %v1790 = vadd.f32 0.0, %v1789
      %v1791 = vpop.f32.mrb[0].mxu0
      %v1792 = vpop.f32.mrb[0].mxu0
      %v1793 = vadd.f32 0.0, %v1792
      %v1794 = vpop.f32.mrb[0].mxu0
      %1795 = vmatprep.mubr.bf16.mxu0 0
      %1796 = vmatmul.mubr.bf16.gmra.mrb[0].mxu0 %v1663
      %v1797 = vpop.f32.mrb[0].mxu0
      %v1798 = vadd.f32 0.0, %v1797
      %v1799 = vpop.f32.mrb[0].mxu0
      %v1800 = vpop.f32.mrb[0].mxu0
      %v1801 = vadd.f32 0.0, %v1800
      %v1802 = vpop.f32.mrb[0].mxu0
      %1803 = vmatprep.mubr.bf16.mxu0 0
      %1804 = vmatmul.mubr.bf16.gmra.mrb[0].mxu0 %v1666
      %v1805 = vpop.f32.mrb[0].mxu0
      %v1806 = vadd.f32 0.0, %v1805
      %v1807 = vpop.f32.mrb[0].mxu0
      %v1808 = vpop.f32.mrb[0].mxu0
      %v1809 = vadd.f32 0.0, %v1808
      %v1810 = vpop.f32.mrb[0].mxu0
      %1811 = vmatprep.mubr.bf16.mxu0 0
      %1812 = vmatmul.mubr.bf16.gmra.mrb[0].mxu0 %v1669
      %v1813 = vpop.f32.mrb[0].mxu0
      %v1814 = vadd.f32 0.0, %v1813
      %v1815 = vpop.f32.mrb[0].mxu0
      %v1816 = vpop.f32.mrb[0].mxu0
      %v1817 = vadd.f32 0.0, %v1816
      %v1818 = vpop.f32.mrb[0].mxu0
      %1819 = vmatprep.mubr.bf16.mxu0 0
      %1820 = vmatmul.mubr.bf16.gmra.mrb[0].mxu0 %v1672
      %v1821 = vpop.f32.mrb[0].mxu0
      %v1822 = vadd.f32 0.0, %v1821
      %v1823 = vpop.f32.mrb[0].mxu0
      %v1824 = vpop.f32.mrb[0].mxu0
      %v1825 = vadd.f32 0.0, %v1824
      %v1826 = vpop.f32.mrb[0].mxu0
      %1827 = vmatprep.mubr.bf16.mxu0 0
      %1828 = vmatmul.mubr.bf16.gmra.mrb[0].mxu0 %v1675
      %v1829 = vpop.f32.mrb[0].mxu0
      %v1830 = vadd.f32 0.0, %v1829
      %v1831 = vpop.f32.mrb[0].mxu0
      %v1832 = vpop.f32.mrb[0].mxu0
      %v1833 = vadd.f32 0.0, %v1832
      %v1834 = vpop.f32.mrb[0].mxu0
      %1835 = vmatprep.mubr.bf16.mxu0 0
      %1836 = vmatmul.mubr.bf16.gmra.mrb[0].mxu0 %v1678
      %v1837 = vpop.f32.mrb[0].mxu0
      %v1838 = vadd.f32 0.0, %v1837
      %v1839 = vpop.f32.mrb[0].mxu0
      %v1840 = vpop.f32.mrb[0].mxu0
      %v1841 = vadd.f32 0.0, %v1840
      %v1842 = vpop.f32.mrb[0].mxu0
      %1843 = vdwg.mxu0
      %v1844 = vsel %vm586, %v1718, 0.0
      %v1845 = vsel %vm587, %v1721, 0.0
      %v1846 = vsel %vm588, %v1726, 0.0
      %v1847 = vsel %vm589, %v1729, 0.0
      %v1848 = vsel %vm590, %v1734, 0.0
      %v1849 = vsel %vm591, %v1737, 0.0
      %v1850 = vsel %vm592, %v1742, 0.0
      %v1851 = vsel %vm593, %v1745, 0.0
      %v1852 = vsel %vm594, %v1750, 0.0
      %v1853 = vsel %vm595, %v1753, 0.0
      %v1854 = vsel %vm596, %v1758, 0.0
      %v1855 = vsel %vm597, %v1761, 0.0
      %v1856 = vsel %vm598, %v1766, 0.0
      %v1857 = vsel %vm599, %v1769, 0.0
      %v1858 = vsel %vm600, %v1774, 0.0
      %v1859 = vsel %vm601, %v1777, 0.0
      %v1860 = vsel %vm602, %v1782, 0.0
      %v1861 = vsel %vm603, %v1785, 0.0
      %v1862 = vsel %vm604, %v1790, 0.0
      %v1863 = vsel %vm605, %v1793, 0.0
      %v1864 = vsel %vm606, %v1798, 0.0
      %v1865 = vsel %vm607, %v1801, 0.0
      %v1866 = vsel %vm608, %v1806, 0.0
      %v1867 = vsel %vm609, %v1809, 0.0
      %v1868 = vsel %vm610, %v1814, 0.0
      %v1869 = vsel %vm611, %v1817, 0.0
      %v1870 = vsel %vm612, %v1822, 0.0
      %v1871 = vsel %vm613, %v1825, 0.0
      %v1872 = vsel %vm614, %v1830, 0.0
      %v1873 = vsel %vm615, %v1833, 0.0
      %v1874 = vsel %vm616, %v1838, 0.0
      %v1875 = vsel %vm617, %v1841, 0.0
      %v1876 = vadd.f32 %v1531, %v1844
      %v1877 = vadd.f32 %v1532, %v1845
      %v1878 = vadd.f32 %v1533, %v1846
      %v1879 = vadd.f32 %v1534, %v1847
      %v1880 = vadd.f32 %v1535, %v1848
      %v1881 = vadd.f32 %v1536, %v1849
      %v1882 = vadd.f32 %v1537, %v1850
      %v1883 = vadd.f32 %v1538, %v1851
      %v1884 = vadd.f32 %v1539, %v1852
      %v1885 = vadd.f32 %v1540, %v1853
      %v1886 = vadd.f32 %v1541, %v1854
      %v1887 = vadd.f32 %v1542, %v1855
      %v1888 = vadd.f32 %v1543, %v1856
      %v1889 = vadd.f32 %v1544, %v1857
      %v1890 = vadd.f32 %v1545, %v1858
      %v1891 = vadd.f32 %v1546, %v1859
      %v1892 = vadd.f32 %v1547, %v1860
      %v1893 = vadd.f32 %v1548, %v1861
      %v1894 = vadd.f32 %v1549, %v1862
      %v1895 = vadd.f32 %v1550, %v1863
      %v1896 = vadd.f32 %v1551, %v1864
      %v1897 = vadd.f32 %v1552, %v1865
      %v1898 = vadd.f32 %v1553, %v1866
      %v1899 = vadd.f32 %v1554, %v1867
      %v1900 = vadd.f32 %v1555, %v1868
      %v1901 = vadd.f32 %v1556, %v1869
      %v1902 = vadd.f32 %v1557, %v1870
      %v1903 = vadd.f32 %v1558, %v1871
      %v1904 = vadd.f32 %v1559, %v1872
      %v1905 = vadd.f32 %v1560, %v1873
      %v1906 = vadd.f32 %v1561, %v1874
      %v1907 = vadd.f32 %v1562, %v1875
      %v1908 = vld [vmem:[#allocation2 + $0x10] sm:$0xf0]
      %v1909 = vld [vmem:[#allocation2 + $0x90] sm:$0xf]
      %s1910 = scalar_lea.vmem %s3, 8
      %v1911 = vld [vmem:[%s1910] sm:$0x3]
      %v1914 = vrot.slane %v1908, 4
      %v1915 = vrot.slane %v1564, 4
      %v1916 = vsel %vm455, %v1914, %v1915
      %v1917 = vrot.slane %v1565, 4
      %v1918 = vsel %vm455, %v1915, %v1917
      %v1919 = vrot.slane %v1566, 4
      %v1920 = vsel %vm455, %v1917, %v1919
      %v1921 = vrot.slane %v1567, 4
      %v1922 = vsel %vm455, %v1919, %v1921
      %v1923 = vrot.slane %v1568, 4
      %v1924 = vsel %vm455, %v1921, %v1923
      %v1925 = vrot.slane %v1569, 4
      %v1926 = vsel %vm455, %v1923, %v1925
      %v1927 = vrot.slane %v1570, 4
      %v1928 = vsel %vm455, %v1925, %v1927
      %v1929 = vrot.slane %v1571, 4
      %v1930 = vsel %vm455, %v1927, %v1929
      %v1931 = vrot.slane %v1572, 4
      %v1932 = vsel %vm455, %v1929, %v1931
      %v1933 = vrot.slane %v1573, 4
      %v1934 = vsel %vm455, %v1931, %v1933
      %v1935 = vrot.slane %v1574, 4
      %v1936 = vsel %vm455, %v1933, %v1935
      %v1937 = vrot.slane %v1575, 4
      %v1938 = vsel %vm455, %v1935, %v1937
      %v1939 = vrot.slane %v1576, 4
      %v1940 = vsel %vm455, %v1937, %v1939
      %v1941 = vrot.slane %v1577, 4
      %v1942 = vsel %vm455, %v1939, %v1941
      %v1943 = vrot.slane %v1578, 4
      %v1944 = vsel %vm455, %v1941, %v1943
      %v1945 = vrot.slane %v1909, 4
      %v1946 = vsel %vm455, %v1943, %v1945
      %v1948 = vsel %vm414, %v1916, 0
      %v1951 = vsel %vm414, %v1918, 0
      %v1954 = vsel %vm414, %v1920, 0
      %v1957 = vsel %vm414, %v1922, 0
      %v1960 = vsel %vm414, %v1924, 0
      %v1963 = vsel %vm414, %v1926, 0
      %v1966 = vsel %vm414, %v1928, 0
      %v1969 = vsel %vm414, %v1930, 0
      %v1972 = vsel %vm414, %v1932, 0
      %v1975 = vsel %vm414, %v1934, 0
      %v1978 = vsel %vm414, %v1936, 0
      %v1981 = vsel %vm414, %v1938, 0
      %v1984 = vsel %vm414, %v1940, 0
      %v1987 = vsel %vm414, %v1942, 0
      %v1990 = vsel %vm414, %v1944, 0
      %v1993 = vsel %vm414, %v1946, 0
      %v1996 = vsel %vm767, %v1911, 0
      %1998 = vmatprep.subr.bf16.mxu0 0
      %1999 = vmatpush1.bf16.msra.mxu0 %v1996
      %2000 = vmatprep.subr.bf16.mxu0 0
      %2001 = vmatpush1.bf16.msra.mxu0 0
      %2002 = vmatprep.subr.bf16.mxu0 0
      %2003 = vmatpush1.bf16.msra.mxu0 0
      %2004 = vmatprep.subr.bf16.mxu0 0
      %2005 = vmatpush1.bf16.msra.mxu0 0
      %2006 = vmatprep.subr.bf16.mxu0 0
      %2007 = vmatpush1.bf16.msra.mxu0 0
      %2008 = vmatprep.subr.bf16.mxu0 0
      %2009 = vmatpush1.bf16.msra.mxu0 0
      %2010 = vmatprep.subr.bf16.mxu0 0
      %2011 = vmatpush1.bf16.msra.mxu0 0
      %2012 = vmatprep.subr.bf16.mxu0 0
      %2013 = vmatpush1.bf16.msra.mxu0 0
      %2014 = vmatprep.subr.bf16.mxu0 0
      %2015 = vmatpush1.bf16.msra.mxu0 0
      %2016 = vmatprep.subr.bf16.mxu0 0
      %2017 = vmatpush1.bf16.msra.mxu0 0
      %2018 = vmatprep.subr.bf16.mxu0 0
      %2019 = vmatpush1.bf16.msra.mxu0 0
      %2020 = vmatprep.subr.bf16.mxu0 0
      %2021 = vmatpush1.bf16.msra.mxu0 0
      %2022 = vmatprep.subr.bf16.mxu0 0
      %2023 = vmatpush1.bf16.msra.mxu0 0
      %2024 = vmatprep.subr.bf16.mxu0 0
      %2025 = vmatpush1.bf16.msra.mxu0 0
      %2026 = vmatprep.subr.bf16.mxu0 0
      %2027 = vmatpush1.bf16.msra.mxu0 0
      %2028 = vmatprep.subr.bf16.mxu0 0
      %2029 = vmatpush1.bf16.msra.mxu0 0
      %2030 = vmatprep.mubr.bf16.mxu0 0
      %2031 = vmatmul.mubr.bf16.gmra.mrb[0].mxu0 %v1948
      %v2032 = vpop.f32.mrb[0].mxu0
      %v2033 = vadd.f32 0.0, %v2032
      %v2034 = vpop.f32.mrb[0].mxu0
      %v2035 = vpop.f32.mrb[0].mxu0
      %v2036 = vadd.f32 0.0, %v2035
      %v2037 = vpop.f32.mrb[0].mxu0
      %2038 = vmatprep.mubr.bf16.mxu0 0
      %2039 = vmatmul.mubr.bf16.gmra.mrb[0].mxu0 %v1951
      %v2040 = vpop.f32.mrb[0].mxu0
      %v2041 = vadd.f32 0.0, %v2040
      %v2042 = vpop.f32.mrb[0].mxu0
      %v2043 = vpop.f32.mrb[0].mxu0
      %v2044 = vadd.f32 0.0, %v2043
      %v2045 = vpop.f32.mrb[0].mxu0
      %2046 = vmatprep.mubr.bf16.mxu0 0
      %2047 = vmatmul.mubr.bf16.gmra.mrb[0].mxu0 %v1954
      %v2048 = vpop.f32.mrb[0].mxu0
      %v2049 = vadd.f32 0.0, %v2048
      %v2050 = vpop.f32.mrb[0].mxu0
      %v2051 = vpop.f32.mrb[0].mxu0
      %v2052 = vadd.f32 0.0, %v2051
      %v2053 = vpop.f32.mrb[0].mxu0
      %2054 = vmatprep.mubr.bf16.mxu0 0
      %2055 = vmatmul.mubr.bf16.gmra.mrb[0].mxu0 %v1957
      %v2056 = vpop.f32.mrb[0].mxu0
      %v2057 = vadd.f32 0.0, %v2056
      %v2058 = vpop.f32.mrb[0].mxu0
      %v2059 = vpop.f32.mrb[0].mxu0
      %v2060 = vadd.f32 0.0, %v2059
      %v2061 = vpop.f32.mrb[0].mxu0
      %2062 = vmatprep.mubr.bf16.mxu0 0
      %2063 = vmatmul.mubr.bf16.gmra.mrb[0].mxu0 %v1960
      %v2064 = vpop.f32.mrb[0].mxu0
      %v2065 = vadd.f32 0.0, %v2064
      %v2066 = vpop.f32.mrb[0].mxu0
      %v2067 = vpop.f32.mrb[0].mxu0
      %v2068 = vadd.f32 0.0, %v2067
      %v2069 = vpop.f32.mrb[0].mxu0
      %2070 = vmatprep.mubr.bf16.mxu0 0
      %2071 = vmatmul.mubr.bf16.gmra.mrb[0].mxu0 %v1963
      %v2072 = vpop.f32.mrb[0].mxu0
      %v2073 = vadd.f32 0.0, %v2072
      %v2074 = vpop.f32.mrb[0].mxu0
      %v2075 = vpop.f32.mrb[0].mxu0
      %v2076 = vadd.f32 0.0, %v2075
      %v2077 = vpop.f32.mrb[0].mxu0
      %2078 = vmatprep.mubr.bf16.mxu0 0
      %2079 = vmatmul.mubr.bf16.gmra.mrb[0].mxu0 %v1966
      %v2080 = vpop.f32.mrb[0].mxu0
      %v2081 = vadd.f32 0.0, %v2080
      %v2082 = vpop.f32.mrb[0].mxu0
      %v2083 = vpop.f32.mrb[0].mxu0
      %v2084 = vadd.f32 0.0, %v2083
      %v2085 = vpop.f32.mrb[0].mxu0
      %2086 = vmatprep.mubr.bf16.mxu0 0
      %2087 = vmatmul.mubr.bf16.gmra.mrb[0].mxu0 %v1969
      %v2088 = vpop.f32.mrb[0].mxu0
      %v2089 = vadd.f32 0.0, %v2088
      %v2090 = vpop.f32.mrb[0].mxu0
      %v2091 = vpop.f32.mrb[0].mxu0
      %v2092 = vadd.f32 0.0, %v2091
      %v2093 = vpop.f32.mrb[0].mxu0
      %2094 = vmatprep.mubr.bf16.mxu0 0
      %2095 = vmatmul.mubr.bf16.gmra.mrb[0].mxu0 %v1972
      %v2096 = vpop.f32.mrb[0].mxu0
      %v2097 = vadd.f32 0.0, %v2096
      %v2098 = vpop.f32.mrb[0].mxu0
      %v2099 = vpop.f32.mrb[0].mxu0
      %v2100 = vadd.f32 0.0, %v2099
      %v2101 = vpop.f32.mrb[0].mxu0
      %2102 = vmatprep.mubr.bf16.mxu0 0
      %2103 = vmatmul.mubr.bf16.gmra.mrb[0].mxu0 %v1975
      %v2104 = vpop.f32.mrb[0].mxu0
      %v2105 = vadd.f32 0.0, %v2104
      %v2106 = vpop.f32.mrb[0].mxu0
      %v2107 = vpop.f32.mrb[0].mxu0
      %v2108 = vadd.f32 0.0, %v2107
      %v2109 = vpop.f32.mrb[0].mxu0
      %2110 = vmatprep.mubr.bf16.mxu0 0
      %2111 = vmatmul.mubr.bf16.gmra.mrb[0].mxu0 %v1978
      %v2112 = vpop.f32.mrb[0].mxu0
      %v2113 = vadd.f32 0.0, %v2112
      %v2114 = vpop.f32.mrb[0].mxu0
      %v2115 = vpop.f32.mrb[0].mxu0
      %v2116 = vadd.f32 0.0, %v2115
      %v2117 = vpop.f32.mrb[0].mxu0
      %2118 = vmatprep.mubr.bf16.mxu0 0
      %2119 = vmatmul.mubr.bf16.gmra.mrb[0].mxu0 %v1981
      %v2120 = vpop.f32.mrb[0].mxu0
      %v2121 = vadd.f32 0.0, %v2120
      %v2122 = vpop.f32.mrb[0].mxu0
      %v2123 = vpop.f32.mrb[0].mxu0
      %v2124 = vadd.f32 0.0, %v2123
      %v2125 = vpop.f32.mrb[0].mxu0
      %2126 = vmatprep.mubr.bf16.mxu0 0
      %2127 = vmatmul.mubr.bf16.gmra.mrb[0].mxu0 %v1984
      %v2128 = vpop.f32.mrb[0].mxu0
      %v2129 = vadd.f32 0.0, %v2128
      %v2130 = vpop.f32.mrb[0].mxu0
      %v2131 = vpop.f32.mrb[0].mxu0
      %v2132 = vadd.f32 0.0, %v2131
      %v2133 = vpop.f32.mrb[0].mxu0
      %2134 = vmatprep.mubr.bf16.mxu0 0
      %2135 = vmatmul.mubr.bf16.gmra.mrb[0].mxu0 %v1987
      %v2136 = vpop.f32.mrb[0].mxu0
      %v2137 = vadd.f32 0.0, %v2136
      %v2138 = vpop.f32.mrb[0].mxu0
      %v2139 = vpop.f32.mrb[0].mxu0
      %v2140 = vadd.f32 0.0, %v2139
      %v2141 = vpop.f32.mrb[0].mxu0
      %2142 = vmatprep.mubr.bf16.mxu0 0
      %2143 = vmatmul.mubr.bf16.gmra.mrb[0].mxu0 %v1990
      %v2144 = vpop.f32.mrb[0].mxu0
      %v2145 = vadd.f32 0.0, %v2144
      %v2146 = vpop.f32.mrb[0].mxu0
      %v2147 = vpop.f32.mrb[0].mxu0
      %v2148 = vadd.f32 0.0, %v2147
      %v2149 = vpop.f32.mrb[0].mxu0
      %2150 = vmatprep.mubr.bf16.mxu0 0
      %2151 = vmatmul.mubr.bf16.gmra.mrb[0].mxu0 %v1993
      %v2152 = vpop.f32.mrb[0].mxu0
      %v2153 = vadd.f32 0.0, %v2152
      %v2154 = vpop.f32.mrb[0].mxu0
      %v2155 = vpop.f32.mrb[0].mxu0
      %v2156 = vadd.f32 0.0, %v2155
      %v2157 = vpop.f32.mrb[0].mxu0
      %2158 = vdwg.mxu0
      %v2159 = vadd.f32 %v1876, %v2033
      %v2160 = vadd.f32 %v1877, %v2036
      %v2161 = vadd.f32 %v1878, %v2041
      %v2162 = vadd.f32 %v1879, %v2044
      %v2163 = vadd.f32 %v1880, %v2049
      %v2164 = vadd.f32 %v1881, %v2052
      %v2165 = vadd.f32 %v1882, %v2057
      %v2166 = vadd.f32 %v1883, %v2060
      %v2167 = vadd.f32 %v1884, %v2065
      %v2168 = vadd.f32 %v1885, %v2068
      %v2169 = vadd.f32 %v1886, %v2073
      %v2170 = vadd.f32 %v1887, %v2076
      %v2171 = vadd.f32 %v1888, %v2081
      %v2172 = vadd.f32 %v1889, %v2084
      %v2173 = vadd.f32 %v1890, %v2089
      %v2174 = vadd.f32 %v1891, %v2092
      %v2175 = vadd.f32 %v1892, %v2097
      %v2176 = vadd.f32 %v1893, %v2100
      %v2177 = vadd.f32 %v1894, %v2105
      %v2178 = vadd.f32 %v1895, %v2108
      %v2179 = vadd.f32 %v1896, %v2113
      %v2180 = vadd.f32 %v1897, %v2116
      %v2181 = vadd.f32 %v1898, %v2121
      %v2182 = vadd.f32 %v1899, %v2124
      %v2183 = vadd.f32 %v1900, %v2129
      %v2184 = vadd.f32 %v1901, %v2132
      %v2185 = vadd.f32 %v1902, %v2137
      %v2186 = vadd.f32 %v1903, %v2140
      %v2187 = vadd.f32 %v1904, %v2145
      %v2188 = vadd.f32 %v1905, %v2148
      %v2189 = vadd.f32 %v1906, %v2153
      %v2190 = vadd.f32 %v1907, %v2156
      %v2191 = vld [vmem:[#allocation2 + $0x10] sm:$0xe0]
      %v2192 = vld [vmem:[#allocation2 + $0x90] sm:$0x1f]
      %s2193 = scalar_lea.vmem %s3, 10
      %v2194 = vld [vmem:[%s2193] sm:$0x3]
      %v2197 = vrot.slane %v2191, 5
      %v2198 = vrot.slane %v1564, 5
      %v2199 = vsel %vm1253, %v2197, %v2198
      %v2200 = vrot.slane %v1565, 5
      %v2201 = vsel %vm1253, %v2198, %v2200
      %v2202 = vrot.slane %v1566, 5
      %v2203 = vsel %vm1253, %v2200, %v2202
      %v2204 = vrot.slane %v1567, 5
      %v2205 = vsel %vm1253, %v2202, %v2204
      %v2206 = vrot.slane %v1568, 5
      %v2207 = vsel %vm1253, %v2204, %v2206
      %v2208 = vrot.slane %v1569, 5
      %v2209 = vsel %vm1253, %v2206, %v2208
      %v2210 = vrot.slane %v1570, 5
      %v2211 = vsel %vm1253, %v2208, %v2210
      %v2212 = vrot.slane %v1571, 5
      %v2213 = vsel %vm1253, %v2210, %v2212
      %v2214 = vrot.slane %v1572, 5
      %v2215 = vsel %vm1253, %v2212, %v2214
      %v2216 = vrot.slane %v1573, 5
      %v2217 = vsel %vm1253, %v2214, %v2216
      %v2218 = vrot.slane %v1574, 5
      %v2219 = vsel %vm1253, %v2216, %v2218
      %v2220 = vrot.slane %v1575, 5
      %v2221 = vsel %vm1253, %v2218, %v2220
      %v2222 = vrot.slane %v1576, 5
      %v2223 = vsel %vm1253, %v2220, %v2222
      %v2224 = vrot.slane %v1577, 5
      %v2225 = vsel %vm1253, %v2222, %v2224
      %v2226 = vrot.slane %v1578, 5
      %v2227 = vsel %vm1253, %v2224, %v2226
      %v2228 = vrot.slane %v2192, 5
      %v2229 = vsel %vm1253, %v2226, %v2228
      %v2231 = vsel %vm414, %v2199, 0
      %v2234 = vsel %vm414, %v2201, 0
      %v2237 = vsel %vm414, %v2203, 0
      %v2240 = vsel %vm414, %v2205, 0
      %v2243 = vsel %vm414, %v2207, 0
      %v2246 = vsel %vm414, %v2209, 0
      %v2249 = vsel %vm414, %v2211, 0
      %v2252 = vsel %vm414, %v2213, 0
      %v2255 = vsel %vm414, %v2215, 0
      %v2258 = vsel %vm414, %v2217, 0
      %v2261 = vsel %vm414, %v2219, 0
      %v2264 = vsel %vm414, %v2221, 0
      %v2267 = vsel %vm414, %v2223, 0
      %v2270 = vsel %vm414, %v2225, 0
      %v2273 = vsel %vm414, %v2227, 0
      %v2276 = vsel %vm414, %v2229, 0
      %v2279 = vsel %vm767, %v2194, 0
      %2281 = vmatprep.subr.bf16.mxu0 0
      %2282 = vmatpush1.bf16.msra.mxu0 %v2279
      %2283 = vmatprep.subr.bf16.mxu0 0
      %2284 = vmatpush1.bf16.msra.mxu0 0
      %2285 = vmatprep.subr.bf16.mxu0 0
      %2286 = vmatpush1.bf16.msra.mxu0 0
      %2287 = vmatprep.subr.bf16.mxu0 0
      %2288 = vmatpush1.bf16.msra.mxu0 0
      %2289 = vmatprep.subr.bf16.mxu0 0
      %2290 = vmatpush1.bf16.msra.mxu0 0
      %2291 = vmatprep.subr.bf16.mxu0 0
      %2292 = vmatpush1.bf16.msra.mxu0 0
      %2293 = vmatprep.subr.bf16.mxu0 0
      %2294 = vmatpush1.bf16.msra.mxu0 0
      %2295 = vmatprep.subr.bf16.mxu0 0
      %2296 = vmatpush1.bf16.msra.mxu0 0
      %2297 = vmatprep.subr.bf16.mxu0 0
      %2298 = vmatpush1.bf16.msra.mxu0 0
      %2299 = vmatprep.subr.bf16.mxu0 0
      %2300 = vmatpush1.bf16.msra.mxu0 0
      %2301 = vmatprep.subr.bf16.mxu0 0
      %2302 = vmatpush1.bf16.msra.mxu0 0
      %2303 = vmatprep.subr.bf16.mxu0 0
      %2304 = vmatpush1.bf16.msra.mxu0 0
      %2305 = vmatprep.subr.bf16.mxu0 0
      %2306 = vmatpush1.bf16.msra.mxu0 0
      %2307 = vmatprep.subr.bf16.mxu0 0
      %2308 = vmatpush1.bf16.msra.mxu0 0
      %2309 = vmatprep.subr.bf16.mxu0 0
      %2310 = vmatpush1.bf16.msra.mxu0 0
      %2311 = vmatprep.subr.bf16.mxu0 0
      %2312 = vmatpush1.bf16.msra.mxu0 0
      %2313 = vmatprep.mubr.bf16.mxu0 0
      %2314 = vmatmul.mubr.bf16.gmra.mrb[0].mxu0 %v2231
      %v2315 = vpop.f32.mrb[0].mxu0
      %v2316 = vadd.f32 0.0, %v2315
      %v2317 = vpop.f32.mrb[0].mxu0
      %v2318 = vpop.f32.mrb[0].mxu0
      %v2319 = vadd.f32 0.0, %v2318
      %v2320 = vpop.f32.mrb[0].mxu0
      %2321 = vmatprep.mubr.bf16.mxu0 0
      %2322 = vmatmul.mubr.bf16.gmra.mrb[0].mxu0 %v2234
      %v2323 = vpop.f32.mrb[0].mxu0
      %v2324 = vadd.f32 0.0, %v2323
      %v2325 = vpop.f32.mrb[0].mxu0
      %v2326 = vpop.f32.mrb[0].mxu0
      %v2327 = vadd.f32 0.0, %v2326
      %v2328 = vpop.f32.mrb[0].mxu0
      %2329 = vmatprep.mubr.bf16.mxu0 0
      %2330 = vmatmul.mubr.bf16.gmra.mrb[0].mxu0 %v2237
      %v2331 = vpop.f32.mrb[0].mxu0
      %v2332 = vadd.f32 0.0, %v2331
      %v2333 = vpop.f32.mrb[0].mxu0
      %v2334 = vpop.f32.mrb[0].mxu0
      %v2335 = vadd.f32 0.0, %v2334
      %v2336 = vpop.f32.mrb[0].mxu0
      %2337 = vmatprep.mubr.bf16.mxu0 0
      %2338 = vmatmul.mubr.bf16.gmra.mrb[0].mxu0 %v2240
      %v2339 = vpop.f32.mrb[0].mxu0
      %v2340 = vadd.f32 0.0, %v2339
      %v2341 = vpop.f32.mrb[0].mxu0
      %v2342 = vpop.f32.mrb[0].mxu0
      %v2343 = vadd.f32 0.0, %v2342
      %v2344 = vpop.f32.mrb[0].mxu0
      %2345 = vmatprep.mubr.bf16.mxu0 0
      %2346 = vmatmul.mubr.bf16.gmra.mrb[0].mxu0 %v2243
      %v2347 = vpop.f32.mrb[0].mxu0
      %v2348 = vadd.f32 0.0, %v2347
      %v2349 = vpop.f32.mrb[0].mxu0
      %v2350 = vpop.f32.mrb[0].mxu0
      %v2351 = vadd.f32 0.0, %v2350
      %v2352 = vpop.f32.mrb[0].mxu0
      %2353 = vmatprep.mubr.bf16.mxu0 0
      %2354 = vmatmul.mubr.bf16.gmra.mrb[0].mxu0 %v2246
      %v2355 = vpop.f32.mrb[0].mxu0
      %v2356 = vadd.f32 0.0, %v2355
      %v2357 = vpop.f32.mrb[0].mxu0
      %v2358 = vpop.f32.mrb[0].mxu0
      %v2359 = vadd.f32 0.0, %v2358
      %v2360 = vpop.f32.mrb[0].mxu0
      %2361 = vmatprep.mubr.bf16.mxu0 0
      %2362 = vmatmul.mubr.bf16.gmra.mrb[0].mxu0 %v2249
      %v2363 = vpop.f32.mrb[0].mxu0
      %v2364 = vadd.f32 0.0, %v2363
      %v2365 = vpop.f32.mrb[0].mxu0
      %v2366 = vpop.f32.mrb[0].mxu0
      %v2367 = vadd.f32 0.0, %v2366
      %v2368 = vpop.f32.mrb[0].mxu0
      %2369 = vmatprep.mubr.bf16.mxu0 0
      %2370 = vmatmul.mubr.bf16.gmra.mrb[0].mxu0 %v2252
      %v2371 = vpop.f32.mrb[0].mxu0
      %v2372 = vadd.f32 0.0, %v2371
      %v2373 = vpop.f32.mrb[0].mxu0
      %v2374 = vpop.f32.mrb[0].mxu0
      %v2375 = vadd.f32 0.0, %v2374
      %v2376 = vpop.f32.mrb[0].mxu0
      %2377 = vmatprep.mubr.bf16.mxu0 0
      %2378 = vmatmul.mubr.bf16.gmra.mrb[0].mxu0 %v2255
      %v2379 = vpop.f32.mrb[0].mxu0
      %v2380 = vadd.f32 0.0, %v2379
      %v2381 = vpop.f32.mrb[0].mxu0
      %v2382 = vpop.f32.mrb[0].mxu0
      %v2383 = vadd.f32 0.0, %v2382
      %v2384 = vpop.f32.mrb[0].mxu0
      %2385 = vmatprep.mubr.bf16.mxu0 0
      %2386 = vmatmul.mubr.bf16.gmra.mrb[0].mxu0 %v2258
      %v2387 = vpop.f32.mrb[0].mxu0
      %v2388 = vadd.f32 0.0, %v2387
      %v2389 = vpop.f32.mrb[0].mxu0
      %v2390 = vpop.f32.mrb[0].mxu0
      %v2391 = vadd.f32 0.0, %v2390
      %v2392 = vpop.f32.mrb[0].mxu0
      %2393 = vmatprep.mubr.bf16.mxu0 0
      %2394 = vmatmul.mubr.bf16.gmra.mrb[0].mxu0 %v2261
      %v2395 = vpop.f32.mrb[0].mxu0
      %v2396 = vadd.f32 0.0, %v2395
      %v2397 = vpop.f32.mrb[0].mxu0
      %v2398 = vpop.f32.mrb[0].mxu0
      %v2399 = vadd.f32 0.0, %v2398
      %v2400 = vpop.f32.mrb[0].mxu0
      %2401 = vmatprep.mubr.bf16.mxu0 0
      %2402 = vmatmul.mubr.bf16.gmra.mrb[0].mxu0 %v2264
      %v2403 = vpop.f32.mrb[0].mxu0
      %v2404 = vadd.f32 0.0, %v2403
      %v2405 = vpop.f32.mrb[0].mxu0
      %v2406 = vpop.f32.mrb[0].mxu0
      %v2407 = vadd.f32 0.0, %v2406
      %v2408 = vpop.f32.mrb[0].mxu0
      %2409 = vmatprep.mubr.bf16.mxu0 0
      %2410 = vmatmul.mubr.bf16.gmra.mrb[0].mxu0 %v2267
      %v2411 = vpop.f32.mrb[0].mxu0
      %v2412 = vadd.f32 0.0, %v2411
      %v2413 = vpop.f32.mrb[0].mxu0
      %v2414 = vpop.f32.mrb[0].mxu0
      %v2415 = vadd.f32 0.0, %v2414
      %v2416 = vpop.f32.mrb[0].mxu0
      %2417 = vmatprep.mubr.bf16.mxu0 0
      %2418 = vmatmul.mubr.bf16.gmra.mrb[0].mxu0 %v2270
      %v2419 = vpop.f32.mrb[0].mxu0
      %v2420 = vadd.f32 0.0, %v2419
      %v2421 = vpop.f32.mrb[0].mxu0
      %v2422 = vpop.f32.mrb[0].mxu0
      %v2423 = vadd.f32 0.0, %v2422
      %v2424 = vpop.f32.mrb[0].mxu0
      %2425 = vmatprep.mubr.bf16.mxu0 0
      %2426 = vmatmul.mubr.bf16.gmra.mrb[0].mxu0 %v2273
      %v2427 = vpop.f32.mrb[0].mxu0
      %v2428 = vadd.f32 0.0, %v2427
      %v2429 = vpop.f32.mrb[0].mxu0
      %v2430 = vpop.f32.mrb[0].mxu0
      %v2431 = vadd.f32 0.0, %v2430
      %v2432 = vpop.f32.mrb[0].mxu0
      %2433 = vmatprep.mubr.bf16.mxu0 0
      %2434 = vmatmul.mubr.bf16.gmra.mrb[0].mxu0 %v2276
      %v2435 = vpop.f32.mrb[0].mxu0
      %v2436 = vadd.f32 0.0, %v2435
      %v2437 = vpop.f32.mrb[0].mxu0
      %v2438 = vpop.f32.mrb[0].mxu0
      %v2439 = vadd.f32 0.0, %v2438
      %v2440 = vpop.f32.mrb[0].mxu0
      %2441 = vdwg.mxu0
      %v2442 = vsel %vm618, %v2316, 0.0
      %v2443 = vsel %vm619, %v2319, 0.0
      %v2444 = vsel %vm620, %v2324, 0.0
      %v2445 = vsel %vm621, %v2327, 0.0
      %v2446 = vsel %vm622, %v2332, 0.0
      %v2447 = vsel %vm623, %v2335, 0.0
      %v2448 = vsel %vm624, %v2340, 0.0
      %v2449 = vsel %vm625, %v2343, 0.0
      %v2450 = vsel %vm626, %v2348, 0.0
      %v2451 = vsel %vm627, %v2351, 0.0
      %v2452 = vsel %vm628, %v2356, 0.0
      %v2453 = vsel %vm629, %v2359, 0.0
      %v2454 = vsel %vm630, %v2364, 0.0
      %v2455 = vsel %vm631, %v2367, 0.0
      %v2456 = vsel %vm632, %v2372, 0.0
      %v2457 = vsel %vm633, %v2375, 0.0
      %v2458 = vsel %vm634, %v2380, 0.0
      %v2459 = vsel %vm635, %v2383, 0.0
      %v2460 = vsel %vm636, %v2388, 0.0
      %v2461 = vsel %vm637, %v2391, 0.0
      %v2462 = vsel %vm638, %v2396, 0.0
      %v2463 = vsel %vm639, %v2399, 0.0
      %v2464 = vsel %vm640, %v2404, 0.0
      %v2465 = vsel %vm641, %v2407, 0.0
      %v2466 = vsel %vm642, %v2412, 0.0
      %v2467 = vsel %vm643, %v2415, 0.0
      %v2468 = vsel %vm644, %v2420, 0.0
      %v2469 = vsel %vm645, %v2423, 0.0
      %v2470 = vsel %vm646, %v2428, 0.0
      %v2471 = vsel %vm647, %v2431, 0.0
      %v2472 = vsel %vm648, %v2436, 0.0
      %v2473 = vsel %vm649, %v2439, 0.0
      %v2474 = vadd.f32 %v2159, %v2442
      %v2475 = vadd.f32 %v2160, %v2443
      %v2476 = vadd.f32 %v2161, %v2444
      %v2477 = vadd.f32 %v2162, %v2445
      %v2478 = vadd.f32 %v2163, %v2446
      %v2479 = vadd.f32 %v2164, %v2447
      %v2480 = vadd.f32 %v2165, %v2448
      %v2481 = vadd.f32 %v2166, %v2449
      %v2482 = vadd.f32 %v2167, %v2450
      %v2483 = vadd.f32 %v2168, %v2451
      %v2484 = vadd.f32 %v2169, %v2452
      %v2485 = vadd.f32 %v2170, %v2453
      %v2486 = vadd.f32 %v2171, %v2454
      %v2487 = vadd.f32 %v2172, %v2455
      %v2488 = vadd.f32 %v2173, %v2456
      %v2489 = vadd.f32 %v2174, %v2457
      %v2490 = vadd.f32 %v2175, %v2458
      %v2491 = vadd.f32 %v2176, %v2459
      %v2492 = vadd.f32 %v2177, %v2460
      %v2493 = vadd.f32 %v2178, %v2461
      %v2494 = vadd.f32 %v2179, %v2462
      %v2495 = vadd.f32 %v2180, %v2463
      %v2496 = vadd.f32 %v2181, %v2464
      %v2497 = vadd.f32 %v2182, %v2465
      %v2498 = vadd.f32 %v2183, %v2466
      %v2499 = vadd.f32 %v2184, %v2467
      %v2500 = vadd.f32 %v2185, %v2468
      %v2501 = vadd.f32 %v2186, %v2469
      %v2502 = vadd.f32 %v2187, %v2470
      %v2503 = vadd.f32 %v2188, %v2471
      %v2504 = vadd.f32 %v2189, %v2472
      %v2505 = vadd.f32 %v2190, %v2473
      %v2506 = vld [vmem:[#allocation2 + $0x20] sm:$0xf8]
      %v2507 = vld [vmem:[#allocation2 + $0x28] sm:$0xff]
      %v2508 = vld [vmem:[#allocation2 + $0x30] sm:$0xff]
      %v2509 = vld [vmem:[#allocation2 + $0x38] sm:$0xff]
      %v2510 = vld [vmem:[#allocation2 + $0x40] sm:$0xff]
      %v2511 = vld [vmem:[#allocation2 + $0x48] sm:$0xff]
      %v2512 = vld [vmem:[#allocation2 + $0x50] sm:$0xff]
      %v2513 = vld [vmem:[#allocation2 + $0x58] sm:$0xff]
      %v2514 = vld [vmem:[#allocation2 + $0x60] sm:$0xff]
      %v2515 = vld [vmem:[#allocation2 + $0x68] sm:$0xff]
      %v2516 = vld [vmem:[#allocation2 + $0x70] sm:$0xff]
      %v2517 = vld [vmem:[#allocation2 + $0x78] sm:$0xff]
      %v2518 = vld [vmem:[#allocation2 + $0x80] sm:$0xff]
      %v2519 = vld [vmem:[#allocation2 + $0x88] sm:$0xff]
      %v2520 = vld [vmem:[#allocation2 + $0x90] sm:$0xff]
      %v2521 = vld [vmem:[#allocation2 + $0x98] sm:$0xff]
      %v2522 = vld [vmem:[#allocation2 + $0xa0] sm:$0x7]
      %s2523 = scalar_lea.vmem %s3, 12
      %v2524 = vld [vmem:[%s2523] sm:$0x3]
      %v2542 = vrot.slane %v2506, 3
      %v2543 = vrot.slane %v2507, 3
      %v2544 = vsel %vm685, %v2542, %v2543
      %v2545 = vrot.slane %v2508, 3
      %v2546 = vsel %vm685, %v2543, %v2545
      %v2547 = vrot.slane %v2509, 3
      %v2548 = vsel %vm685, %v2545, %v2547
      %v2549 = vrot.slane %v2510, 3
      %v2550 = vsel %vm685, %v2547, %v2549
      %v2551 = vrot.slane %v2511, 3
      %v2552 = vsel %vm685, %v2549, %v2551
      %v2553 = vrot.slane %v2512, 3
      %v2554 = vsel %vm685, %v2551, %v2553
      %v2555 = vrot.slane %v2513, 3
      %v2556 = vsel %vm685, %v2553, %v2555
      %v2557 = vrot.slane %v2514, 3
      %v2558 = vsel %vm685, %v2555, %v2557
      %v2559 = vrot.slane %v2515, 3
      %v2560 = vsel %vm685, %v2557, %v2559
      %v2561 = vrot.slane %v2516, 3
      %v2562 = vsel %vm685, %v2559, %v2561
      %v2563 = vrot.slane %v2517, 3
      %v2564 = vsel %vm685, %v2561, %v2563
      %v2565 = vrot.slane %v2518, 3
      %v2566 = vsel %vm685, %v2563, %v2565
      %v2567 = vrot.slane %v2519, 3
      %v2568 = vsel %vm685, %v2565, %v2567
      %v2569 = vrot.slane %v2520, 3
      %v2570 = vsel %vm685, %v2567, %v2569
      %v2571 = vrot.slane %v2521, 3
      %v2572 = vsel %vm685, %v2569, %v2571
      %v2573 = vrot.slane %v2522, 3
      %v2574 = vsel %vm685, %v2571, %v2573
      %v2576 = vsel %vm414, %v2544, 0
      %v2579 = vsel %vm414, %v2546, 0
      %v2582 = vsel %vm414, %v2548, 0
      %v2585 = vsel %vm414, %v2550, 0
      %v2588 = vsel %vm414, %v2552, 0
      %v2591 = vsel %vm414, %v2554, 0
      %v2594 = vsel %vm414, %v2556, 0
      %v2597 = vsel %vm414, %v2558, 0
      %v2600 = vsel %vm414, %v2560, 0
      %v2603 = vsel %vm414, %v2562, 0
      %v2606 = vsel %vm414, %v2564, 0
      %v2609 = vsel %vm414, %v2566, 0
      %v2612 = vsel %vm414, %v2568, 0
      %v2615 = vsel %vm414, %v2570, 0
      %v2618 = vsel %vm414, %v2572, 0
      %v2621 = vsel %vm414, %v2574, 0
      %v2624 = vsel %vm767, %v2524, 0
      %2626 = vmatprep.subr.bf16.mxu0 0
      %2627 = vmatpush1.bf16.msra.mxu0 %v2624
      %2628 = vmatprep.subr.bf16.mxu0 0
      %2629 = vmatpush1.bf16.msra.mxu0 0
      %2630 = vmatprep.subr.bf16.mxu0 0
      %2631 = vmatpush1.bf16.msra.mxu0 0
      %2632 = vmatprep.subr.bf16.mxu0 0
      %2633 = vmatpush1.bf16.msra.mxu0 0
      %2634 = vmatprep.subr.bf16.mxu0 0
      %2635 = vmatpush1.bf16.msra.mxu0 0
      %2636 = vmatprep.subr.bf16.mxu0 0
      %2637 = vmatpush1.bf16.msra.mxu0 0
      %2638 = vmatprep.subr.bf16.mxu0 0
      %2639 = vmatpush1.bf16.msra.mxu0 0
      %2640 = vmatprep.subr.bf16.mxu0 0
      %2641 = vmatpush1.bf16.msra.mxu0 0
      %2642 = vmatprep.subr.bf16.mxu0 0
      %2643 = vmatpush1.bf16.msra.mxu0 0
      %2644 = vmatprep.subr.bf16.mxu0 0
      %2645 = vmatpush1.bf16.msra.mxu0 0
      %2646 = vmatprep.subr.bf16.mxu0 0
      %2647 = vmatpush1.bf16.msra.mxu0 0
      %2648 = vmatprep.subr.bf16.mxu0 0
      %2649 = vmatpush1.bf16.msra.mxu0 0
      %2650 = vmatprep.subr.bf16.mxu0 0
      %2651 = vmatpush1.bf16.msra.mxu0 0
      %2652 = vmatprep.subr.bf16.mxu0 0
      %2653 = vmatpush1.bf16.msra.mxu0 0
      %2654 = vmatprep.subr.bf16.mxu0 0
      %2655 = vmatpush1.bf16.msra.mxu0 0
      %2656 = vmatprep.subr.bf16.mxu0 0
      %2657 = vmatpush1.bf16.msra.mxu0 0
      %2658 = vmatprep.mubr.bf16.mxu0 0
      %2659 = vmatmul.mubr.bf16.gmra.mrb[0].mxu0 %v2576
      %v2660 = vpop.f32.mrb[0].mxu0
      %v2661 = vadd.f32 0.0, %v2660
      %v2662 = vpop.f32.mrb[0].mxu0
      %v2663 = vpop.f32.mrb[0].mxu0
      %v2664 = vadd.f32 0.0, %v2663
      %v2665 = vpop.f32.mrb[0].mxu0
      %2666 = vmatprep.mubr.bf16.mxu0 0
      %2667 = vmatmul.mubr.bf16.gmra.mrb[0].mxu0 %v2579
      %v2668 = vpop.f32.mrb[0].mxu0
      %v2669 = vadd.f32 0.0, %v2668
      %v2670 = vpop.f32.mrb[0].mxu0
      %v2671 = vpop.f32.mrb[0].mxu0
      %v2672 = vadd.f32 0.0, %v2671
      %v2673 = vpop.f32.mrb[0].mxu0
      %2674 = vmatprep.mubr.bf16.mxu0 0
      %2675 = vmatmul.mubr.bf16.gmra.mrb[0].mxu0 %v2582
      %v2676 = vpop.f32.mrb[0].mxu0
      %v2677 = vadd.f32 0.0, %v2676
      %v2678 = vpop.f32.mrb[0].mxu0
      %v2679 = vpop.f32.mrb[0].mxu0
      %v2680 = vadd.f32 0.0, %v2679
      %v2681 = vpop.f32.mrb[0].mxu0
      %2682 = vmatprep.mubr.bf16.mxu0 0
      %2683 = vmatmul.mubr.bf16.gmra.mrb[0].mxu0 %v2585
      %v2684 = vpop.f32.mrb[0].mxu0
      %v2685 = vadd.f32 0.0, %v2684
      %v2686 = vpop.f32.mrb[0].mxu0
      %v2687 = vpop.f32.mrb[0].mxu0
      %v2688 = vadd.f32 0.0, %v2687
      %v2689 = vpop.f32.mrb[0].mxu0
      %2690 = vmatprep.mubr.bf16.mxu0 0
      %2691 = vmatmul.mubr.bf16.gmra.mrb[0].mxu0 %v2588
      %v2692 = vpop.f32.mrb[0].mxu0
      %v2693 = vadd.f32 0.0, %v2692
      %v2694 = vpop.f32.mrb[0].mxu0
      %v2695 = vpop.f32.mrb[0].mxu0
      %v2696 = vadd.f32 0.0, %v2695
      %v2697 = vpop.f32.mrb[0].mxu0
      %2698 = vmatprep.mubr.bf16.mxu0 0
      %2699 = vmatmul.mubr.bf16.gmra.mrb[0].mxu0 %v2591
      %v2700 = vpop.f32.mrb[0].mxu0
      %v2701 = vadd.f32 0.0, %v2700
      %v2702 = vpop.f32.mrb[0].mxu0
      %v2703 = vpop.f32.mrb[0].mxu0
      %v2704 = vadd.f32 0.0, %v2703
      %v2705 = vpop.f32.mrb[0].mxu0
      %2706 = vmatprep.mubr.bf16.mxu0 0
      %2707 = vmatmul.mubr.bf16.gmra.mrb[0].mxu0 %v2594
      %v2708 = vpop.f32.mrb[0].mxu0
      %v2709 = vadd.f32 0.0, %v2708
      %v2710 = vpop.f32.mrb[0].mxu0
      %v2711 = vpop.f32.mrb[0].mxu0
      %v2712 = vadd.f32 0.0, %v2711
      %v2713 = vpop.f32.mrb[0].mxu0
      %2714 = vmatprep.mubr.bf16.mxu0 0
      %2715 = vmatmul.mubr.bf16.gmra.mrb[0].mxu0 %v2597
      %v2716 = vpop.f32.mrb[0].mxu0
      %v2717 = vadd.f32 0.0, %v2716
      %v2718 = vpop.f32.mrb[0].mxu0
      %v2719 = vpop.f32.mrb[0].mxu0
      %v2720 = vadd.f32 0.0, %v2719
      %v2721 = vpop.f32.mrb[0].mxu0
      %2722 = vmatprep.mubr.bf16.mxu0 0
      %2723 = vmatmul.mubr.bf16.gmra.mrb[0].mxu0 %v2600
      %v2724 = vpop.f32.mrb[0].mxu0
      %v2725 = vadd.f32 0.0, %v2724
      %v2726 = vpop.f32.mrb[0].mxu0
      %v2727 = vpop.f32.mrb[0].mxu0
      %v2728 = vadd.f32 0.0, %v2727
      %v2729 = vpop.f32.mrb[0].mxu0
      %2730 = vmatprep.mubr.bf16.mxu0 0
      %2731 = vmatmul.mubr.bf16.gmra.mrb[0].mxu0 %v2603
      %v2732 = vpop.f32.mrb[0].mxu0
      %v2733 = vadd.f32 0.0, %v2732
      %v2734 = vpop.f32.mrb[0].mxu0
      %v2735 = vpop.f32.mrb[0].mxu0
      %v2736 = vadd.f32 0.0, %v2735
      %v2737 = vpop.f32.mrb[0].mxu0
      %2738 = vmatprep.mubr.bf16.mxu0 0
      %2739 = vmatmul.mubr.bf16.gmra.mrb[0].mxu0 %v2606
      %v2740 = vpop.f32.mrb[0].mxu0
      %v2741 = vadd.f32 0.0, %v2740
      %v2742 = vpop.f32.mrb[0].mxu0
      %v2743 = vpop.f32.mrb[0].mxu0
      %v2744 = vadd.f32 0.0, %v2743
      %v2745 = vpop.f32.mrb[0].mxu0
      %2746 = vmatprep.mubr.bf16.mxu0 0
      %2747 = vmatmul.mubr.bf16.gmra.mrb[0].mxu0 %v2609
      %v2748 = vpop.f32.mrb[0].mxu0
      %v2749 = vadd.f32 0.0, %v2748
      %v2750 = vpop.f32.mrb[0].mxu0
      %v2751 = vpop.f32.mrb[0].mxu0
      %v2752 = vadd.f32 0.0, %v2751
      %v2753 = vpop.f32.mrb[0].mxu0
      %2754 = vmatprep.mubr.bf16.mxu0 0
      %2755 = vmatmul.mubr.bf16.gmra.mrb[0].mxu0 %v2612
      %v2756 = vpop.f32.mrb[0].mxu0
      %v2757 = vadd.f32 0.0, %v2756
      %v2758 = vpop.f32.mrb[0].mxu0
      %v2759 = vpop.f32.mrb[0].mxu0
      %v2760 = vadd.f32 0.0, %v2759
      %v2761 = vpop.f32.mrb[0].mxu0
      %2762 = vmatprep.mubr.bf16.mxu0 0
      %2763 = vmatmul.mubr.bf16.gmra.mrb[0].mxu0 %v2615
      %v2764 = vpop.f32.mrb[0].mxu0
      %v2765 = vadd.f32 0.0, %v2764
      %v2766 = vpop.f32.mrb[0].mxu0
      %v2767 = vpop.f32.mrb[0].mxu0
      %v2768 = vadd.f32 0.0, %v2767
      %v2769 = vpop.f32.mrb[0].mxu0
      %2770 = vmatprep.mubr.bf16.mxu0 0
      %2771 = vmatmul.mubr.bf16.gmra.mrb[0].mxu0 %v2618
      %v2772 = vpop.f32.mrb[0].mxu0
      %v2773 = vadd.f32 0.0, %v2772
      %v2774 = vpop.f32.mrb[0].mxu0
      %v2775 = vpop.f32.mrb[0].mxu0
      %v2776 = vadd.f32 0.0, %v2775
      %v2777 = vpop.f32.mrb[0].mxu0
      %2778 = vmatprep.mubr.bf16.mxu0 0
      %2779 = vmatmul.mubr.bf16.gmra.mrb[0].mxu0 %v2621
      %v2780 = vpop.f32.mrb[0].mxu0
      %v2781 = vadd.f32 0.0, %v2780
      %v2782 = vpop.f32.mrb[0].mxu0
      %v2783 = vpop.f32.mrb[0].mxu0
      %v2784 = vadd.f32 0.0, %v2783
      %v2785 = vpop.f32.mrb[0].mxu0
      %2786 = vdwg.mxu0
      %v2787 = vsel %vm586, %v2661, 0.0
      %v2788 = vsel %vm587, %v2664, 0.0
      %v2789 = vsel %vm588, %v2669, 0.0
      %v2790 = vsel %vm589, %v2672, 0.0
      %v2791 = vsel %vm590, %v2677, 0.0
      %v2792 = vsel %vm591, %v2680, 0.0
      %v2793 = vsel %vm592, %v2685, 0.0
      %v2794 = vsel %vm593, %v2688, 0.0
      %v2795 = vsel %vm594, %v2693, 0.0
      %v2796 = vsel %vm595, %v2696, 0.0
      %v2797 = vsel %vm596, %v2701, 0.0
      %v2798 = vsel %vm597, %v2704, 0.0
      %v2799 = vsel %vm598, %v2709, 0.0
      %v2800 = vsel %vm599, %v2712, 0.0
      %v2801 = vsel %vm600, %v2717, 0.0
      %v2802 = vsel %vm601, %v2720, 0.0
      %v2803 = vsel %vm602, %v2725, 0.0
      %v2804 = vsel %vm603, %v2728, 0.0
      %v2805 = vsel %vm604, %v2733, 0.0
      %v2806 = vsel %vm605, %v2736, 0.0
      %v2807 = vsel %vm606, %v2741, 0.0
      %v2808 = vsel %vm607, %v2744, 0.0
      %v2809 = vsel %vm608, %v2749, 0.0
      %v2810 = vsel %vm609, %v2752, 0.0
      %v2811 = vsel %vm610, %v2757, 0.0
      %v2812 = vsel %vm611, %v2760, 0.0
      %v2813 = vsel %vm612, %v2765, 0.0
      %v2814 = vsel %vm613, %v2768, 0.0
      %v2815 = vsel %vm614, %v2773, 0.0
      %v2816 = vsel %vm615, %v2776, 0.0
      %v2817 = vsel %vm616, %v2781, 0.0
      %v2818 = vsel %vm617, %v2784, 0.0
      %v2819 = vadd.f32 %v2474, %v2787
      %v2820 = vadd.f32 %v2475, %v2788
      %v2821 = vadd.f32 %v2476, %v2789
      %v2822 = vadd.f32 %v2477, %v2790
      %v2823 = vadd.f32 %v2478, %v2791
      %v2824 = vadd.f32 %v2479, %v2792
      %v2825 = vadd.f32 %v2480, %v2793
      %v2826 = vadd.f32 %v2481, %v2794
      %v2827 = vadd.f32 %v2482, %v2795
      %v2828 = vadd.f32 %v2483, %v2796
      %v2829 = vadd.f32 %v2484, %v2797
      %v2830 = vadd.f32 %v2485, %v2798
      %v2831 = vadd.f32 %v2486, %v2799
      %v2832 = vadd.f32 %v2487, %v2800
      %v2833 = vadd.f32 %v2488, %v2801
      %v2834 = vadd.f32 %v2489, %v2802
      %v2835 = vadd.f32 %v2490, %v2803
      %v2836 = vadd.f32 %v2491, %v2804
      %v2837 = vadd.f32 %v2492, %v2805
      %v2838 = vadd.f32 %v2493, %v2806
      %v2839 = vadd.f32 %v2494, %v2807
      %v2840 = vadd.f32 %v2495, %v2808
      %v2841 = vadd.f32 %v2496, %v2809
      %v2842 = vadd.f32 %v2497, %v2810
      %v2843 = vadd.f32 %v2498, %v2811
      %v2844 = vadd.f32 %v2499, %v2812
      %v2845 = vadd.f32 %v2500, %v2813
      %v2846 = vadd.f32 %v2501, %v2814
      %v2847 = vadd.f32 %v2502, %v2815
      %v2848 = vadd.f32 %v2503, %v2816
      %v2849 = vadd.f32 %v2504, %v2817
      %v2850 = vadd.f32 %v2505, %v2818
      %v2851 = vld [vmem:[#allocation2 + $0x20] sm:$0xf0]
      %v2852 = vld [vmem:[#allocation2 + $0xa0] sm:$0xf]
      %s2853 = scalar_lea.vmem %s3, 14
      %v2854 = vld [vmem:[%s2853] sm:$0x3]
      %v2857 = vrot.slane %v2851, 4
      %v2858 = vrot.slane %v2507, 4
      %v2859 = vsel %vm455, %v2857, %v2858
      %v2860 = vrot.slane %v2508, 4
      %v2861 = vsel %vm455, %v2858, %v2860
      %v2862 = vrot.slane %v2509, 4
      %v2863 = vsel %vm455, %v2860, %v2862
      %v2864 = vrot.slane %v2510, 4
      %v2865 = vsel %vm455, %v2862, %v2864
      %v2866 = vrot.slane %v2511, 4
      %v2867 = vsel %vm455, %v2864, %v2866
      %v2868 = vrot.slane %v2512, 4
      %v2869 = vsel %vm455, %v2866, %v2868
      %v2870 = vrot.slane %v2513, 4
      %v2871 = vsel %vm455, %v2868, %v2870
      %v2872 = vrot.slane %v2514, 4
      %v2873 = vsel %vm455, %v2870, %v2872
      %v2874 = vrot.slane %v2515, 4
      %v2875 = vsel %vm455, %v2872, %v2874
      %v2876 = vrot.slane %v2516, 4
      %v2877 = vsel %vm455, %v2874, %v2876
      %v2878 = vrot.slane %v2517, 4
      %v2879 = vsel %vm455, %v2876, %v2878
      %v2880 = vrot.slane %v2518, 4
      %v2881 = vsel %vm455, %v2878, %v2880
      %v2882 = vrot.slane %v2519, 4
      %v2883 = vsel %vm455, %v2880, %v2882
      %v2884 = vrot.slane %v2520, 4
      %v2885 = vsel %vm455, %v2882, %v2884
      %v2886 = vrot.slane %v2521, 4
      %v2887 = vsel %vm455, %v2884, %v2886
      %v2888 = vrot.slane %v2852, 4
      %v2889 = vsel %vm455, %v2886, %v2888
      %v2891 = vsel %vm414, %v2859, 0
      %v2894 = vsel %vm414, %v2861, 0
      %v2897 = vsel %vm414, %v2863, 0
      %v2900 = vsel %vm414, %v2865, 0
      %v2903 = vsel %vm414, %v2867, 0
      %v2906 = vsel %vm414, %v2869, 0
      %v2909 = vsel %vm414, %v2871, 0
      %v2912 = vsel %vm414, %v2873, 0
      %v2915 = vsel %vm414, %v2875, 0
      %v2918 = vsel %vm414, %v2877, 0
      %v2921 = vsel %vm414, %v2879, 0
      %v2924 = vsel %vm414, %v2881, 0
      %v2927 = vsel %vm414, %v2883, 0
      %v2930 = vsel %vm414, %v2885, 0
      %v2933 = vsel %vm414, %v2887, 0
      %v2936 = vsel %vm414, %v2889, 0
      %v2939 = vsel %vm767, %v2854, 0
      %2941 = vmatprep.subr.bf16.mxu0 0
      %2942 = vmatpush1.bf16.msra.mxu0 %v2939
      %2943 = vmatprep.subr.bf16.mxu0 0
      %2944 = vmatpush1.bf16.msra.mxu0 0
      %2945 = vmatprep.subr.bf16.mxu0 0
      %2946 = vmatpush1.bf16.msra.mxu0 0
      %2947 = vmatprep.subr.bf16.mxu0 0
      %2948 = vmatpush1.bf16.msra.mxu0 0
      %2949 = vmatprep.subr.bf16.mxu0 0
      %2950 = vmatpush1.bf16.msra.mxu0 0
      %2951 = vmatprep.subr.bf16.mxu0 0
      %2952 = vmatpush1.bf16.msra.mxu0 0
      %2953 = vmatprep.subr.bf16.mxu0 0
      %2954 = vmatpush1.bf16.msra.mxu0 0
      %2955 = vmatprep.subr.bf16.mxu0 0
      %2956 = vmatpush1.bf16.msra.mxu0 0
      %2957 = vmatprep.subr.bf16.mxu0 0
      %2958 = vmatpush1.bf16.msra.mxu0 0
      %2959 = vmatprep.subr.bf16.mxu0 0
      %2960 = vmatpush1.bf16.msra.mxu0 0
      %2961 = vmatprep.subr.bf16.mxu0 0
      %2962 = vmatpush1.bf16.msra.mxu0 0
      %2963 = vmatprep.subr.bf16.mxu0 0
      %2964 = vmatpush1.bf16.msra.mxu0 0
      %2965 = vmatprep.subr.bf16.mxu0 0
      %2966 = vmatpush1.bf16.msra.mxu0 0
      %2967 = vmatprep.subr.bf16.mxu0 0
      %2968 = vmatpush1.bf16.msra.mxu0 0
      %2969 = vmatprep.subr.bf16.mxu0 0
      %2970 = vmatpush1.bf16.msra.mxu0 0
      %2971 = vmatprep.subr.bf16.mxu0 0
      %2972 = vmatpush1.bf16.msra.mxu0 0
      %2973 = vmatprep.mubr.bf16.mxu0 0
      %2974 = vmatmul.mubr.bf16.gmra.mrb[0].mxu0 %v2891
      %v2975 = vpop.f32.mrb[0].mxu0
      %v2976 = vadd.f32 0.0, %v2975
      %v2977 = vpop.f32.mrb[0].mxu0
      %v2978 = vpop.f32.mrb[0].mxu0
      %v2979 = vadd.f32 0.0, %v2978
      %v2980 = vpop.f32.mrb[0].mxu0
      %2981 = vmatprep.mubr.bf16.mxu0 0
      %2982 = vmatmul.mubr.bf16.gmra.mrb[0].mxu0 %v2894
      %v2983 = vpop.f32.mrb[0].mxu0
      %v2984 = vadd.f32 0.0, %v2983
      %v2985 = vpop.f32.mrb[0].mxu0
      %v2986 = vpop.f32.mrb[0].mxu0
      %v2987 = vadd.f32 0.0, %v2986
      %v2988 = vpop.f32.mrb[0].mxu0
      %2989 = vmatprep.mubr.bf16.mxu0 0
      %2990 = vmatmul.mubr.bf16.gmra.mrb[0].mxu0 %v2897
      %v2991 = vpop.f32.mrb[0].mxu0
      %v2992 = vadd.f32 0.0, %v2991
      %v2993 = vpop.f32.mrb[0].mxu0
      %v2994 = vpop.f32.mrb[0].mxu0
      %v2995 = vadd.f32 0.0, %v2994
      %v2996 = vpop.f32.mrb[0].mxu0
      %2997 = vmatprep.mubr.bf16.mxu0 0
      %2998 = vmatmul.mubr.bf16.gmra.mrb[0].mxu0 %v2900
      %v2999 = vpop.f32.mrb[0].mxu0
      %v3000 = vadd.f32 0.0, %v2999
      %v3001 = vpop.f32.mrb[0].mxu0
      %v3002 = vpop.f32.mrb[0].mxu0
      %v3003 = vadd.f32 0.0, %v3002
      %v3004 = vpop.f32.mrb[0].mxu0
      %3005 = vmatprep.mubr.bf16.mxu0 0
      %3006 = vmatmul.mubr.bf16.gmra.mrb[0].mxu0 %v2903
      %v3007 = vpop.f32.mrb[0].mxu0
      %v3008 = vadd.f32 0.0, %v3007
      %v3009 = vpop.f32.mrb[0].mxu0
      %v3010 = vpop.f32.mrb[0].mxu0
      %v3011 = vadd.f32 0.0, %v3010
      %v3012 = vpop.f32.mrb[0].mxu0
      %3013 = vmatprep.mubr.bf16.mxu0 0
      %3014 = vmatmul.mubr.bf16.gmra.mrb[0].mxu0 %v2906
      %v3015 = vpop.f32.mrb[0].mxu0
      %v3016 = vadd.f32 0.0, %v3015
      %v3017 = vpop.f32.mrb[0].mxu0
      %v3018 = vpop.f32.mrb[0].mxu0
      %v3019 = vadd.f32 0.0, %v3018
      %v3020 = vpop.f32.mrb[0].mxu0
      %3021 = vmatprep.mubr.bf16.mxu0 0
      %3022 = vmatmul.mubr.bf16.gmra.mrb[0].mxu0 %v2909
      %v3023 = vpop.f32.mrb[0].mxu0
      %v3024 = vadd.f32 0.0, %v3023
      %v3025 = vpop.f32.mrb[0].mxu0
      %v3026 = vpop.f32.mrb[0].mxu0
      %v3027 = vadd.f32 0.0, %v3026
      %v3028 = vpop.f32.mrb[0].mxu0
      %3029 = vmatprep.mubr.bf16.mxu0 0
      %3030 = vmatmul.mubr.bf16.gmra.mrb[0].mxu0 %v2912
      %v3031 = vpop.f32.mrb[0].mxu0
      %v3032 = vadd.f32 0.0, %v3031
      %v3033 = vpop.f32.mrb[0].mxu0
      %v3034 = vpop.f32.mrb[0].mxu0
      %v3035 = vadd.f32 0.0, %v3034
      %v3036 = vpop.f32.mrb[0].mxu0
      %3037 = vmatprep.mubr.bf16.mxu0 0
      %3038 = vmatmul.mubr.bf16.gmra.mrb[0].mxu0 %v2915
      %v3039 = vpop.f32.mrb[0].mxu0
      %v3040 = vadd.f32 0.0, %v3039
      %v3041 = vpop.f32.mrb[0].mxu0
      %v3042 = vpop.f32.mrb[0].mxu0
      %v3043 = vadd.f32 0.0, %v3042
      %v3044 = vpop.f32.mrb[0].mxu0
      %3045 = vmatprep.mubr.bf16.mxu0 0
      %3046 = vmatmul.mubr.bf16.gmra.mrb[0].mxu0 %v2918
      %v3047 = vpop.f32.mrb[0].mxu0
      %v3048 = vadd.f32 0.0, %v3047
      %v3049 = vpop.f32.mrb[0].mxu0
      %v3050 = vpop.f32.mrb[0].mxu0
      %v3051 = vadd.f32 0.0, %v3050
      %v3052 = vpop.f32.mrb[0].mxu0
      %3053 = vmatprep.mubr.bf16.mxu0 0
      %3054 = vmatmul.mubr.bf16.gmra.mrb[0].mxu0 %v2921
      %v3055 = vpop.f32.mrb[0].mxu0
      %v3056 = vadd.f32 0.0, %v3055
      %v3057 = vpop.f32.mrb[0].mxu0
      %v3058 = vpop.f32.mrb[0].mxu0
      %v3059 = vadd.f32 0.0, %v3058
      %v3060 = vpop.f32.mrb[0].mxu0
      %3061 = vmatprep.mubr.bf16.mxu0 0
      %3062 = vmatmul.mubr.bf16.gmra.mrb[0].mxu0 %v2924
      %v3063 = vpop.f32.mrb[0].mxu0
      %v3064 = vadd.f32 0.0, %v3063
      %v3065 = vpop.f32.mrb[0].mxu0
      %v3066 = vpop.f32.mrb[0].mxu0
      %v3067 = vadd.f32 0.0, %v3066
      %v3068 = vpop.f32.mrb[0].mxu0
      %3069 = vmatprep.mubr.bf16.mxu0 0
      %3070 = vmatmul.mubr.bf16.gmra.mrb[0].mxu0 %v2927
      %v3071 = vpop.f32.mrb[0].mxu0
      %v3072 = vadd.f32 0.0, %v3071
      %v3073 = vpop.f32.mrb[0].mxu0
      %v3074 = vpop.f32.mrb[0].mxu0
      %v3075 = vadd.f32 0.0, %v3074
      %v3076 = vpop.f32.mrb[0].mxu0
      %3077 = vmatprep.mubr.bf16.mxu0 0
      %3078 = vmatmul.mubr.bf16.gmra.mrb[0].mxu0 %v2930
      %v3079 = vpop.f32.mrb[0].mxu0
      %v3080 = vadd.f32 0.0, %v3079
      %v3081 = vpop.f32.mrb[0].mxu0
      %v3082 = vpop.f32.mrb[0].mxu0
      %v3083 = vadd.f32 0.0, %v3082
      %v3084 = vpop.f32.mrb[0].mxu0
      %3085 = vmatprep.mubr.bf16.mxu0 0
      %3086 = vmatmul.mubr.bf16.gmra.mrb[0].mxu0 %v2933
      %v3087 = vpop.f32.mrb[0].mxu0
      %v3088 = vadd.f32 0.0, %v3087
      %v3089 = vpop.f32.mrb[0].mxu0
      %v3090 = vpop.f32.mrb[0].mxu0
      %v3091 = vadd.f32 0.0, %v3090
      %v3092 = vpop.f32.mrb[0].mxu0
      %3093 = vmatprep.mubr.bf16.mxu0 0
      %3094 = vmatmul.mubr.bf16.gmra.mrb[0].mxu0 %v2936
      %v3095 = vpop.f32.mrb[0].mxu0
      %v3096 = vadd.f32 0.0, %v3095
      %v3097 = vpop.f32.mrb[0].mxu0
      %v3098 = vpop.f32.mrb[0].mxu0
      %v3099 = vadd.f32 0.0, %v3098
      %v3100 = vpop.f32.mrb[0].mxu0
      %3101 = vdwg.mxu0
      %v3102 = vadd.f32 %v2819, %v2976
      %v3103 = vadd.f32 %v2820, %v2979
      %v3104 = vadd.f32 %v2821, %v2984
      %v3105 = vadd.f32 %v2822, %v2987
      %v3106 = vadd.f32 %v2823, %v2992
      %v3107 = vadd.f32 %v2824, %v2995
      %v3108 = vadd.f32 %v2825, %v3000
      %v3109 = vadd.f32 %v2826, %v3003
      %v3110 = vadd.f32 %v2827, %v3008
      %v3111 = vadd.f32 %v2828, %v3011
      %v3112 = vadd.f32 %v2829, %v3016
      %v3113 = vadd.f32 %v2830, %v3019
      %v3114 = vadd.f32 %v2831, %v3024
      %v3115 = vadd.f32 %v2832, %v3027
      %v3116 = vadd.f32 %v2833, %v3032
      %v3117 = vadd.f32 %v2834, %v3035
      %v3118 = vadd.f32 %v2835, %v3040
      %v3119 = vadd.f32 %v2836, %v3043
      %v3120 = vadd.f32 %v2837, %v3048
      %v3121 = vadd.f32 %v2838, %v3051
      %v3122 = vadd.f32 %v2839, %v3056
      %v3123 = vadd.f32 %v2840, %v3059
      %v3124 = vadd.f32 %v2841, %v3064
      %v3125 = vadd.f32 %v2842, %v3067
      %v3126 = vadd.f32 %v2843, %v3072
      %v3127 = vadd.f32 %v2844, %v3075
      %v3128 = vadd.f32 %v2845, %v3080
      %v3129 = vadd.f32 %v2846, %v3083
      %v3130 = vadd.f32 %v2847, %v3088
      %v3131 = vadd.f32 %v2848, %v3091
      %v3132 = vadd.f32 %v2849, %v3096
      %v3133 = vadd.f32 %v2850, %v3099
      %v3134 = vld [vmem:[#allocation2 + $0x20] sm:$0xe0]
      %v3135 = vld [vmem:[#allocation2 + $0xa0] sm:$0x1f]
      %s3136 = scalar_lea.vmem %s3, 16
      %v3137 = vld [vmem:[%s3136] sm:$0x3]
      %v3140 = vrot.slane %v3134, 5
      %v3141 = vrot.slane %v2507, 5
      %v3142 = vsel %vm1253, %v3140, %v3141
      %v3143 = vrot.slane %v2508, 5
      %v3144 = vsel %vm1253, %v3141, %v3143
      %v3145 = vrot.slane %v2509, 5
      %v3146 = vsel %vm1253, %v3143, %v3145
      %v3147 = vrot.slane %v2510, 5
      %v3148 = vsel %vm1253, %v3145, %v3147
      %v3149 = vrot.slane %v2511, 5
      %v3150 = vsel %vm1253, %v3147, %v3149
      %v3151 = vrot.slane %v2512, 5
      %v3152 = vsel %vm1253, %v3149, %v3151
      %v3153 = vrot.slane %v2513, 5
      %v3154 = vsel %vm1253, %v3151, %v3153
      %v3155 = vrot.slane %v2514, 5
      %v3156 = vsel %vm1253, %v3153, %v3155
      %v3157 = vrot.slane %v2515, 5
      %v3158 = vsel %vm1253, %v3155, %v3157
      %v3159 = vrot.slane %v2516, 5
      %v3160 = vsel %vm1253, %v3157, %v3159
      %v3161 = vrot.slane %v2517, 5
      %v3162 = vsel %vm1253, %v3159, %v3161
      %v3163 = vrot.slane %v2518, 5
      %v3164 = vsel %vm1253, %v3161, %v3163
      %v3165 = vrot.slane %v2519, 5
      %v3166 = vsel %vm1253, %v3163, %v3165
      %v3167 = vrot.slane %v2520, 5
      %v3168 = vsel %vm1253, %v3165, %v3167
      %v3169 = vrot.slane %v2521, 5
      %v3170 = vsel %vm1253, %v3167, %v3169
      %v3171 = vrot.slane %v3135, 5
      %v3172 = vsel %vm1253, %v3169, %v3171
      %v3174 = vsel %vm414, %v3142, 0
      %v3177 = vsel %vm414, %v3144, 0
      %v3180 = vsel %vm414, %v3146, 0
      %v3183 = vsel %vm414, %v3148, 0
      %v3186 = vsel %vm414, %v3150, 0
      %v3189 = vsel %vm414, %v3152, 0
      %v3192 = vsel %vm414, %v3154, 0
      %v3195 = vsel %vm414, %v3156, 0
      %v3198 = vsel %vm414, %v3158, 0
      %v3201 = vsel %vm414, %v3160, 0
      %v3204 = vsel %vm414, %v3162, 0
      %v3207 = vsel %vm414, %v3164, 0
      %v3210 = vsel %vm414, %v3166, 0
      %v3213 = vsel %vm414, %v3168, 0
      %v3216 = vsel %vm414, %v3170, 0
      %v3219 = vsel %vm414, %v3172, 0
      %v3222 = vsel %vm767, %v3137, 0
      %3224 = vmatprep.subr.bf16.mxu0 0
      %3225 = vmatpush1.bf16.msra.mxu0 %v3222
      %3226 = vmatprep.subr.bf16.mxu0 0
      %3227 = vmatpush1.bf16.msra.mxu0 0
      %3228 = vmatprep.subr.bf16.mxu0 0
      %3229 = vmatpush1.bf16.msra.mxu0 0
      %3230 = vmatprep.subr.bf16.mxu0 0
      %3231 = vmatpush1.bf16.msra.mxu0 0
      %3232 = vmatprep.subr.bf16.mxu0 0
      %3233 = vmatpush1.bf16.msra.mxu0 0
      %3234 = vmatprep.subr.bf16.mxu0 0
      %3235 = vmatpush1.bf16.msra.mxu0 0
      %3236 = vmatprep.subr.bf16.mxu0 0
      %3237 = vmatpush1.bf16.msra.mxu0 0
      %3238 = vmatprep.subr.bf16.mxu0 0
      %3239 = vmatpush1.bf16.msra.mxu0 0
      %3240 = vmatprep.subr.bf16.mxu0 0
      %3241 = vmatpush1.bf16.msra.mxu0 0
      %3242 = vmatprep.subr.bf16.mxu0 0
      %3243 = vmatpush1.bf16.msra.mxu0 0
      %3244 = vmatprep.subr.bf16.mxu0 0
      %3245 = vmatpush1.bf16.msra.mxu0 0
      %3246 = vmatprep.subr.bf16.mxu0 0
      %3247 = vmatpush1.bf16.msra.mxu0 0
      %3248 = vmatprep.subr.bf16.mxu0 0
      %3249 = vmatpush1.bf16.msra.mxu0 0
      %3250 = vmatprep.subr.bf16.mxu0 0
      %3251 = vmatpush1.bf16.msra.mxu0 0
      %3252 = vmatprep.subr.bf16.mxu0 0
      %3253 = vmatpush1.bf16.msra.mxu0 0
      %3254 = vmatprep.subr.bf16.mxu0 0
      %3255 = vmatpush1.bf16.msra.mxu0 0
      %3256 = vmatprep.mubr.bf16.mxu0 0
      %3257 = vmatmul.mubr.bf16.gmra.mrb[0].mxu0 %v3174
      %v3258 = vpop.f32.mrb[0].mxu0
      %v3259 = vadd.f32 0.0, %v3258
      %v3260 = vpop.f32.mrb[0].mxu0
      %v3261 = vpop.f32.mrb[0].mxu0
      %v3262 = vadd.f32 0.0, %v3261
      %v3263 = vpop.f32.mrb[0].mxu0
      %3264 = vmatprep.mubr.bf16.mxu0 0
      %3265 = vmatmul.mubr.bf16.gmra.mrb[0].mxu0 %v3177
      %v3266 = vpop.f32.mrb[0].mxu0
      %v3267 = vadd.f32 0.0, %v3266
      %v3268 = vpop.f32.mrb[0].mxu0
      %v3269 = vpop.f32.mrb[0].mxu0
      %v3270 = vadd.f32 0.0, %v3269
      %v3271 = vpop.f32.mrb[0].mxu0
      %3272 = vmatprep.mubr.bf16.mxu0 0
      %3273 = vmatmul.mubr.bf16.gmra.mrb[0].mxu0 %v3180
      %v3274 = vpop.f32.mrb[0].mxu0
      %v3275 = vadd.f32 0.0, %v3274
      %v3276 = vpop.f32.mrb[0].mxu0
      %v3277 = vpop.f32.mrb[0].mxu0
      %v3278 = vadd.f32 0.0, %v3277
      %v3279 = vpop.f32.mrb[0].mxu0
      %3280 = vmatprep.mubr.bf16.mxu0 0
      %3281 = vmatmul.mubr.bf16.gmra.mrb[0].mxu0 %v3183
      %v3282 = vpop.f32.mrb[0].mxu0
      %v3283 = vadd.f32 0.0, %v3282
      %v3284 = vpop.f32.mrb[0].mxu0
      %v3285 = vpop.f32.mrb[0].mxu0
      %v3286 = vadd.f32 0.0, %v3285
      %v3287 = vpop.f32.mrb[0].mxu0
      %3288 = vmatprep.mubr.bf16.mxu0 0
      %3289 = vmatmul.mubr.bf16.gmra.mrb[0].mxu0 %v3186
      %v3290 = vpop.f32.mrb[0].mxu0
      %v3291 = vadd.f32 0.0, %v3290
      %v3292 = vpop.f32.mrb[0].mxu0
      %v3293 = vpop.f32.mrb[0].mxu0
      %v3294 = vadd.f32 0.0, %v3293
      %v3295 = vpop.f32.mrb[0].mxu0
      %3296 = vmatprep.mubr.bf16.mxu0 0
      %3297 = vmatmul.mubr.bf16.gmra.mrb[0].mxu0 %v3189
      %v3298 = vpop.f32.mrb[0].mxu0
      %v3299 = vadd.f32 0.0, %v3298
      %v3300 = vpop.f32.mrb[0].mxu0
      %v3301 = vpop.f32.mrb[0].mxu0
      %v3302 = vadd.f32 0.0, %v3301
      %v3303 = vpop.f32.mrb[0].mxu0
      %3304 = vmatprep.mubr.bf16.mxu0 0
      %3305 = vmatmul.mubr.bf16.gmra.mrb[0].mxu0 %v3192
      %v3306 = vpop.f32.mrb[0].mxu0
      %v3307 = vadd.f32 0.0, %v3306
      %v3308 = vpop.f32.mrb[0].mxu0
      %v3309 = vpop.f32.mrb[0].mxu0
      %v3310 = vadd.f32 0.0, %v3309
      %v3311 = vpop.f32.mrb[0].mxu0
      %3312 = vmatprep.mubr.bf16.mxu0 0
      %3313 = vmatmul.mubr.bf16.gmra.mrb[0].mxu0 %v3195
      %v3314 = vpop.f32.mrb[0].mxu0
      %v3315 = vadd.f32 0.0, %v3314
      %v3316 = vpop.f32.mrb[0].mxu0
      %v3317 = vpop.f32.mrb[0].mxu0
      %v3318 = vadd.f32 0.0, %v3317
      %v3319 = vpop.f32.mrb[0].mxu0
      %3320 = vmatprep.mubr.bf16.mxu0 0
      %3321 = vmatmul.mubr.bf16.gmra.mrb[0].mxu0 %v3198
      %v3322 = vpop.f32.mrb[0].mxu0
      %v3323 = vadd.f32 0.0, %v3322
      %v3324 = vpop.f32.mrb[0].mxu0
      %v3325 = vpop.f32.mrb[0].mxu0
      %v3326 = vadd.f32 0.0, %v3325
      %v3327 = vpop.f32.mrb[0].mxu0
      %3328 = vmatprep.mubr.bf16.mxu0 0
      %3329 = vmatmul.mubr.bf16.gmra.mrb[0].mxu0 %v3201
      %v3330 = vpop.f32.mrb[0].mxu0
      %v3331 = vadd.f32 0.0, %v3330
      %v3332 = vpop.f32.mrb[0].mxu0
      %v3333 = vpop.f32.mrb[0].mxu0
      %v3334 = vadd.f32 0.0, %v3333
      %v3335 = vpop.f32.mrb[0].mxu0
      %3336 = vmatprep.mubr.bf16.mxu0 0
      %3337 = vmatmul.mubr.bf16.gmra.mrb[0].mxu0 %v3204
      %v3338 = vpop.f32.mrb[0].mxu0
      %v3339 = vadd.f32 0.0, %v3338
      %v3340 = vpop.f32.mrb[0].mxu0
      %v3341 = vpop.f32.mrb[0].mxu0
      %v3342 = vadd.f32 0.0, %v3341
      %v3343 = vpop.f32.mrb[0].mxu0
      %3344 = vmatprep.mubr.bf16.mxu0 0
      %3345 = vmatmul.mubr.bf16.gmra.mrb[0].mxu0 %v3207
      %v3346 = vpop.f32.mrb[0].mxu0
      %v3347 = vadd.f32 0.0, %v3346
      %v3348 = vpop.f32.mrb[0].mxu0
      %v3349 = vpop.f32.mrb[0].mxu0
      %v3350 = vadd.f32 0.0, %v3349
      %v3351 = vpop.f32.mrb[0].mxu0
      %3352 = vmatprep.mubr.bf16.mxu0 0
      %3353 = vmatmul.mubr.bf16.gmra.mrb[0].mxu0 %v3210
      %v3354 = vpop.f32.mrb[0].mxu0
      %v3355 = vadd.f32 0.0, %v3354
      %v3356 = vpop.f32.mrb[0].mxu0
      %v3357 = vpop.f32.mrb[0].mxu0
      %v3358 = vadd.f32 0.0, %v3357
      %v3359 = vpop.f32.mrb[0].mxu0
      %3360 = vmatprep.mubr.bf16.mxu0 0
      %3361 = vmatmul.mubr.bf16.gmra.mrb[0].mxu0 %v3213
      %v3362 = vpop.f32.mrb[0].mxu0
      %v3363 = vadd.f32 0.0, %v3362
      %v3364 = vpop.f32.mrb[0].mxu0
      %v3365 = vpop.f32.mrb[0].mxu0
      %v3366 = vadd.f32 0.0, %v3365
      %v3367 = vpop.f32.mrb[0].mxu0
      %3368 = vmatprep.mubr.bf16.mxu0 0
      %3369 = vmatmul.mubr.bf16.gmra.mrb[0].mxu0 %v3216
      %v3370 = vpop.f32.mrb[0].mxu0
      %v3371 = vadd.f32 0.0, %v3370
      %v3372 = vpop.f32.mrb[0].mxu0
      %v3373 = vpop.f32.mrb[0].mxu0
      %v3374 = vadd.f32 0.0, %v3373
      %v3375 = vpop.f32.mrb[0].mxu0
      %3376 = vmatprep.mubr.bf16.mxu0 0
      %3377 = vmatmul.mubr.bf16.gmra.mrb[0].mxu0 %v3219
      %v3378 = vpop.f32.mrb[0].mxu0
      %v3379 = vadd.f32 0.0, %v3378
      %v3380 = vpop.f32.mrb[0].mxu0
      %v3381 = vpop.f32.mrb[0].mxu0
      %v3382 = vadd.f32 0.0, %v3381
      %v3383 = vpop.f32.mrb[0].mxu0
      %3384 = vdwg.mxu0
      %v3385 = vsel %vm618, %v3259, 0.0
      %v3386 = vsel %vm619, %v3262, 0.0
      %v3387 = vsel %vm620, %v3267, 0.0
      %v3388 = vsel %vm621, %v3270, 0.0
      %v3389 = vsel %vm622, %v3275, 0.0
      %v3390 = vsel %vm623, %v3278, 0.0
      %v3391 = vsel %vm624, %v3283, 0.0
      %v3392 = vsel %vm625, %v3286, 0.0
      %v3393 = vsel %vm626, %v3291, 0.0
      %v3394 = vsel %vm627, %v3294, 0.0
      %v3395 = vsel %vm628, %v3299, 0.0
      %v3396 = vsel %vm629, %v3302, 0.0
      %v3397 = vsel %vm630, %v3307, 0.0
      %v3398 = vsel %vm631, %v3310, 0.0
      %v3399 = vsel %vm632, %v3315, 0.0
      %v3400 = vsel %vm633, %v3318, 0.0
      %v3401 = vsel %vm634, %v3323, 0.0
      %v3402 = vsel %vm635, %v3326, 0.0
      %v3403 = vsel %vm636, %v3331, 0.0
      %v3404 = vsel %vm637, %v3334, 0.0
      %v3405 = vsel %vm638, %v3339, 0.0
      %v3406 = vsel %vm639, %v3342, 0.0
      %v3407 = vsel %vm640, %v3347, 0.0
      %v3408 = vsel %vm641, %v3350, 0.0
      %v3409 = vsel %vm642, %v3355, 0.0
      %v3410 = vsel %vm643, %v3358, 0.0
      %v3411 = vsel %vm644, %v3363, 0.0
      %v3412 = vsel %vm645, %v3366, 0.0
      %v3413 = vsel %vm646, %v3371, 0.0
      %v3414 = vsel %vm647, %v3374, 0.0
      %v3415 = vsel %vm648, %v3379, 0.0
      %v3416 = vsel %vm649, %v3382, 0.0
      %v3417 = vadd.f32 %v3102, %v3385
      %v3418 = vadd.f32 %v3103, %v3386
      %v3419 = vadd.f32 %v3104, %v3387
      %v3420 = vadd.f32 %v3105, %v3388
      %v3421 = vadd.f32 %v3106, %v3389
      %v3422 = vadd.f32 %v3107, %v3390
      %v3423 = vadd.f32 %v3108, %v3391
      %v3424 = vadd.f32 %v3109, %v3392
      %v3425 = vadd.f32 %v3110, %v3393
      %v3426 = vadd.f32 %v3111, %v3394
      %v3427 = vadd.f32 %v3112, %v3395
      %v3428 = vadd.f32 %v3113, %v3396
      %v3429 = vadd.f32 %v3114, %v3397
      %v3430 = vadd.f32 %v3115, %v3398
      %v3431 = vadd.f32 %v3116, %v3399
      %v3432 = vadd.f32 %v3117, %v3400
      %v3433 = vadd.f32 %v3118, %v3401
      %v3434 = vadd.f32 %v3119, %v3402
      %v3435 = vadd.f32 %v3120, %v3403
      %v3436 = vadd.f32 %v3121, %v3404
      %v3437 = vadd.f32 %v3122, %v3405
      %v3438 = vadd.f32 %v3123, %v3406
      %v3439 = vadd.f32 %v3124, %v3407
      %v3440 = vadd.f32 %v3125, %v3408
      %v3441 = vadd.f32 %v3126, %v3409
      %v3442 = vadd.f32 %v3127, %v3410
      %v3443 = vadd.f32 %v3128, %v3411
      %v3444 = vadd.f32 %v3129, %v3412
      %v3445 = vadd.f32 %v3130, %v3413
      %v3446 = vadd.f32 %v3131, %v3414
      %v3447 = vadd.f32 %v3132, %v3415
      %v3448 = vadd.f32 %v3133, %v3416
      %v3449 = vpack.c.bf16 %v3418, %v3417
      %v3450 = vpack.c.bf16 %v3420, %v3419
      %v3451 = vpack.c.bf16 %v3422, %v3421
      %v3452 = vpack.c.bf16 %v3424, %v3423
      %v3453 = vpack.c.bf16 %v3426, %v3425
      %v3454 = vpack.c.bf16 %v3428, %v3427
      %v3455 = vpack.c.bf16 %v3430, %v3429
      %v3456 = vpack.c.bf16 %v3432, %v3431
      %v3457 = vpack.c.bf16 %v3434, %v3433
      %v3458 = vpack.c.bf16 %v3436, %v3435
      %v3459 = vpack.c.bf16 %v3438, %v3437
      %v3460 = vpack.c.bf16 %v3440, %v3439
      %v3461 = vpack.c.bf16 %v3442, %v3441
      %v3462 = vpack.c.bf16 %v3444, %v3443
      %v3463 = vpack.c.bf16 %v3446, %v3445
      %v3464 = vpack.c.bf16 %v3448, %v3447
      %v3481 = vunpack.c.l.b16 %v3449
      %v3482 = vunpack.c.h.b16 %v3449
      %v3483 = vunpack.c.l.b16 %v3450
      %v3484 = vunpack.c.h.b16 %v3450
      %v3485 = vunpack.c.l.b16 %v3451
      %v3486 = vunpack.c.h.b16 %v3451
      %v3487 = vunpack.c.l.b16 %v3452
      %v3488 = vunpack.c.h.b16 %v3452
      %v3489 = vunpack.c.l.b16 %v3453
      %v3490 = vunpack.c.h.b16 %v3453
      %v3491 = vunpack.c.l.b16 %v3454
      %v3492 = vunpack.c.h.b16 %v3454
      %v3493 = vunpack.c.l.b16 %v3455
      %v3494 = vunpack.c.h.b16 %v3455
      %v3495 = vunpack.c.l.b16 %v3456
      %v3496 = vunpack.c.h.b16 %v3456
      %v3497 = vunpack.c.l.b16 %v3457
      %v3498 = vunpack.c.h.b16 %v3457
      %v3499 = vunpack.c.l.b16 %v3458
      %v3500 = vunpack.c.h.b16 %v3458
      %v3501 = vunpack.c.l.b16 %v3459
      %v3502 = vunpack.c.h.b16 %v3459
      %v3503 = vunpack.c.l.b16 %v3460
      %v3504 = vunpack.c.h.b16 %v3460
      %v3505 = vunpack.c.l.b16 %v3461
      %v3506 = vunpack.c.h.b16 %v3461
      %v3507 = vunpack.c.l.b16 %v3462
      %v3508 = vunpack.c.h.b16 %v3462
      %v3509 = vunpack.c.l.b16 %v3463
      %v3510 = vunpack.c.h.b16 %v3463
      %v3511 = vunpack.c.l.b16 %v3464
      %v3512 = vunpack.c.h.b16 %v3464
      %v3513 = vpack.c.b16 %v3481, %v3481
      %v3514 = vpack.c.b16 %v3482, %v3482
      %v3515 = vpack.c.b16 %v3483, %v3483
      %v3516 = vpack.c.b16 %v3484, %v3484
      %v3517 = vpack.c.b16 %v3485, %v3485
      %v3518 = vpack.c.b16 %v3486, %v3486
      %v3519 = vpack.c.b16 %v3487, %v3487
      %v3520 = vpack.c.b16 %v3488, %v3488
      %v3521 = vpack.c.b16 %v3489, %v3489
      %v3522 = vpack.c.b16 %v3490, %v3490
      %v3523 = vpack.c.b16 %v3491, %v3491
      %v3524 = vpack.c.b16 %v3492, %v3492
      %v3525 = vpack.c.b16 %v3493, %v3493
      %v3526 = vpack.c.b16 %v3494, %v3494
      %v3527 = vpack.c.b16 %v3495, %v3495
      %v3528 = vpack.c.b16 %v3496, %v3496
      %v3529 = vpack.c.b16 %v3497, %v3497
      %v3530 = vpack.c.b16 %v3498, %v3498
      %v3531 = vpack.c.b16 %v3499, %v3499
      %v3532 = vpack.c.b16 %v3500, %v3500
      %v3533 = vpack.c.b16 %v3501, %v3501
      %v3534 = vpack.c.b16 %v3502, %v3502
      %v3535 = vpack.c.b16 %v3503, %v3503
      %v3536 = vpack.c.b16 %v3504, %v3504
      %v3537 = vpack.c.b16 %v3505, %v3505
      %v3538 = vpack.c.b16 %v3506, %v3506
      %v3539 = vpack.c.b16 %v3507, %v3507
      %v3540 = vpack.c.b16 %v3508, %v3508
      %v3541 = vpack.c.b16 %v3509, %v3509
      %v3542 = vpack.c.b16 %v3510, %v3510
      %v3543 = vpack.c.b16 %v3511, %v3511
      %v3544 = vpack.c.b16 %v3512, %v3512
      %3577 = vst.msk [vmem:[%s233] sm:$0xf] %vm417, %v3513
      %3578 = vst.msk [vmem:[%s233 + $0x4] sm:$0xf] %vm417, %v3514
      %3579 = vst.msk [vmem:[%s233 + $0x8] sm:$0xf] %vm417, %v3515
      %3580 = vst.msk [vmem:[%s233 + $0xc] sm:$0xf] %vm417, %v3516
      %3581 = vst.msk [vmem:[%s233 + $0x10] sm:$0xf] %vm417, %v3517
      %3582 = vst.msk [vmem:[%s233 + $0x14] sm:$0xf] %vm417, %v3518
      %3583 = vst.msk [vmem:[%s233 + $0x18] sm:$0xf] %vm417, %v3519
      %3584 = vst.msk [vmem:[%s233 + $0x1c] sm:$0xf] %vm417, %v3520
      %3585 = vst.msk [vmem:[%s233 + $0x20] sm:$0xf] %vm417, %v3521
      %3586 = vst.msk [vmem:[%s233 + $0x24] sm:$0xf] %vm417, %v3522
      %3587 = vst.msk [vmem:[%s233 + $0x28] sm:$0xf] %vm417, %v3523
      %3588 = vst.msk [vmem:[%s233 + $0x2c] sm:$0xf] %vm417, %v3524
      %3589 = vst.msk [vmem:[%s233 + $0x30] sm:$0xf] %vm417, %v3525
      %3590 = vst.msk [vmem:[%s233 + $0x34] sm:$0xf] %vm417, %v3526
      %3591 = vst.msk [vmem:[%s233 + $0x38] sm:$0xf] %vm417, %v3527
      %3592 = vst.msk [vmem:[%s233 + $0x3c] sm:$0xf] %vm417, %v3528
      %3593 = vst.msk [vmem:[%s233 + $0x40] sm:$0xf] %vm417, %v3529
      %3594 = vst.msk [vmem:[%s233 + $0x44] sm:$0xf] %vm417, %v3530
      %3595 = vst.msk [vmem:[%s233 + $0x48] sm:$0xf] %vm417, %v3531
      %3596 = vst.msk [vmem:[%s233 + $0x4c] sm:$0xf] %vm417, %v3532
      %3597 = vst.msk [vmem:[%s233 + $0x50] sm:$0xf] %vm417, %v3533
      %3598 = vst.msk [vmem:[%s233 + $0x54] sm:$0xf] %vm417, %v3534
      %3599 = vst.msk [vmem:[%s233 + $0x58] sm:$0xf] %vm417, %v3535
      %3600 = vst.msk [vmem:[%s233 + $0x5c] sm:$0xf] %vm417, %v3536
      %3601 = vst.msk [vmem:[%s233 + $0x60] sm:$0xf] %vm417, %v3537
      %3602 = vst.msk [vmem:[%s233 + $0x64] sm:$0xf] %vm417, %v3538
      %3603 = vst.msk [vmem:[%s233 + $0x68] sm:$0xf] %vm417, %v3539
      %3604 = vst.msk [vmem:[%s233 + $0x6c] sm:$0xf] %vm417, %v3540
      %3605 = vst.msk [vmem:[%s233 + $0x70] sm:$0xf] %vm417, %v3541
      %3606 = vst.msk [vmem:[%s233 + $0x74] sm:$0xf] %vm417, %v3542
      %3607 = vst.msk [vmem:[%s233 + $0x78] sm:$0xf] %vm417, %v3543
      %3608 = vst.msk [vmem:[%s233 + $0x7c] sm:$0xf] %vm417, %v3544
      %v3609 = vsel %vm414, %v3417, 0.0
      %v3610 = vsel %vm414, %v3418, 0.0
      %v3611 = vadd.f32 %v3609, %v3610
      %v3612 = vsel %vm414, %v3419, 0.0
      %v3613 = vadd.f32 %v3611, %v3612
      %v3614 = vsel %vm414, %v3420, 0.0
      %v3615 = vadd.f32 %v3613, %v3614
      %v3616 = vsel %vm414, %v3421, 0.0
      %v3617 = vadd.f32 %v3615, %v3616
      %v3618 = vsel %vm414, %v3422, 0.0
      %v3619 = vadd.f32 %v3617, %v3618
      %v3620 = vsel %vm414, %v3423, 0.0
      %v3621 = vadd.f32 %v3619, %v3620
      %v3622 = vsel %vm414, %v3424, 0.0
      %v3623 = vadd.f32 %v3621, %v3622
      %v3624 = vsel %vm414, %v3425, 0.0
      %v3625 = vadd.f32 %v3623, %v3624
      %v3626 = vsel %vm414, %v3426, 0.0
      %v3627 = vadd.f32 %v3625, %v3626
      %v3628 = vsel %vm414, %v3427, 0.0
      %v3629 = vadd.f32 %v3627, %v3628
      %v3630 = vsel %vm414, %v3428, 0.0
      %v3631 = vadd.f32 %v3629, %v3630
      %v3632 = vsel %vm414, %v3429, 0.0
      %v3633 = vadd.f32 %v3631, %v3632
      %v3634 = vsel %vm414, %v3430, 0.0
      %v3635 = vadd.f32 %v3633, %v3634
      %v3636 = vsel %vm414, %v3431, 0.0
      %v3637 = vadd.f32 %v3635, %v3636
      %v3638 = vsel %vm414, %v3432, 0.0
      %v3639 = vadd.f32 %v3637, %v3638
      %v3640 = vsel %vm414, %v3433, 0.0
      %v3641 = vadd.f32 %v3639, %v3640
      %v3642 = vsel %vm414, %v3434, 0.0
      %v3643 = vadd.f32 %v3641, %v3642
      %v3644 = vsel %vm414, %v3435, 0.0
      %v3645 = vadd.f32 %v3643, %v3644
      %v3646 = vsel %vm414, %v3436, 0.0
      %v3647 = vadd.f32 %v3645, %v3646
      %v3648 = vsel %vm414, %v3437, 0.0
      %v3649 = vadd.f32 %v3647, %v3648
      %v3650 = vsel %vm414, %v3438, 0.0
      %v3651 = vadd.f32 %v3649, %v3650
      %v3652 = vsel %vm414, %v3439, 0.0
      %v3653 = vadd.f32 %v3651, %v3652
      %v3654 = vsel %vm414, %v3440, 0.0
      %v3655 = vadd.f32 %v3653, %v3654
      %v3656 = vsel %vm414, %v3441, 0.0
      %v3657 = vadd.f32 %v3655, %v3656
      %v3658 = vsel %vm414, %v3442, 0.0
      %v3659 = vadd.f32 %v3657, %v3658
      %v3660 = vsel %vm414, %v3443, 0.0
      %v3661 = vadd.f32 %v3659, %v3660
      %v3662 = vsel %vm414, %v3444, 0.0
      %v3663 = vadd.f32 %v3661, %v3662
      %v3664 = vsel %vm414, %v3445, 0.0
      %v3665 = vadd.f32 %v3663, %v3664
      %v3666 = vsel %vm414, %v3446, 0.0
      %v3667 = vadd.f32 %v3665, %v3666
      %v3668 = vsel %vm414, %v3447, 0.0
      %v3669 = vadd.f32 %v3667, %v3668
      %v3670 = vsel %vm414, %v3448, 0.0
      %v3671 = vadd.f32 %v3669, %v3670
      %v3672 = vrot.slane %v3671, 4
      %v3673 = vadd.f32 %v3671, %v3672
      %v3674 = vrot.slane %v3673, 2
      %v3675 = vadd.f32 %v3673, %v3674
      %v3676 = vrot.slane %v3675, 1
      %v3677 = vadd.f32 %v3675, %v3676
      %v3678 = vmul.f32 %v3417, %v3417
      %v3679 = vmul.f32 %v3418, %v3418
      %v3680 = vmul.f32 %v3419, %v3419
      %v3681 = vmul.f32 %v3420, %v3420
      %v3682 = vmul.f32 %v3421, %v3421
      %v3683 = vmul.f32 %v3422, %v3422
      %v3684 = vmul.f32 %v3423, %v3423
      %v3685 = vmul.f32 %v3424, %v3424
      %v3686 = vmul.f32 %v3425, %v3425
      %v3687 = vmul.f32 %v3426, %v3426
      %v3688 = vmul.f32 %v3427, %v3427
      %v3689 = vmul.f32 %v3428, %v3428
      %v3690 = vmul.f32 %v3429, %v3429
      %v3691 = vmul.f32 %v3430, %v3430
      %v3692 = vmul.f32 %v3431, %v3431
      %v3693 = vmul.f32 %v3432, %v3432
      %v3694 = vmul.f32 %v3433, %v3433
      %v3695 = vmul.f32 %v3434, %v3434
      %v3696 = vmul.f32 %v3435, %v3435
      %v3697 = vmul.f32 %v3436, %v3436
      %v3698 = vmul.f32 %v3437, %v3437
      %v3699 = vmul.f32 %v3438, %v3438
      %v3700 = vmul.f32 %v3439, %v3439
      %v3701 = vmul.f32 %v3440, %v3440
      %v3702 = vmul.f32 %v3441, %v3441
      %v3703 = vmul.f32 %v3442, %v3442
      %v3704 = vmul.f32 %v3443, %v3443
      %v3705 = vmul.f32 %v3444, %v3444
      %v3706 = vmul.f32 %v3445, %v3445
      %v3707 = vmul.f32 %v3446, %v3446
      %v3708 = vmul.f32 %v3447, %v3447
      %v3709 = vmul.f32 %v3448, %v3448
      %v3710 = vsel %vm414, %v3678, 0.0
      %v3711 = vsel %vm414, %v3679, 0.0
      %v3712 = vadd.f32 %v3710, %v3711
      %v3713 = vsel %vm414, %v3680, 0.0
      %v3714 = vadd.f32 %v3712, %v3713
      %v3715 = vsel %vm414, %v3681, 0.0
      %v3716 = vadd.f32 %v3714, %v3715
      %v3717 = vsel %vm414, %v3682, 0.0
      %v3718 = vadd.f32 %v3716, %v3717
      %v3719 = vsel %vm414, %v3683, 0.0
      %v3720 = vadd.f32 %v3718, %v3719
      %v3721 = vsel %vm414, %v3684, 0.0
      %v3722 = vadd.f32 %v3720, %v3721
      %v3723 = vsel %vm414, %v3685, 0.0
      %v3724 = vadd.f32 %v3722, %v3723
      %v3725 = vsel %vm414, %v3686, 0.0
      %v3726 = vadd.f32 %v3724, %v3725
      %v3727 = vsel %vm414, %v3687, 0.0
      %v3728 = vadd.f32 %v3726, %v3727
      %v3729 = vsel %vm414, %v3688, 0.0
      %v3730 = vadd.f32 %v3728, %v3729
      %v3731 = vsel %vm414, %v3689, 0.0
      %v3732 = vadd.f32 %v3730, %v3731
      %v3733 = vsel %vm414, %v3690, 0.0
      %v3734 = vadd.f32 %v3732, %v3733
      %v3735 = vsel %vm414, %v3691, 0.0
      %v3736 = vadd.f32 %v3734, %v3735
      %v3737 = vsel %vm414, %v3692, 0.0
      %v3738 = vadd.f32 %v3736, %v3737
      %v3739 = vsel %vm414, %v3693, 0.0
      %v3740 = vadd.f32 %v3738, %v3739
      %v3741 = vsel %vm414, %v3694, 0.0
      %v3742 = vadd.f32 %v3740, %v3741
      %v3743 = vsel %vm414, %v3695, 0.0
      %v3744 = vadd.f32 %v3742, %v3743
      %v3745 = vsel %vm414, %v3696, 0.0
      %v3746 = vadd.f32 %v3744, %v3745
      %v3747 = vsel %vm414, %v3697, 0.0
      %v3748 = vadd.f32 %v3746, %v3747
      %v3749 = vsel %vm414, %v3698, 0.0
      %v3750 = vadd.f32 %v3748, %v3749
      %v3751 = vsel %vm414, %v3699, 0.0
      %v3752 = vadd.f32 %v3750, %v3751
      %v3753 = vsel %vm414, %v3700, 0.0
      %v3754 = vadd.f32 %v3752, %v3753
      %v3755 = vsel %vm414, %v3701, 0.0
      %v3756 = vadd.f32 %v3754, %v3755
      %v3757 = vsel %vm414, %v3702, 0.0
      %v3758 = vadd.f32 %v3756, %v3757
      %v3759 = vsel %vm414, %v3703, 0.0
      %v3760 = vadd.f32 %v3758, %v3759
      %v3761 = vsel %vm414, %v3704, 0.0
      %v3762 = vadd.f32 %v3760, %v3761
      %v3763 = vsel %vm414, %v3705, 0.0
      %v3764 = vadd.f32 %v3762, %v3763
      %v3765 = vsel %vm414, %v3706, 0.0
      %v3766 = vadd.f32 %v3764, %v3765
      %v3767 = vsel %vm414, %v3707, 0.0
      %v3768 = vadd.f32 %v3766, %v3767
      %v3769 = vsel %vm414, %v3708, 0.0
      %v3770 = vadd.f32 %v3768, %v3769
      %v3771 = vsel %vm414, %v3709, 0.0
      %v3772 = vadd.f32 %v3770, %v3771
      %v3773 = vrot.slane %v3772, 4
      %v3774 = vadd.f32 %v3772, %v3773
      %v3775 = vrot.slane %v3774, 2
      %v3776 = vadd.f32 %v3774, %v3775
      %v3777 = vrot.slane %v3776, 1
      %v3778 = vadd.f32 %v3776, %v3777
      %vm3779 = vcmp.eq.s32.totalorder %v522, 0
      %vm3780 = vcmp.eq.s32.totalorder %v522, 1
      %v3781 = vsel %vm3780, %v3778, 0.0
      %v3782 = vsel %vm3779, %v3677, %v3781
      %3783 = vst.msk [vmem:[%s238] sm:$0xff] %vm414, %v3782
      %s3784 = smul.u32 32, %s17
      %p3785 = scmp.lt.s32.totalorder %s3784, 63
      %s3786 = scalar_select %p3785, %s3784, 63
      %s3787 = smul.addr %s3786, 4
      %s3788 = scalar_lea.vmem %s4, %s3787
      %p3789 = scmp.lt.s32.totalorder %s17, 1
      %s3790 = scalar_select %p3789, %s17, 1
      %s3791 = smul.addr %s3790, 8
      %s3792 = scalar_lea.vmem %s5, %s3791
      // Predicated region
      $region37: #{bottleneck_forward.5} parent=35 // pred_check
        %p3793 = pneg %p124
      $region38: #{bottleneck_forward.5} parent=35 // pred_check_branch
        %3795 = sbr.rel (%p3793) target = $region40
      $region39: #{bottleneck_forward.5} parent=35 // pred_region
        %s3796 = smul.u32 32, %s17
      $region40: #{bottleneck_forward.5} parent=35 // pred_fallthru
        _
      // Predicated region
      $region41: #{bottleneck_forward.5} parent=35 // pred_check
        %p3797 = pneg %p150
      $region42: #{bottleneck_forward.5} parent=35 // pred_check_branch
        %3799 = sbr.rel (%p3797) target = $region44
      $region43: #{bottleneck_forward.5} parent=35 // pred_region
        _
      $region44: #{bottleneck_forward.5} parent=35 // pred_fallthru
        _
    $region36: #{bottleneck_forward.5} parent=5 // pred_fallthru
      _
    %p3800 = scmp.le.s32.totalorder 2, %s12
    // Predicated region
    $region45: #{bottleneck_forward.5} parent=5 // pred_check
      %p3801 = pneg %p3800
    $region46: #{bottleneck_forward.5} parent=5 // pred_check_branch
      %3803 = sbr.rel (%p3801) target = $region48
    $region47: #{bottleneck_forward.5} parent=5 // pred_region
      %s3804 = ssub.s32 %s12, 2
      // Predicated region
      $region49: #{bottleneck_forward.5} parent=47 // pred_check
        %p3805 = pneg %p130
      $region50: #{bottleneck_forward.5} parent=47 // pred_check_branch
        %3807 = sbr.rel (%p3805) target = $region52
      $region51: #{bottleneck_forward.5} parent=47 // pred_region
        %s3808 = smul.u32 32, %s18
        %p3809 = scmp.lt.s32.totalorder %s3808, 63
        %s3810 = scalar_select %p3809, %s3808, 63
        %s3811 = smul.addr %s3810, 4
        %s3812 = scalar_lea.vmem %s4, %s3811
      $region52: #{bottleneck_forward.5} parent=47 // pred_fallthru
        _
      // Predicated region
      $region53: #{bottleneck_forward.5} parent=47 // pred_check
        %p3813 = pneg %p156
      $region54: #{bottleneck_forward.5} parent=47 // pred_check_branch
        %3815 = sbr.rel (%p3813) target = $region56
      $region55: #{bottleneck_forward.5} parent=47 // pred_region
        %p3816 = scmp.lt.s32.totalorder %s18, 1
        %s3817 = scalar_select %p3816, %s18, 1
        %s3818 = smul.addr %s3817, 8
        %s3819 = scalar_lea.vmem %s5, %s3818
      $region56: #{bottleneck_forward.5} parent=47 // pred_fallthru
        _
    $region48: #{bottleneck_forward.5} parent=5 // pred_fallthru
      _
  $region6: #{bottleneck_forward.5} parent=0 // loop_footer
    %s16 = sadd.s32 1, %s12
  $region7: #{bottleneck_forward.5} parent=0 // loop_footer_branch
    %11 = sbr.rel target = $region3
  $region8: #{bottleneck_forward.5} parent=0 // loop_exit
    _

</llo_original>
